<compile_context>
chip_gen: v7x
topology: tpu7x:2x2x1
jax: 0.10.0
libtpu: 0.0.40
codegen_flags: <defaults>
</compile_context>

<pallas_src>
import functools

import numpy as np

import jax
import jax.numpy as jnp
from jax.experimental import pallas as pl
from jax.experimental.pallas import tpu as pltpu  # noqa: F401  (kept for TPU-specific extensions)
from jax.scipy.special import logsumexp


# ------------------------- fused forward kernel -------------------------

def make_forward_kernel(layer_cfgs, n_per_branch, sigma):
    """layer_cfgs: tuple of (out_channels, out_length, padded_feat) per layer."""
    n_layers = len(layer_cfgs)
    N = n_per_branch  # rows [0:N) = q branch, rows [N:2N) = k branch

    def kernel(*refs):
        x_ref, adj_ref, noise_ref = refs[:3]
        proj_ref, pred_ref = refs[-2:]
        p = refs[3:-2]

        def per_branch(fn, h):
            # Apply fn independently to the q rows and the k rows (exact
            # per-branch training-mode BatchNorm statistics).
            return jnp.concatenate([fn(h[:N]), fn(h[N:])], axis=0)

        def feat_bn_relu(h, gamma, beta):
            # BatchNorm1d over features (per branch, biased var) + ReLU.
            def norm(hb):
                m = jnp.mean(hb, axis=0, keepdims=True)
                v = jnp.maximum(jnp.mean(hb * hb, axis=0, keepdims=True) - m * m, 0.0)
                return jnp.maximum(
                    (hb - m) * jax.lax.rsqrt(v + 1e-5) * gamma + beta, 0.0)
            return per_branch(norm, h)

        def mlp(inp, w1, b1, g, b, w2, b2):
            # Linear -> BatchNorm1d -> ReLU -> Linear  (padded hidden cols are 0).
            h = jnp.dot(inp.astype(jnp.bfloat16), w1[...],
                        preferred_element_type=jnp.float32) + b1[...]
            h = feat_bn_relu(h, g[...], b[...])
            return jnp.dot(h.astype(jnp.bfloat16), w2[...],
                           preferred_element_type=jnp.float32) + b2[...]

        x = x_ref[...]            # (2N, Din)  f32, channel-major flat
        adj = adj_ref[...]        # (2N, 2N)   f32, block_diag(adj, adj)

        idx = 0
        for li in range(n_layers):
            _c, lout, _f_pad = layer_cfgs[li]
            (wconv, bconv, g_mat, gt_mat, gamma_c, beta_c,
             gw, gb, ggcn, bgcn) = p[idx:idx + 10]
            idx += 10

            # Conv1d folded into one dense channel-major matmul.
            y = jnp.dot(x.astype(jnp.bfloat16), wconv[...],
                        preferred_element_type=jnp.float32) + bconv[...]   # (2N, Fpad)

            # BatchNorm1d over (nodes, length) per channel per branch + ReLU.
            # Reduce over rows first (XLU), then tiny grouping matmuls,
            # then fold the affine into a single y*a + b.
            inv_cnt = 1.0 / float(N * lout)

            def conv_bn_branch(yb):
                s1 = jnp.sum(yb, axis=0, keepdims=True)          # (1, Fpad)
                s2 = jnp.sum(yb * yb, axis=0, keepdims=True)     # (1, Fpad)
                rs = jnp.dot(s1, g_mat[...], preferred_element_type=jnp.float32)   # (1, C)
                rss = jnp.dot(s2, g_mat[...], preferred_element_type=jnp.float32)  # (1, C)
                mu = rs * inv_cnt
                var = jnp.maximum(rss * inv_cnt - mu * mu, 0.0)
                a = jax.lax.rsqrt(var + 1e-5) * gamma_c[...]      # (1, C)
                bsh = beta_c[...] - mu * a                        # (1, C)
                a_f = jnp.dot(a, gt_mat[...], preferred_element_type=jnp.float32)    # (1, Fpad)
                b_f = jnp.dot(bsh, gt_mat[...], preferred_element_type=jnp.float32)  # (1, Fpad)
                return jnp.maximum(yb * a_f + b_f, 0.0)           # padded cols -> 0

            y = per_branch(conv_bn_branch, y)

            # GraphConvolution: block_diag(adj,adj) @ (y @ W) + b, then BN + ReLU.
            sup = jnp.dot(y.astype(jnp.bfloat16), gw[...],
                          preferred_element_type=jnp.float32)     # (2N, Fpad)
            z = jnp.dot(adj, sup, preferred_element_type=jnp.float32) + gb[...]
            x = feat_bn_relu(z, ggcn[...], bgcn[...])

        # Projector, then predictor on the noise-perturbed projection.
        proj = mlp(x, *p[idx:idx + 6]); idx += 6
        proj_ref[...] = proj
        noisy = proj + noise_ref[...] * sigma
        pred_ref[...] = mlp(noisy, *p[idx:idx + 6])

    return kernel


def fused_net_forward(prep, x2, adj2, noise2, sigma):
    """Single pallas_call: encoder + projector + predictor for both branches."""
    two_n = x2.shape[0]
    n = two_n // 2
    f_pad = prep["out_dim_pad"]

    kern = make_forward_kernel(prep["cfgs"], n, sigma)

    # No grid: one invocation, everything lives in VMEM (full-array specs by
    # default).  No pipeline => no double buffering of the constant weights.
    return pl.pallas_call(
        kern,
        out_shape=(jax.ShapeDtypeStruct((two_n, f_pad), jnp.float32),
                   jax.ShapeDtypeStruct((two_n, f_pad), jnp.float32)),
    )(x2, adj2, noise2, *prep["flat"])


# ------------------------- parameter preparation -------------------------

def _round128(n):
    return ((int(n) + 127) // 128) * 128


def conv_dense_matrix(w, lin):
    """Fold a Conv1d weight (Cout, Cin, K) into a dense channel-major matrix
    (Cin*Lin, Cout*Lout): y_flat = x_flat @ M."""
    w = np.asarray(w, dtype=np.float32)
    cout, cin, k = w.shape
    lout = lin - k + 1
    m = np.zeros((cin, lin, cout, lout), np.float32)
    for kk in range(k):
        for ll in range(lout):
            m[:, ll + kk, :, ll] = w[:, :, kk].T       # (Cin, Cout)
    return m.reshape(cin * lin, cout * lout)


def prepare_params(params, in_dim):
    """Flatten / pre-transform / 128-pad params into the kernel's input order."""
    flat, cfgs = [], []
    lin = in_dim
    in_flat = in_dim          # real width of the flattened layer input
    in_flat_pad = in_dim      # padded width of the layer input (layer 1: raw x)
    for lp in params["encoder"]["layers"]:
        cout, cin, k = (int(s) for s in lp["conv_w"].shape)
        lout = lin - k + 1
        f = cout * lout
        f_pad = _round128(f)

        wdense = conv_dense_matrix(lp["conv_w"], lin)                       # (cin*lin, f)
        wdense = np.pad(wdense, ((0, in_flat_pad - cin * lin), (0, f_pad - f)))
        bconv = np.zeros((1, f_pad), np.float32)
        bconv[0, :f] = np.repeat(np.asarray(lp["conv_b"], np.float32), lout)

        # 0/1 grouping matrices (flat position <-> channel); zero rows/cols on pads.
        g = np.zeros((f_pad, cout), np.float32)
        g[:f, :] = np.kron(np.eye(cout, dtype=np.float32),
                           np.ones((lout, 1), np.float32))
        gt = np.ascontiguousarray(g.T)

        gamma_c = np.asarray(lp["bn_cnn_g"], np.float32).reshape(1, cout)
        beta_c = np.asarray(lp["bn_cnn_b"], np.float32).reshape(1, cout)

        gw = np.zeros((f_pad, f_pad), np.float32)
        gw[:f, :f] = np.asarray(lp["gcn_w"], np.float32)
        gb = np.zeros((1, f_pad), np.float32);   gb[0, :f] = np.asarray(lp["gcn_b"], np.float32)
        ggcn = np.zeros((1, f_pad), np.float32); ggcn[0, :f] = np.asarray(lp["bn_gcn_g"], np.float32)
        bgcn = np.zeros((1, f_pad), np.float32); bgcn[0, :f] = np.asarray(lp["bn_gcn_b"], np.float32)

        flat += [jnp.asarray(wdense, jnp.bfloat16), jnp.asarray(bconv),
                 jnp.asarray(g, jnp.bfloat16), jnp.asarray(gt, jnp.bfloat16),
                 jnp.asarray(gamma_c), jnp.asarray(beta_c),
                 jnp.asarray(gw, jnp.bfloat16), jnp.asarray(gb),
                 jnp.asarray(ggcn), jnp.asarray(bgcn)]
        cfgs.append((cout, lout, f_pad))
        lin = lout
        in_flat, in_flat_pad = f, f_pad

    f_real, f_pad = in_flat, in_flat_pad
    h = int(params["projector"]["w1"].shape[1])
    h_pad = _round128(h)
    for name in ("projector", "predictor"):
        mp = params[name]
        w1 = np.zeros((f_pad, h_pad), np.float32);  w1[:f_real, :h] = np.asarray(mp["w1"], np.float32)
        b1 = np.zeros((1, h_pad), np.float32);      b1[0, :h] = np.asarray(mp["b1"], np.float32)
        bng = np.zeros((1, h_pad), np.float32);     bng[0, :h] = np.asarray(mp["bn_g"], np.float32)
        bnb = np.zeros((1, h_pad), np.float32);     bnb[0, :h] = np.asarray(mp["bn_b"], np.float32)
        w2 = np.zeros((h_pad, f_pad), np.float32);  w2[:h, :f_real] = np.asarray(mp["w2"], np.float32)
        b2 = np.zeros((1, f_pad), np.float32);      b2[0, :f_real] = np.asarray(mp["b2"], np.float32)
        flat += [jnp.asarray(w1, jnp.bfloat16), jnp.asarray(b1), jnp.asarray(bng),
                 jnp.asarray(bnb), jnp.asarray(w2, jnp.bfloat16), jnp.asarray(b2)]

    return {"flat": flat, "cfgs": tuple(cfgs),
            "out_dim": int(f_real), "out_dim_pad": int(f_pad), "hid_pad": int(h_pad)}


# ------------------------- loss heads (tiny; plain jnp) -------------------------

def l2_normalize(x, eps=1e-12):
    n = jnp.sqrt(jnp.sum(x * x, axis=1, keepdims=True))
    return x / jnp.maximum(n, eps)


def cosine_similarity(a, b, eps=1e-8):
    na = jnp.sqrt(jnp.sum(a * a, axis=1))
    nb = jnp.sqrt(jnp.sum(b * b, axis=1))
    return jnp.sum(a * b, axis=1) / jnp.maximum(na * nb, eps)


def compute_centers(x, labels, num_cluster):
    onehot = (labels[None, :] == jnp.arange(num_cluster)[:, None]).astype(jnp.float32)
    weight = onehot / jnp.maximum(jnp.sum(onehot, axis=1, keepdims=True), 1e-12)
    centers = weight @ x
    return l2_normalize(centers)


def compute_cluster_loss(q_centers, k_centers, temperature, labels, num_cluster):
    d_q = (q_centers @ q_centers.T) / temperature
    d_k = jnp.sum(q_centers * k_centers, axis=1) / temperature
    diag = jnp.arange(num_cluster)
    d_q = d_q.at[diag, diag].set(d_k)
    present = jnp.zeros((num_cluster,), jnp.float32).at[labels].add(1.0) > 0
    zero_mask = ~present
    d_q = jnp.where(zero_mask[None, :], -10.0, d_q)   # matches the -10 masking trick
    pos = jnp.diagonal(d_q)
    # cat([pos, off-diag]) per row covers the whole row exactly once:
    loss = -pos + logsumexp(d_q, axis=1)
    loss = jnp.where(zero_mask, 0.0, loss)
    n_nonzero = jnp.maximum(num_cluster - jnp.sum(zero_mask.astype(jnp.int32)), 1)
    return jnp.sum(loss) / n_nonzero


def net_forward(prep, im_q, im_k, adj, labels, key,
                num_cluster, temperature=0.7, sigma=0.001):
    n = im_q.shape[0]
    f_real = prep["out_dim"]
    f_pad = prep["out_dim_pad"]

    # Stack both branches as rows [0:N)=q, [N:2N)=k; block-diagonal adjacency
    # keeps the graph conv strictly within each branch.
    x2 = jnp.concatenate([im_q, im_k], axis=0)
    adj2 = jnp.zeros((2 * n, 2 * n), jnp.float32)
    adj2 = adj2.at[:n, :n].set(adj).at[n:, n:].set(adj)
    noise = jax.random.normal(key, (2 * n, f_pad), jnp.float32)

    # ONE fused kernel: encodes q and k exactly once (weights shared, as at
    # init), projects, perturbs with noise and runs the predictor.
    proj, pred = fused_net_forward(prep, x2, adj2, noise, sigma)
    q, k = proj[:n, :f_real], proj[n:, :f_real]
    pq, pk = pred[:n, :f_real], pred[n:, :f_real]

    # half 1: (im_q, im_k); half 2: (im_k, im_q) — deduped to one encoder pass each.
    c1 = jnp.mean(2.0 - 2.0 * cosine_similarity(pq, k))
    c2 = jnp.mean(2.0 - 2.0 * cosine_similarity(pk, q))

    qn, kn = l2_normalize(q), l2_normalize(k)
    qc = compute_centers(qn, labels, num_cluster)
    kc = compute_centers(kn, labels, num_cluster)
    cl1 = compute_cluster_loss(qc, kc, temperature, labels, num_cluster)
    cl2 = compute_cluster_loss(kc, qc, temperature, labels, num_cluster)
    return (c1 + c2) / 2.0, (cl1 + cl2) / 2.0


# ------------------------- parameter init (mirrors the PyTorch module) -------------------------

def init_params(key, in_dim, num_layer, init_out_channel=16,
                init_kernel_size=7, hidden_size=64):
    keys = iter(jax.random.split(key, 64))
    layers = []
    cin, cout, ksz, dim = 1, init_out_channel, init_kernel_size, in_dim
    for _ in range(num_layer):
        dim = dim - ksz + 1
        gdim = dim * cout
        layers.append(dict(
            conv_w=0.1 * jax.random.normal(next(keys), (cout, cin, ksz), jnp.float32),
            conv_b=jnp.zeros((cout,), jnp.float32),
            bn_cnn_g=jnp.ones((cout,), jnp.float32),
            bn_cnn_b=jnp.zeros((cout,), jnp.float32),
            gcn_w=0.05 * jax.random.normal(next(keys), (gdim, gdim), jnp.float32),
            gcn_b=jnp.zeros((gdim,), jnp.float32),
            bn_gcn_g=jnp.ones((gdim,), jnp.float32),
            bn_gcn_b=jnp.zeros((gdim,), jnp.float32),
        ))
        cin = cout
        cout = cout * 2
        ksz = max(3, ksz - 2)
    enc_out = dim * cin  # cin holds the last layer's out_channels

    def mlp(kw1, kw2, std):
        return dict(
            w1=std * jax.random.normal(kw1, (enc_out, hidden_size), jnp.float32),
            b1=jnp.zeros((hidden_size,), jnp.float32),
            bn_g=jnp.ones((hidden_size,), jnp.float32),
            bn_b=jnp.zeros((hidden_size,), jnp.float32),
            w2=std * jax.random.normal(kw2, (hidden_size, enc_out), jnp.float32),
            b2=jnp.zeros((enc_out,), jnp.float32),
        )

    projector = mlp(next(keys), next(keys), std=0.05)
    predictor = mlp(next(keys), next(keys), std=0.01)  # predictor Linear init N(0, 0.01)
    return dict(encoder=dict(layers=layers), projector=projector, predictor=predictor)


# ------------------------- main -------------------------

if __name__ == "__main__":
    num_nodes = 8
    in_dim = 32
    num_layer = 2
    num_cluster = 4
    hidden_size = 64

    root = jax.random.PRNGKey(0)
    kp, kq, kk_, ka, kn_ = jax.random.split(root, 5)

    params = init_params(kp, in_dim, num_layer, init_out_channel=16,
                         init_kernel_size=7, hidden_size=hidden_size)
    prep = prepare_params(params, in_dim)

    im_q = jax.random.normal(kq, (num_nodes, in_dim), jnp.float32)
    im_k = jax.random.normal(kk_, (num_nodes, in_dim), jnp.float32)
    adj_raw = jax.random.uniform(ka, (num_nodes, num_nodes), jnp.float32) + jnp.eye(num_nodes)
    adj_norm = adj_raw / jnp.sum(adj_raw, axis=1, keepdims=True)
    # class 3 intentionally empty to exercise the zero_classes path
    psedo_labels = jnp.array([0, 1, 2, 0, 1, 2, 0, 1], dtype=jnp.int32)

    fwd = jax.jit(functools.partial(net_forward, prep,
                                    num_cluster=num_cluster,
                                    temperature=0.7, sigma=0.001))

    contrastive_loss, cluster_loss = fwd(im_q, im_k, adj_norm, psedo_labels, kn_)
    jax.block_until_ready((contrastive_loss, cluster_loss))
    assert bool(jnp.isfinite(contrastive_loss)) and bool(jnp.isfinite(cluster_loss))
    print("KERNEL_OK")
</pallas_src>

<mosaic_0001>
module attributes {stable_mosaic.version = 11 : i64} {
  func.func @kernel(%arg0: memref<16x32xf32, #tpu.memory_space<vmem>>, %arg1: memref<16x16xf32, #tpu.memory_space<vmem>>, %arg2: memref<16x768xf32, #tpu.memory_space<vmem>>, %arg3: memref<32x512xbf16, #tpu.memory_space<vmem>>, %arg4: memref<1x512xf32, #tpu.memory_space<vmem>>, %arg5: memref<512x16xbf16, #tpu.memory_space<vmem>>, %arg6: memref<16x512xbf16, #tpu.memory_space<vmem>>, %arg7: memref<1x16xf32, #tpu.memory_space<vmem>>, %arg8: memref<1x16xf32, #tpu.memory_space<vmem>>, %arg9: memref<512x512xbf16, #tpu.memory_space<vmem>>, %arg10: memref<1x512xf32, #tpu.memory_space<vmem>>, %arg11: memref<1x512xf32, #tpu.memory_space<vmem>>, %arg12: memref<1x512xf32, #tpu.memory_space<vmem>>, %arg13: memref<512x768xbf16, #tpu.memory_space<vmem>>, %arg14: memref<1x768xf32, #tpu.memory_space<vmem>>, %arg15: memref<768x32xbf16, #tpu.memory_space<vmem>>, %arg16: memref<32x768xbf16, #tpu.memory_space<vmem>>, %arg17: memref<1x32xf32, #tpu.memory_space<vmem>>, %arg18: memref<1x32xf32, #tpu.memory_space<vmem>>, %arg19: memref<768x768xbf16, #tpu.memory_space<vmem>>, %arg20: memref<1x768xf32, #tpu.memory_space<vmem>>, %arg21: memref<1x768xf32, #tpu.memory_space<vmem>>, %arg22: memref<1x768xf32, #tpu.memory_space<vmem>>, %arg23: memref<768x128xbf16, #tpu.memory_space<vmem>>, %arg24: memref<1x128xf32, #tpu.memory_space<vmem>>, %arg25: memref<1x128xf32, #tpu.memory_space<vmem>>, %arg26: memref<1x128xf32, #tpu.memory_space<vmem>>, %arg27: memref<128x768xbf16, #tpu.memory_space<vmem>>, %arg28: memref<1x768xf32, #tpu.memory_space<vmem>>, %arg29: memref<768x128xbf16, #tpu.memory_space<vmem>>, %arg30: memref<1x128xf32, #tpu.memory_space<vmem>>, %arg31: memref<1x128xf32, #tpu.memory_space<vmem>>, %arg32: memref<1x128xf32, #tpu.memory_space<vmem>>, %arg33: memref<128x768xbf16, #tpu.memory_space<vmem>>, %arg34: memref<1x768xf32, #tpu.memory_space<vmem>>, %arg35: memref<16x768xf32, #tpu.memory_space<vmem>>, %arg36: memref<16x768xf32, #tpu.memory_space<vmem>>) attributes {dimension_semantics = [], scalar_prefetch = 0 : i64, scratch_operands = 0 : i64, tpu.core_type = #tpu.core_type<tc>} {
    %c0 = arith.constant 0 : index
    %c0_0 = arith.constant 0 : index
    %0 = vector.load %arg0[%c0, %c0_0] : memref<16x32xf32, #tpu.memory_space<vmem>>, vector<16x32xf32>
    %c0_1 = arith.constant 0 : index
    %c0_2 = arith.constant 0 : index
    %1 = vector.load %arg1[%c0_1, %c0_2] : memref<16x16xf32, #tpu.memory_space<vmem>>, vector<16x16xf32>
    %2 = arith.truncf %0 : vector<16x32xf32> to vector<16x32xbf16>
    %c0_3 = arith.constant 0 : index
    %c0_4 = arith.constant 0 : index
    %3 = vector.load %arg3[%c0_3, %c0_4] : memref<32x512xbf16, #tpu.memory_space<vmem>>, vector<32x512xbf16>
    %cst = arith.constant dense<0.000000e+00> : vector<16x512xf32>
    %4 = tpu.matmul %2, %3, %cst {dimension_numbers = #tpu.dot_dimension_numbers<[1], [0], [0], [1], [0, 0, 1, 1], [], []>} : vector<16x32xbf16>, vector<32x512xbf16>, vector<16x512xf32> -> vector<16x512xf32>
    %c0_5 = arith.constant 0 : index
    %c0_6 = arith.constant 0 : index
    %5 = vector.load %arg4[%c0_5, %c0_6] : memref<1x512xf32, #tpu.memory_space<vmem>>, vector<1x512xf32>
    %6 = vector.broadcast %5 : vector<1x512xf32> to vector<16x512xf32>
    %7 = arith.addf %4, %6 : vector<16x512xf32>
    %8 = vector.extract_strided_slice %7 {offsets = [0, 0], sizes = [8, 512], strides = [1, 1]} : vector<16x512xf32> to vector<8x512xf32>
    %cst_7 = arith.constant dense<0.000000e+00> : vector<512xf32>
    %9 = vector.multi_reduction <add>, %8, %cst_7 [0] : vector<8x512xf32> to vector<512xf32>
    %10 = vector.shape_cast %9 : vector<512xf32> to vector<1x512xf32>
    %11 = arith.mulf %8, %8 : vector<8x512xf32>
    %cst_8 = arith.constant dense<0.000000e+00> : vector<512xf32>
    %12 = vector.multi_reduction <add>, %11, %cst_8 [0] : vector<8x512xf32> to vector<512xf32>
    %13 = vector.shape_cast %12 : vector<512xf32> to vector<1x512xf32>
    %c0_9 = arith.constant 0 : index
    %c0_10 = arith.constant 0 : index
    %14 = vector.load %arg5[%c0_9, %c0_10] : memref<512x16xbf16, #tpu.memory_space<vmem>>, vector<512x16xbf16>
    %cst_11 = arith.constant dense<0.000000e+00> : vector<1x16xf32>
    %15 = tpu.matmul %10, %14, %cst_11 {dimension_numbers = #tpu.dot_dimension_numbers<[1], [0], [0], [1], [0, 0, 1, 1], [], []>} : vector<1x512xf32>, vector<512x16xbf16>, vector<1x16xf32> -> vector<1x16xf32>
    %c0_12 = arith.constant 0 : index
    %c0_13 = arith.constant 0 : index
    %16 = vector.load %arg5[%c0_12, %c0_13] : memref<512x16xbf16, #tpu.memory_space<vmem>>, vector<512x16xbf16>
    %cst_14 = arith.constant dense<0.000000e+00> : vector<1x16xf32>
    %17 = tpu.matmul %13, %16, %cst_14 {dimension_numbers = #tpu.dot_dimension_numbers<[1], [0], [0], [1], [0, 0, 1, 1], [], []>} : vector<1x512xf32>, vector<512x16xbf16>, vector<1x16xf32> -> vector<1x16xf32>
    %cst_15 = arith.constant 0.00480769249 : f32
    %18 = vector.broadcast %cst_15 : f32 to vector<1x16xf32>
    %19 = arith.mulf %15, %18 : vector<1x16xf32>
    %cst_16 = arith.constant 0.00480769249 : f32
    %20 = vector.broadcast %cst_16 : f32 to vector<1x16xf32>
    %21 = arith.mulf %17, %20 : vector<1x16xf32>
    %22 = arith.mulf %19, %19 : vector<1x16xf32>
    %23 = arith.subf %21, %22 : vector<1x16xf32>
    %cst_17 = arith.constant 0.000000e+00 : f32
    %24 = vector.broadcast %cst_17 : f32 to vector<1x16xf32>
    %25 = arith.maximumf %23, %24 : vector<1x16xf32>
    %cst_18 = arith.constant 9.99999974E-6 : f32
    %26 = vector.broadcast %cst_18 : f32 to vector<1x16xf32>
    %27 = arith.addf %25, %26 : vector<1x16xf32>
    %28 = math.rsqrt %27 : vector<1x16xf32>
    %c0_19 = arith.constant 0 : index
    %c0_20 = arith.constant 0 : index
    %29 = vector.load %arg7[%c0_19, %c0_20] : memref<1x16xf32, #tpu.memory_space<vmem>>, vector<1x16xf32>
    %30 = arith.mulf %28, %29 : vector<1x16xf32>
    %c0_21 = arith.constant 0 : index
    %c0_22 = arith.constant 0 : index
    %31 = vector.load %arg8[%c0_21, %c0_22] : memref<1x16xf32, #tpu.memory_space<vmem>>, vector<1x16xf32>
    %32 = arith.mulf %19, %30 : vector<1x16xf32>
    %33 = arith.subf %31, %32 : vector<1x16xf32>
    %c0_23 = arith.constant 0 : index
    %c0_24 = arith.constant 0 : index
    %34 = vector.load %arg6[%c0_23, %c0_24] : memref<16x512xbf16, #tpu.memory_space<vmem>>, vector<16x512xbf16>
    %cst_25 = arith.constant dense<0.000000e+00> : vector<1x512xf32>
    %35 = tpu.matmul %30, %34, %cst_25 {dimension_numbers = #tpu.dot_dimension_numbers<[1], [0], [0], [1], [0, 0, 1, 1], [], []>} : vector<1x16xf32>, vector<16x512xbf16>, vector<1x512xf32> -> vector<1x512xf32>
    %c0_26 = arith.constant 0 : index
    %c0_27 = arith.constant 0 : index
    %36 = vector.load %arg6[%c0_26, %c0_27] : memref<16x512xbf16, #tpu.memory_space<vmem>>, vector<16x512xbf16>
    %cst_28 = arith.constant dense<0.000000e+00> : vector<1x512xf32>
    %37 = tpu.matmul %33, %36, %cst_28 {dimension_numbers = #tpu.dot_dimension_numbers<[1], [0], [0], [1], [0, 0, 1, 1], [], []>} : vector<1x16xf32>, vector<16x512xbf16>, vector<1x512xf32> -> vector<1x512xf32>
    %38 = vector.broadcast %35 : vector<1x512xf32> to vector<8x512xf32>
    %39 = arith.mulf %8, %38 : vector<8x512xf32>
    %40 = vector.broadcast %37 : vector<1x512xf32> to vector<8x512xf32>
    %41 = arith.addf %39, %40 : vector<8x512xf32>
    %cst_29 = arith.constant 0.000000e+00 : f32
    %42 = vector.broadcast %cst_29 : f32 to vector<8x512xf32>
    %43 = arith.maximumf %41, %42 : vector<8x512xf32>
    %44 = vector.extract_strided_slice %7 {offsets = [8, 0], sizes = [8, 512], strides = [1, 1]} : vector<16x512xf32> to vector<8x512xf32>
    %cst_30 = arith.constant dense<0.000000e+00> : vector<512xf32>
    %45 = vector.multi_reduction <add>, %44, %cst_30 [0] : vector<8x512xf32> to vector<512xf32>
    %46 = vector.shape_cast %45 : vector<512xf32> to vector<1x512xf32>
    %47 = arith.mulf %44, %44 : vector<8x512xf32>
    %cst_31 = arith.constant dense<0.000000e+00> : vector<512xf32>
    %48 = vector.multi_reduction <add>, %47, %cst_31 [0] : vector<8x512xf32> to vector<512xf32>
    %49 = vector.shape_cast %48 : vector<512xf32> to vector<1x512xf32>
    %c0_32 = arith.constant 0 : index
    %c0_33 = arith.constant 0 : index
    %50 = vector.load %arg5[%c0_32, %c0_33] : memref<512x16xbf16, #tpu.memory_space<vmem>>, vector<512x16xbf16>
    %cst_34 = arith.constant dense<0.000000e+00> : vector<1x16xf32>
    %51 = tpu.matmul %46, %50, %cst_34 {dimension_numbers = #tpu.dot_dimension_numbers<[1], [0], [0], [1], [0, 0, 1, 1], [], []>} : vector<1x512xf32>, vector<512x16xbf16>, vector<1x16xf32> -> vector<1x16xf32>
    %c0_35 = arith.constant 0 : index
    %c0_36 = arith.constant 0 : index
    %52 = vector.load %arg5[%c0_35, %c0_36] : memref<512x16xbf16, #tpu.memory_space<vmem>>, vector<512x16xbf16>
    %cst_37 = arith.constant dense<0.000000e+00> : vector<1x16xf32>
    %53 = tpu.matmul %49, %52, %cst_37 {dimension_numbers = #tpu.dot_dimension_numbers<[1], [0], [0], [1], [0, 0, 1, 1], [], []>} : vector<1x512xf32>, vector<512x16xbf16>, vector<1x16xf32> -> vector<1x16xf32>
    %cst_38 = arith.constant 0.00480769249 : f32
    %54 = vector.broadcast %cst_38 : f32 to vector<1x16xf32>
    %55 = arith.mulf %51, %54 : vector<1x16xf32>
    %cst_39 = arith.constant 0.00480769249 : f32
    %56 = vector.broadcast %cst_39 : f32 to vector<1x16xf32>
    %57 = arith.mulf %53, %56 : vector<1x16xf32>
    %58 = arith.mulf %55, %55 : vector<1x16xf32>
    %59 = arith.subf %57, %58 : vector<1x16xf32>
    %cst_40 = arith.constant 0.000000e+00 : f32
    %60 = vector.broadcast %cst_40 : f32 to vector<1x16xf32>
    %61 = arith.maximumf %59, %60 : vector<1x16xf32>
    %cst_41 = arith.constant 9.99999974E-6 : f32
    %62 = vector.broadcast %cst_41 : f32 to vector<1x16xf32>
    %63 = arith.addf %61, %62 : vector<1x16xf32>
    %64 = math.rsqrt %63 : vector<1x16xf32>
    %c0_42 = arith.constant 0 : index
    %c0_43 = arith.constant 0 : index
    %65 = vector.load %arg7[%c0_42, %c0_43] : memref<1x16xf32, #tpu.memory_space<vmem>>, vector<1x16xf32>
    %66 = arith.mulf %64, %65 : vector<1x16xf32>
    %c0_44 = arith.constant 0 : index
    %c0_45 = arith.constant 0 : index
    %67 = vector.load %arg8[%c0_44, %c0_45] : memref<1x16xf32, #tpu.memory_space<vmem>>, vector<1x16xf32>
    %68 = arith.mulf %55, %66 : vector<1x16xf32>
    %69 = arith.subf %67, %68 : vector<1x16xf32>
    %c0_46 = arith.constant 0 : index
    %c0_47 = arith.constant 0 : index
    %70 = vector.load %arg6[%c0_46, %c0_47] : memref<16x512xbf16, #tpu.memory_space<vmem>>, vector<16x512xbf16>
    %cst_48 = arith.constant dense<0.000000e+00> : vector<1x512xf32>
    %71 = tpu.matmul %66, %70, %cst_48 {dimension_numbers = #tpu.dot_dimension_numbers<[1], [0], [0], [1], [0, 0, 1, 1], [], []>} : vector<1x16xf32>, vector<16x512xbf16>, vector<1x512xf32> -> vector<1x512xf32>
    %c0_49 = arith.constant 0 : index
    %c0_50 = arith.constant 0 : index
    %72 = vector.load %arg6[%c0_49, %c0_50] : memref<16x512xbf16, #tpu.memory_space<vmem>>, vector<16x512xbf16>
    %cst_51 = arith.constant dense<0.000000e+00> : vector<1x512xf32>
    %73 = tpu.matmul %69, %72, %cst_51 {dimension_numbers = #tpu.dot_dimension_numbers<[1], [0], [0], [1], [0, 0, 1, 1], [], []>} : vector<1x16xf32>, vector<16x512xbf16>, vector<1x512xf32> -> vector<1x512xf32>
    %74 = vector.broadcast %71 : vector<1x512xf32> to vector<8x512xf32>
    %75 = arith.mulf %44, %74 : vector<8x512xf32>
    %76 = vector.broadcast %73 : vector<1x512xf32> to vector<8x512xf32>
    %77 = arith.addf %75, %76 : vector<8x512xf32>
    %cst_52 = arith.constant 0.000000e+00 : f32
    %78 = vector.broadcast %cst_52 : f32 to vector<8x512xf32>
    %79 = arith.maximumf %77, %78 : vector<8x512xf32>
    %80 = tpu.concatenate %43, %79 in 0 : vector<8x512xf32>, vector<8x512xf32> -> vector<16x512xf32>
    %81 = arith.truncf %80 : vector<16x512xf32> to vector<16x512xbf16>
    %c0_53 = arith.constant 0 : index
    %c0_54 = arith.constant 0 : index
    %82 = vector.load %arg9[%c0_53, %c0_54] : memref<512x512xbf16, #tpu.memory_space<vmem>>, vector<512x512xbf16>
    %cst_55 = arith.constant dense<0.000000e+00> : vector<16x512xf32>
    %83 = tpu.matmul %81, %82, %cst_55 {dimension_numbers = #tpu.dot_dimension_numbers<[1], [0], [0], [1], [0, 0, 1, 1], [], []>} : vector<16x512xbf16>, vector<512x512xbf16>, vector<16x512xf32> -> vector<16x512xf32>
    %cst_56 = arith.constant dense<0.000000e+00> : vector<16x512xf32>
    %84 = tpu.matmul %1, %83, %cst_56 {dimension_numbers = #tpu.dot_dimension_numbers<[1], [0], [0], [1], [0, 0, 1, 1], [], []>} : vector<16x16xf32>, vector<16x512xf32>, vector<16x512xf32> -> vector<16x512xf32>
    %c0_57 = arith.constant 0 : index
    %c0_58 = arith.constant 0 : index
    %85 = vector.load %arg10[%c0_57, %c0_58] : memref<1x512xf32, #tpu.memory_space<vmem>>, vector<1x512xf32>
    %86 = vector.broadcast %85 : vector<1x512xf32> to vector<16x512xf32>
    %87 = arith.addf %84, %86 : vector<16x512xf32>
    %c0_59 = arith.constant 0 : index
    %c0_60 = arith.constant 0 : index
    %88 = vector.load %arg11[%c0_59, %c0_60] : memref<1x512xf32, #tpu.memory_space<vmem>>, vector<1x512xf32>
    %c0_61 = arith.constant 0 : index
    %c0_62 = arith.constant 0 : index
    %89 = vector.load %arg12[%c0_61, %c0_62] : memref<1x512xf32, #tpu.memory_space<vmem>>, vector<1x512xf32>
    %90 = vector.extract_strided_slice %87 {offsets = [0, 0], sizes = [8, 512], strides = [1, 1]} : vector<16x512xf32> to vector<8x512xf32>
    %cst_63 = arith.constant dense<0.000000e+00> : vector<512xf32>
    %91 = vector.multi_reduction <add>, %90, %cst_63 [0] : vector<8x512xf32> to vector<512xf32>
    %92 = vector.shape_cast %91 : vector<512xf32> to vector<1x512xf32>
    %cst_64 = arith.constant 8.000000e+00 : f32
    %93 = vector.broadcast %cst_64 : f32 to vector<1x512xf32>
    %94 = arith.divf %92, %93 : vector<1x512xf32>
    %95 = arith.mulf %90, %90 : vector<8x512xf32>
    %cst_65 = arith.constant dense<0.000000e+00> : vector<512xf32>
    %96 = vector.multi_reduction <add>, %95, %cst_65 [0] : vector<8x512xf32> to vector<512xf32>
    %97 = vector.shape_cast %96 : vector<512xf32> to vector<1x512xf32>
    %cst_66 = arith.constant 8.000000e+00 : f32
    %98 = vector.broadcast %cst_66 : f32 to vector<1x512xf32>
    %99 = arith.divf %97, %98 : vector<1x512xf32>
    %100 = arith.mulf %94, %94 : vector<1x512xf32>
    %101 = arith.subf %99, %100 : vector<1x512xf32>
    %cst_67 = arith.constant 0.000000e+00 : f32
    %102 = vector.broadcast %cst_67 : f32 to vector<1x512xf32>
    %103 = arith.maximumf %101, %102 : vector<1x512xf32>
    %104 = vector.broadcast %94 : vector<1x512xf32> to vector<8x512xf32>
    %105 = arith.subf %90, %104 : vector<8x512xf32>
    %cst_68 = arith.constant 9.99999974E-6 : f32
    %106 = vector.broadcast %cst_68 : f32 to vector<1x512xf32>
    %107 = arith.addf %103, %106 : vector<1x512xf32>
    %108 = math.rsqrt %107 : vector<1x512xf32>
    %109 = vector.broadcast %108 : vector<1x512xf32> to vector<8x512xf32>
    %110 = arith.mulf %105, %109 : vector<8x512xf32>
    %111 = vector.broadcast %88 : vector<1x512xf32> to vector<8x512xf32>
    %112 = arith.mulf %110, %111 : vector<8x512xf32>
    %113 = vector.broadcast %89 : vector<1x512xf32> to vector<8x512xf32>
    %114 = arith.addf %112, %113 : vector<8x512xf32>
    %cst_69 = arith.constant 0.000000e+00 : f32
    %115 = vector.broadcast %cst_69 : f32 to vector<8x512xf32>
    %116 = arith.maximumf %114, %115 : vector<8x512xf32>
    %117 = vector.extract_strided_slice %87 {offsets = [8, 0], sizes = [8, 512], strides = [1, 1]} : vector<16x512xf32> to vector<8x512xf32>
    %cst_70 = arith.constant dense<0.000000e+00> : vector<512xf32>
    %118 = vector.multi_reduction <add>, %117, %cst_70 [0] : vector<8x512xf32> to vector<512xf32>
    %119 = vector.shape_cast %118 : vector<512xf32> to vector<1x512xf32>
    %cst_71 = arith.constant 8.000000e+00 : f32
    %120 = vector.broadcast %cst_71 : f32 to vector<1x512xf32>
    %121 = arith.divf %119, %120 : vector<1x512xf32>
    %122 = arith.mulf %117, %117 : vector<8x512xf32>
    %cst_72 = arith.constant dense<0.000000e+00> : vector<512xf32>
    %123 = vector.multi_reduction <add>, %122, %cst_72 [0] : vector<8x512xf32> to vector<512xf32>
    %124 = vector.shape_cast %123 : vector<512xf32> to vector<1x512xf32>
    %cst_73 = arith.constant 8.000000e+00 : f32
    %125 = vector.broadcast %cst_73 : f32 to vector<1x512xf32>
    %126 = arith.divf %124, %125 : vector<1x512xf32>
    %127 = arith.mulf %121, %121 : vector<1x512xf32>
    %128 = arith.subf %126, %127 : vector<1x512xf32>
    %cst_74 = arith.constant 0.000000e+00 : f32
    %129 = vector.broadcast %cst_74 : f32 to vector<1x512xf32>
    %130 = arith.maximumf %128, %129 : vector<1x512xf32>
    %131 = vector.broadcast %121 : vector<1x512xf32> to vector<8x512xf32>
    %132 = arith.subf %117, %131 : vector<8x512xf32>
    %cst_75 = arith.constant 9.99999974E-6 : f32
    %133 = vector.broadcast %cst_75 : f32 to vector<1x512xf32>
    %134 = arith.addf %130, %133 : vector<1x512xf32>
    %135 = math.rsqrt %134 : vector<1x512xf32>
    %136 = vector.broadcast %135 : vector<1x512xf32> to vector<8x512xf32>
    %137 = arith.mulf %132, %136 : vector<8x512xf32>
    %138 = vector.broadcast %88 : vector<1x512xf32> to vector<8x512xf32>
    %139 = arith.mulf %137, %138 : vector<8x512xf32>
    %140 = vector.broadcast %89 : vector<1x512xf32> to vector<8x512xf32>
    %141 = arith.addf %139, %140 : vector<8x512xf32>
    %cst_76 = arith.constant 0.000000e+00 : f32
    %142 = vector.broadcast %cst_76 : f32 to vector<8x512xf32>
    %143 = arith.maximumf %141, %142 : vector<8x512xf32>
    %144 = tpu.concatenate %116, %143 in 0 : vector<8x512xf32>, vector<8x512xf32> -> vector<16x512xf32>
    %145 = arith.truncf %144 : vector<16x512xf32> to vector<16x512xbf16>
    %c0_77 = arith.constant 0 : index
    %c0_78 = arith.constant 0 : index
    %146 = vector.load %arg13[%c0_77, %c0_78] : memref<512x768xbf16, #tpu.memory_space<vmem>>, vector<512x768xbf16>
    %cst_79 = arith.constant dense<0.000000e+00> : vector<16x768xf32>
    %147 = tpu.matmul %145, %146, %cst_79 {dimension_numbers = #tpu.dot_dimension_numbers<[1], [0], [0], [1], [0, 0, 1, 1], [], []>} : vector<16x512xbf16>, vector<512x768xbf16>, vector<16x768xf32> -> vector<16x768xf32>
    %c0_80 = arith.constant 0 : index
    %c0_81 = arith.constant 0 : index
    %148 = vector.load %arg14[%c0_80, %c0_81] : memref<1x768xf32, #tpu.memory_space<vmem>>, vector<1x768xf32>
    %149 = vector.broadcast %148 : vector<1x768xf32> to vector<16x768xf32>
    %150 = arith.addf %147, %149 : vector<16x768xf32>
    %151 = vector.extract_strided_slice %150 {offsets = [0, 0], sizes = [8, 768], strides = [1, 1]} : vector<16x768xf32> to vector<8x768xf32>
    %cst_82 = arith.constant dense<0.000000e+00> : vector<768xf32>
    %152 = vector.multi_reduction <add>, %151, %cst_82 [0] : vector<8x768xf32> to vector<768xf32>
    %153 = vector.shape_cast %152 : vector<768xf32> to vector<1x768xf32>
    %154 = arith.mulf %151, %151 : vector<8x768xf32>
    %cst_83 = arith.constant dense<0.000000e+00> : vector<768xf32>
    %155 = vector.multi_reduction <add>, %154, %cst_83 [0] : vector<8x768xf32> to vector<768xf32>
    %156 = vector.shape_cast %155 : vector<768xf32> to vector<1x768xf32>
    %c0_84 = arith.constant 0 : index
    %c0_85 = arith.constant 0 : index
    %157 = vector.load %arg15[%c0_84, %c0_85] : memref<768x32xbf16, #tpu.memory_space<vmem>>, vector<768x32xbf16>
    %cst_86 = arith.constant dense<0.000000e+00> : vector<1x32xf32>
    %158 = tpu.matmul %153, %157, %cst_86 {dimension_numbers = #tpu.dot_dimension_numbers<[1], [0], [0], [1], [0, 0, 1, 1], [], []>} : vector<1x768xf32>, vector<768x32xbf16>, vector<1x32xf32> -> vector<1x32xf32>
    %c0_87 = arith.constant 0 : index
    %c0_88 = arith.constant 0 : index
    %159 = vector.load %arg15[%c0_87, %c0_88] : memref<768x32xbf16, #tpu.memory_space<vmem>>, vector<768x32xbf16>
    %cst_89 = arith.constant dense<0.000000e+00> : vector<1x32xf32>
    %160 = tpu.matmul %156, %159, %cst_89 {dimension_numbers = #tpu.dot_dimension_numbers<[1], [0], [0], [1], [0, 0, 1, 1], [], []>} : vector<1x768xf32>, vector<768x32xbf16>, vector<1x32xf32> -> vector<1x32xf32>
    %cst_90 = arith.constant 0.00568181835 : f32
    %161 = vector.broadcast %cst_90 : f32 to vector<1x32xf32>
    %162 = arith.mulf %158, %161 : vector<1x32xf32>
    %cst_91 = arith.constant 0.00568181835 : f32
    %163 = vector.broadcast %cst_91 : f32 to vector<1x32xf32>
    %164 = arith.mulf %160, %163 : vector<1x32xf32>
    %165 = arith.mulf %162, %162 : vector<1x32xf32>
    %166 = arith.subf %164, %165 : vector<1x32xf32>
    %cst_92 = arith.constant 0.000000e+00 : f32
    %167 = vector.broadcast %cst_92 : f32 to vector<1x32xf32>
    %168 = arith.maximumf %166, %167 : vector<1x32xf32>
    %cst_93 = arith.constant 9.99999974E-6 : f32
    %169 = vector.broadcast %cst_93 : f32 to vector<1x32xf32>
    %170 = arith.addf %168, %169 : vector<1x32xf32>
    %171 = math.rsqrt %170 : vector<1x32xf32>
    %c0_94 = arith.constant 0 : index
    %c0_95 = arith.constant 0 : index
    %172 = vector.load %arg17[%c0_94, %c0_95] : memref<1x32xf32, #tpu.memory_space<vmem>>, vector<1x32xf32>
    %173 = arith.mulf %171, %172 : vector<1x32xf32>
    %c0_96 = arith.constant 0 : index
    %c0_97 = arith.constant 0 : index
    %174 = vector.load %arg18[%c0_96, %c0_97] : memref<1x32xf32, #tpu.memory_space<vmem>>, vector<1x32xf32>
    %175 = arith.mulf %162, %173 : vector<1x32xf32>
    %176 = arith.subf %174, %175 : vector<1x32xf32>
    %c0_98 = arith.constant 0 : index
    %c0_99 = arith.constant 0 : index
    %177 = vector.load %arg16[%c0_98, %c0_99] : memref<32x768xbf16, #tpu.memory_space<vmem>>, vector<32x768xbf16>
    %cst_100 = arith.constant dense<0.000000e+00> : vector<1x768xf32>
    %178 = tpu.matmul %173, %177, %cst_100 {dimension_numbers = #tpu.dot_dimension_numbers<[1], [0], [0], [1], [0, 0, 1, 1], [], []>} : vector<1x32xf32>, vector<32x768xbf16>, vector<1x768xf32> -> vector<1x768xf32>
    %c0_101 = arith.constant 0 : index
    %c0_102 = arith.constant 0 : index
    %179 = vector.load %arg16[%c0_101, %c0_102] : memref<32x768xbf16, #tpu.memory_space<vmem>>, vector<32x768xbf16>
    %cst_103 = arith.constant dense<0.000000e+00> : vector<1x768xf32>
    %180 = tpu.matmul %176, %179, %cst_103 {dimension_numbers = #tpu.dot_dimension_numbers<[1], [0], [0], [1], [0, 0, 1, 1], [], []>} : vector<1x32xf32>, vector<32x768xbf16>, vector<1x768xf32> -> vector<1x768xf32>
    %181 = vector.broadcast %178 : vector<1x768xf32> to vector<8x768xf32>
    %182 = arith.mulf %151, %181 : vector<8x768xf32>
    %183 = vector.broadcast %180 : vector<1x768xf32> to vector<8x768xf32>
    %184 = arith.addf %182, %183 : vector<8x768xf32>
    %cst_104 = arith.constant 0.000000e+00 : f32
    %185 = vector.broadcast %cst_104 : f32 to vector<8x768xf32>
    %186 = arith.maximumf %184, %185 : vector<8x768xf32>
    %187 = vector.extract_strided_slice %150 {offsets = [8, 0], sizes = [8, 768], strides = [1, 1]} : vector<16x768xf32> to vector<8x768xf32>
    %cst_105 = arith.constant dense<0.000000e+00> : vector<768xf32>
    %188 = vector.multi_reduction <add>, %187, %cst_105 [0] : vector<8x768xf32> to vector<768xf32>
    %189 = vector.shape_cast %188 : vector<768xf32> to vector<1x768xf32>
    %190 = arith.mulf %187, %187 : vector<8x768xf32>
    %cst_106 = arith.constant dense<0.000000e+00> : vector<768xf32>
    %191 = vector.multi_reduction <add>, %190, %cst_106 [0] : vector<8x768xf32> to vector<768xf32>
    %192 = vector.shape_cast %191 : vector<768xf32> to vector<1x768xf32>
    %c0_107 = arith.constant 0 : index
    %c0_108 = arith.constant 0 : index
    %193 = vector.load %arg15[%c0_107, %c0_108] : memref<768x32xbf16, #tpu.memory_space<vmem>>, vector<768x32xbf16>
    %cst_109 = arith.constant dense<0.000000e+00> : vector<1x32xf32>
    %194 = tpu.matmul %189, %193, %cst_109 {dimension_numbers = #tpu.dot_dimension_numbers<[1], [0], [0], [1], [0, 0, 1, 1], [], []>} : vector<1x768xf32>, vector<768x32xbf16>, vector<1x32xf32> -> vector<1x32xf32>
    %c0_110 = arith.constant 0 : index
    %c0_111 = arith.constant 0 : index
    %195 = vector.load %arg15[%c0_110, %c0_111] : memref<768x32xbf16, #tpu.memory_space<vmem>>, vector<768x32xbf16>
    %cst_112 = arith.constant dense<0.000000e+00> : vector<1x32xf32>
    %196 = tpu.matmul %192, %195, %cst_112 {dimension_numbers = #tpu.dot_dimension_numbers<[1], [0], [0], [1], [0, 0, 1, 1], [], []>} : vector<1x768xf32>, vector<768x32xbf16>, vector<1x32xf32> -> vector<1x32xf32>
    %cst_113 = arith.constant 0.00568181835 : f32
    %197 = vector.broadcast %cst_113 : f32 to vector<1x32xf32>
    %198 = arith.mulf %194, %197 : vector<1x32xf32>
    %cst_114 = arith.constant 0.00568181835 : f32
    %199 = vector.broadcast %cst_114 : f32 to vector<1x32xf32>
    %200 = arith.mulf %196, %199 : vector<1x32xf32>
    %201 = arith.mulf %198, %198 : vector<1x32xf32>
    %202 = arith.subf %200, %201 : vector<1x32xf32>
    %cst_115 = arith.constant 0.000000e+00 : f32
    %203 = vector.broadcast %cst_115 : f32 to vector<1x32xf32>
    %204 = arith.maximumf %202, %203 : vector<1x32xf32>
    %cst_116 = arith.constant 9.99999974E-6 : f32
    %205 = vector.broadcast %cst_116 : f32 to vector<1x32xf32>
    %206 = arith.addf %204, %205 : vector<1x32xf32>
    %207 = math.rsqrt %206 : vector<1x32xf32>
    %c0_117 = arith.constant 0 : index
    %c0_118 = arith.constant 0 : index
    %208 = vector.load %arg17[%c0_117, %c0_118] : memref<1x32xf32, #tpu.memory_space<vmem>>, vector<1x32xf32>
    %209 = arith.mulf %207, %208 : vector<1x32xf32>
    %c0_119 = arith.constant 0 : index
    %c0_120 = arith.constant 0 : index
    %210 = vector.load %arg18[%c0_119, %c0_120] : memref<1x32xf32, #tpu.memory_space<vmem>>, vector<1x32xf32>
    %211 = arith.mulf %198, %209 : vector<1x32xf32>
    %212 = arith.subf %210, %211 : vector<1x32xf32>
    %c0_121 = arith.constant 0 : index
    %c0_122 = arith.constant 0 : index
    %213 = vector.load %arg16[%c0_121, %c0_122] : memref<32x768xbf16, #tpu.memory_space<vmem>>, vector<32x768xbf16>
    %cst_123 = arith.constant dense<0.000000e+00> : vector<1x768xf32>
    %214 = tpu.matmul %209, %213, %cst_123 {dimension_numbers = #tpu.dot_dimension_numbers<[1], [0], [0], [1], [0, 0, 1, 1], [], []>} : vector<1x32xf32>, vector<32x768xbf16>, vector<1x768xf32> -> vector<1x768xf32>
    %c0_124 = arith.constant 0 : index
    %c0_125 = arith.constant 0 : index
    %215 = vector.load %arg16[%c0_124, %c0_125] : memref<32x768xbf16, #tpu.memory_space<vmem>>, vector<32x768xbf16>
    %cst_126 = arith.constant dense<0.000000e+00> : vector<1x768xf32>
    %216 = tpu.matmul %212, %215, %cst_126 {dimension_numbers = #tpu.dot_dimension_numbers<[1], [0], [0], [1], [0, 0, 1, 1], [], []>} : vector<1x32xf32>, vector<32x768xbf16>, vector<1x768xf32> -> vector<1x768xf32>
    %217 = vector.broadcast %214 : vector<1x768xf32> to vector<8x768xf32>
    %218 = arith.mulf %187, %217 : vector<8x768xf32>
    %219 = vector.broadcast %216 : vector<1x768xf32> to vector<8x768xf32>
    %220 = arith.addf %218, %219 : vector<8x768xf32>
    %cst_127 = arith.constant 0.000000e+00 : f32
    %221 = vector.broadcast %cst_127 : f32 to vector<8x768xf32>
    %222 = arith.maximumf %220, %221 : vector<8x768xf32>
    %223 = tpu.concatenate %186, %222 in 0 : vector<8x768xf32>, vector<8x768xf32> -> vector<16x768xf32>
    %224 = arith.truncf %223 : vector<16x768xf32> to vector<16x768xbf16>
    %c0_128 = arith.constant 0 : index
    %c0_129 = arith.constant 0 : index
    %225 = vector.load %arg19[%c0_128, %c0_129] : memref<768x768xbf16, #tpu.memory_space<vmem>>, vector<768x768xbf16>
    %cst_130 = arith.constant dense<0.000000e+00> : vector<16x768xf32>
    %226 = tpu.matmul %224, %225, %cst_130 {dimension_numbers = #tpu.dot_dimension_numbers<[1], [0], [0], [1], [0, 0, 1, 1], [], []>} : vector<16x768xbf16>, vector<768x768xbf16>, vector<16x768xf32> -> vector<16x768xf32>
    %cst_131 = arith.constant dense<0.000000e+00> : vector<16x768xf32>
    %227 = tpu.matmul %1, %226, %cst_131 {dimension_numbers = #tpu.dot_dimension_numbers<[1], [0], [0], [1], [0, 0, 1, 1], [], []>} : vector<16x16xf32>, vector<16x768xf32>, vector<16x768xf32> -> vector<16x768xf32>
    %c0_132 = arith.constant 0 : index
    %c0_133 = arith.constant 0 : index
    %228 = vector.load %arg20[%c0_132, %c0_133] : memref<1x768xf32, #tpu.memory_space<vmem>>, vector<1x768xf32>
    %229 = vector.broadcast %228 : vector<1x768xf32> to vector<16x768xf32>
    %230 = arith.addf %227, %229 : vector<16x768xf32>
    %c0_134 = arith.constant 0 : index
    %c0_135 = arith.constant 0 : index
    %231 = vector.load %arg21[%c0_134, %c0_135] : memref<1x768xf32, #tpu.memory_space<vmem>>, vector<1x768xf32>
    %c0_136 = arith.constant 0 : index
    %c0_137 = arith.constant 0 : index
    %232 = vector.load %arg22[%c0_136, %c0_137] : memref<1x768xf32, #tpu.memory_space<vmem>>, vector<1x768xf32>
    %233 = vector.extract_strided_slice %230 {offsets = [0, 0], sizes = [8, 768], strides = [1, 1]} : vector<16x768xf32> to vector<8x768xf32>
    %cst_138 = arith.constant dense<0.000000e+00> : vector<768xf32>
    %234 = vector.multi_reduction <add>, %233, %cst_138 [0] : vector<8x768xf32> to vector<768xf32>
    %235 = vector.shape_cast %234 : vector<768xf32> to vector<1x768xf32>
    %cst_139 = arith.constant 8.000000e+00 : f32
    %236 = vector.broadcast %cst_139 : f32 to vector<1x768xf32>
    %237 = arith.divf %235, %236 : vector<1x768xf32>
    %238 = arith.mulf %233, %233 : vector<8x768xf32>
    %cst_140 = arith.constant dense<0.000000e+00> : vector<768xf32>
    %239 = vector.multi_reduction <add>, %238, %cst_140 [0] : vector<8x768xf32> to vector<768xf32>
    %240 = vector.shape_cast %239 : vector<768xf32> to vector<1x768xf32>
    %cst_141 = arith.constant 8.000000e+00 : f32
    %241 = vector.broadcast %cst_141 : f32 to vector<1x768xf32>
    %242 = arith.divf %240, %241 : vector<1x768xf32>
    %243 = arith.mulf %237, %237 : vector<1x768xf32>
    %244 = arith.subf %242, %243 : vector<1x768xf32>
    %cst_142 = arith.constant 0.000000e+00 : f32
    %245 = vector.broadcast %cst_142 : f32 to vector<1x768xf32>
    %246 = arith.maximumf %244, %245 : vector<1x768xf32>
    %247 = vector.broadcast %237 : vector<1x768xf32> to vector<8x768xf32>
    %248 = arith.subf %233, %247 : vector<8x768xf32>
    %cst_143 = arith.constant 9.99999974E-6 : f32
    %249 = vector.broadcast %cst_143 : f32 to vector<1x768xf32>
    %250 = arith.addf %246, %249 : vector<1x768xf32>
    %251 = math.rsqrt %250 : vector<1x768xf32>
    %252 = vector.broadcast %251 : vector<1x768xf32> to vector<8x768xf32>
    %253 = arith.mulf %248, %252 : vector<8x768xf32>
    %254 = vector.broadcast %231 : vector<1x768xf32> to vector<8x768xf32>
    %255 = arith.mulf %253, %254 : vector<8x768xf32>
    %256 = vector.broadcast %232 : vector<1x768xf32> to vector<8x768xf32>
    %257 = arith.addf %255, %256 : vector<8x768xf32>
    %cst_144 = arith.constant 0.000000e+00 : f32
    %258 = vector.broadcast %cst_144 : f32 to vector<8x768xf32>
    %259 = arith.maximumf %257, %258 : vector<8x768xf32>
    %260 = vector.extract_strided_slice %230 {offsets = [8, 0], sizes = [8, 768], strides = [1, 1]} : vector<16x768xf32> to vector<8x768xf32>
    %cst_145 = arith.constant dense<0.000000e+00> : vector<768xf32>
    %261 = vector.multi_reduction <add>, %260, %cst_145 [0] : vector<8x768xf32> to vector<768xf32>
    %262 = vector.shape_cast %261 : vector<768xf32> to vector<1x768xf32>
    %cst_146 = arith.constant 8.000000e+00 : f32
    %263 = vector.broadcast %cst_146 : f32 to vector<1x768xf32>
    %264 = arith.divf %262, %263 : vector<1x768xf32>
    %265 = arith.mulf %260, %260 : vector<8x768xf32>
    %cst_147 = arith.constant dense<0.000000e+00> : vector<768xf32>
    %266 = vector.multi_reduction <add>, %265, %cst_147 [0] : vector<8x768xf32> to vector<768xf32>
    %267 = vector.shape_cast %266 : vector<768xf32> to vector<1x768xf32>
    %cst_148 = arith.constant 8.000000e+00 : f32
    %268 = vector.broadcast %cst_148 : f32 to vector<1x768xf32>
    %269 = arith.divf %267, %268 : vector<1x768xf32>
    %270 = arith.mulf %264, %264 : vector<1x768xf32>
    %271 = arith.subf %269, %270 : vector<1x768xf32>
    %cst_149 = arith.constant 0.000000e+00 : f32
    %272 = vector.broadcast %cst_149 : f32 to vector<1x768xf32>
    %273 = arith.maximumf %271, %272 : vector<1x768xf32>
    %274 = vector.broadcast %264 : vector<1x768xf32> to vector<8x768xf32>
    %275 = arith.subf %260, %274 : vector<8x768xf32>
    %cst_150 = arith.constant 9.99999974E-6 : f32
    %276 = vector.broadcast %cst_150 : f32 to vector<1x768xf32>
    %277 = arith.addf %273, %276 : vector<1x768xf32>
    %278 = math.rsqrt %277 : vector<1x768xf32>
    %279 = vector.broadcast %278 : vector<1x768xf32> to vector<8x768xf32>
    %280 = arith.mulf %275, %279 : vector<8x768xf32>
    %281 = vector.broadcast %231 : vector<1x768xf32> to vector<8x768xf32>
    %282 = arith.mulf %280, %281 : vector<8x768xf32>
    %283 = vector.broadcast %232 : vector<1x768xf32> to vector<8x768xf32>
    %284 = arith.addf %282, %283 : vector<8x768xf32>
    %cst_151 = arith.constant 0.000000e+00 : f32
    %285 = vector.broadcast %cst_151 : f32 to vector<8x768xf32>
    %286 = arith.maximumf %284, %285 : vector<8x768xf32>
    %287 = tpu.concatenate %259, %286 in 0 : vector<8x768xf32>, vector<8x768xf32> -> vector<16x768xf32>
    %288 = arith.truncf %287 : vector<16x768xf32> to vector<16x768xbf16>
    %c0_152 = arith.constant 0 : index
    %c0_153 = arith.constant 0 : index
    %289 = vector.load %arg23[%c0_152, %c0_153] : memref<768x128xbf16, #tpu.memory_space<vmem>>, vector<768x128xbf16>
    %cst_154 = arith.constant dense<0.000000e+00> : vector<16x128xf32>
    %290 = tpu.matmul %288, %289, %cst_154 {dimension_numbers = #tpu.dot_dimension_numbers<[1], [0], [0], [1], [0, 0, 1, 1], [], []>} : vector<16x768xbf16>, vector<768x128xbf16>, vector<16x128xf32> -> vector<16x128xf32>
    %c0_155 = arith.constant 0 : index
    %c0_156 = arith.constant 0 : index
    %291 = vector.load %arg24[%c0_155, %c0_156] : memref<1x128xf32, #tpu.memory_space<vmem>>, vector<1x128xf32>
    %292 = vector.broadcast %291 : vector<1x128xf32> to vector<16x128xf32>
    %293 = arith.addf %290, %292 : vector<16x128xf32>
    %c0_157 = arith.constant 0 : index
    %c0_158 = arith.constant 0 : index
    %294 = vector.load %arg25[%c0_157, %c0_158] : memref<1x128xf32, #tpu.memory_space<vmem>>, vector<1x128xf32>
    %c0_159 = arith.constant 0 : index
    %c0_160 = arith.constant 0 : index
    %295 = vector.load %arg26[%c0_159, %c0_160] : memref<1x128xf32, #tpu.memory_space<vmem>>, vector<1x128xf32>
    %296 = vector.extract_strided_slice %293 {offsets = [0, 0], sizes = [8, 128], strides = [1, 1]} : vector<16x128xf32> to vector<8x128xf32>
    %cst_161 = arith.constant dense<0.000000e+00> : vector<128xf32>
    %297 = vector.multi_reduction <add>, %296, %cst_161 [0] : vector<8x128xf32> to vector<128xf32>
    %298 = vector.shape_cast %297 : vector<128xf32> to vector<1x128xf32>
    %cst_162 = arith.constant 8.000000e+00 : f32
    %299 = vector.broadcast %cst_162 : f32 to vector<1x128xf32>
    %300 = arith.divf %298, %299 : vector<1x128xf32>
    %301 = arith.mulf %296, %296 : vector<8x128xf32>
    %cst_163 = arith.constant dense<0.000000e+00> : vector<128xf32>
    %302 = vector.multi_reduction <add>, %301, %cst_163 [0] : vector<8x128xf32> to vector<128xf32>
    %303 = vector.shape_cast %302 : vector<128xf32> to vector<1x128xf32>
    %cst_164 = arith.constant 8.000000e+00 : f32
    %304 = vector.broadcast %cst_164 : f32 to vector<1x128xf32>
    %305 = arith.divf %303, %304 : vector<1x128xf32>
    %306 = arith.mulf %300, %300 : vector<1x128xf32>
    %307 = arith.subf %305, %306 : vector<1x128xf32>
    %cst_165 = arith.constant 0.000000e+00 : f32
    %308 = vector.broadcast %cst_165 : f32 to vector<1x128xf32>
    %309 = arith.maximumf %307, %308 : vector<1x128xf32>
    %310 = vector.broadcast %300 : vector<1x128xf32> to vector<8x128xf32>
    %311 = arith.subf %296, %310 : vector<8x128xf32>
    %cst_166 = arith.constant 9.99999974E-6 : f32
    %312 = vector.broadcast %cst_166 : f32 to vector<1x128xf32>
    %313 = arith.addf %309, %312 : vector<1x128xf32>
    %314 = math.rsqrt %313 : vector<1x128xf32>
    %315 = vector.broadcast %314 : vector<1x128xf32> to vector<8x128xf32>
    %316 = arith.mulf %311, %315 : vector<8x128xf32>
    %317 = vector.broadcast %294 : vector<1x128xf32> to vector<8x128xf32>
    %318 = arith.mulf %316, %317 : vector<8x128xf32>
    %319 = vector.broadcast %295 : vector<1x128xf32> to vector<8x128xf32>
    %320 = arith.addf %318, %319 : vector<8x128xf32>
    %cst_167 = arith.constant 0.000000e+00 : f32
    %321 = vector.broadcast %cst_167 : f32 to vector<8x128xf32>
    %322 = arith.maximumf %320, %321 : vector<8x128xf32>
    %323 = vector.extract_strided_slice %293 {offsets = [8, 0], sizes = [8, 128], strides = [1, 1]} : vector<16x128xf32> to vector<8x128xf32>
    %cst_168 = arith.constant dense<0.000000e+00> : vector<128xf32>
    %324 = vector.multi_reduction <add>, %323, %cst_168 [0] : vector<8x128xf32> to vector<128xf32>
    %325 = vector.shape_cast %324 : vector<128xf32> to vector<1x128xf32>
    %cst_169 = arith.constant 8.000000e+00 : f32
    %326 = vector.broadcast %cst_169 : f32 to vector<1x128xf32>
    %327 = arith.divf %325, %326 : vector<1x128xf32>
    %328 = arith.mulf %323, %323 : vector<8x128xf32>
    %cst_170 = arith.constant dense<0.000000e+00> : vector<128xf32>
    %329 = vector.multi_reduction <add>, %328, %cst_170 [0] : vector<8x128xf32> to vector<128xf32>
    %330 = vector.shape_cast %329 : vector<128xf32> to vector<1x128xf32>
    %cst_171 = arith.constant 8.000000e+00 : f32
    %331 = vector.broadcast %cst_171 : f32 to vector<1x128xf32>
    %332 = arith.divf %330, %331 : vector<1x128xf32>
    %333 = arith.mulf %327, %327 : vector<1x128xf32>
    %334 = arith.subf %332, %333 : vector<1x128xf32>
    %cst_172 = arith.constant 0.000000e+00 : f32
    %335 = vector.broadcast %cst_172 : f32 to vector<1x128xf32>
    %336 = arith.maximumf %334, %335 : vector<1x128xf32>
    %337 = vector.broadcast %327 : vector<1x128xf32> to vector<8x128xf32>
    %338 = arith.subf %323, %337 : vector<8x128xf32>
    %cst_173 = arith.constant 9.99999974E-6 : f32
    %339 = vector.broadcast %cst_173 : f32 to vector<1x128xf32>
    %340 = arith.addf %336, %339 : vector<1x128xf32>
    %341 = math.rsqrt %340 : vector<1x128xf32>
    %342 = vector.broadcast %341 : vector<1x128xf32> to vector<8x128xf32>
    %343 = arith.mulf %338, %342 : vector<8x128xf32>
    %344 = vector.broadcast %294 : vector<1x128xf32> to vector<8x128xf32>
    %345 = arith.mulf %343, %344 : vector<8x128xf32>
    %346 = vector.broadcast %295 : vector<1x128xf32> to vector<8x128xf32>
    %347 = arith.addf %345, %346 : vector<8x128xf32>
    %cst_174 = arith.constant 0.000000e+00 : f32
    %348 = vector.broadcast %cst_174 : f32 to vector<8x128xf32>
    %349 = arith.maximumf %347, %348 : vector<8x128xf32>
    %350 = tpu.concatenate %322, %349 in 0 : vector<8x128xf32>, vector<8x128xf32> -> vector<16x128xf32>
    %351 = arith.truncf %350 : vector<16x128xf32> to vector<16x128xbf16>
    %c0_175 = arith.constant 0 : index
    %c0_176 = arith.constant 0 : index
    %352 = vector.load %arg27[%c0_175, %c0_176] : memref<128x768xbf16, #tpu.memory_space<vmem>>, vector<128x768xbf16>
    %cst_177 = arith.constant dense<0.000000e+00> : vector<16x768xf32>
    %353 = tpu.matmul %351, %352, %cst_177 {dimension_numbers = #tpu.dot_dimension_numbers<[1], [0], [0], [1], [0, 0, 1, 1], [], []>} : vector<16x128xbf16>, vector<128x768xbf16>, vector<16x768xf32> -> vector<16x768xf32>
    %c0_178 = arith.constant 0 : index
    %c0_179 = arith.constant 0 : index
    %354 = vector.load %arg28[%c0_178, %c0_179] : memref<1x768xf32, #tpu.memory_space<vmem>>, vector<1x768xf32>
    %355 = vector.broadcast %354 : vector<1x768xf32> to vector<16x768xf32>
    %356 = arith.addf %353, %355 : vector<16x768xf32>
    %c0_180 = arith.constant 0 : index
    %c0_181 = arith.constant 0 : index
    %357 = vector.load %arg35[%c0_180, %c0_181] : memref<16x768xf32, #tpu.memory_space<vmem>>, vector<16x768xf32>
    tpu.vector_store %arg35[%c0_180, %c0_181], %356 {strides = array<i32>} : memref<16x768xf32, #tpu.memory_space<vmem>>, vector<16x768xf32>,
    %c0_182 = arith.constant 0 : index
    %c0_183 = arith.constant 0 : index
    %358 = vector.load %arg2[%c0_182, %c0_183] : memref<16x768xf32, #tpu.memory_space<vmem>>, vector<16x768xf32>
    %cst_184 = arith.constant 1.000000e-03 : f32
    %359 = vector.broadcast %cst_184 : f32 to vector<16x768xf32>
    %360 = arith.mulf %358, %359 : vector<16x768xf32>
    %361 = arith.addf %356, %360 : vector<16x768xf32>
    %362 = arith.truncf %361 : vector<16x768xf32> to vector<16x768xbf16>
    %c0_185 = arith.constant 0 : index
    %c0_186 = arith.constant 0 : index
    %363 = vector.load %arg29[%c0_185, %c0_186] : memref<768x128xbf16, #tpu.memory_space<vmem>>, vector<768x128xbf16>
    %cst_187 = arith.constant dense<0.000000e+00> : vector<16x128xf32>
    %364 = tpu.matmul %362, %363, %cst_187 {dimension_numbers = #tpu.dot_dimension_numbers<[1], [0], [0], [1], [0, 0, 1, 1], [], []>} : vector<16x768xbf16>, vector<768x128xbf16>, vector<16x128xf32> -> vector<16x128xf32>
    %c0_188 = arith.constant 0 : index
    %c0_189 = arith.constant 0 : index
    %365 = vector.load %arg30[%c0_188, %c0_189] : memref<1x128xf32, #tpu.memory_space<vmem>>, vector<1x128xf32>
    %366 = vector.broadcast %365 : vector<1x128xf32> to vector<16x128xf32>
    %367 = arith.addf %364, %366 : vector<16x128xf32>
    %c0_190 = arith.constant 0 : index
    %c0_191 = arith.constant 0 : index
    %368 = vector.load %arg31[%c0_190, %c0_191] : memref<1x128xf32, #tpu.memory_space<vmem>>, vector<1x128xf32>
    %c0_192 = arith.constant 0 : index
    %c0_193 = arith.constant 0 : index
    %369 = vector.load %arg32[%c0_192, %c0_193] : memref<1x128xf32, #tpu.memory_space<vmem>>, vector<1x128xf32>
    %370 = vector.extract_strided_slice %367 {offsets = [0, 0], sizes = [8, 128], strides = [1, 1]} : vector<16x128xf32> to vector<8x128xf32>
    %cst_194 = arith.constant dense<0.000000e+00> : vector<128xf32>
    %371 = vector.multi_reduction <add>, %370, %cst_194 [0] : vector<8x128xf32> to vector<128xf32>
    %372 = vector.shape_cast %371 : vector<128xf32> to vector<1x128xf32>
    %cst_195 = arith.constant 8.000000e+00 : f32
    %373 = vector.broadcast %cst_195 : f32 to vector<1x128xf32>
    %374 = arith.divf %372, %373 : vector<1x128xf32>
    %375 = arith.mulf %370, %370 : vector<8x128xf32>
    %cst_196 = arith.constant dense<0.000000e+00> : vector<128xf32>
    %376 = vector.multi_reduction <add>, %375, %cst_196 [0] : vector<8x128xf32> to vector<128xf32>
    %377 = vector.shape_cast %376 : vector<128xf32> to vector<1x128xf32>
    %cst_197 = arith.constant 8.000000e+00 : f32
    %378 = vector.broadcast %cst_197 : f32 to vector<1x128xf32>
    %379 = arith.divf %377, %378 : vector<1x128xf32>
    %380 = arith.mulf %374, %374 : vector<1x128xf32>
    %381 = arith.subf %379, %380 : vector<1x128xf32>
    %cst_198 = arith.constant 0.000000e+00 : f32
    %382 = vector.broadcast %cst_198 : f32 to vector<1x128xf32>
    %383 = arith.maximumf %381, %382 : vector<1x128xf32>
    %384 = vector.broadcast %374 : vector<1x128xf32> to vector<8x128xf32>
    %385 = arith.subf %370, %384 : vector<8x128xf32>
    %cst_199 = arith.constant 9.99999974E-6 : f32
    %386 = vector.broadcast %cst_199 : f32 to vector<1x128xf32>
    %387 = arith.addf %383, %386 : vector<1x128xf32>
    %388 = math.rsqrt %387 : vector<1x128xf32>
    %389 = vector.broadcast %388 : vector<1x128xf32> to vector<8x128xf32>
    %390 = arith.mulf %385, %389 : vector<8x128xf32>
    %391 = vector.broadcast %368 : vector<1x128xf32> to vector<8x128xf32>
    %392 = arith.mulf %390, %391 : vector<8x128xf32>
    %393 = vector.broadcast %369 : vector<1x128xf32> to vector<8x128xf32>
    %394 = arith.addf %392, %393 : vector<8x128xf32>
    %cst_200 = arith.constant 0.000000e+00 : f32
    %395 = vector.broadcast %cst_200 : f32 to vector<8x128xf32>
    %396 = arith.maximumf %394, %395 : vector<8x128xf32>
    %397 = vector.extract_strided_slice %367 {offsets = [8, 0], sizes = [8, 128], strides = [1, 1]} : vector<16x128xf32> to vector<8x128xf32>
    %cst_201 = arith.constant dense<0.000000e+00> : vector<128xf32>
    %398 = vector.multi_reduction <add>, %397, %cst_201 [0] : vector<8x128xf32> to vector<128xf32>
    %399 = vector.shape_cast %398 : vector<128xf32> to vector<1x128xf32>
    %cst_202 = arith.constant 8.000000e+00 : f32
    %400 = vector.broadcast %cst_202 : f32 to vector<1x128xf32>
    %401 = arith.divf %399, %400 : vector<1x128xf32>
    %402 = arith.mulf %397, %397 : vector<8x128xf32>
    %cst_203 = arith.constant dense<0.000000e+00> : vector<128xf32>
    %403 = vector.multi_reduction <add>, %402, %cst_203 [0] : vector<8x128xf32> to vector<128xf32>
    %404 = vector.shape_cast %403 : vector<128xf32> to vector<1x128xf32>
    %cst_204 = arith.constant 8.000000e+00 : f32
    %405 = vector.broadcast %cst_204 : f32 to vector<1x128xf32>
    %406 = arith.divf %404, %405 : vector<1x128xf32>
    %407 = arith.mulf %401, %401 : vector<1x128xf32>
    %408 = arith.subf %406, %407 : vector<1x128xf32>
    %cst_205 = arith.constant 0.000000e+00 : f32
    %409 = vector.broadcast %cst_205 : f32 to vector<1x128xf32>
    %410 = arith.maximumf %408, %409 : vector<1x128xf32>
    %411 = vector.broadcast %401 : vector<1x128xf32> to vector<8x128xf32>
    %412 = arith.subf %397, %411 : vector<8x128xf32>
    %cst_206 = arith.constant 9.99999974E-6 : f32
    %413 = vector.broadcast %cst_206 : f32 to vector<1x128xf32>
    %414 = arith.addf %410, %413 : vector<1x128xf32>
    %415 = math.rsqrt %414 : vector<1x128xf32>
    %416 = vector.broadcast %415 : vector<1x128xf32> to vector<8x128xf32>
    %417 = arith.mulf %412, %416 : vector<8x128xf32>
    %418 = vector.broadcast %368 : vector<1x128xf32> to vector<8x128xf32>
    %419 = arith.mulf %417, %418 : vector<8x128xf32>
    %420 = vector.broadcast %369 : vector<1x128xf32> to vector<8x128xf32>
    %421 = arith.addf %419, %420 : vector<8x128xf32>
    %cst_207 = arith.constant 0.000000e+00 : f32
    %422 = vector.broadcast %cst_207 : f32 to vector<8x128xf32>
    %423 = arith.maximumf %421, %422 : vector<8x128xf32>
    %424 = tpu.concatenate %396, %423 in 0 : vector<8x128xf32>, vector<8x128xf32> -> vector<16x128xf32>
    %425 = arith.truncf %424 : vector<16x128xf32> to vector<16x128xbf16>
    %c0_208 = arith.constant 0 : index
    %c0_209 = arith.constant 0 : index
    %426 = vector.load %arg33[%c0_208, %c0_209] : memref<128x768xbf16, #tpu.memory_space<vmem>>, vector<128x768xbf16>
    %cst_210 = arith.constant dense<0.000000e+00> : vector<16x768xf32>
    %427 = tpu.matmul %425, %426, %cst_210 {dimension_numbers = #tpu.dot_dimension_numbers<[1], [0], [0], [1], [0, 0, 1, 1], [], []>} : vector<16x128xbf16>, vector<128x768xbf16>, vector<16x768xf32> -> vector<16x768xf32>
    %c0_211 = arith.constant 0 : index
    %c0_212 = arith.constant 0 : index
    %428 = vector.load %arg34[%c0_211, %c0_212] : memref<1x768xf32, #tpu.memory_space<vmem>>, vector<1x768xf32>
    %429 = vector.broadcast %428 : vector<1x768xf32> to vector<16x768xf32>
    %430 = arith.addf %427, %429 : vector<16x768xf32>
    %c0_213 = arith.constant 0 : index
    %c0_214 = arith.constant 0 : index
    %431 = vector.load %arg36[%c0_213, %c0_214] : memref<16x768xf32, #tpu.memory_space<vmem>>, vector<16x768xf32>
    tpu.vector_store %arg36[%c0_213, %c0_214], %430 {strides = array<i32>} : memref<16x768xf32, #tpu.memory_space<vmem>>, vector<16x768xf32>,
    return
  }
}

</mosaic_0001>

<llo_original>
// kernel: net_forward.1
$region0: #{net_forward.1}
  #allocation0 [shape = 'u32[]', space=smem, size = 0x4, offset = 0x4, fixed_abs, tag = 'smem constant byte address 0x4 - core index']
  #allocation1 [shape = 'u32[144,128]{1,0:T(1,128)}', space=vmem, size = 0x12000, scoped, tag = 'internal scratch']
  %s0 = inlined_call_operand.smem [shape: u32[37], index: -1, kind: input, shape index: {}]
  %s1 = sld [smem:[%s0]]
  %s2 = scalar_lea.smem %s0, 1
  %s3 = sld [smem:[%s2]]
  %s4 = scalar_lea.smem %s0, 2
  %s5 = sld [smem:[%s4]]
  %s6 = scalar_lea.smem %s0, 3
  %s7 = sld [smem:[%s6]]
  %s8 = scalar_lea.smem %s0, 4
  %s9 = sld [smem:[%s8]]
  %s10 = scalar_lea.smem %s0, 5
  %s11 = sld [smem:[%s10]]
  %s12 = scalar_lea.smem %s0, 6
  %s13 = sld [smem:[%s12]]
  %s14 = scalar_lea.smem %s0, 7
  %s15 = sld [smem:[%s14]]
  %s16 = scalar_lea.smem %s0, 8
  %s17 = sld [smem:[%s16]]
  %s18 = scalar_lea.smem %s0, 9
  %s19 = sld [smem:[%s18]]
  %s20 = scalar_lea.smem %s0, 10
  %s21 = sld [smem:[%s20]]
  %s22 = scalar_lea.smem %s0, 11
  %s23 = sld [smem:[%s22]]
  %s24 = scalar_lea.smem %s0, 12
  %s25 = sld [smem:[%s24]]
  %s26 = scalar_lea.smem %s0, 13
  %s27 = sld [smem:[%s26]]
  %s28 = scalar_lea.smem %s0, 14
  %s29 = sld [smem:[%s28]]
  %s30 = scalar_lea.smem %s0, 15
  %s31 = sld [smem:[%s30]]
  %s32 = scalar_lea.smem %s0, 16
  %s33 = sld [smem:[%s32]]
  %s34 = scalar_lea.smem %s0, 17
  %s35 = sld [smem:[%s34]]
  %s36 = scalar_lea.smem %s0, 18
  %s37 = sld [smem:[%s36]]
  %s38 = scalar_lea.smem %s0, 19
  %s39 = sld [smem:[%s38]]
  %s40 = scalar_lea.smem %s0, 20
  %s41 = sld [smem:[%s40]]
  %s42 = scalar_lea.smem %s0, 21
  %s43 = sld [smem:[%s42]]
  %s44 = scalar_lea.smem %s0, 22
  %s45 = sld [smem:[%s44]]
  %s46 = scalar_lea.smem %s0, 23
  %s47 = sld [smem:[%s46]]
  %s48 = scalar_lea.smem %s0, 24
  %s49 = sld [smem:[%s48]]
  %s50 = scalar_lea.smem %s0, 25
  %s51 = sld [smem:[%s50]]
  %s52 = scalar_lea.smem %s0, 26
  %s53 = sld [smem:[%s52]]
  %s54 = scalar_lea.smem %s0, 27
  %s55 = sld [smem:[%s54]]
  %s56 = scalar_lea.smem %s0, 28
  %s57 = sld [smem:[%s56]]
  %s58 = scalar_lea.smem %s0, 29
  %s59 = sld [smem:[%s58]]
  %s60 = scalar_lea.smem %s0, 30
  %s61 = sld [smem:[%s60]]
  %s62 = scalar_lea.smem %s0, 31
  %s63 = sld [smem:[%s62]]
  %s64 = scalar_lea.smem %s0, 32
  %s65 = sld [smem:[%s64]]
  %s66 = scalar_lea.smem %s0, 33
  %s67 = sld [smem:[%s66]]
  %s68 = scalar_lea.smem %s0, 34
  %s69 = sld [smem:[%s68]]
  %s70 = scalar_lea.smem %s0, 35
  %s71 = sld [smem:[%s70]]
  %s72 = scalar_lea.smem %s0, 36
  %s73 = sld [smem:[%s72]]
  %74 = xla_tuple %s71, %s73
  %s75 = sld [smem:[#allocation0]]
  $region158: #{net_forward.1} parent=0
    _
  %s77 = ssub.s32 1, %s75
  %s78 = scalar_select 0, %s77, %s75
  // Predicated region
  $region2: #{net_forward.1} parent=0 // pred_check
    _
  $region3: #{net_forward.1} parent=0 // pred_check_branch
    %80 = sbr.rel (0) target = $region5
  $region4: #{net_forward.1} parent=0 // pred_region
    _
  $region5: #{net_forward.1} parent=0 // pred_fallthru
    _
  // Predicated region
  $region6: #{net_forward.1} parent=0 // pred_check
    _
  $region7: #{net_forward.1} parent=0 // pred_check_branch
    %82 = sbr.rel (0) target = $region9
  $region8: #{net_forward.1} parent=0 // pred_region
    _
  $region9: #{net_forward.1} parent=0 // pred_fallthru
    _
  // Predicated region
  $region10: #{net_forward.1} parent=0 // pred_check
    _
  $region11: #{net_forward.1} parent=0 // pred_check_branch
    %84 = sbr.rel (0) target = $region13
  $region12: #{net_forward.1} parent=0 // pred_region
    _
  $region13: #{net_forward.1} parent=0 // pred_fallthru
    _
  // Predicated region
  $region14: #{net_forward.1} parent=0 // pred_check
    _
  $region15: #{net_forward.1} parent=0 // pred_check_branch
    %86 = sbr.rel (0) target = $region17
  $region16: #{net_forward.1} parent=0 // pred_region
    _
  $region17: #{net_forward.1} parent=0 // pred_fallthru
    _
  // Predicated region
  $region18: #{net_forward.1} parent=0 // pred_check
    _
  $region19: #{net_forward.1} parent=0 // pred_check_branch
    %88 = sbr.rel (0) target = $region21
  $region20: #{net_forward.1} parent=0 // pred_region
    _
  $region21: #{net_forward.1} parent=0 // pred_fallthru
    _
  // Predicated region
  $region22: #{net_forward.1} parent=0 // pred_check
    _
  $region23: #{net_forward.1} parent=0 // pred_check_branch
    %90 = sbr.rel (0) target = $region25
  $region24: #{net_forward.1} parent=0 // pred_region
    _
  $region25: #{net_forward.1} parent=0 // pred_fallthru
    _
  // Predicated region
  $region26: #{net_forward.1} parent=0 // pred_check
    _
  $region27: #{net_forward.1} parent=0 // pred_check_branch
    %92 = sbr.rel (0) target = $region29
  $region28: #{net_forward.1} parent=0 // pred_region
    _
  $region29: #{net_forward.1} parent=0 // pred_fallthru
    _
  // Predicated region
  $region30: #{net_forward.1} parent=0 // pred_check
    _
  $region31: #{net_forward.1} parent=0 // pred_check_branch
    %94 = sbr.rel (0) target = $region33
  $region32: #{net_forward.1} parent=0 // pred_region
    _
  $region33: #{net_forward.1} parent=0 // pred_fallthru
    _
  // Predicated region
  $region34: #{net_forward.1} parent=0 // pred_check
    _
  $region35: #{net_forward.1} parent=0 // pred_check_branch
    %96 = sbr.rel (0) target = $region37
  $region36: #{net_forward.1} parent=0 // pred_region
    _
  $region37: #{net_forward.1} parent=0 // pred_fallthru
    _
  // Predicated region
  $region38: #{net_forward.1} parent=0 // pred_check
    _
  $region39: #{net_forward.1} parent=0 // pred_check_branch
    %98 = sbr.rel (0) target = $region41
  $region40: #{net_forward.1} parent=0 // pred_region
    _
  $region41: #{net_forward.1} parent=0 // pred_fallthru
    _
  // Predicated region
  $region42: #{net_forward.1} parent=0 // pred_check
    _
  $region43: #{net_forward.1} parent=0 // pred_check_branch
    %100 = sbr.rel (0) target = $region45
  $region44: #{net_forward.1} parent=0 // pred_region
    _
  $region45: #{net_forward.1} parent=0 // pred_fallthru
    _
  // Predicated region
  $region46: #{net_forward.1} parent=0 // pred_check
    _
  $region47: #{net_forward.1} parent=0 // pred_check_branch
    %102 = sbr.rel (0) target = $region49
  $region48: #{net_forward.1} parent=0 // pred_region
    _
  $region49: #{net_forward.1} parent=0 // pred_fallthru
    _
  // Predicated region
  $region50: #{net_forward.1} parent=0 // pred_check
    _
  $region51: #{net_forward.1} parent=0 // pred_check_branch
    %104 = sbr.rel (0) target = $region53
  $region52: #{net_forward.1} parent=0 // pred_region
    _
  $region53: #{net_forward.1} parent=0 // pred_fallthru
    _
  // Predicated region
  $region54: #{net_forward.1} parent=0 // pred_check
    _
  $region55: #{net_forward.1} parent=0 // pred_check_branch
    %106 = sbr.rel (0) target = $region57
  $region56: #{net_forward.1} parent=0 // pred_region
    _
  $region57: #{net_forward.1} parent=0 // pred_fallthru
    _
  // Predicated region
  $region58: #{net_forward.1} parent=0 // pred_check
    _
  $region59: #{net_forward.1} parent=0 // pred_check_branch
    %108 = sbr.rel (0) target = $region61
  $region60: #{net_forward.1} parent=0 // pred_region
    _
  $region61: #{net_forward.1} parent=0 // pred_fallthru
    _
  // Predicated region
  $region62: #{net_forward.1} parent=0 // pred_check
    _
  $region63: #{net_forward.1} parent=0 // pred_check_branch
    %110 = sbr.rel (0) target = $region65
  $region64: #{net_forward.1} parent=0 // pred_region
    _
  $region65: #{net_forward.1} parent=0 // pred_fallthru
    _
  // Predicated region
  $region66: #{net_forward.1} parent=0 // pred_check
    _
  $region67: #{net_forward.1} parent=0 // pred_check_branch
    %112 = sbr.rel (0) target = $region69
  $region68: #{net_forward.1} parent=0 // pred_region
    _
  $region69: #{net_forward.1} parent=0 // pred_fallthru
    _
  // Predicated region
  $region70: #{net_forward.1} parent=0 // pred_check
    _
  $region71: #{net_forward.1} parent=0 // pred_check_branch
    %114 = sbr.rel (0) target = $region73
  $region72: #{net_forward.1} parent=0 // pred_region
    _
  $region73: #{net_forward.1} parent=0 // pred_fallthru
    _
  // Predicated region
  $region74: #{net_forward.1} parent=0 // pred_check
    _
  $region75: #{net_forward.1} parent=0 // pred_check_branch
    %116 = sbr.rel (0) target = $region77
  $region76: #{net_forward.1} parent=0 // pred_region
    _
  $region77: #{net_forward.1} parent=0 // pred_fallthru
    _
  // Predicated region
  $region78: #{net_forward.1} parent=0 // pred_check
    _
  $region79: #{net_forward.1} parent=0 // pred_check_branch
    %118 = sbr.rel (0) target = $region81
  $region80: #{net_forward.1} parent=0 // pred_region
    _
  $region81: #{net_forward.1} parent=0 // pred_fallthru
    _
  // Predicated region
  $region82: #{net_forward.1} parent=0 // pred_check
    _
  $region83: #{net_forward.1} parent=0 // pred_check_branch
    %120 = sbr.rel (0) target = $region85
  $region84: #{net_forward.1} parent=0 // pred_region
    _
  $region85: #{net_forward.1} parent=0 // pred_fallthru
    _
  // Predicated region
  $region86: #{net_forward.1} parent=0 // pred_check
    _
  $region87: #{net_forward.1} parent=0 // pred_check_branch
    %122 = sbr.rel (0) target = $region89
  $region88: #{net_forward.1} parent=0 // pred_region
    _
  $region89: #{net_forward.1} parent=0 // pred_fallthru
    _
  // Predicated region
  $region90: #{net_forward.1} parent=0 // pred_check
    _
  $region91: #{net_forward.1} parent=0 // pred_check_branch
    %124 = sbr.rel (0) target = $region93
  $region92: #{net_forward.1} parent=0 // pred_region
    _
  $region93: #{net_forward.1} parent=0 // pred_fallthru
    _
  // Predicated region
  $region94: #{net_forward.1} parent=0 // pred_check
    _
  $region95: #{net_forward.1} parent=0 // pred_check_branch
    %126 = sbr.rel (0) target = $region97
  $region96: #{net_forward.1} parent=0 // pred_region
    _
  $region97: #{net_forward.1} parent=0 // pred_fallthru
    _
  // Predicated region
  $region98: #{net_forward.1} parent=0 // pred_check
    _
  $region99: #{net_forward.1} parent=0 // pred_check_branch
    %128 = sbr.rel (0) target = $region101
  $region100: #{net_forward.1} parent=0 // pred_region
    _
  $region101: #{net_forward.1} parent=0 // pred_fallthru
    _
  // Predicated region
  $region102: #{net_forward.1} parent=0 // pred_check
    _
  $region103: #{net_forward.1} parent=0 // pred_check_branch
    %130 = sbr.rel (0) target = $region105
  $region104: #{net_forward.1} parent=0 // pred_region
    _
  $region105: #{net_forward.1} parent=0 // pred_fallthru
    _
  // Predicated region
  $region106: #{net_forward.1} parent=0 // pred_check
    _
  $region107: #{net_forward.1} parent=0 // pred_check_branch
    %132 = sbr.rel (0) target = $region109
  $region108: #{net_forward.1} parent=0 // pred_region
    _
  $region109: #{net_forward.1} parent=0 // pred_fallthru
    _
  // Predicated region
  $region110: #{net_forward.1} parent=0 // pred_check
    _
  $region111: #{net_forward.1} parent=0 // pred_check_branch
    %134 = sbr.rel (0) target = $region113
  $region112: #{net_forward.1} parent=0 // pred_region
    _
  $region113: #{net_forward.1} parent=0 // pred_fallthru
    _
  // Predicated region
  $region114: #{net_forward.1} parent=0 // pred_check
    _
  $region115: #{net_forward.1} parent=0 // pred_check_branch
    %136 = sbr.rel (0) target = $region117
  $region116: #{net_forward.1} parent=0 // pred_region
    _
  $region117: #{net_forward.1} parent=0 // pred_fallthru
    _
  // Predicated region
  $region118: #{net_forward.1} parent=0 // pred_check
    _
  $region119: #{net_forward.1} parent=0 // pred_check_branch
    %138 = sbr.rel (0) target = $region121
  $region120: #{net_forward.1} parent=0 // pred_region
    _
  $region121: #{net_forward.1} parent=0 // pred_fallthru
    _
  // Predicated region
  $region122: #{net_forward.1} parent=0 // pred_check
    _
  $region123: #{net_forward.1} parent=0 // pred_check_branch
    %140 = sbr.rel (0) target = $region125
  $region124: #{net_forward.1} parent=0 // pred_region
    _
  $region125: #{net_forward.1} parent=0 // pred_fallthru
    _
  // Predicated region
  $region126: #{net_forward.1} parent=0 // pred_check
    _
  $region127: #{net_forward.1} parent=0 // pred_check_branch
    %142 = sbr.rel (0) target = $region129
  $region128: #{net_forward.1} parent=0 // pred_region
    _
  $region129: #{net_forward.1} parent=0 // pred_fallthru
    _
  // Predicated region
  $region130: #{net_forward.1} parent=0 // pred_check
    _
  $region131: #{net_forward.1} parent=0 // pred_check_branch
    %144 = sbr.rel (0) target = $region133
  $region132: #{net_forward.1} parent=0 // pred_region
    _
  $region133: #{net_forward.1} parent=0 // pred_fallthru
    _
  // Predicated region
  $region134: #{net_forward.1} parent=0 // pred_check
    _
  $region135: #{net_forward.1} parent=0 // pred_check_branch
    %146 = sbr.rel (0) target = $region137
  $region136: #{net_forward.1} parent=0 // pred_region
    _
  $region137: #{net_forward.1} parent=0 // pred_fallthru
    _
  // Predicated region
  $region138: #{net_forward.1} parent=0 // pred_check
    _
  $region139: #{net_forward.1} parent=0 // pred_check_branch
    %148 = sbr.rel (0) target = $region141
  $region140: #{net_forward.1} parent=0 // pred_region
    _
  $region141: #{net_forward.1} parent=0 // pred_fallthru
    _
  %v150 = vld [vmem:[%s1] sm:$0xff]
  %v151 = vld [vmem:[%s1 + $0x8] sm:$0xff]
  %v152 = vld [vmem:[%s3] sm:$0xff]
  %v153 = vld [vmem:[%s3 + $0x8] sm:$0xff]
  %v154 = vpack.c.bf16 %v151, %v150
  %v155 = vld [vmem:[%s7] sm:$0xff]
  %v156 = vld [vmem:[%s7 + $0x8] sm:$0xff]
  %v157 = vld [vmem:[%s7 + $0x10] sm:$0xff]
  %v158 = vld [vmem:[%s7 + $0x18] sm:$0xff]
  %v159 = vld [vmem:[%s7 + $0x20] sm:$0xff]
  %v160 = vld [vmem:[%s7 + $0x28] sm:$0xff]
  %v161 = vld [vmem:[%s7 + $0x30] sm:$0xff]
  %v162 = vld [vmem:[%s7 + $0x38] sm:$0xff]
  %v163 = vld [vmem:[%s9] sm:$0xf]
  %v165 = vlaneseq
  %v166 = vshrl.u32 %v165, 7
  %v167 = vsub.s32 0, %v166
  %v168 = vrot.slane %v163, %v167
  %v169 = vlaneseq
  %v170 = vshrl.u32 %v169, 7
  %v171 = vsub.s32 1, %v170
  %v172 = vrot.slane %v163, %v171
  %v173 = vlaneseq
  %v174 = vshrl.u32 %v173, 7
  %v175 = vsub.s32 2, %v174
  %v176 = vrot.slane %v163, %v175
  %v177 = vlaneseq
  %v178 = vshrl.u32 %v177, 7
  %v179 = vsub.s32 3, %v178
  %v180 = vrot.slane %v163, %v179
  %v193 = vunpack.c.l.b16 %v155
  %v194 = vunpack.c.h.b16 %v155
  %v195 = vunpack.c.l.b16 %v156
  %v196 = vunpack.c.h.b16 %v156
  %v197 = vunpack.c.l.b16 %v157
  %v198 = vunpack.c.h.b16 %v157
  %v199 = vunpack.c.l.b16 %v158
  %v200 = vunpack.c.h.b16 %v158
  %v201 = vunpack.c.l.b16 %v159
  %v202 = vunpack.c.h.b16 %v159
  %v203 = vunpack.c.l.b16 %v160
  %v204 = vunpack.c.h.b16 %v160
  %v205 = vunpack.c.l.b16 %v161
  %v206 = vunpack.c.h.b16 %v161
  %v207 = vunpack.c.l.b16 %v162
  %v208 = vunpack.c.h.b16 %v162
  %v209 = vpack.c.b16 %v197, %v193
  %v210 = vpack.c.b16 %v198, %v194
  %v211 = vpack.c.b16 %v199, %v195
  %v212 = vpack.c.b16 %v200, %v196
  %v213 = vpack.c.b16 %v205, %v201
  %v214 = vpack.c.b16 %v206, %v202
  %v215 = vpack.c.b16 %v207, %v203
  %v216 = vpack.c.b16 %v208, %v204
  %vm225 = vcmask 261120
  %v227 = vsel %vm225, %v154, 0
  %229 = vmatprep.subr.bf16.mxu0 %v210
  %230 = vmatpush1.bf16.msra.mxu0 %v209
  %231 = vmatprep.subr.bf16.mxu0 %v214
  %232 = vmatpush1.bf16.msra.mxu0 %v213
  %233 = vmatprep.subr.bf16.mxu0 0
  %234 = vmatpush1.bf16.msra.mxu0 0
  %235 = vmatprep.subr.bf16.mxu0 0
  %236 = vmatpush1.bf16.msra.mxu0 0
  %237 = vmatprep.subr.bf16.mxu0 0
  %238 = vmatpush1.bf16.msra.mxu0 0
  %239 = vmatprep.subr.bf16.mxu0 0
  %240 = vmatpush1.bf16.msra.mxu0 0
  %241 = vmatprep.subr.bf16.mxu0 0
  %242 = vmatpush1.bf16.msra.mxu0 0
  %243 = vmatprep.subr.bf16.mxu0 0
  %244 = vmatpush1.bf16.msra.mxu0 0
  %245 = vmatprep.subr.bf16.mxu0 0
  %246 = vmatpush1.bf16.msra.mxu0 0
  %247 = vmatprep.subr.bf16.mxu0 0
  %248 = vmatpush1.bf16.msra.mxu0 0
  %249 = vmatprep.subr.bf16.mxu0 0
  %250 = vmatpush1.bf16.msra.mxu0 0
  %251 = vmatprep.subr.bf16.mxu0 0
  %252 = vmatpush1.bf16.msra.mxu0 0
  %253 = vmatprep.subr.bf16.mxu0 0
  %254 = vmatpush1.bf16.msra.mxu0 0
  %255 = vmatprep.subr.bf16.mxu0 0
  %256 = vmatpush1.bf16.msra.mxu0 0
  %257 = vmatprep.subr.bf16.mxu0 0
  %258 = vmatpush1.bf16.msra.mxu0 0
  %259 = vmatprep.subr.bf16.mxu0 0
  %260 = vmatpush1.bf16.msra.mxu0 0
  %261 = vmatprep.mubr.bf16.mxu0 0
  %262 = vmatmul.mubr.bf16.gmra.mrb[0].mxu0 %v227
  %v263 = vpop.f32.mrb[0].mxu0
  %v264 = vadd.f32 %v168, %v263
  %v265 = vpop.f32.mrb[0].mxu0
  %v266 = vadd.f32 %v172, %v265
  %v267 = vpop.f32.mrb[0].mxu0
  %v268 = vadd.f32 %v168, %v267
  %v269 = vpop.f32.mrb[0].mxu0
  %v270 = vadd.f32 %v172, %v269
  %271 = vdwg.mxu0
  %272 = vmatprep.subr.bf16.mxu0 %v212
  %273 = vmatpush1.bf16.msra.mxu0 %v211
  %274 = vmatprep.subr.bf16.mxu0 %v216
  %275 = vmatpush1.bf16.msra.mxu0 %v215
  %276 = vmatprep.subr.bf16.mxu0 0
  %277 = vmatpush1.bf16.msra.mxu0 0
  %278 = vmatprep.subr.bf16.mxu0 0
  %279 = vmatpush1.bf16.msra.mxu0 0
  %280 = vmatprep.subr.bf16.mxu0 0
  %281 = vmatpush1.bf16.msra.mxu0 0
  %282 = vmatprep.subr.bf16.mxu0 0
  %283 = vmatpush1.bf16.msra.mxu0 0
  %284 = vmatprep.subr.bf16.mxu0 0
  %285 = vmatpush1.bf16.msra.mxu0 0
  %286 = vmatprep.subr.bf16.mxu0 0
  %287 = vmatpush1.bf16.msra.mxu0 0
  %288 = vmatprep.subr.bf16.mxu0 0
  %289 = vmatpush1.bf16.msra.mxu0 0
  %290 = vmatprep.subr.bf16.mxu0 0
  %291 = vmatpush1.bf16.msra.mxu0 0
  %292 = vmatprep.subr.bf16.mxu0 0
  %293 = vmatpush1.bf16.msra.mxu0 0
  %294 = vmatprep.subr.bf16.mxu0 0
  %295 = vmatpush1.bf16.msra.mxu0 0
  %296 = vmatprep.subr.bf16.mxu0 0
  %297 = vmatpush1.bf16.msra.mxu0 0
  %298 = vmatprep.subr.bf16.mxu0 0
  %299 = vmatpush1.bf16.msra.mxu0 0
  %300 = vmatprep.subr.bf16.mxu0 0
  %301 = vmatpush1.bf16.msra.mxu0 0
  %302 = vmatprep.subr.bf16.mxu0 0
  %303 = vmatpush1.bf16.msra.mxu0 0
  %304 = vmatprep.mubr.bf16.mxu0 0
  %305 = vmatmul.mubr.bf16.gmra.mrb[0].mxu0 %v227
  %v306 = vpop.f32.mrb[0].mxu0
  %v307 = vadd.f32 %v176, %v306
  %v308 = vpop.f32.mrb[0].mxu0
  %v309 = vadd.f32 %v180, %v308
  %v310 = vpop.f32.mrb[0].mxu0
  %v311 = vadd.f32 %v176, %v310
  %v312 = vpop.f32.mrb[0].mxu0
  %v313 = vadd.f32 %v180, %v312
  %314 = vdwg.mxu0
  %v315 = vrot.slane %v264, 4
  %v316 = vadd.f32 %v264, %v315
  %v317 = vrot.slane %v316, 2
  %v318 = vadd.f32 %v316, %v317
  %v319 = vrot.slane %v318, 1
  %v320 = vadd.f32 %v318, %v319
  %v321 = vrot.slane %v266, 4
  %v322 = vadd.f32 %v266, %v321
  %v323 = vrot.slane %v322, 2
  %v324 = vadd.f32 %v322, %v323
  %v325 = vrot.slane %v324, 1
  %v326 = vadd.f32 %v324, %v325
  %v327 = vrot.slane %v307, 4
  %v328 = vadd.f32 %v307, %v327
  %v329 = vrot.slane %v328, 2
  %v330 = vadd.f32 %v328, %v329
  %v331 = vrot.slane %v330, 1
  %v332 = vadd.f32 %v330, %v331
  %v333 = vrot.slane %v309, 4
  %v334 = vadd.f32 %v309, %v333
  %v335 = vrot.slane %v334, 2
  %v336 = vadd.f32 %v334, %v335
  %v337 = vrot.slane %v336, 1
  %v338 = vadd.f32 %v336, %v337
  %v339 = vmul.f32 %v264, %v264
  %v340 = vmul.f32 %v266, %v266
  %v341 = vmul.f32 %v307, %v307
  %v342 = vmul.f32 %v309, %v309
  %v343 = vrot.slane %v339, 4
  %v344 = vadd.f32 %v339, %v343
  %v345 = vrot.slane %v344, 2
  %v346 = vadd.f32 %v344, %v345
  %v347 = vrot.slane %v346, 1
  %v348 = vadd.f32 %v346, %v347
  %v349 = vrot.slane %v340, 4
  %v350 = vadd.f32 %v340, %v349
  %v351 = vrot.slane %v350, 2
  %v352 = vadd.f32 %v350, %v351
  %v353 = vrot.slane %v352, 1
  %v354 = vadd.f32 %v352, %v353
  %v355 = vrot.slane %v341, 4
  %v356 = vadd.f32 %v341, %v355
  %v357 = vrot.slane %v356, 2
  %v358 = vadd.f32 %v356, %v357
  %v359 = vrot.slane %v358, 1
  %v360 = vadd.f32 %v358, %v359
  %v361 = vrot.slane %v342, 4
  %v362 = vadd.f32 %v342, %v361
  %v363 = vrot.slane %v362, 2
  %v364 = vadd.f32 %v362, %v363
  %v365 = vrot.slane %v364, 1
  %v366 = vadd.f32 %v364, %v365
  %v367 = vld [vmem:[%s11] sm:$0xf]
  %v368 = vld [vmem:[%s11 + $0x4] sm:$0xf]
  %v369 = vld [vmem:[%s11 + $0x8] sm:$0xf]
  %v370 = vld [vmem:[%s11 + $0xc] sm:$0xf]
  %v371 = vld [vmem:[%s11 + $0x10] sm:$0xf]
  %v372 = vld [vmem:[%s11 + $0x14] sm:$0xf]
  %v373 = vld [vmem:[%s11 + $0x18] sm:$0xf]
  %v374 = vld [vmem:[%s11 + $0x1c] sm:$0xf]
  %v375 = vld [vmem:[%s11 + $0x20] sm:$0xf]
  %v376 = vld [vmem:[%s11 + $0x24] sm:$0xf]
  %v377 = vld [vmem:[%s11 + $0x28] sm:$0xf]
  %v378 = vld [vmem:[%s11 + $0x2c] sm:$0xf]
  %v379 = vld [vmem:[%s11 + $0x30] sm:$0xf]
  %v380 = vld [vmem:[%s11 + $0x34] sm:$0xf]
  %v381 = vld [vmem:[%s11 + $0x38] sm:$0xf]
  %v382 = vld [vmem:[%s11 + $0x3c] sm:$0xf]
  %v383 = vld [vmem:[%s11 + $0x40] sm:$0xf]
  %v384 = vld [vmem:[%s11 + $0x44] sm:$0xf]
  %v385 = vld [vmem:[%s11 + $0x48] sm:$0xf]
  %v386 = vld [vmem:[%s11 + $0x4c] sm:$0xf]
  %v387 = vld [vmem:[%s11 + $0x50] sm:$0xf]
  %v388 = vld [vmem:[%s11 + $0x54] sm:$0xf]
  %v389 = vld [vmem:[%s11 + $0x58] sm:$0xf]
  %v390 = vld [vmem:[%s11 + $0x5c] sm:$0xf]
  %v391 = vld [vmem:[%s11 + $0x60] sm:$0xf]
  %v392 = vld [vmem:[%s11 + $0x64] sm:$0xf]
  %v393 = vld [vmem:[%s11 + $0x68] sm:$0xf]
  %v394 = vld [vmem:[%s11 + $0x6c] sm:$0xf]
  %v395 = vld [vmem:[%s11 + $0x70] sm:$0xf]
  %v396 = vld [vmem:[%s11 + $0x74] sm:$0xf]
  %v397 = vld [vmem:[%s11 + $0x78] sm:$0xf]
  %v398 = vld [vmem:[%s11 + $0x7c] sm:$0xf]
  %v399 = vld [vmem:[%s11 + $0x80] sm:$0xf]
  %v400 = vld [vmem:[%s11 + $0x84] sm:$0xf]
  %v401 = vld [vmem:[%s11 + $0x88] sm:$0xf]
  %v402 = vld [vmem:[%s11 + $0x8c] sm:$0xf]
  %v403 = vld [vmem:[%s11 + $0x90] sm:$0xf]
  %v404 = vld [vmem:[%s11 + $0x94] sm:$0xf]
  %v405 = vld [vmem:[%s11 + $0x98] sm:$0xf]
  %v406 = vld [vmem:[%s11 + $0x9c] sm:$0xf]
  %v407 = vld [vmem:[%s11 + $0xa0] sm:$0xf]
  %v408 = vld [vmem:[%s11 + $0xa4] sm:$0xf]
  %v409 = vld [vmem:[%s11 + $0xa8] sm:$0xf]
  %v410 = vld [vmem:[%s11 + $0xac] sm:$0xf]
  %v411 = vld [vmem:[%s11 + $0xb0] sm:$0xf]
  %v412 = vld [vmem:[%s11 + $0xb4] sm:$0xf]
  %v413 = vld [vmem:[%s11 + $0xb8] sm:$0xf]
  %v414 = vld [vmem:[%s11 + $0xbc] sm:$0xf]
  %v415 = vld [vmem:[%s11 + $0xc0] sm:$0xf]
  %v416 = vld [vmem:[%s11 + $0xc4] sm:$0xf]
  %v417 = vld [vmem:[%s11 + $0xc8] sm:$0xf]
  %v418 = vld [vmem:[%s11 + $0xcc] sm:$0xf]
  %v419 = vld [vmem:[%s11 + $0xd0] sm:$0xf]
  %v420 = vld [vmem:[%s11 + $0xd4] sm:$0xf]
  %v421 = vld [vmem:[%s11 + $0xd8] sm:$0xf]
  %v422 = vld [vmem:[%s11 + $0xdc] sm:$0xf]
  %v423 = vld [vmem:[%s11 + $0xe0] sm:$0xf]
  %v424 = vld [vmem:[%s11 + $0xe4] sm:$0xf]
  %v425 = vld [vmem:[%s11 + $0xe8] sm:$0xf]
  %v426 = vld [vmem:[%s11 + $0xec] sm:$0xf]
  %v427 = vld [vmem:[%s11 + $0xf0] sm:$0xf]
  %v428 = vld [vmem:[%s11 + $0xf4] sm:$0xf]
  %v429 = vld [vmem:[%s11 + $0xf8] sm:$0xf]
  %v430 = vld [vmem:[%s11 + $0xfc] sm:$0xf]
  %v495 = vunpack.c.l.b16 %v367
  %v496 = vunpack.c.l.b16 %v368
  %v497 = vunpack.c.l.b16 %v369
  %v498 = vunpack.c.l.b16 %v370
  %v499 = vunpack.c.l.b16 %v371
  %v500 = vunpack.c.l.b16 %v372
  %v501 = vunpack.c.l.b16 %v373
  %v502 = vunpack.c.l.b16 %v374
  %v503 = vunpack.c.l.b16 %v375
  %v504 = vunpack.c.l.b16 %v376
  %v505 = vunpack.c.l.b16 %v377
  %v506 = vunpack.c.l.b16 %v378
  %v507 = vunpack.c.l.b16 %v379
  %v508 = vunpack.c.l.b16 %v380
  %v509 = vunpack.c.l.b16 %v381
  %v510 = vunpack.c.l.b16 %v382
  %v511 = vunpack.c.l.b16 %v383
  %v512 = vunpack.c.l.b16 %v384
  %v513 = vunpack.c.l.b16 %v385
  %v514 = vunpack.c.l.b16 %v386
  %v515 = vunpack.c.l.b16 %v387
  %v516 = vunpack.c.l.b16 %v388
  %v517 = vunpack.c.l.b16 %v389
  %v518 = vunpack.c.l.b16 %v390
  %v519 = vunpack.c.l.b16 %v391
  %v520 = vunpack.c.l.b16 %v392
  %v521 = vunpack.c.l.b16 %v393
  %v522 = vunpack.c.l.b16 %v394
  %v523 = vunpack.c.l.b16 %v395
  %v524 = vunpack.c.l.b16 %v396
  %v525 = vunpack.c.l.b16 %v397
  %v526 = vunpack.c.l.b16 %v398
  %v527 = vunpack.c.l.b16 %v399
  %v528 = vunpack.c.l.b16 %v400
  %v529 = vunpack.c.l.b16 %v401
  %v530 = vunpack.c.l.b16 %v402
  %v531 = vunpack.c.l.b16 %v403
  %v532 = vunpack.c.l.b16 %v404
  %v533 = vunpack.c.l.b16 %v405
  %v534 = vunpack.c.l.b16 %v406
  %v535 = vunpack.c.l.b16 %v407
  %v536 = vunpack.c.l.b16 %v408
  %v537 = vunpack.c.l.b16 %v409
  %v538 = vunpack.c.l.b16 %v410
  %v539 = vunpack.c.l.b16 %v411
  %v540 = vunpack.c.l.b16 %v412
  %v541 = vunpack.c.l.b16 %v413
  %v542 = vunpack.c.l.b16 %v414
  %v543 = vunpack.c.l.b16 %v415
  %v544 = vunpack.c.l.b16 %v416
  %v545 = vunpack.c.l.b16 %v417
  %v546 = vunpack.c.l.b16 %v418
  %v547 = vunpack.c.l.b16 %v419
  %v548 = vunpack.c.l.b16 %v420
  %v549 = vunpack.c.l.b16 %v421
  %v550 = vunpack.c.l.b16 %v422
  %v551 = vunpack.c.l.b16 %v423
  %v552 = vunpack.c.l.b16 %v424
  %v553 = vunpack.c.l.b16 %v425
  %v554 = vunpack.c.l.b16 %v426
  %v555 = vunpack.c.l.b16 %v427
  %v556 = vunpack.c.l.b16 %v428
  %v557 = vunpack.c.l.b16 %v429
  %v558 = vunpack.c.l.b16 %v430
  %v559 = vpack.c.b16 %v496, %v495
  %v560 = vpack.c.b16 %v498, %v497
  %v561 = vpack.c.b16 %v500, %v499
  %v562 = vpack.c.b16 %v502, %v501
  %v563 = vpack.c.b16 %v504, %v503
  %v564 = vpack.c.b16 %v506, %v505
  %v565 = vpack.c.b16 %v508, %v507
  %v566 = vpack.c.b16 %v510, %v509
  %v567 = vpack.c.b16 %v512, %v511
  %v568 = vpack.c.b16 %v514, %v513
  %v569 = vpack.c.b16 %v516, %v515
  %v570 = vpack.c.b16 %v518, %v517
  %v571 = vpack.c.b16 %v520, %v519
  %v572 = vpack.c.b16 %v522, %v521
  %v573 = vpack.c.b16 %v524, %v523
  %v574 = vpack.c.b16 %v526, %v525
  %v575 = vpack.c.b16 %v528, %v527
  %v576 = vpack.c.b16 %v530, %v529
  %v577 = vpack.c.b16 %v532, %v531
  %v578 = vpack.c.b16 %v534, %v533
  %v579 = vpack.c.b16 %v536, %v535
  %v580 = vpack.c.b16 %v538, %v537
  %v581 = vpack.c.b16 %v540, %v539
  %v582 = vpack.c.b16 %v542, %v541
  %v583 = vpack.c.b16 %v544, %v543
  %v584 = vpack.c.b16 %v546, %v545
  %v585 = vpack.c.b16 %v548, %v547
  %v586 = vpack.c.b16 %v550, %v549
  %v587 = vpack.c.b16 %v552, %v551
  %v588 = vpack.c.b16 %v554, %v553
  %v589 = vpack.c.b16 %v556, %v555
  %v590 = vpack.c.b16 %v558, %v557
  %623 = vmatprep.subr.bf16.mxu0 0
  %624 = vmatpush1.bf16.msra.mxu0 %v559
  %625 = vmatprep.subr.bf16.mxu0 0
  %626 = vmatpush1.bf16.msra.mxu0 %v560
  %627 = vmatprep.subr.bf16.mxu0 0
  %628 = vmatpush1.bf16.msra.mxu0 %v561
  %629 = vmatprep.subr.bf16.mxu0 0
  %630 = vmatpush1.bf16.msra.mxu0 %v562
  %631 = vmatprep.subr.bf16.mxu0 0
  %632 = vmatpush1.bf16.msra.mxu0 %v563
  %633 = vmatprep.subr.bf16.mxu0 0
  %634 = vmatpush1.bf16.msra.mxu0 %v564
  %635 = vmatprep.subr.bf16.mxu0 0
  %636 = vmatpush1.bf16.msra.mxu0 %v565
  %637 = vmatprep.subr.bf16.mxu0 0
  %638 = vmatpush1.bf16.msra.mxu0 %v566
  %639 = vmatprep.subr.bf16.mxu0 0
  %640 = vmatpush1.bf16.msra.mxu0 %v567
  %641 = vmatprep.subr.bf16.mxu0 0
  %642 = vmatpush1.bf16.msra.mxu0 %v568
  %643 = vmatprep.subr.bf16.mxu0 0
  %644 = vmatpush1.bf16.msra.mxu0 %v569
  %645 = vmatprep.subr.bf16.mxu0 0
  %646 = vmatpush1.bf16.msra.mxu0 %v570
  %647 = vmatprep.subr.bf16.mxu0 0
  %648 = vmatpush1.bf16.msra.mxu0 %v571
  %649 = vmatprep.subr.bf16.mxu0 0
  %650 = vmatpush1.bf16.msra.mxu0 %v572
  %651 = vmatprep.subr.bf16.mxu0 0
  %652 = vmatpush1.bf16.msra.mxu0 %v573
  %653 = vmatprep.subr.bf16.mxu0 0
  %654 = vmatpush1.bf16.msra.mxu0 %v574
  %655 = vmatprep.mubr.f32.mxu0 %v326
  %656 = vmatmul.mubr.f32.gmra.mrb[0].mxu0 %v320
  %v657 = vpop.f32.mrb[0].mxu0
  %v658 = vadd.f32 0.0, %v657
  %v659 = vpop.f32.mrb[0].mxu0
  %660 = vdwg.mxu0
  %661 = vmatprep.subr.bf16.mxu0 0
  %662 = vmatpush1.bf16.msra.mxu0 %v575
  %663 = vmatprep.subr.bf16.mxu0 0
  %664 = vmatpush1.bf16.msra.mxu0 %v576
  %665 = vmatprep.subr.bf16.mxu0 0
  %666 = vmatpush1.bf16.msra.mxu0 %v577
  %667 = vmatprep.subr.bf16.mxu0 0
  %668 = vmatpush1.bf16.msra.mxu0 %v578
  %669 = vmatprep.subr.bf16.mxu0 0
  %670 = vmatpush1.bf16.msra.mxu0 %v579
  %671 = vmatprep.subr.bf16.mxu0 0
  %672 = vmatpush1.bf16.msra.mxu0 %v580
  %673 = vmatprep.subr.bf16.mxu0 0
  %674 = vmatpush1.bf16.msra.mxu0 %v581
  %675 = vmatprep.subr.bf16.mxu0 0
  %676 = vmatpush1.bf16.msra.mxu0 %v582
  %677 = vmatprep.subr.bf16.mxu0 0
  %678 = vmatpush1.bf16.msra.mxu0 %v583
  %679 = vmatprep.subr.bf16.mxu0 0
  %680 = vmatpush1.bf16.msra.mxu0 %v584
  %681 = vmatprep.subr.bf16.mxu0 0
  %682 = vmatpush1.bf16.msra.mxu0 %v585
  %683 = vmatprep.subr.bf16.mxu0 0
  %684 = vmatpush1.bf16.msra.mxu0 %v586
  %685 = vmatprep.subr.bf16.mxu0 0
  %686 = vmatpush1.bf16.msra.mxu0 %v587
  %687 = vmatprep.subr.bf16.mxu0 0
  %688 = vmatpush1.bf16.msra.mxu0 %v588
  %689 = vmatprep.subr.bf16.mxu0 0
  %690 = vmatpush1.bf16.msra.mxu0 %v589
  %691 = vmatprep.subr.bf16.mxu0 0
  %692 = vmatpush1.bf16.msra.mxu0 %v590
  %693 = vmatprep.mubr.f32.mxu0 %v338
  %694 = vmatmul.mubr.f32.gmra.mrb[0].mxu0 %v332
  %v695 = vpop.f32.mrb[0].mxu0
  %v696 = vadd.f32 %v658, %v695
  %v697 = vpop.f32.mrb[0].mxu0
  %698 = vdwg.mxu0
  %699 = vmatprep.subr.bf16.mxu0 0
  %700 = vmatpush1.bf16.msra.mxu0 %v559
  %701 = vmatprep.subr.bf16.mxu0 0
  %702 = vmatpush1.bf16.msra.mxu0 %v560
  %703 = vmatprep.subr.bf16.mxu0 0
  %704 = vmatpush1.bf16.msra.mxu0 %v561
  %705 = vmatprep.subr.bf16.mxu0 0
  %706 = vmatpush1.bf16.msra.mxu0 %v562
  %707 = vmatprep.subr.bf16.mxu0 0
  %708 = vmatpush1.bf16.msra.mxu0 %v563
  %709 = vmatprep.subr.bf16.mxu0 0
  %710 = vmatpush1.bf16.msra.mxu0 %v564
  %711 = vmatprep.subr.bf16.mxu0 0
  %712 = vmatpush1.bf16.msra.mxu0 %v565
  %713 = vmatprep.subr.bf16.mxu0 0
  %714 = vmatpush1.bf16.msra.mxu0 %v566
  %715 = vmatprep.subr.bf16.mxu0 0
  %716 = vmatpush1.bf16.msra.mxu0 %v567
  %717 = vmatprep.subr.bf16.mxu0 0
  %718 = vmatpush1.bf16.msra.mxu0 %v568
  %719 = vmatprep.subr.bf16.mxu0 0
  %720 = vmatpush1.bf16.msra.mxu0 %v569
  %721 = vmatprep.subr.bf16.mxu0 0
  %722 = vmatpush1.bf16.msra.mxu0 %v570
  %723 = vmatprep.subr.bf16.mxu0 0
  %724 = vmatpush1.bf16.msra.mxu0 %v571
  %725 = vmatprep.subr.bf16.mxu0 0
  %726 = vmatpush1.bf16.msra.mxu0 %v572
  %727 = vmatprep.subr.bf16.mxu0 0
  %728 = vmatpush1.bf16.msra.mxu0 %v573
  %729 = vmatprep.subr.bf16.mxu0 0
  %730 = vmatpush1.bf16.msra.mxu0 %v574
  %731 = vmatprep.mubr.f32.mxu0 %v354
  %732 = vmatmul.mubr.f32.gmra.mrb[0].mxu0 %v348
  %v733 = vpop.f32.mrb[0].mxu0
  %v734 = vadd.f32 0.0, %v733
  %v735 = vpop.f32.mrb[0].mxu0
  %736 = vdwg.mxu0
  %737 = vmatprep.subr.bf16.mxu0 0
  %738 = vmatpush1.bf16.msra.mxu0 %v575
  %739 = vmatprep.subr.bf16.mxu0 0
  %740 = vmatpush1.bf16.msra.mxu0 %v576
  %741 = vmatprep.subr.bf16.mxu0 0
  %742 = vmatpush1.bf16.msra.mxu0 %v577
  %743 = vmatprep.subr.bf16.mxu0 0
  %744 = vmatpush1.bf16.msra.mxu0 %v578
  %745 = vmatprep.subr.bf16.mxu0 0
  %746 = vmatpush1.bf16.msra.mxu0 %v579
  %747 = vmatprep.subr.bf16.mxu0 0
  %748 = vmatpush1.bf16.msra.mxu0 %v580
  %749 = vmatprep.subr.bf16.mxu0 0
  %750 = vmatpush1.bf16.msra.mxu0 %v581
  %751 = vmatprep.subr.bf16.mxu0 0
  %752 = vmatpush1.bf16.msra.mxu0 %v582
  %753 = vmatprep.subr.bf16.mxu0 0
  %754 = vmatpush1.bf16.msra.mxu0 %v583
  %755 = vmatprep.subr.bf16.mxu0 0
  %756 = vmatpush1.bf16.msra.mxu0 %v584
  %757 = vmatprep.subr.bf16.mxu0 0
  %758 = vmatpush1.bf16.msra.mxu0 %v585
  %759 = vmatprep.subr.bf16.mxu0 0
  %760 = vmatpush1.bf16.msra.mxu0 %v586
  %761 = vmatprep.subr.bf16.mxu0 0
  %762 = vmatpush1.bf16.msra.mxu0 %v587
  %763 = vmatprep.subr.bf16.mxu0 0
  %764 = vmatpush1.bf16.msra.mxu0 %v588
  %765 = vmatprep.subr.bf16.mxu0 0
  %766 = vmatpush1.bf16.msra.mxu0 %v589
  %767 = vmatprep.subr.bf16.mxu0 0
  %768 = vmatpush1.bf16.msra.mxu0 %v590
  %769 = vmatprep.mubr.f32.mxu0 %v366
  %770 = vmatmul.mubr.f32.gmra.mrb[0].mxu0 %v360
  %v771 = vpop.f32.mrb[0].mxu0
  %v772 = vadd.f32 %v734, %v771
  %v773 = vpop.f32.mrb[0].mxu0
  %774 = vdwg.mxu0
  %v775 = vmul.f32 %v696, 0.0048076925
  %v776 = vmul.f32 %v772, 0.0048076925
  %v777 = vmul.f32 %v775, %v775
  %v778 = vsub.f32 %v776, %v777
  %v779 = vmax.f32 %v778, 0.0
  %v780 = vadd.f32 %v779, 1e-05
  %v781 = vrsqrt.pop %v780
  %v782 = vld [vmem:[%s15] sm:$0x1]
  %v783 = vmul.f32 %v781, %v782
  %v784 = vld [vmem:[%s17] sm:$0x1]
  %v785 = vmul.f32 %v775, %v783
  %v786 = vsub.f32 %v784, %v785
  %v787 = vld [vmem:[%s13] sm:$0xff]
  %v788 = vld [vmem:[%s13 + $0x8] sm:$0xff]
  %v789 = vld [vmem:[%s13 + $0x10] sm:$0xff]
  %v790 = vld [vmem:[%s13 + $0x18] sm:$0xff]
  %v795 = vunpack.c.l.b16 %v787
  %v796 = vunpack.c.h.b16 %v787
  %v797 = vunpack.c.l.b16 %v788
  %v798 = vunpack.c.h.b16 %v788
  %v799 = vunpack.c.l.b16 %v789
  %v800 = vunpack.c.h.b16 %v789
  %v801 = vunpack.c.l.b16 %v790
  %v802 = vunpack.c.h.b16 %v790
  %v803 = vpack.c.b16 %v799, %v795
  %v804 = vpack.c.b16 %v800, %v796
  %v805 = vpack.c.b16 %v801, %v797
  %v806 = vpack.c.b16 %v802, %v798
  %vm811 = vcmask 130048
  %v813 = vsel %vm811, %v783, 0
  %815 = vmatprep.subr.bf16.mxu0 %v804
  %816 = vmatpush1.bf16.msra.mxu0 %v803
  %817 = vmatprep.subr.bf16.mxu0 0
  %818 = vmatpush1.bf16.msra.mxu0 0
  %819 = vmatprep.subr.bf16.mxu0 0
  %820 = vmatpush1.bf16.msra.mxu0 0
  %821 = vmatprep.subr.bf16.mxu0 0
  %822 = vmatpush1.bf16.msra.mxu0 0
  %823 = vmatprep.subr.bf16.mxu0 0
  %824 = vmatpush1.bf16.msra.mxu0 0
  %825 = vmatprep.subr.bf16.mxu0 0
  %826 = vmatpush1.bf16.msra.mxu0 0
  %827 = vmatprep.subr.bf16.mxu0 0
  %828 = vmatpush1.bf16.msra.mxu0 0
  %829 = vmatprep.subr.bf16.mxu0 0
  %830 = vmatpush1.bf16.msra.mxu0 0
  %831 = vmatprep.subr.bf16.mxu0 0
  %832 = vmatpush1.bf16.msra.mxu0 0
  %833 = vmatprep.subr.bf16.mxu0 0
  %834 = vmatpush1.bf16.msra.mxu0 0
  %835 = vmatprep.subr.bf16.mxu0 0
  %836 = vmatpush1.bf16.msra.mxu0 0
  %837 = vmatprep.subr.bf16.mxu0 0
  %838 = vmatpush1.bf16.msra.mxu0 0
  %839 = vmatprep.subr.bf16.mxu0 0
  %840 = vmatpush1.bf16.msra.mxu0 0
  %841 = vmatprep.subr.bf16.mxu0 0
  %842 = vmatpush1.bf16.msra.mxu0 0
  %843 = vmatprep.subr.bf16.mxu0 0
  %844 = vmatpush1.bf16.msra.mxu0 0
  %845 = vmatprep.subr.bf16.mxu0 0
  %846 = vmatpush1.bf16.msra.mxu0 0
  %847 = vmatprep.mubr.f32.mxu0 0.0
  %848 = vmatmul.mubr.f32.gmra.mrb[0].mxu0 %v813
  %v849 = vpop.f32.mrb[0].mxu0
  %v850 = vadd.f32 0.0, %v849
  %v851 = vpop.f32.mrb[0].mxu0
  %v852 = vadd.f32 0.0, %v851
  %853 = vdwg.mxu0
  %854 = vmatprep.subr.bf16.mxu0 %v806
  %855 = vmatpush1.bf16.msra.mxu0 %v805
  %856 = vmatprep.subr.bf16.mxu0 0
  %857 = vmatpush1.bf16.msra.mxu0 0
  %858 = vmatprep.subr.bf16.mxu0 0
  %859 = vmatpush1.bf16.msra.mxu0 0
  %860 = vmatprep.subr.bf16.mxu0 0
  %861 = vmatpush1.bf16.msra.mxu0 0
  %862 = vmatprep.subr.bf16.mxu0 0
  %863 = vmatpush1.bf16.msra.mxu0 0
  %864 = vmatprep.subr.bf16.mxu0 0
  %865 = vmatpush1.bf16.msra.mxu0 0
  %866 = vmatprep.subr.bf16.mxu0 0
  %867 = vmatpush1.bf16.msra.mxu0 0
  %868 = vmatprep.subr.bf16.mxu0 0
  %869 = vmatpush1.bf16.msra.mxu0 0
  %870 = vmatprep.subr.bf16.mxu0 0
  %871 = vmatpush1.bf16.msra.mxu0 0
  %872 = vmatprep.subr.bf16.mxu0 0
  %873 = vmatpush1.bf16.msra.mxu0 0
  %874 = vmatprep.subr.bf16.mxu0 0
  %875 = vmatpush1.bf16.msra.mxu0 0
  %876 = vmatprep.subr.bf16.mxu0 0
  %877 = vmatpush1.bf16.msra.mxu0 0
  %878 = vmatprep.subr.bf16.mxu0 0
  %879 = vmatpush1.bf16.msra.mxu0 0
  %880 = vmatprep.subr.bf16.mxu0 0
  %881 = vmatpush1.bf16.msra.mxu0 0
  %882 = vmatprep.subr.bf16.mxu0 0
  %883 = vmatpush1.bf16.msra.mxu0 0
  %884 = vmatprep.subr.bf16.mxu0 0
  %885 = vmatpush1.bf16.msra.mxu0 0
  %886 = vmatprep.mubr.f32.mxu0 0.0
  %887 = vmatmul.mubr.f32.gmra.mrb[0].mxu0 %v813
  %v888 = vpop.f32.mrb[0].mxu0
  %v889 = vadd.f32 0.0, %v888
  %v890 = vpop.f32.mrb[0].mxu0
  %v891 = vadd.f32 0.0, %v890
  %892 = vdwg.mxu0
  %v894 = vsel %vm811, %v786, 0
  %896 = vmatprep.subr.bf16.mxu0 %v804
  %897 = vmatpush1.bf16.msra.mxu0 %v803
  %898 = vmatprep.subr.bf16.mxu0 0
  %899 = vmatpush1.bf16.msra.mxu0 0
  %900 = vmatprep.subr.bf16.mxu0 0
  %901 = vmatpush1.bf16.msra.mxu0 0
  %902 = vmatprep.subr.bf16.mxu0 0
  %903 = vmatpush1.bf16.msra.mxu0 0
  %904 = vmatprep.subr.bf16.mxu0 0
  %905 = vmatpush1.bf16.msra.mxu0 0
  %906 = vmatprep.subr.bf16.mxu0 0
  %907 = vmatpush1.bf16.msra.mxu0 0
  %908 = vmatprep.subr.bf16.mxu0 0
  %909 = vmatpush1.bf16.msra.mxu0 0
  %910 = vmatprep.subr.bf16.mxu0 0
  %911 = vmatpush1.bf16.msra.mxu0 0
  %912 = vmatprep.subr.bf16.mxu0 0
  %913 = vmatpush1.bf16.msra.mxu0 0
  %914 = vmatprep.subr.bf16.mxu0 0
  %915 = vmatpush1.bf16.msra.mxu0 0
  %916 = vmatprep.subr.bf16.mxu0 0
  %917 = vmatpush1.bf16.msra.mxu0 0
  %918 = vmatprep.subr.bf16.mxu0 0
  %919 = vmatpush1.bf16.msra.mxu0 0
  %920 = vmatprep.subr.bf16.mxu0 0
  %921 = vmatpush1.bf16.msra.mxu0 0
  %922 = vmatprep.subr.bf16.mxu0 0
  %923 = vmatpush1.bf16.msra.mxu0 0
  %924 = vmatprep.subr.bf16.mxu0 0
  %925 = vmatpush1.bf16.msra.mxu0 0
  %926 = vmatprep.subr.bf16.mxu0 0
  %927 = vmatpush1.bf16.msra.mxu0 0
  %928 = vmatprep.mubr.f32.mxu0 0.0
  %929 = vmatmul.mubr.f32.gmra.mrb[0].mxu0 %v894
  %v930 = vpop.f32.mrb[0].mxu0
  %v931 = vadd.f32 0.0, %v930
  %v932 = vpop.f32.mrb[0].mxu0
  %v933 = vadd.f32 0.0, %v932
  %934 = vdwg.mxu0
  %935 = vmatprep.subr.bf16.mxu0 %v806
  %936 = vmatpush1.bf16.msra.mxu0 %v805
  %937 = vmatprep.subr.bf16.mxu0 0
  %938 = vmatpush1.bf16.msra.mxu0 0
  %939 = vmatprep.subr.bf16.mxu0 0
  %940 = vmatpush1.bf16.msra.mxu0 0
  %941 = vmatprep.subr.bf16.mxu0 0
  %942 = vmatpush1.bf16.msra.mxu0 0
  %943 = vmatprep.subr.bf16.mxu0 0
  %944 = vmatpush1.bf16.msra.mxu0 0
  %945 = vmatprep.subr.bf16.mxu0 0
  %946 = vmatpush1.bf16.msra.mxu0 0
  %947 = vmatprep.subr.bf16.mxu0 0
  %948 = vmatpush1.bf16.msra.mxu0 0
  %949 = vmatprep.subr.bf16.mxu0 0
  %950 = vmatpush1.bf16.msra.mxu0 0
  %951 = vmatprep.subr.bf16.mxu0 0
  %952 = vmatpush1.bf16.msra.mxu0 0
  %953 = vmatprep.subr.bf16.mxu0 0
  %954 = vmatpush1.bf16.msra.mxu0 0
  %955 = vmatprep.subr.bf16.mxu0 0
  %956 = vmatpush1.bf16.msra.mxu0 0
  %957 = vmatprep.subr.bf16.mxu0 0
  %958 = vmatpush1.bf16.msra.mxu0 0
  %959 = vmatprep.subr.bf16.mxu0 0
  %960 = vmatpush1.bf16.msra.mxu0 0
  %961 = vmatprep.subr.bf16.mxu0 0
  %962 = vmatpush1.bf16.msra.mxu0 0
  %963 = vmatprep.subr.bf16.mxu0 0
  %964 = vmatpush1.bf16.msra.mxu0 0
  %965 = vmatprep.subr.bf16.mxu0 0
  %966 = vmatpush1.bf16.msra.mxu0 0
  %967 = vmatprep.mubr.f32.mxu0 0.0
  %968 = vmatmul.mubr.f32.gmra.mrb[0].mxu0 %v894
  %v969 = vpop.f32.mrb[0].mxu0
  %v970 = vadd.f32 0.0, %v969
  %v971 = vpop.f32.mrb[0].mxu0
  %v972 = vadd.f32 0.0, %v971
  %973 = vdwg.mxu0
  %v974 = vlaneseq
  %v975 = vshrl.u32 %v974, 7
  %v976 = vsub.s32 0, %v975
  %v977 = vrot.slane %v850, %v976
  %v978 = vlaneseq
  %v979 = vshrl.u32 %v978, 7
  %v980 = vsub.s32 0, %v979
  %v981 = vrot.slane %v852, %v980
  %v982 = vlaneseq
  %v983 = vshrl.u32 %v982, 7
  %v984 = vsub.s32 0, %v983
  %v985 = vrot.slane %v889, %v984
  %v986 = vlaneseq
  %v987 = vshrl.u32 %v986, 7
  %v988 = vsub.s32 0, %v987
  %v989 = vrot.slane %v891, %v988
  %v990 = vmul.f32 %v264, %v977
  %v991 = vmul.f32 %v266, %v981
  %v992 = vmul.f32 %v307, %v985
  %v993 = vmul.f32 %v309, %v989
  %v994 = vlaneseq
  %v995 = vshrl.u32 %v994, 7
  %v996 = vsub.s32 0, %v995
  %v997 = vrot.slane %v931, %v996
  %v998 = vlaneseq
  %v999 = vshrl.u32 %v998, 7
  %v1000 = vsub.s32 0, %v999
  %v1001 = vrot.slane %v933, %v1000
  %v1002 = vlaneseq
  %v1003 = vshrl.u32 %v1002, 7
  %v1004 = vsub.s32 0, %v1003
  %v1005 = vrot.slane %v970, %v1004
  %v1006 = vlaneseq
  %v1007 = vshrl.u32 %v1006, 7
  %v1008 = vsub.s32 0, %v1007
  %v1009 = vrot.slane %v972, %v1008
  %v1010 = vadd.f32 %v990, %v997
  %v1011 = vadd.f32 %v991, %v1001
  %v1012 = vadd.f32 %v992, %v1005
  %v1013 = vadd.f32 %v993, %v1009
  %v1014 = vmax.f32 %v1010, 0.0
  %v1015 = vmax.f32 %v1011, 0.0
  %v1016 = vmax.f32 %v1012, 0.0
  %v1017 = vmax.f32 %v1013, 0.0
  %v1018 = vrot.slane %v268, 4
  %v1019 = vadd.f32 %v268, %v1018
  %v1020 = vrot.slane %v1019, 2
  %v1021 = vadd.f32 %v1019, %v1020
  %v1022 = vrot.slane %v1021, 1
  %v1023 = vadd.f32 %v1021, %v1022
  %v1024 = vrot.slane %v270, 4
  %v1025 = vadd.f32 %v270, %v1024
  %v1026 = vrot.slane %v1025, 2
  %v1027 = vadd.f32 %v1025, %v1026
  %v1028 = vrot.slane %v1027, 1
  %v1029 = vadd.f32 %v1027, %v1028
  %v1030 = vrot.slane %v311, 4
  %v1031 = vadd.f32 %v311, %v1030
  %v1032 = vrot.slane %v1031, 2
  %v1033 = vadd.f32 %v1031, %v1032
  %v1034 = vrot.slane %v1033, 1
  %v1035 = vadd.f32 %v1033, %v1034
  %v1036 = vrot.slane %v313, 4
  %v1037 = vadd.f32 %v313, %v1036
  %v1038 = vrot.slane %v1037, 2
  %v1039 = vadd.f32 %v1037, %v1038
  %v1040 = vrot.slane %v1039, 1
  %v1041 = vadd.f32 %v1039, %v1040
  %v1042 = vmul.f32 %v268, %v268
  %v1043 = vmul.f32 %v270, %v270
  %v1044 = vmul.f32 %v311, %v311
  %v1045 = vmul.f32 %v313, %v313
  %v1046 = vrot.slane %v1042, 4
  %v1047 = vadd.f32 %v1042, %v1046
  %v1048 = vrot.slane %v1047, 2
  %v1049 = vadd.f32 %v1047, %v1048
  %v1050 = vrot.slane %v1049, 1
  %v1051 = vadd.f32 %v1049, %v1050
  %v1052 = vrot.slane %v1043, 4
  %v1053 = vadd.f32 %v1043, %v1052
  %v1054 = vrot.slane %v1053, 2
  %v1055 = vadd.f32 %v1053, %v1054
  %v1056 = vrot.slane %v1055, 1
  %v1057 = vadd.f32 %v1055, %v1056
  %v1058 = vrot.slane %v1044, 4
  %v1059 = vadd.f32 %v1044, %v1058
  %v1060 = vrot.slane %v1059, 2
  %v1061 = vadd.f32 %v1059, %v1060
  %v1062 = vrot.slane %v1061, 1
  %v1063 = vadd.f32 %v1061, %v1062
  %v1064 = vrot.slane %v1045, 4
  %v1065 = vadd.f32 %v1045, %v1064
  %v1066 = vrot.slane %v1065, 2
  %v1067 = vadd.f32 %v1065, %v1066
  %v1068 = vrot.slane %v1067, 1
  %v1069 = vadd.f32 %v1067, %v1068
  %1070 = vmatprep.subr.bf16.mxu0 0
  %1071 = vmatpush1.bf16.msra.mxu0 %v559
  %1072 = vmatprep.subr.bf16.mxu0 0
  %1073 = vmatpush1.bf16.msra.mxu0 %v560
  %1074 = vmatprep.subr.bf16.mxu0 0
  %1075 = vmatpush1.bf16.msra.mxu0 %v561
  %1076 = vmatprep.subr.bf16.mxu0 0
  %1077 = vmatpush1.bf16.msra.mxu0 %v562
  %1078 = vmatprep.subr.bf16.mxu0 0
  %1079 = vmatpush1.bf16.msra.mxu0 %v563
  %1080 = vmatprep.subr.bf16.mxu0 0
  %1081 = vmatpush1.bf16.msra.mxu0 %v564
  %1082 = vmatprep.subr.bf16.mxu0 0
  %1083 = vmatpush1.bf16.msra.mxu0 %v565
  %1084 = vmatprep.subr.bf16.mxu0 0
  %1085 = vmatpush1.bf16.msra.mxu0 %v566
  %1086 = vmatprep.subr.bf16.mxu0 0
  %1087 = vmatpush1.bf16.msra.mxu0 %v567
  %1088 = vmatprep.subr.bf16.mxu0 0
  %1089 = vmatpush1.bf16.msra.mxu0 %v568
  %1090 = vmatprep.subr.bf16.mxu0 0
  %1091 = vmatpush1.bf16.msra.mxu0 %v569
  %1092 = vmatprep.subr.bf16.mxu0 0
  %1093 = vmatpush1.bf16.msra.mxu0 %v570
  %1094 = vmatprep.subr.bf16.mxu0 0
  %1095 = vmatpush1.bf16.msra.mxu0 %v571
  %1096 = vmatprep.subr.bf16.mxu0 0
  %1097 = vmatpush1.bf16.msra.mxu0 %v572
  %1098 = vmatprep.subr.bf16.mxu0 0
  %1099 = vmatpush1.bf16.msra.mxu0 %v573
  %1100 = vmatprep.subr.bf16.mxu0 0
  %1101 = vmatpush1.bf16.msra.mxu0 %v574
  %1102 = vmatprep.mubr.f32.mxu0 %v1029
  %1103 = vmatmul.mubr.f32.gmra.mrb[0].mxu0 %v1023
  %v1104 = vpop.f32.mrb[0].mxu0
  %v1105 = vadd.f32 0.0, %v1104
  %v1106 = vpop.f32.mrb[0].mxu0
  %1107 = vdwg.mxu0
  %1108 = vmatprep.subr.bf16.mxu0 0
  %1109 = vmatpush1.bf16.msra.mxu0 %v575
  %1110 = vmatprep.subr.bf16.mxu0 0
  %1111 = vmatpush1.bf16.msra.mxu0 %v576
  %1112 = vmatprep.subr.bf16.mxu0 0
  %1113 = vmatpush1.bf16.msra.mxu0 %v577
  %1114 = vmatprep.subr.bf16.mxu0 0
  %1115 = vmatpush1.bf16.msra.mxu0 %v578
  %1116 = vmatprep.subr.bf16.mxu0 0
  %1117 = vmatpush1.bf16.msra.mxu0 %v579
  %1118 = vmatprep.subr.bf16.mxu0 0
  %1119 = vmatpush1.bf16.msra.mxu0 %v580
  %1120 = vmatprep.subr.bf16.mxu0 0
  %1121 = vmatpush1.bf16.msra.mxu0 %v581
  %1122 = vmatprep.subr.bf16.mxu0 0
  %1123 = vmatpush1.bf16.msra.mxu0 %v582
  %1124 = vmatprep.subr.bf16.mxu0 0
  %1125 = vmatpush1.bf16.msra.mxu0 %v583
  %1126 = vmatprep.subr.bf16.mxu0 0
  %1127 = vmatpush1.bf16.msra.mxu0 %v584
  %1128 = vmatprep.subr.bf16.mxu0 0
  %1129 = vmatpush1.bf16.msra.mxu0 %v585
  %1130 = vmatprep.subr.bf16.mxu0 0
  %1131 = vmatpush1.bf16.msra.mxu0 %v586
  %1132 = vmatprep.subr.bf16.mxu0 0
  %1133 = vmatpush1.bf16.msra.mxu0 %v587
  %1134 = vmatprep.subr.bf16.mxu0 0
  %1135 = vmatpush1.bf16.msra.mxu0 %v588
  %1136 = vmatprep.subr.bf16.mxu0 0
  %1137 = vmatpush1.bf16.msra.mxu0 %v589
  %1138 = vmatprep.subr.bf16.mxu0 0
  %1139 = vmatpush1.bf16.msra.mxu0 %v590
  %1140 = vmatprep.mubr.f32.mxu0 %v1041
  %1141 = vmatmul.mubr.f32.gmra.mrb[0].mxu0 %v1035
  %v1142 = vpop.f32.mrb[0].mxu0
  %v1143 = vadd.f32 %v1105, %v1142
  %v1144 = vpop.f32.mrb[0].mxu0
  %1145 = vdwg.mxu0
  %1146 = vmatprep.subr.bf16.mxu0 0
  %1147 = vmatpush1.bf16.msra.mxu0 %v559
  %1148 = vmatprep.subr.bf16.mxu0 0
  %1149 = vmatpush1.bf16.msra.mxu0 %v560
  %1150 = vmatprep.subr.bf16.mxu0 0
  %1151 = vmatpush1.bf16.msra.mxu0 %v561
  %1152 = vmatprep.subr.bf16.mxu0 0
  %1153 = vmatpush1.bf16.msra.mxu0 %v562
  %1154 = vmatprep.subr.bf16.mxu0 0
  %1155 = vmatpush1.bf16.msra.mxu0 %v563
  %1156 = vmatprep.subr.bf16.mxu0 0
  %1157 = vmatpush1.bf16.msra.mxu0 %v564
  %1158 = vmatprep.subr.bf16.mxu0 0
  %1159 = vmatpush1.bf16.msra.mxu0 %v565
  %1160 = vmatprep.subr.bf16.mxu0 0
  %1161 = vmatpush1.bf16.msra.mxu0 %v566
  %1162 = vmatprep.subr.bf16.mxu0 0
  %1163 = vmatpush1.bf16.msra.mxu0 %v567
  %1164 = vmatprep.subr.bf16.mxu0 0
  %1165 = vmatpush1.bf16.msra.mxu0 %v568
  %1166 = vmatprep.subr.bf16.mxu0 0
  %1167 = vmatpush1.bf16.msra.mxu0 %v569
  %1168 = vmatprep.subr.bf16.mxu0 0
  %1169 = vmatpush1.bf16.msra.mxu0 %v570
  %1170 = vmatprep.subr.bf16.mxu0 0
  %1171 = vmatpush1.bf16.msra.mxu0 %v571
  %1172 = vmatprep.subr.bf16.mxu0 0
  %1173 = vmatpush1.bf16.msra.mxu0 %v572
  %1174 = vmatprep.subr.bf16.mxu0 0
  %1175 = vmatpush1.bf16.msra.mxu0 %v573
  %1176 = vmatprep.subr.bf16.mxu0 0
  %1177 = vmatpush1.bf16.msra.mxu0 %v574
  %1178 = vmatprep.mubr.f32.mxu0 %v1057
  %1179 = vmatmul.mubr.f32.gmra.mrb[0].mxu0 %v1051
  %v1180 = vpop.f32.mrb[0].mxu0
  %v1181 = vadd.f32 0.0, %v1180
  %v1182 = vpop.f32.mrb[0].mxu0
  %1183 = vdwg.mxu0
  %1184 = vmatprep.subr.bf16.mxu0 0
  %1185 = vmatpush1.bf16.msra.mxu0 %v575
  %1186 = vmatprep.subr.bf16.mxu0 0
  %1187 = vmatpush1.bf16.msra.mxu0 %v576
  %1188 = vmatprep.subr.bf16.mxu0 0
  %1189 = vmatpush1.bf16.msra.mxu0 %v577
  %1190 = vmatprep.subr.bf16.mxu0 0
  %1191 = vmatpush1.bf16.msra.mxu0 %v578
  %1192 = vmatprep.subr.bf16.mxu0 0
  %1193 = vmatpush1.bf16.msra.mxu0 %v579
  %1194 = vmatprep.subr.bf16.mxu0 0
  %1195 = vmatpush1.bf16.msra.mxu0 %v580
  %1196 = vmatprep.subr.bf16.mxu0 0
  %1197 = vmatpush1.bf16.msra.mxu0 %v581
  %1198 = vmatprep.subr.bf16.mxu0 0
  %1199 = vmatpush1.bf16.msra.mxu0 %v582
  %1200 = vmatprep.subr.bf16.mxu0 0
  %1201 = vmatpush1.bf16.msra.mxu0 %v583
  %1202 = vmatprep.subr.bf16.mxu0 0
  %1203 = vmatpush1.bf16.msra.mxu0 %v584
  %1204 = vmatprep.subr.bf16.mxu0 0
  %1205 = vmatpush1.bf16.msra.mxu0 %v585
  %1206 = vmatprep.subr.bf16.mxu0 0
  %1207 = vmatpush1.bf16.msra.mxu0 %v586
  %1208 = vmatprep.subr.bf16.mxu0 0
  %1209 = vmatpush1.bf16.msra.mxu0 %v587
  %1210 = vmatprep.subr.bf16.mxu0 0
  %1211 = vmatpush1.bf16.msra.mxu0 %v588
  %1212 = vmatprep.subr.bf16.mxu0 0
  %1213 = vmatpush1.bf16.msra.mxu0 %v589
  %1214 = vmatprep.subr.bf16.mxu0 0
  %1215 = vmatpush1.bf16.msra.mxu0 %v590
  %1216 = vmatprep.mubr.f32.mxu0 %v1069
  %1217 = vmatmul.mubr.f32.gmra.mrb[0].mxu0 %v1063
  %v1218 = vpop.f32.mrb[0].mxu0
  %v1219 = vadd.f32 %v1181, %v1218
  %v1220 = vpop.f32.mrb[0].mxu0
  %1221 = vdwg.mxu0
  %v1222 = vmul.f32 %v1143, 0.0048076925
  %v1223 = vmul.f32 %v1219, 0.0048076925
  %v1224 = vmul.f32 %v1222, %v1222
  %v1225 = vsub.f32 %v1223, %v1224
  %v1226 = vmax.f32 %v1225, 0.0
  %v1227 = vadd.f32 %v1226, 1e-05
  %v1228 = vrsqrt.pop %v1227
  %v1229 = vmul.f32 %v1228, %v782
  %v1230 = vmul.f32 %v1222, %v1229
  %v1231 = vsub.f32 %v784, %v1230
  %v1233 = vsel %vm811, %v1229, 0
  %1235 = vmatprep.subr.bf16.mxu0 %v804
  %1236 = vmatpush1.bf16.msra.mxu0 %v803
  %1237 = vmatprep.subr.bf16.mxu0 0
  %1238 = vmatpush1.bf16.msra.mxu0 0
  %1239 = vmatprep.subr.bf16.mxu0 0
  %1240 = vmatpush1.bf16.msra.mxu0 0
  %1241 = vmatprep.subr.bf16.mxu0 0
  %1242 = vmatpush1.bf16.msra.mxu0 0
  %1243 = vmatprep.subr.bf16.mxu0 0
  %1244 = vmatpush1.bf16.msra.mxu0 0
  %1245 = vmatprep.subr.bf16.mxu0 0
  %1246 = vmatpush1.bf16.msra.mxu0 0
  %1247 = vmatprep.subr.bf16.mxu0 0
  %1248 = vmatpush1.bf16.msra.mxu0 0
  %1249 = vmatprep.subr.bf16.mxu0 0
  %1250 = vmatpush1.bf16.msra.mxu0 0
  %1251 = vmatprep.subr.bf16.mxu0 0
  %1252 = vmatpush1.bf16.msra.mxu0 0
  %1253 = vmatprep.subr.bf16.mxu0 0
  %1254 = vmatpush1.bf16.msra.mxu0 0
  %1255 = vmatprep.subr.bf16.mxu0 0
  %1256 = vmatpush1.bf16.msra.mxu0 0
  %1257 = vmatprep.subr.bf16.mxu0 0
  %1258 = vmatpush1.bf16.msra.mxu0 0
  %1259 = vmatprep.subr.bf16.mxu0 0
  %1260 = vmatpush1.bf16.msra.mxu0 0
  %1261 = vmatprep.subr.bf16.mxu0 0
  %1262 = vmatpush1.bf16.msra.mxu0 0
  %1263 = vmatprep.subr.bf16.mxu0 0
  %1264 = vmatpush1.bf16.msra.mxu0 0
  %1265 = vmatprep.subr.bf16.mxu0 0
  %1266 = vmatpush1.bf16.msra.mxu0 0
  %1267 = vmatprep.mubr.f32.mxu0 0.0
  %1268 = vmatmul.mubr.f32.gmra.mrb[0].mxu0 %v1233
  %v1269 = vpop.f32.mrb[0].mxu0
  %v1270 = vadd.f32 0.0, %v1269
  %v1271 = vpop.f32.mrb[0].mxu0
  %v1272 = vadd.f32 0.0, %v1271
  %1273 = vdwg.mxu0
  %1274 = vmatprep.subr.bf16.mxu0 %v806
  %1275 = vmatpush1.bf16.msra.mxu0 %v805
  %1276 = vmatprep.subr.bf16.mxu0 0
  %1277 = vmatpush1.bf16.msra.mxu0 0
  %1278 = vmatprep.subr.bf16.mxu0 0
  %1279 = vmatpush1.bf16.msra.mxu0 0
  %1280 = vmatprep.subr.bf16.mxu0 0
  %1281 = vmatpush1.bf16.msra.mxu0 0
  %1282 = vmatprep.subr.bf16.mxu0 0
  %1283 = vmatpush1.bf16.msra.mxu0 0
  %1284 = vmatprep.subr.bf16.mxu0 0
  %1285 = vmatpush1.bf16.msra.mxu0 0
  %1286 = vmatprep.subr.bf16.mxu0 0
  %1287 = vmatpush1.bf16.msra.mxu0 0
  %1288 = vmatprep.subr.bf16.mxu0 0
  %1289 = vmatpush1.bf16.msra.mxu0 0
  %1290 = vmatprep.subr.bf16.mxu0 0
  %1291 = vmatpush1.bf16.msra.mxu0 0
  %1292 = vmatprep.subr.bf16.mxu0 0
  %1293 = vmatpush1.bf16.msra.mxu0 0
  %1294 = vmatprep.subr.bf16.mxu0 0
  %1295 = vmatpush1.bf16.msra.mxu0 0
  %1296 = vmatprep.subr.bf16.mxu0 0
  %1297 = vmatpush1.bf16.msra.mxu0 0
  %1298 = vmatprep.subr.bf16.mxu0 0
  %1299 = vmatpush1.bf16.msra.mxu0 0
  %1300 = vmatprep.subr.bf16.mxu0 0
  %1301 = vmatpush1.bf16.msra.mxu0 0
  %1302 = vmatprep.subr.bf16.mxu0 0
  %1303 = vmatpush1.bf16.msra.mxu0 0
  %1304 = vmatprep.subr.bf16.mxu0 0
  %1305 = vmatpush1.bf16.msra.mxu0 0
  %1306 = vmatprep.mubr.f32.mxu0 0.0
  %1307 = vmatmul.mubr.f32.gmra.mrb[0].mxu0 %v1233
  %v1308 = vpop.f32.mrb[0].mxu0
  %v1309 = vadd.f32 0.0, %v1308
  %v1310 = vpop.f32.mrb[0].mxu0
  %v1311 = vadd.f32 0.0, %v1310
  %1312 = vdwg.mxu0
  %v1314 = vsel %vm811, %v1231, 0
  %1316 = vmatprep.subr.bf16.mxu0 %v804
  %1317 = vmatpush1.bf16.msra.mxu0 %v803
  %1318 = vmatprep.subr.bf16.mxu0 0
  %1319 = vmatpush1.bf16.msra.mxu0 0
  %1320 = vmatprep.subr.bf16.mxu0 0
  %1321 = vmatpush1.bf16.msra.mxu0 0
  %1322 = vmatprep.subr.bf16.mxu0 0
  %1323 = vmatpush1.bf16.msra.mxu0 0
  %1324 = vmatprep.subr.bf16.mxu0 0
  %1325 = vmatpush1.bf16.msra.mxu0 0
  %1326 = vmatprep.subr.bf16.mxu0 0
  %1327 = vmatpush1.bf16.msra.mxu0 0
  %1328 = vmatprep.subr.bf16.mxu0 0
  %1329 = vmatpush1.bf16.msra.mxu0 0
  %1330 = vmatprep.subr.bf16.mxu0 0
  %1331 = vmatpush1.bf16.msra.mxu0 0
  %1332 = vmatprep.subr.bf16.mxu0 0
  %1333 = vmatpush1.bf16.msra.mxu0 0
  %1334 = vmatprep.subr.bf16.mxu0 0
  %1335 = vmatpush1.bf16.msra.mxu0 0
  %1336 = vmatprep.subr.bf16.mxu0 0
  %1337 = vmatpush1.bf16.msra.mxu0 0
  %1338 = vmatprep.subr.bf16.mxu0 0
  %1339 = vmatpush1.bf16.msra.mxu0 0
  %1340 = vmatprep.subr.bf16.mxu0 0
  %1341 = vmatpush1.bf16.msra.mxu0 0
  %1342 = vmatprep.subr.bf16.mxu0 0
  %1343 = vmatpush1.bf16.msra.mxu0 0
  %1344 = vmatprep.subr.bf16.mxu0 0
  %1345 = vmatpush1.bf16.msra.mxu0 0
  %1346 = vmatprep.subr.bf16.mxu0 0
  %1347 = vmatpush1.bf16.msra.mxu0 0
  %1348 = vmatprep.mubr.f32.mxu0 0.0
  %1349 = vmatmul.mubr.f32.gmra.mrb[0].mxu0 %v1314
  %v1350 = vpop.f32.mrb[0].mxu0
  %v1351 = vadd.f32 0.0, %v1350
  %v1352 = vpop.f32.mrb[0].mxu0
  %v1353 = vadd.f32 0.0, %v1352
  %1354 = vdwg.mxu0
  %1355 = vmatprep.subr.bf16.mxu0 %v806
  %1356 = vmatpush1.bf16.msra.mxu0 %v805
  %1357 = vmatprep.subr.bf16.mxu0 0
  %1358 = vmatpush1.bf16.msra.mxu0 0
  %1359 = vmatprep.subr.bf16.mxu0 0
  %1360 = vmatpush1.bf16.msra.mxu0 0
  %1361 = vmatprep.subr.bf16.mxu0 0
  %1362 = vmatpush1.bf16.msra.mxu0 0
  %1363 = vmatprep.subr.bf16.mxu0 0
  %1364 = vmatpush1.bf16.msra.mxu0 0
  %1365 = vmatprep.subr.bf16.mxu0 0
  %1366 = vmatpush1.bf16.msra.mxu0 0
  %1367 = vmatprep.subr.bf16.mxu0 0
  %1368 = vmatpush1.bf16.msra.mxu0 0
  %1369 = vmatprep.subr.bf16.mxu0 0
  %1370 = vmatpush1.bf16.msra.mxu0 0
  %1371 = vmatprep.subr.bf16.mxu0 0
  %1372 = vmatpush1.bf16.msra.mxu0 0
  %1373 = vmatprep.subr.bf16.mxu0 0
  %1374 = vmatpush1.bf16.msra.mxu0 0
  %1375 = vmatprep.subr.bf16.mxu0 0
  %1376 = vmatpush1.bf16.msra.mxu0 0
  %1377 = vmatprep.subr.bf16.mxu0 0
  %1378 = vmatpush1.bf16.msra.mxu0 0
  %1379 = vmatprep.subr.bf16.mxu0 0
  %1380 = vmatpush1.bf16.msra.mxu0 0
  %1381 = vmatprep.subr.bf16.mxu0 0
  %1382 = vmatpush1.bf16.msra.mxu0 0
  %1383 = vmatprep.subr.bf16.mxu0 0
  %1384 = vmatpush1.bf16.msra.mxu0 0
  %1385 = vmatprep.subr.bf16.mxu0 0
  %1386 = vmatpush1.bf16.msra.mxu0 0
  %1387 = vmatprep.mubr.f32.mxu0 0.0
  %1388 = vmatmul.mubr.f32.gmra.mrb[0].mxu0 %v1314
  %v1389 = vpop.f32.mrb[0].mxu0
  %v1390 = vadd.f32 0.0, %v1389
  %v1391 = vpop.f32.mrb[0].mxu0
  %v1392 = vadd.f32 0.0, %v1391
  %1393 = vdwg.mxu0
  %v1394 = vlaneseq
  %v1395 = vshrl.u32 %v1394, 7
  %v1396 = vsub.s32 0, %v1395
  %v1397 = vrot.slane %v1270, %v1396
  %v1398 = vlaneseq
  %v1399 = vshrl.u32 %v1398, 7
  %v1400 = vsub.s32 0, %v1399
  %v1401 = vrot.slane %v1272, %v1400
  %v1402 = vlaneseq
  %v1403 = vshrl.u32 %v1402, 7
  %v1404 = vsub.s32 0, %v1403
  %v1405 = vrot.slane %v1309, %v1404
  %v1406 = vlaneseq
  %v1407 = vshrl.u32 %v1406, 7
  %v1408 = vsub.s32 0, %v1407
  %v1409 = vrot.slane %v1311, %v1408
  %v1410 = vmul.f32 %v268, %v1397
  %v1411 = vmul.f32 %v270, %v1401
  %v1412 = vmul.f32 %v311, %v1405
  %v1413 = vmul.f32 %v313, %v1409
  %v1414 = vlaneseq
  %v1415 = vshrl.u32 %v1414, 7
  %v1416 = vsub.s32 0, %v1415
  %v1417 = vrot.slane %v1351, %v1416
  %v1418 = vlaneseq
  %v1419 = vshrl.u32 %v1418, 7
  %v1420 = vsub.s32 0, %v1419
  %v1421 = vrot.slane %v1353, %v1420
  %v1422 = vlaneseq
  %v1423 = vshrl.u32 %v1422, 7
  %v1424 = vsub.s32 0, %v1423
  %v1425 = vrot.slane %v1390, %v1424
  %v1426 = vlaneseq
  %v1427 = vshrl.u32 %v1426, 7
  %v1428 = vsub.s32 0, %v1427
  %v1429 = vrot.slane %v1392, %v1428
  %v1430 = vadd.f32 %v1410, %v1417
  %v1431 = vadd.f32 %v1411, %v1421
  %v1432 = vadd.f32 %v1412, %v1425
  %v1433 = vadd.f32 %v1413, %v1429
  %v1434 = vmax.f32 %v1430, 0.0
  %v1435 = vmax.f32 %v1431, 0.0
  %v1436 = vmax.f32 %v1432, 0.0
  %v1437 = vmax.f32 %v1433, 0.0
  %v1438 = vpack.c.bf16 %v1434, %v1014
  %v1439 = vpack.c.bf16 %v1435, %v1015
  %v1440 = vpack.c.bf16 %v1436, %v1016
  %v1441 = vpack.c.bf16 %v1437, %v1017
  %v1442 = vld [vmem:[%s19] sm:$0xff]
  %v1443 = vld [vmem:[%s19 + $0x8] sm:$0xff]
  %v1444 = vld [vmem:[%s19 + $0x10] sm:$0xff]
  %v1445 = vld [vmem:[%s19 + $0x18] sm:$0xff]
  %v1446 = vld [vmem:[%s19 + $0x20] sm:$0xff]
  %v1447 = vld [vmem:[%s19 + $0x28] sm:$0xff]
  %v1448 = vld [vmem:[%s19 + $0x30] sm:$0xff]
  %v1449 = vld [vmem:[%s19 + $0x38] sm:$0xff]
  %v1450 = vld [vmem:[%s19 + $0x40] sm:$0xff]
  %v1451 = vld [vmem:[%s19 + $0x48] sm:$0xff]
  %v1452 = vld [vmem:[%s19 + $0x50] sm:$0xff]
  %v1453 = vld [vmem:[%s19 + $0x58] sm:$0xff]
  %v1454 = vld [vmem:[%s19 + $0x60] sm:$0xff]
  %v1455 = vld [vmem:[%s19 + $0x68] sm:$0xff]
  %v1456 = vld [vmem:[%s19 + $0x70] sm:$0xff]
  %v1457 = vld [vmem:[%s19 + $0x78] sm:$0xff]
  %v1458 = vld [vmem:[%s19 + $0x80] sm:$0xff]
  %v1459 = vld [vmem:[%s19 + $0x88] sm:$0xff]
  %v1460 = vld [vmem:[%s19 + $0x90] sm:$0xff]
  %v1461 = vld [vmem:[%s19 + $0x98] sm:$0xff]
  %v1462 = vld [vmem:[%s19 + $0xa0] sm:$0xff]
  %v1463 = vld [vmem:[%s19 + $0xa8] sm:$0xff]
  %v1464 = vld [vmem:[%s19 + $0xb0] sm:$0xff]
  %v1465 = vld [vmem:[%s19 + $0xb8] sm:$0xff]
  %v1466 = vld [vmem:[%s19 + $0xc0] sm:$0xff]
  %v1467 = vld [vmem:[%s19 + $0xc8] sm:$0xff]
  %v1468 = vld [vmem:[%s19 + $0xd0] sm:$0xff]
  %v1469 = vld [vmem:[%s19 + $0xd8] sm:$0xff]
  %v1470 = vld [vmem:[%s19 + $0xe0] sm:$0xff]
  %v1471 = vld [vmem:[%s19 + $0xe8] sm:$0xff]
  %v1472 = vld [vmem:[%s19 + $0xf0] sm:$0xff]
  %v1473 = vld [vmem:[%s19 + $0xf8] sm:$0xff]
  %v1474 = vld [vmem:[%s19 + $0x100] sm:$0xff]
  %v1475 = vld [vmem:[%s19 + $0x108] sm:$0xff]
  %v1476 = vld [vmem:[%s19 + $0x110] sm:$0xff]
  %v1477 = vld [vmem:[%s19 + $0x118] sm:$0xff]
  %v1478 = vld [vmem:[%s19 + $0x120] sm:$0xff]
  %v1479 = vld [vmem:[%s19 + $0x128] sm:$0xff]
  %v1480 = vld [vmem:[%s19 + $0x130] sm:$0xff]
  %v1481 = vld [vmem:[%s19 + $0x138] sm:$0xff]
  %v1482 = vld [vmem:[%s19 + $0x140] sm:$0xff]
  %v1483 = vld [vmem:[%s19 + $0x148] sm:$0xff]
  %v1484 = vld [vmem:[%s19 + $0x150] sm:$0xff]
  %v1485 = vld [vmem:[%s19 + $0x158] sm:$0xff]
  %v1486 = vld [vmem:[%s19 + $0x160] sm:$0xff]
  %v1487 = vld [vmem:[%s19 + $0x168] sm:$0xff]
  %v1488 = vld [vmem:[%s19 + $0x170] sm:$0xff]
  %v1489 = vld [vmem:[%s19 + $0x178] sm:$0xff]
  %v1490 = vld [vmem:[%s19 + $0x180] sm:$0xff]
  %v1491 = vld [vmem:[%s19 + $0x188] sm:$0xff]
  %v1492 = vld [vmem:[%s19 + $0x190] sm:$0xff]
  %v1493 = vld [vmem:[%s19 + $0x198] sm:$0xff]
  %v1494 = vld [vmem:[%s19 + $0x1a0] sm:$0xff]
  %v1495 = vld [vmem:[%s19 + $0x1a8] sm:$0xff]
  %v1496 = vld [vmem:[%s19 + $0x1b0] sm:$0xff]
  %v1497 = vld [vmem:[%s19 + $0x1b8] sm:$0xff]
  %v1498 = vld [vmem:[%s19 + $0x1c0] sm:$0xff]
  %v1499 = vld [vmem:[%s19 + $0x1c8] sm:$0xff]
  %v1500 = vld [vmem:[%s19 + $0x1d0] sm:$0xff]
  %v1501 = vld [vmem:[%s19 + $0x1d8] sm:$0xff]
  %v1502 = vld [vmem:[%s19 + $0x1e0] sm:$0xff]
  %v1503 = vld [vmem:[%s19 + $0x1e8] sm:$0xff]
  %v1504 = vld [vmem:[%s19 + $0x1f0] sm:$0xff]
  %v1505 = vld [vmem:[%s19 + $0x1f8] sm:$0xff]
  %v1506 = vld [vmem:[%s19 + $0x200] sm:$0xff]
  %v1507 = vld [vmem:[%s19 + $0x208] sm:$0xff]
  %v1508 = vld [vmem:[%s19 + $0x210] sm:$0xff]
  %v1509 = vld [vmem:[%s19 + $0x218] sm:$0xff]
  %v1510 = vld [vmem:[%s19 + $0x220] sm:$0xff]
  %v1511 = vld [vmem:[%s19 + $0x228] sm:$0xff]
  %v1512 = vld [vmem:[%s19 + $0x230] sm:$0xff]
  %v1513 = vld [vmem:[%s19 + $0x238] sm:$0xff]
  %v1514 = vld [vmem:[%s19 + $0x240] sm:$0xff]
  %v1515 = vld [vmem:[%s19 + $0x248] sm:$0xff]
  %v1516 = vld [vmem:[%s19 + $0x250] sm:$0xff]
  %v1517 = vld [vmem:[%s19 + $0x258] sm:$0xff]
  %v1518 = vld [vmem:[%s19 + $0x260] sm:$0xff]
  %v1519 = vld [vmem:[%s19 + $0x268] sm:$0xff]
  %v1520 = vld [vmem:[%s19 + $0x270] sm:$0xff]
  %v1521 = vld [vmem:[%s19 + $0x278] sm:$0xff]
  %v1522 = vld [vmem:[%s19 + $0x280] sm:$0xff]
  %v1523 = vld [vmem:[%s19 + $0x288] sm:$0xff]
  %v1524 = vld [vmem:[%s19 + $0x290] sm:$0xff]
  %v1525 = vld [vmem:[%s19 + $0x298] sm:$0xff]
  %v1526 = vld [vmem:[%s19 + $0x2a0] sm:$0xff]
  %v1527 = vld [vmem:[%s19 + $0x2a8] sm:$0xff]
  %v1528 = vld [vmem:[%s19 + $0x2b0] sm:$0xff]
  %v1529 = vld [vmem:[%s19 + $0x2b8] sm:$0xff]
  %v1530 = vld [vmem:[%s19 + $0x2c0] sm:$0xff]
  %v1531 = vld [vmem:[%s19 + $0x2c8] sm:$0xff]
  %v1532 = vld [vmem:[%s19 + $0x2d0] sm:$0xff]
  %v1533 = vld [vmem:[%s19 + $0x2d8] sm:$0xff]
  %v1534 = vld [vmem:[%s19 + $0x2e0] sm:$0xff]
  %v1535 = vld [vmem:[%s19 + $0x2e8] sm:$0xff]
  %v1536 = vld [vmem:[%s19 + $0x2f0] sm:$0xff]
  %v1537 = vld [vmem:[%s19 + $0x2f8] sm:$0xff]
  %v1538 = vld [vmem:[%s19 + $0x300] sm:$0xff]
  %v1539 = vld [vmem:[%s19 + $0x308] sm:$0xff]
  %v1540 = vld [vmem:[%s19 + $0x310] sm:$0xff]
  %v1541 = vld [vmem:[%s19 + $0x318] sm:$0xff]
  %v1542 = vld [vmem:[%s19 + $0x320] sm:$0xff]
  %v1543 = vld [vmem:[%s19 + $0x328] sm:$0xff]
  %v1544 = vld [vmem:[%s19 + $0x330] sm:$0xff]
  %v1545 = vld [vmem:[%s19 + $0x338] sm:$0xff]
  %v1546 = vld [vmem:[%s19 + $0x340] sm:$0xff]
  %v1547 = vld [vmem:[%s19 + $0x348] sm:$0xff]
  %v1548 = vld [vmem:[%s19 + $0x350] sm:$0xff]
  %v1549 = vld [vmem:[%s19 + $0x358] sm:$0xff]
  %v1550 = vld [vmem:[%s19 + $0x360] sm:$0xff]
  %v1551 = vld [vmem:[%s19 + $0x368] sm:$0xff]
  %v1552 = vld [vmem:[%s19 + $0x370] sm:$0xff]
  %v1553 = vld [vmem:[%s19 + $0x378] sm:$0xff]
  %v1554 = vld [vmem:[%s19 + $0x380] sm:$0xff]
  %v1555 = vld [vmem:[%s19 + $0x388] sm:$0xff]
  %v1556 = vld [vmem:[%s19 + $0x390] sm:$0xff]
  %v1557 = vld [vmem:[%s19 + $0x398] sm:$0xff]
  %v1558 = vld [vmem:[%s19 + $0x3a0] sm:$0xff]
  %v1559 = vld [vmem:[%s19 + $0x3a8] sm:$0xff]
  %v1560 = vld [vmem:[%s19 + $0x3b0] sm:$0xff]
  %v1561 = vld [vmem:[%s19 + $0x3b8] sm:$0xff]
  %v1562 = vld [vmem:[%s19 + $0x3c0] sm:$0xff]
  %v1563 = vld [vmem:[%s19 + $0x3c8] sm:$0xff]
  %v1564 = vld [vmem:[%s19 + $0x3d0] sm:$0xff]
  %v1565 = vld [vmem:[%s19 + $0x3d8] sm:$0xff]
  %v1566 = vld [vmem:[%s19 + $0x3e0] sm:$0xff]
  %v1567 = vld [vmem:[%s19 + $0x3e8] sm:$0xff]
  %v1568 = vld [vmem:[%s19 + $0x3f0] sm:$0xff]
  %v1569 = vld [vmem:[%s19 + $0x3f8] sm:$0xff]
  %v1698 = vunpack.c.l.b16 %v1442
  %v1699 = vunpack.c.h.b16 %v1442
  %v1700 = vunpack.c.l.b16 %v1443
  %v1701 = vunpack.c.h.b16 %v1443
  %v1702 = vunpack.c.l.b16 %v1444
  %v1703 = vunpack.c.h.b16 %v1444
  %v1704 = vunpack.c.l.b16 %v1445
  %v1705 = vunpack.c.h.b16 %v1445
  %v1706 = vunpack.c.l.b16 %v1446
  %v1707 = vunpack.c.h.b16 %v1446
  %v1708 = vunpack.c.l.b16 %v1447
  %v1709 = vunpack.c.h.b16 %v1447
  %v1710 = vunpack.c.l.b16 %v1448
  %v1711 = vunpack.c.h.b16 %v1448
  %v1712 = vunpack.c.l.b16 %v1449
  %v1713 = vunpack.c.h.b16 %v1449
  %v1714 = vunpack.c.l.b16 %v1450
  %v1715 = vunpack.c.h.b16 %v1450
  %v1716 = vunpack.c.l.b16 %v1451
  %v1717 = vunpack.c.h.b16 %v1451
  %v1718 = vunpack.c.l.b16 %v1452
  %v1719 = vunpack.c.h.b16 %v1452
  %v1720 = vunpack.c.l.b16 %v1453
  %v1721 = vunpack.c.h.b16 %v1453
  %v1722 = vunpack.c.l.b16 %v1454
  %v1723 = vunpack.c.h.b16 %v1454
  %v1724 = vunpack.c.l.b16 %v1455
  %v1725 = vunpack.c.h.b16 %v1455
  %v1726 = vunpack.c.l.b16 %v1456
  %v1727 = vunpack.c.h.b16 %v1456
  %v1728 = vunpack.c.l.b16 %v1457
  %v1729 = vunpack.c.h.b16 %v1457
  %v1730 = vunpack.c.l.b16 %v1458
  %v1731 = vunpack.c.h.b16 %v1458
  %v1732 = vunpack.c.l.b16 %v1459
  %v1733 = vunpack.c.h.b16 %v1459
  %v1734 = vunpack.c.l.b16 %v1460
  %v1735 = vunpack.c.h.b16 %v1460
  %v1736 = vunpack.c.l.b16 %v1461
  %v1737 = vunpack.c.h.b16 %v1461
  %v1738 = vunpack.c.l.b16 %v1462
  %v1739 = vunpack.c.h.b16 %v1462
  %v1740 = vunpack.c.l.b16 %v1463
  %v1741 = vunpack.c.h.b16 %v1463
  %v1742 = vunpack.c.l.b16 %v1464
  %v1743 = vunpack.c.h.b16 %v1464
  %v1744 = vunpack.c.l.b16 %v1465
  %v1745 = vunpack.c.h.b16 %v1465
  %v1746 = vunpack.c.l.b16 %v1466
  %v1747 = vunpack.c.h.b16 %v1466
  %v1748 = vunpack.c.l.b16 %v1467
  %v1749 = vunpack.c.h.b16 %v1467
  %v1750 = vunpack.c.l.b16 %v1468
  %v1751 = vunpack.c.h.b16 %v1468
  %v1752 = vunpack.c.l.b16 %v1469
  %v1753 = vunpack.c.h.b16 %v1469
  %v1754 = vunpack.c.l.b16 %v1470
  %v1755 = vunpack.c.h.b16 %v1470
  %v1756 = vunpack.c.l.b16 %v1471
  %v1757 = vunpack.c.h.b16 %v1471
  %v1758 = vunpack.c.l.b16 %v1472
  %v1759 = vunpack.c.h.b16 %v1472
  %v1760 = vunpack.c.l.b16 %v1473
  %v1761 = vunpack.c.h.b16 %v1473
  %v1762 = vunpack.c.l.b16 %v1474
  %v1763 = vunpack.c.h.b16 %v1474
  %v1764 = vunpack.c.l.b16 %v1475
  %v1765 = vunpack.c.h.b16 %v1475
  %v1766 = vunpack.c.l.b16 %v1476
  %v1767 = vunpack.c.h.b16 %v1476
  %v1768 = vunpack.c.l.b16 %v1477
  %v1769 = vunpack.c.h.b16 %v1477
  %v1770 = vunpack.c.l.b16 %v1478
  %v1771 = vunpack.c.h.b16 %v1478
  %v1772 = vunpack.c.l.b16 %v1479
  %v1773 = vunpack.c.h.b16 %v1479
  %v1774 = vunpack.c.l.b16 %v1480
  %v1775 = vunpack.c.h.b16 %v1480
  %v1776 = vunpack.c.l.b16 %v1481
  %v1777 = vunpack.c.h.b16 %v1481
  %v1778 = vunpack.c.l.b16 %v1482
  %v1779 = vunpack.c.h.b16 %v1482
  %v1780 = vunpack.c.l.b16 %v1483
  %v1781 = vunpack.c.h.b16 %v1483
  %v1782 = vunpack.c.l.b16 %v1484
  %v1783 = vunpack.c.h.b16 %v1484
  %v1784 = vunpack.c.l.b16 %v1485
  %v1785 = vunpack.c.h.b16 %v1485
  %v1786 = vunpack.c.l.b16 %v1486
  %v1787 = vunpack.c.h.b16 %v1486
  %v1788 = vunpack.c.l.b16 %v1487
  %v1789 = vunpack.c.h.b16 %v1487
  %v1790 = vunpack.c.l.b16 %v1488
  %v1791 = vunpack.c.h.b16 %v1488
  %v1792 = vunpack.c.l.b16 %v1489
  %v1793 = vunpack.c.h.b16 %v1489
  %v1794 = vunpack.c.l.b16 %v1490
  %v1795 = vunpack.c.h.b16 %v1490
  %v1796 = vunpack.c.l.b16 %v1491
  %v1797 = vunpack.c.h.b16 %v1491
  %v1798 = vunpack.c.l.b16 %v1492
  %v1799 = vunpack.c.h.b16 %v1492
  %v1800 = vunpack.c.l.b16 %v1493
  %v1801 = vunpack.c.h.b16 %v1493
  %v1802 = vunpack.c.l.b16 %v1494
  %v1803 = vunpack.c.h.b16 %v1494
  %v1804 = vunpack.c.l.b16 %v1495
  %v1805 = vunpack.c.h.b16 %v1495
  %v1806 = vunpack.c.l.b16 %v1496
  %v1807 = vunpack.c.h.b16 %v1496
  %v1808 = vunpack.c.l.b16 %v1497
  %v1809 = vunpack.c.h.b16 %v1497
  %v1810 = vunpack.c.l.b16 %v1498
  %v1811 = vunpack.c.h.b16 %v1498
  %v1812 = vunpack.c.l.b16 %v1499
  %v1813 = vunpack.c.h.b16 %v1499
  %v1814 = vunpack.c.l.b16 %v1500
  %v1815 = vunpack.c.h.b16 %v1500
  %v1816 = vunpack.c.l.b16 %v1501
  %v1817 = vunpack.c.h.b16 %v1501
  %v1818 = vunpack.c.l.b16 %v1502
  %v1819 = vunpack.c.h.b16 %v1502
  %v1820 = vunpack.c.l.b16 %v1503
  %v1821 = vunpack.c.h.b16 %v1503
  %v1822 = vunpack.c.l.b16 %v1504
  %v1823 = vunpack.c.h.b16 %v1504
  %v1824 = vunpack.c.l.b16 %v1505
  %v1825 = vunpack.c.h.b16 %v1505
  %v1826 = vunpack.c.l.b16 %v1506
  %v1827 = vunpack.c.h.b16 %v1506
  %v1828 = vunpack.c.l.b16 %v1507
  %v1829 = vunpack.c.h.b16 %v1507
  %v1830 = vunpack.c.l.b16 %v1508
  %v1831 = vunpack.c.h.b16 %v1508
  %v1832 = vunpack.c.l.b16 %v1509
  %v1833 = vunpack.c.h.b16 %v1509
  %v1834 = vunpack.c.l.b16 %v1510
  %v1835 = vunpack.c.h.b16 %v1510
  %v1836 = vunpack.c.l.b16 %v1511
  %v1837 = vunpack.c.h.b16 %v1511
  %v1838 = vunpack.c.l.b16 %v1512
  %v1839 = vunpack.c.h.b16 %v1512
  %v1840 = vunpack.c.l.b16 %v1513
  %v1841 = vunpack.c.h.b16 %v1513
  %v1842 = vunpack.c.l.b16 %v1514
  %v1843 = vunpack.c.h.b16 %v1514
  %v1844 = vunpack.c.l.b16 %v1515
  %v1845 = vunpack.c.h.b16 %v1515
  %v1846 = vunpack.c.l.b16 %v1516
  %v1847 = vunpack.c.h.b16 %v1516
  %v1848 = vunpack.c.l.b16 %v1517
  %v1849 = vunpack.c.h.b16 %v1517
  %v1850 = vunpack.c.l.b16 %v1518
  %v1851 = vunpack.c.h.b16 %v1518
  %v1852 = vunpack.c.l.b16 %v1519
  %v1853 = vunpack.c.h.b16 %v1519
  %v1854 = vunpack.c.l.b16 %v1520
  %v1855 = vunpack.c.h.b16 %v1520
  %v1856 = vunpack.c.l.b16 %v1521
  %v1857 = vunpack.c.h.b16 %v1521
  %v1858 = vunpack.c.l.b16 %v1522
  %v1859 = vunpack.c.h.b16 %v1522
  %v1860 = vunpack.c.l.b16 %v1523
  %v1861 = vunpack.c.h.b16 %v1523
  %v1862 = vunpack.c.l.b16 %v1524
  %v1863 = vunpack.c.h.b16 %v1524
  %v1864 = vunpack.c.l.b16 %v1525
  %v1865 = vunpack.c.h.b16 %v1525
  %v1866 = vunpack.c.l.b16 %v1526
  %v1867 = vunpack.c.h.b16 %v1526
  %v1868 = vunpack.c.l.b16 %v1527
  %v1869 = vunpack.c.h.b16 %v1527
  %v1870 = vunpack.c.l.b16 %v1528
  %v1871 = vunpack.c.h.b16 %v1528
  %v1872 = vunpack.c.l.b16 %v1529
  %v1873 = vunpack.c.h.b16 %v1529
  %v1874 = vunpack.c.l.b16 %v1530
  %v1875 = vunpack.c.h.b16 %v1530
  %v1876 = vunpack.c.l.b16 %v1531
  %v1877 = vunpack.c.h.b16 %v1531
  %v1878 = vunpack.c.l.b16 %v1532
  %v1879 = vunpack.c.h.b16 %v1532
  %v1880 = vunpack.c.l.b16 %v1533
  %v1881 = vunpack.c.h.b16 %v1533
  %v1882 = vunpack.c.l.b16 %v1534
  %v1883 = vunpack.c.h.b16 %v1534
  %v1884 = vunpack.c.l.b16 %v1535
  %v1885 = vunpack.c.h.b16 %v1535
  %v1886 = vunpack.c.l.b16 %v1536
  %v1887 = vunpack.c.h.b16 %v1536
  %v1888 = vunpack.c.l.b16 %v1537
  %v1889 = vunpack.c.h.b16 %v1537
  %v1890 = vunpack.c.l.b16 %v1538
  %v1891 = vunpack.c.h.b16 %v1538
  %v1892 = vunpack.c.l.b16 %v1539
  %v1893 = vunpack.c.h.b16 %v1539
  %v1894 = vunpack.c.l.b16 %v1540
  %v1895 = vunpack.c.h.b16 %v1540
  %v1896 = vunpack.c.l.b16 %v1541
  %v1897 = vunpack.c.h.b16 %v1541
  %v1898 = vunpack.c.l.b16 %v1542
  %v1899 = vunpack.c.h.b16 %v1542
  %v1900 = vunpack.c.l.b16 %v1543
  %v1901 = vunpack.c.h.b16 %v1543
  %v1902 = vunpack.c.l.b16 %v1544
  %v1903 = vunpack.c.h.b16 %v1544
  %v1904 = vunpack.c.l.b16 %v1545
  %v1905 = vunpack.c.h.b16 %v1545
  %v1906 = vunpack.c.l.b16 %v1546
  %v1907 = vunpack.c.h.b16 %v1546
  %v1908 = vunpack.c.l.b16 %v1547
  %v1909 = vunpack.c.h.b16 %v1547
  %v1910 = vunpack.c.l.b16 %v1548
  %v1911 = vunpack.c.h.b16 %v1548
  %v1912 = vunpack.c.l.b16 %v1549
  %v1913 = vunpack.c.h.b16 %v1549
  %v1914 = vunpack.c.l.b16 %v1550
  %v1915 = vunpack.c.h.b16 %v1550
  %v1916 = vunpack.c.l.b16 %v1551
  %v1917 = vunpack.c.h.b16 %v1551
  %v1918 = vunpack.c.l.b16 %v1552
  %v1919 = vunpack.c.h.b16 %v1552
  %v1920 = vunpack.c.l.b16 %v1553
  %v1921 = vunpack.c.h.b16 %v1553
  %v1922 = vunpack.c.l.b16 %v1554
  %v1923 = vunpack.c.h.b16 %v1554
  %v1924 = vunpack.c.l.b16 %v1555
  %v1925 = vunpack.c.h.b16 %v1555
  %v1926 = vunpack.c.l.b16 %v1556
  %v1927 = vunpack.c.h.b16 %v1556
  %v1928 = vunpack.c.l.b16 %v1557
  %v1929 = vunpack.c.h.b16 %v1557
  %v1930 = vunpack.c.l.b16 %v1558
  %v1931 = vunpack.c.h.b16 %v1558
  %v1932 = vunpack.c.l.b16 %v1559
  %v1933 = vunpack.c.h.b16 %v1559
  %v1934 = vunpack.c.l.b16 %v1560
  %v1935 = vunpack.c.h.b16 %v1560
  %v1936 = vunpack.c.l.b16 %v1561
  %v1937 = vunpack.c.h.b16 %v1561
  %v1938 = vunpack.c.l.b16 %v1562
  %v1939 = vunpack.c.h.b16 %v1562
  %v1940 = vunpack.c.l.b16 %v1563
  %v1941 = vunpack.c.h.b16 %v1563
  %v1942 = vunpack.c.l.b16 %v1564
  %v1943 = vunpack.c.h.b16 %v1564
  %v1944 = vunpack.c.l.b16 %v1565
  %v1945 = vunpack.c.h.b16 %v1565
  %v1946 = vunpack.c.l.b16 %v1566
  %v1947 = vunpack.c.h.b16 %v1566
  %v1948 = vunpack.c.l.b16 %v1567
  %v1949 = vunpack.c.h.b16 %v1567
  %v1950 = vunpack.c.l.b16 %v1568
  %v1951 = vunpack.c.h.b16 %v1568
  %v1952 = vunpack.c.l.b16 %v1569
  %v1953 = vunpack.c.h.b16 %v1569
  %v1954 = vpack.c.b16 %v1702, %v1698
  %v1955 = vpack.c.b16 %v1703, %v1699
  %v1956 = vpack.c.b16 %v1704, %v1700
  %v1957 = vpack.c.b16 %v1705, %v1701
  %v1958 = vpack.c.b16 %v1710, %v1706
  %v1959 = vpack.c.b16 %v1711, %v1707
  %v1960 = vpack.c.b16 %v1712, %v1708
  %v1961 = vpack.c.b16 %v1713, %v1709
  %v1962 = vpack.c.b16 %v1718, %v1714
  %v1963 = vpack.c.b16 %v1719, %v1715
  %v1964 = vpack.c.b16 %v1720, %v1716
  %v1965 = vpack.c.b16 %v1721, %v1717
  %v1966 = vpack.c.b16 %v1726, %v1722
  %v1967 = vpack.c.b16 %v1727, %v1723
  %v1968 = vpack.c.b16 %v1728, %v1724
  %v1969 = vpack.c.b16 %v1729, %v1725
  %v1970 = vpack.c.b16 %v1734, %v1730
  %v1971 = vpack.c.b16 %v1735, %v1731
  %v1972 = vpack.c.b16 %v1736, %v1732
  %v1973 = vpack.c.b16 %v1737, %v1733
  %v1974 = vpack.c.b16 %v1742, %v1738
  %v1975 = vpack.c.b16 %v1743, %v1739
  %v1976 = vpack.c.b16 %v1744, %v1740
  %v1977 = vpack.c.b16 %v1745, %v1741
  %v1978 = vpack.c.b16 %v1750, %v1746
  %v1979 = vpack.c.b16 %v1751, %v1747
  %v1980 = vpack.c.b16 %v1752, %v1748
  %v1981 = vpack.c.b16 %v1753, %v1749
  %v1982 = vpack.c.b16 %v1758, %v1754
  %v1983 = vpack.c.b16 %v1759, %v1755
  %v1984 = vpack.c.b16 %v1760, %v1756
  %v1985 = vpack.c.b16 %v1761, %v1757
  %v1986 = vpack.c.b16 %v1766, %v1762
  %v1987 = vpack.c.b16 %v1767, %v1763
  %v1988 = vpack.c.b16 %v1768, %v1764
  %v1989 = vpack.c.b16 %v1769, %v1765
  %v1990 = vpack.c.b16 %v1774, %v1770
  %v1991 = vpack.c.b16 %v1775, %v1771
  %v1992 = vpack.c.b16 %v1776, %v1772
  %v1993 = vpack.c.b16 %v1777, %v1773
  %v1994 = vpack.c.b16 %v1782, %v1778
  %v1995 = vpack.c.b16 %v1783, %v1779
  %v1996 = vpack.c.b16 %v1784, %v1780
  %v1997 = vpack.c.b16 %v1785, %v1781
  %v1998 = vpack.c.b16 %v1790, %v1786
  %v1999 = vpack.c.b16 %v1791, %v1787
  %v2000 = vpack.c.b16 %v1792, %v1788
  %v2001 = vpack.c.b16 %v1793, %v1789
  %v2002 = vpack.c.b16 %v1798, %v1794
  %v2003 = vpack.c.b16 %v1799, %v1795
  %v2004 = vpack.c.b16 %v1800, %v1796
  %v2005 = vpack.c.b16 %v1801, %v1797
  %v2006 = vpack.c.b16 %v1806, %v1802
  %v2007 = vpack.c.b16 %v1807, %v1803
  %v2008 = vpack.c.b16 %v1808, %v1804
  %v2009 = vpack.c.b16 %v1809, %v1805
  %v2010 = vpack.c.b16 %v1814, %v1810
  %v2011 = vpack.c.b16 %v1815, %v1811
  %v2012 = vpack.c.b16 %v1816, %v1812
  %v2013 = vpack.c.b16 %v1817, %v1813
  %v2014 = vpack.c.b16 %v1822, %v1818
  %v2015 = vpack.c.b16 %v1823, %v1819
  %v2016 = vpack.c.b16 %v1824, %v1820
  %v2017 = vpack.c.b16 %v1825, %v1821
  %v2018 = vpack.c.b16 %v1830, %v1826
  %v2019 = vpack.c.b16 %v1831, %v1827
  %v2020 = vpack.c.b16 %v1832, %v1828
  %v2021 = vpack.c.b16 %v1833, %v1829
  %v2022 = vpack.c.b16 %v1838, %v1834
  %v2023 = vpack.c.b16 %v1839, %v1835
  %v2024 = vpack.c.b16 %v1840, %v1836
  %v2025 = vpack.c.b16 %v1841, %v1837
  %v2026 = vpack.c.b16 %v1846, %v1842
  %v2027 = vpack.c.b16 %v1847, %v1843
  %v2028 = vpack.c.b16 %v1848, %v1844
  %v2029 = vpack.c.b16 %v1849, %v1845
  %v2030 = vpack.c.b16 %v1854, %v1850
  %v2031 = vpack.c.b16 %v1855, %v1851
  %v2032 = vpack.c.b16 %v1856, %v1852
  %v2033 = vpack.c.b16 %v1857, %v1853
  %v2034 = vpack.c.b16 %v1862, %v1858
  %v2035 = vpack.c.b16 %v1863, %v1859
  %v2036 = vpack.c.b16 %v1864, %v1860
  %v2037 = vpack.c.b16 %v1865, %v1861
  %v2038 = vpack.c.b16 %v1870, %v1866
  %v2039 = vpack.c.b16 %v1871, %v1867
  %v2040 = vpack.c.b16 %v1872, %v1868
  %v2041 = vpack.c.b16 %v1873, %v1869
  %v2042 = vpack.c.b16 %v1878, %v1874
  %v2043 = vpack.c.b16 %v1879, %v1875
  %v2044 = vpack.c.b16 %v1880, %v1876
  %v2045 = vpack.c.b16 %v1881, %v1877
  %v2046 = vpack.c.b16 %v1886, %v1882
  %v2047 = vpack.c.b16 %v1887, %v1883
  %v2048 = vpack.c.b16 %v1888, %v1884
  %v2049 = vpack.c.b16 %v1889, %v1885
  %v2050 = vpack.c.b16 %v1894, %v1890
  %v2051 = vpack.c.b16 %v1895, %v1891
  %v2052 = vpack.c.b16 %v1896, %v1892
  %v2053 = vpack.c.b16 %v1897, %v1893
  %v2054 = vpack.c.b16 %v1902, %v1898
  %v2055 = vpack.c.b16 %v1903, %v1899
  %v2056 = vpack.c.b16 %v1904, %v1900
  %v2057 = vpack.c.b16 %v1905, %v1901
  %v2058 = vpack.c.b16 %v1910, %v1906
  %v2059 = vpack.c.b16 %v1911, %v1907
  %v2060 = vpack.c.b16 %v1912, %v1908
  %v2061 = vpack.c.b16 %v1913, %v1909
  %v2062 = vpack.c.b16 %v1918, %v1914
  %v2063 = vpack.c.b16 %v1919, %v1915
  %v2064 = vpack.c.b16 %v1920, %v1916
  %v2065 = vpack.c.b16 %v1921, %v1917
  %v2066 = vpack.c.b16 %v1926, %v1922
  %v2067 = vpack.c.b16 %v1927, %v1923
  %v2068 = vpack.c.b16 %v1928, %v1924
  %v2069 = vpack.c.b16 %v1929, %v1925
  %v2070 = vpack.c.b16 %v1934, %v1930
  %v2071 = vpack.c.b16 %v1935, %v1931
  %v2072 = vpack.c.b16 %v1936, %v1932
  %v2073 = vpack.c.b16 %v1937, %v1933
  %v2074 = vpack.c.b16 %v1942, %v1938
  %v2075 = vpack.c.b16 %v1943, %v1939
  %v2076 = vpack.c.b16 %v1944, %v1940
  %v2077 = vpack.c.b16 %v1945, %v1941
  %v2078 = vpack.c.b16 %v1950, %v1946
  %v2079 = vpack.c.b16 %v1951, %v1947
  %v2080 = vpack.c.b16 %v1952, %v1948
  %v2081 = vpack.c.b16 %v1953, %v1949
  %2210 = vmatprep.subr.bf16.mxu0 %v1955
  %2211 = vmatpush1.bf16.msra.mxu0 %v1954
  %2212 = vmatprep.subr.bf16.mxu0 %v1959
  %2213 = vmatpush1.bf16.msra.mxu0 %v1958
  %2214 = vmatprep.subr.bf16.mxu0 %v1963
  %2215 = vmatpush1.bf16.msra.mxu0 %v1962
  %2216 = vmatprep.subr.bf16.mxu0 %v1967
  %2217 = vmatpush1.bf16.msra.mxu0 %v1966
  %2218 = vmatprep.subr.bf16.mxu0 %v1971
  %2219 = vmatpush1.bf16.msra.mxu0 %v1970
  %2220 = vmatprep.subr.bf16.mxu0 %v1975
  %2221 = vmatpush1.bf16.msra.mxu0 %v1974
  %2222 = vmatprep.subr.bf16.mxu0 %v1979
  %2223 = vmatpush1.bf16.msra.mxu0 %v1978
  %2224 = vmatprep.subr.bf16.mxu0 %v1983
  %2225 = vmatpush1.bf16.msra.mxu0 %v1982
  %2226 = vmatprep.subr.bf16.mxu0 %v1987
  %2227 = vmatpush1.bf16.msra.mxu0 %v1986
  %2228 = vmatprep.subr.bf16.mxu0 %v1991
  %2229 = vmatpush1.bf16.msra.mxu0 %v1990
  %2230 = vmatprep.subr.bf16.mxu0 %v1995
  %2231 = vmatpush1.bf16.msra.mxu0 %v1994
  %2232 = vmatprep.subr.bf16.mxu0 %v1999
  %2233 = vmatpush1.bf16.msra.mxu0 %v1998
  %2234 = vmatprep.subr.bf16.mxu0 %v2003
  %2235 = vmatpush1.bf16.msra.mxu0 %v2002
  %2236 = vmatprep.subr.bf16.mxu0 %v2007
  %2237 = vmatpush1.bf16.msra.mxu0 %v2006
  %2238 = vmatprep.subr.bf16.mxu0 %v2011
  %2239 = vmatpush1.bf16.msra.mxu0 %v2010
  %2240 = vmatprep.subr.bf16.mxu0 %v2015
  %2241 = vmatpush1.bf16.msra.mxu0 %v2014
  %2242 = vmatprep.mubr.bf16.mxu0 %v1439
  %2243 = vmatmul.mubr.bf16.gmra.mrb[0].mxu0 %v1438
  %v2244 = vpop.f32.mrb[0].mxu0
  %v2245 = vadd.f32 0.0, %v2244
  %v2246 = vpop.f32.mrb[0].mxu0
  %v2247 = vadd.f32 0.0, %v2246
  %v2248 = vpop.f32.mrb[0].mxu0
  %v2249 = vadd.f32 0.0, %v2248
  %v2250 = vpop.f32.mrb[0].mxu0
  %v2251 = vadd.f32 0.0, %v2250
  %2252 = vdwg.mxu0
  %2253 = vmatprep.subr.bf16.mxu0 %v2019
  %2254 = vmatpush1.bf16.msra.mxu0 %v2018
  %2255 = vmatprep.subr.bf16.mxu0 %v2023
  %2256 = vmatpush1.bf16.msra.mxu0 %v2022
  %2257 = vmatprep.subr.bf16.mxu0 %v2027
  %2258 = vmatpush1.bf16.msra.mxu0 %v2026
  %2259 = vmatprep.subr.bf16.mxu0 %v2031
  %2260 = vmatpush1.bf16.msra.mxu0 %v2030
  %2261 = vmatprep.subr.bf16.mxu0 %v2035
  %2262 = vmatpush1.bf16.msra.mxu0 %v2034
  %2263 = vmatprep.subr.bf16.mxu0 %v2039
  %2264 = vmatpush1.bf16.msra.mxu0 %v2038
  %2265 = vmatprep.subr.bf16.mxu0 %v2043
  %2266 = vmatpush1.bf16.msra.mxu0 %v2042
  %2267 = vmatprep.subr.bf16.mxu0 %v2047
  %2268 = vmatpush1.bf16.msra.mxu0 %v2046
  %2269 = vmatprep.subr.bf16.mxu0 %v2051
  %2270 = vmatpush1.bf16.msra.mxu0 %v2050
  %2271 = vmatprep.subr.bf16.mxu0 %v2055
  %2272 = vmatpush1.bf16.msra.mxu0 %v2054
  %2273 = vmatprep.subr.bf16.mxu0 %v2059
  %2274 = vmatpush1.bf16.msra.mxu0 %v2058
  %2275 = vmatprep.subr.bf16.mxu0 %v2063
  %2276 = vmatpush1.bf16.msra.mxu0 %v2062
  %2277 = vmatprep.subr.bf16.mxu0 %v2067
  %2278 = vmatpush1.bf16.msra.mxu0 %v2066
  %2279 = vmatprep.subr.bf16.mxu0 %v2071
  %2280 = vmatpush1.bf16.msra.mxu0 %v2070
  %2281 = vmatprep.subr.bf16.mxu0 %v2075
  %2282 = vmatpush1.bf16.msra.mxu0 %v2074
  %2283 = vmatprep.subr.bf16.mxu0 %v2079
  %2284 = vmatpush1.bf16.msra.mxu0 %v2078
  %2285 = vmatprep.mubr.bf16.mxu0 %v1441
  %2286 = vmatmul.mubr.bf16.gmra.mrb[0].mxu0 %v1440
  %v2287 = vpop.f32.mrb[0].mxu0
  %v2288 = vadd.f32 %v2245, %v2287
  %v2289 = vpop.f32.mrb[0].mxu0
  %v2290 = vadd.f32 %v2247, %v2289
  %v2291 = vpop.f32.mrb[0].mxu0
  %v2292 = vadd.f32 %v2249, %v2291
  %v2293 = vpop.f32.mrb[0].mxu0
  %v2294 = vadd.f32 %v2251, %v2293
  %2295 = vdwg.mxu0
  %2296 = vmatprep.subr.bf16.mxu0 %v1957
  %2297 = vmatpush1.bf16.msra.mxu0 %v1956
  %2298 = vmatprep.subr.bf16.mxu0 %v1961
  %2299 = vmatpush1.bf16.msra.mxu0 %v1960
  %2300 = vmatprep.subr.bf16.mxu0 %v1965
  %2301 = vmatpush1.bf16.msra.mxu0 %v1964
  %2302 = vmatprep.subr.bf16.mxu0 %v1969
  %2303 = vmatpush1.bf16.msra.mxu0 %v1968
  %2304 = vmatprep.subr.bf16.mxu0 %v1973
  %2305 = vmatpush1.bf16.msra.mxu0 %v1972
  %2306 = vmatprep.subr.bf16.mxu0 %v1977
  %2307 = vmatpush1.bf16.msra.mxu0 %v1976
  %2308 = vmatprep.subr.bf16.mxu0 %v1981
  %2309 = vmatpush1.bf16.msra.mxu0 %v1980
  %2310 = vmatprep.subr.bf16.mxu0 %v1985
  %2311 = vmatpush1.bf16.msra.mxu0 %v1984
  %2312 = vmatprep.subr.bf16.mxu0 %v1989
  %2313 = vmatpush1.bf16.msra.mxu0 %v1988
  %2314 = vmatprep.subr.bf16.mxu0 %v1993
  %2315 = vmatpush1.bf16.msra.mxu0 %v1992
  %2316 = vmatprep.subr.bf16.mxu0 %v1997
  %2317 = vmatpush1.bf16.msra.mxu0 %v1996
  %2318 = vmatprep.subr.bf16.mxu0 %v2001
  %2319 = vmatpush1.bf16.msra.mxu0 %v2000
  %2320 = vmatprep.subr.bf16.mxu0 %v2005
  %2321 = vmatpush1.bf16.msra.mxu0 %v2004
  %2322 = vmatprep.subr.bf16.mxu0 %v2009
  %2323 = vmatpush1.bf16.msra.mxu0 %v2008
  %2324 = vmatprep.subr.bf16.mxu0 %v2013
  %2325 = vmatpush1.bf16.msra.mxu0 %v2012
  %2326 = vmatprep.subr.bf16.mxu0 %v2017
  %2327 = vmatpush1.bf16.msra.mxu0 %v2016
  %2328 = vmatprep.mubr.bf16.mxu0 %v1439
  %2329 = vmatmul.mubr.bf16.gmra.mrb[0].mxu0 %v1438
  %v2330 = vpop.f32.mrb[0].mxu0
  %v2331 = vadd.f32 0.0, %v2330
  %v2332 = vpop.f32.mrb[0].mxu0
  %v2333 = vadd.f32 0.0, %v2332
  %v2334 = vpop.f32.mrb[0].mxu0
  %v2335 = vadd.f32 0.0, %v2334
  %v2336 = vpop.f32.mrb[0].mxu0
  %v2337 = vadd.f32 0.0, %v2336
  %2338 = vdwg.mxu0
  %2339 = vmatprep.subr.bf16.mxu0 %v2021
  %2340 = vmatpush1.bf16.msra.mxu0 %v2020
  %2341 = vmatprep.subr.bf16.mxu0 %v2025
  %2342 = vmatpush1.bf16.msra.mxu0 %v2024
  %2343 = vmatprep.subr.bf16.mxu0 %v2029
  %2344 = vmatpush1.bf16.msra.mxu0 %v2028
  %2345 = vmatprep.subr.bf16.mxu0 %v2033
  %2346 = vmatpush1.bf16.msra.mxu0 %v2032
  %2347 = vmatprep.subr.bf16.mxu0 %v2037
  %2348 = vmatpush1.bf16.msra.mxu0 %v2036
  %2349 = vmatprep.subr.bf16.mxu0 %v2041
  %2350 = vmatpush1.bf16.msra.mxu0 %v2040
  %2351 = vmatprep.subr.bf16.mxu0 %v2045
  %2352 = vmatpush1.bf16.msra.mxu0 %v2044
  %2353 = vmatprep.subr.bf16.mxu0 %v2049
  %2354 = vmatpush1.bf16.msra.mxu0 %v2048
  %2355 = vmatprep.subr.bf16.mxu0 %v2053
  %2356 = vmatpush1.bf16.msra.mxu0 %v2052
  %2357 = vmatprep.subr.bf16.mxu0 %v2057
  %2358 = vmatpush1.bf16.msra.mxu0 %v2056
  %2359 = vmatprep.subr.bf16.mxu0 %v2061
  %2360 = vmatpush1.bf16.msra.mxu0 %v2060
  %2361 = vmatprep.subr.bf16.mxu0 %v2065
  %2362 = vmatpush1.bf16.msra.mxu0 %v2064
  %2363 = vmatprep.subr.bf16.mxu0 %v2069
  %2364 = vmatpush1.bf16.msra.mxu0 %v2068
  %2365 = vmatprep.subr.bf16.mxu0 %v2073
  %2366 = vmatpush1.bf16.msra.mxu0 %v2072
  %2367 = vmatprep.subr.bf16.mxu0 %v2077
  %2368 = vmatpush1.bf16.msra.mxu0 %v2076
  %2369 = vmatprep.subr.bf16.mxu0 %v2081
  %2370 = vmatpush1.bf16.msra.mxu0 %v2080
  %2371 = vmatprep.mubr.bf16.mxu0 %v1441
  %2372 = vmatmul.mubr.bf16.gmra.mrb[0].mxu0 %v1440
  %v2373 = vpop.f32.mrb[0].mxu0
  %v2374 = vadd.f32 %v2331, %v2373
  %v2375 = vpop.f32.mrb[0].mxu0
  %v2376 = vadd.f32 %v2333, %v2375
  %v2377 = vpop.f32.mrb[0].mxu0
  %v2378 = vadd.f32 %v2335, %v2377
  %v2379 = vpop.f32.mrb[0].mxu0
  %v2380 = vadd.f32 %v2337, %v2379
  %2381 = vdwg.mxu0
  %v2382 = vld [vmem:[%s21] sm:$0xf]
  %v2384 = vlaneseq
  %v2385 = vshrl.u32 %v2384, 7
  %v2386 = vsub.s32 0, %v2385
  %v2387 = vrot.slane %v2382, %v2386
  %v2388 = vlaneseq
  %v2389 = vshrl.u32 %v2388, 7
  %v2390 = vsub.s32 1, %v2389
  %v2391 = vrot.slane %v2382, %v2390
  %v2392 = vlaneseq
  %v2393 = vshrl.u32 %v2392, 7
  %v2394 = vsub.s32 2, %v2393
  %v2395 = vrot.slane %v2382, %v2394
  %v2396 = vlaneseq
  %v2397 = vshrl.u32 %v2396, 7
  %v2398 = vsub.s32 3, %v2397
  %v2399 = vrot.slane %v2382, %v2398
  %v2405 = vsel %vm811, %v152, 0
  %v2408 = vsel %vm811, %v153, 0
  %2410 = vmatprep.subr.mxu0 %v2290
  %2411 = vmatpush1.msra.mxu0 %v2288
  %2412 = vmatprep.subr.mxu0 %v2294
  %2413 = vmatpush1.msra.mxu0 %v2292
  %2414 = vmatprep.subr.mxu0 0.0
  %2415 = vmatpush1.msra.mxu0 0.0
  %2416 = vmatprep.subr.mxu0 0.0
  %2417 = vmatpush1.msra.mxu0 0.0
  %2418 = vmatprep.subr.mxu0 0.0
  %2419 = vmatpush1.msra.mxu0 0.0
  %2420 = vmatprep.subr.mxu0 0.0
  %2421 = vmatpush1.msra.mxu0 0.0
  %2422 = vmatprep.subr.mxu0 0.0
  %2423 = vmatpush1.msra.mxu0 0.0
  %2424 = vmatprep.subr.mxu0 0.0
  %2425 = vmatpush1.msra.mxu0 0.0
  %2426 = vmatprep.subr.mxu0 0.0
  %2427 = vmatpush1.msra.mxu0 0.0
  %2428 = vmatprep.subr.mxu0 0.0
  %2429 = vmatpush1.msra.mxu0 0.0
  %2430 = vmatprep.subr.mxu0 0.0
  %2431 = vmatpush1.msra.mxu0 0.0
  %2432 = vmatprep.subr.mxu0 0.0
  %2433 = vmatpush1.msra.mxu0 0.0
  %2434 = vmatprep.subr.mxu0 0.0
  %2435 = vmatpush1.msra.mxu0 0.0
  %2436 = vmatprep.subr.mxu0 0.0
  %2437 = vmatpush1.msra.mxu0 0.0
  %2438 = vmatprep.subr.mxu0 0.0
  %2439 = vmatpush1.msra.mxu0 0.0
  %2440 = vmatprep.subr.mxu0 0.0
  %2441 = vmatpush1.msra.mxu0 0.0
  %2442 = vmatprep.subr.mxu0 0.0
  %2443 = vmatpush1.msra.mxu0 0.0
  %2444 = vmatprep.subr.mxu0 0.0
  %2445 = vmatpush1.msra.mxu0 0.0
  %2446 = vmatprep.subr.mxu0 0.0
  %2447 = vmatpush1.msra.mxu0 0.0
  %2448 = vmatprep.subr.mxu0 0.0
  %2449 = vmatpush1.msra.mxu0 0.0
  %2450 = vmatprep.subr.mxu0 0.0
  %2451 = vmatpush1.msra.mxu0 0.0
  %2452 = vmatprep.subr.mxu0 0.0
  %2453 = vmatpush1.msra.mxu0 0.0
  %2454 = vmatprep.subr.mxu0 0.0
  %2455 = vmatpush1.msra.mxu0 0.0
  %2456 = vmatprep.subr.mxu0 0.0
  %2457 = vmatpush1.msra.mxu0 0.0
  %2458 = vmatprep.subr.mxu0 0.0
  %2459 = vmatpush1.msra.mxu0 0.0
  %2460 = vmatprep.subr.mxu0 0.0
  %2461 = vmatpush1.msra.mxu0 0.0
  %2462 = vmatprep.subr.mxu0 0.0
  %2463 = vmatpush1.msra.mxu0 0.0
  %2464 = vmatprep.subr.mxu0 0.0
  %2465 = vmatpush1.msra.mxu0 0.0
  %2466 = vmatprep.subr.mxu0 0.0
  %2467 = vmatpush1.msra.mxu0 0.0
  %2468 = vmatprep.subr.mxu0 0.0
  %2469 = vmatpush1.msra.mxu0 0.0
  %2470 = vmatprep.subr.mxu0 0.0
  %2471 = vmatpush1.msra.mxu0 0.0
  %2472 = vmatprep.subr.mxu0 0.0
  %2473 = vmatpush1.msra.mxu0 0.0
  %2474 = vmatprep.mubr.f32.mxu0 0.0
  %2475 = vmatmul.mubr.f32.gmra.mrb[0].mxu0 %v2405
  %v2476 = vpop.f32.mrb[0].mxu0
  %v2477 = vadd.f32 %v2387, %v2476
  %v2478 = vpop.f32.mrb[0].mxu0
  %v2479 = vadd.f32 %v2391, %v2478
  %2480 = vmatprep.mubr.f32.mxu0 0.0
  %2481 = vmatmul.mubr.f32.gmra.mrb[0].mxu0 %v2408
  %v2482 = vpop.f32.mrb[0].mxu0
  %v2483 = vadd.f32 %v2387, %v2482
  %v2484 = vpop.f32.mrb[0].mxu0
  %v2485 = vadd.f32 %v2391, %v2484
  %2486 = vdwg.mxu0
  %2487 = vmatprep.subr.mxu0 %v2376
  %2488 = vmatpush1.msra.mxu0 %v2374
  %2489 = vmatprep.subr.mxu0 %v2380
  %2490 = vmatpush1.msra.mxu0 %v2378
  %2491 = vmatprep.subr.mxu0 0.0
  %2492 = vmatpush1.msra.mxu0 0.0
  %2493 = vmatprep.subr.mxu0 0.0
  %2494 = vmatpush1.msra.mxu0 0.0
  %2495 = vmatprep.subr.mxu0 0.0
  %2496 = vmatpush1.msra.mxu0 0.0
  %2497 = vmatprep.subr.mxu0 0.0
  %2498 = vmatpush1.msra.mxu0 0.0
  %2499 = vmatprep.subr.mxu0 0.0
  %2500 = vmatpush1.msra.mxu0 0.0
  %2501 = vmatprep.subr.mxu0 0.0
  %2502 = vmatpush1.msra.mxu0 0.0
  %2503 = vmatprep.subr.mxu0 0.0
  %2504 = vmatpush1.msra.mxu0 0.0
  %2505 = vmatprep.subr.mxu0 0.0
  %2506 = vmatpush1.msra.mxu0 0.0
  %2507 = vmatprep.subr.mxu0 0.0
  %2508 = vmatpush1.msra.mxu0 0.0
  %2509 = vmatprep.subr.mxu0 0.0
  %2510 = vmatpush1.msra.mxu0 0.0
  %2511 = vmatprep.subr.mxu0 0.0
  %2512 = vmatpush1.msra.mxu0 0.0
  %2513 = vmatprep.subr.mxu0 0.0
  %2514 = vmatpush1.msra.mxu0 0.0
  %2515 = vmatprep.subr.mxu0 0.0
  %2516 = vmatpush1.msra.mxu0 0.0
  %2517 = vmatprep.subr.mxu0 0.0
  %2518 = vmatpush1.msra.mxu0 0.0
  %2519 = vmatprep.subr.mxu0 0.0
  %2520 = vmatpush1.msra.mxu0 0.0
  %2521 = vmatprep.subr.mxu0 0.0
  %2522 = vmatpush1.msra.mxu0 0.0
  %2523 = vmatprep.subr.mxu0 0.0
  %2524 = vmatpush1.msra.mxu0 0.0
  %2525 = vmatprep.subr.mxu0 0.0
  %2526 = vmatpush1.msra.mxu0 0.0
  %2527 = vmatprep.subr.mxu0 0.0
  %2528 = vmatpush1.msra.mxu0 0.0
  %2529 = vmatprep.subr.mxu0 0.0
  %2530 = vmatpush1.msra.mxu0 0.0
  %2531 = vmatprep.subr.mxu0 0.0
  %2532 = vmatpush1.msra.mxu0 0.0
  %2533 = vmatprep.subr.mxu0 0.0
  %2534 = vmatpush1.msra.mxu0 0.0
  %2535 = vmatprep.subr.mxu0 0.0
  %2536 = vmatpush1.msra.mxu0 0.0
  %2537 = vmatprep.subr.mxu0 0.0
  %2538 = vmatpush1.msra.mxu0 0.0
  %2539 = vmatprep.subr.mxu0 0.0
  %2540 = vmatpush1.msra.mxu0 0.0
  %2541 = vmatprep.subr.mxu0 0.0
  %2542 = vmatpush1.msra.mxu0 0.0
  %2543 = vmatprep.subr.mxu0 0.0
  %2544 = vmatpush1.msra.mxu0 0.0
  %2545 = vmatprep.subr.mxu0 0.0
  %2546 = vmatpush1.msra.mxu0 0.0
  %2547 = vmatprep.subr.mxu0 0.0
  %2548 = vmatpush1.msra.mxu0 0.0
  %2549 = vmatprep.subr.mxu0 0.0
  %2550 = vmatpush1.msra.mxu0 0.0
  %2551 = vmatprep.mubr.f32.mxu0 0.0
  %2552 = vmatmul.mubr.f32.gmra.mrb[0].mxu0 %v2405
  %v2553 = vpop.f32.mrb[0].mxu0
  %v2554 = vadd.f32 %v2395, %v2553
  %v2555 = vpop.f32.mrb[0].mxu0
  %v2556 = vadd.f32 %v2399, %v2555
  %2557 = vmatprep.mubr.f32.mxu0 0.0
  %2558 = vmatmul.mubr.f32.gmra.mrb[0].mxu0 %v2408
  %v2559 = vpop.f32.mrb[0].mxu0
  %v2560 = vadd.f32 %v2395, %v2559
  %v2561 = vpop.f32.mrb[0].mxu0
  %v2562 = vadd.f32 %v2399, %v2561
  %2563 = vdwg.mxu0
  %v2564 = vld [vmem:[%s23] sm:$0xf]
  %v2565 = vld [vmem:[%s25] sm:$0xf]
  %v2566 = vrot.slane %v2477, 4
  %v2567 = vadd.f32 %v2477, %v2566
  %v2568 = vrot.slane %v2567, 2
  %v2569 = vadd.f32 %v2567, %v2568
  %v2570 = vrot.slane %v2569, 1
  %v2571 = vadd.f32 %v2569, %v2570
  %v2572 = vrot.slane %v2479, 4
  %v2573 = vadd.f32 %v2479, %v2572
  %v2574 = vrot.slane %v2573, 2
  %v2575 = vadd.f32 %v2573, %v2574
  %v2576 = vrot.slane %v2575, 1
  %v2577 = vadd.f32 %v2575, %v2576
  %v2578 = vrot.slane %v2554, 4
  %v2579 = vadd.f32 %v2554, %v2578
  %v2580 = vrot.slane %v2579, 2
  %v2581 = vadd.f32 %v2579, %v2580
  %v2582 = vrot.slane %v2581, 1
  %v2583 = vadd.f32 %v2581, %v2582
  %v2584 = vrot.slane %v2556, 4
  %v2585 = vadd.f32 %v2556, %v2584
  %v2586 = vrot.slane %v2585, 2
  %v2587 = vadd.f32 %v2585, %v2586
  %v2588 = vrot.slane %v2587, 1
  %v2589 = vadd.f32 %v2587, %v2588
  %v2590 = vrcp.pop 8.0
  %v2591 = vmul.f32 %v2571, %v2590
  %v2592 = vmul.f32 %v2577, %v2590
  %v2593 = vmul.f32 %v2583, %v2590
  %v2594 = vmul.f32 %v2589, %v2590
  %v2595 = vmul.f32 %v2477, %v2477
  %v2596 = vmul.f32 %v2479, %v2479
  %v2597 = vmul.f32 %v2554, %v2554
  %v2598 = vmul.f32 %v2556, %v2556
  %v2599 = vrot.slane %v2595, 4
  %v2600 = vadd.f32 %v2595, %v2599
  %v2601 = vrot.slane %v2600, 2
  %v2602 = vadd.f32 %v2600, %v2601
  %v2603 = vrot.slane %v2602, 1
  %v2604 = vadd.f32 %v2602, %v2603
  %v2605 = vrot.slane %v2596, 4
  %v2606 = vadd.f32 %v2596, %v2605
  %v2607 = vrot.slane %v2606, 2
  %v2608 = vadd.f32 %v2606, %v2607
  %v2609 = vrot.slane %v2608, 1
  %v2610 = vadd.f32 %v2608, %v2609
  %v2611 = vrot.slane %v2597, 4
  %v2612 = vadd.f32 %v2597, %v2611
  %v2613 = vrot.slane %v2612, 2
  %v2614 = vadd.f32 %v2612, %v2613
  %v2615 = vrot.slane %v2614, 1
  %v2616 = vadd.f32 %v2614, %v2615
  %v2617 = vrot.slane %v2598, 4
  %v2618 = vadd.f32 %v2598, %v2617
  %v2619 = vrot.slane %v2618, 2
  %v2620 = vadd.f32 %v2618, %v2619
  %v2621 = vrot.slane %v2620, 1
  %v2622 = vadd.f32 %v2620, %v2621
  %v2623 = vmul.f32 %v2604, %v2590
  %v2624 = vmul.f32 %v2610, %v2590
  %v2625 = vmul.f32 %v2616, %v2590
  %v2626 = vmul.f32 %v2622, %v2590
  %v2627 = vmul.f32 %v2591, %v2591
  %v2628 = vmul.f32 %v2592, %v2592
  %v2629 = vmul.f32 %v2593, %v2593
  %v2630 = vmul.f32 %v2594, %v2594
  %v2631 = vsub.f32 %v2623, %v2627
  %v2632 = vsub.f32 %v2624, %v2628
  %v2633 = vsub.f32 %v2625, %v2629
  %v2634 = vsub.f32 %v2626, %v2630
  %v2635 = vmax.f32 %v2631, 0.0
  %v2636 = vmax.f32 %v2632, 0.0
  %v2637 = vmax.f32 %v2633, 0.0
  %v2638 = vmax.f32 %v2634, 0.0
  %v2639 = vsub.f32 %v2477, %v2591
  %v2640 = vsub.f32 %v2479, %v2592
  %v2641 = vsub.f32 %v2554, %v2593
  %v2642 = vsub.f32 %v2556, %v2594
  %v2643 = vadd.f32 %v2635, 1e-05
  %v2644 = vadd.f32 %v2636, 1e-05
  %v2645 = vadd.f32 %v2637, 1e-05
  %v2646 = vadd.f32 %v2638, 1e-05
  %v2647 = vrsqrt.pop %v2643
  %v2648 = vrsqrt.pop %v2644
  %v2649 = vrsqrt.pop %v2645
  %v2650 = vrsqrt.pop %v2646
  %v2651 = vmul.f32 %v2639, %v2647
  %v2652 = vmul.f32 %v2640, %v2648
  %v2653 = vmul.f32 %v2641, %v2649
  %v2654 = vmul.f32 %v2642, %v2650
  %v2656 = vlaneseq
  %v2657 = vshrl.u32 %v2656, 7
  %v2658 = vsub.s32 0, %v2657
  %v2659 = vrot.slane %v2564, %v2658
  %v2660 = vlaneseq
  %v2661 = vshrl.u32 %v2660, 7
  %v2662 = vsub.s32 1, %v2661
  %v2663 = vrot.slane %v2564, %v2662
  %v2664 = vlaneseq
  %v2665 = vshrl.u32 %v2664, 7
  %v2666 = vsub.s32 2, %v2665
  %v2667 = vrot.slane %v2564, %v2666
  %v2668 = vlaneseq
  %v2669 = vshrl.u32 %v2668, 7
  %v2670 = vsub.s32 3, %v2669
  %v2671 = vrot.slane %v2564, %v2670
  %v2676 = vmul.f32 %v2651, %v2659
  %v2677 = vmul.f32 %v2652, %v2663
  %v2678 = vmul.f32 %v2653, %v2667
  %v2679 = vmul.f32 %v2654, %v2671
  %v2681 = vlaneseq
  %v2682 = vshrl.u32 %v2681, 7
  %v2683 = vsub.s32 0, %v2682
  %v2684 = vrot.slane %v2565, %v2683
  %v2685 = vlaneseq
  %v2686 = vshrl.u32 %v2685, 7
  %v2687 = vsub.s32 1, %v2686
  %v2688 = vrot.slane %v2565, %v2687
  %v2689 = vlaneseq
  %v2690 = vshrl.u32 %v2689, 7
  %v2691 = vsub.s32 2, %v2690
  %v2692 = vrot.slane %v2565, %v2691
  %v2693 = vlaneseq
  %v2694 = vshrl.u32 %v2693, 7
  %v2695 = vsub.s32 3, %v2694
  %v2696 = vrot.slane %v2565, %v2695
  %v2701 = vadd.f32 %v2676, %v2684
  %v2702 = vadd.f32 %v2677, %v2688
  %v2703 = vadd.f32 %v2678, %v2692
  %v2704 = vadd.f32 %v2679, %v2696
  %v2705 = vmax.f32 %v2701, 0.0
  %v2706 = vmax.f32 %v2702, 0.0
  %v2707 = vmax.f32 %v2703, 0.0
  %v2708 = vmax.f32 %v2704, 0.0
  %v2709 = vrot.slane %v2483, 4
  %v2710 = vadd.f32 %v2483, %v2709
  %v2711 = vrot.slane %v2710, 2
  %v2712 = vadd.f32 %v2710, %v2711
  %v2713 = vrot.slane %v2712, 1
  %v2714 = vadd.f32 %v2712, %v2713
  %v2715 = vrot.slane %v2485, 4
  %v2716 = vadd.f32 %v2485, %v2715
  %v2717 = vrot.slane %v2716, 2
  %v2718 = vadd.f32 %v2716, %v2717
  %v2719 = vrot.slane %v2718, 1
  %v2720 = vadd.f32 %v2718, %v2719
  %v2721 = vrot.slane %v2560, 4
  %v2722 = vadd.f32 %v2560, %v2721
  %v2723 = vrot.slane %v2722, 2
  %v2724 = vadd.f32 %v2722, %v2723
  %v2725 = vrot.slane %v2724, 1
  %v2726 = vadd.f32 %v2724, %v2725
  %v2727 = vrot.slane %v2562, 4
  %v2728 = vadd.f32 %v2562, %v2727
  %v2729 = vrot.slane %v2728, 2
  %v2730 = vadd.f32 %v2728, %v2729
  %v2731 = vrot.slane %v2730, 1
  %v2732 = vadd.f32 %v2730, %v2731
  %v2733 = vmul.f32 %v2714, %v2590
  %v2734 = vmul.f32 %v2720, %v2590
  %v2735 = vmul.f32 %v2726, %v2590
  %v2736 = vmul.f32 %v2732, %v2590
  %v2737 = vmul.f32 %v2483, %v2483
  %v2738 = vmul.f32 %v2485, %v2485
  %v2739 = vmul.f32 %v2560, %v2560
  %v2740 = vmul.f32 %v2562, %v2562
  %v2741 = vrot.slane %v2737, 4
  %v2742 = vadd.f32 %v2737, %v2741
  %v2743 = vrot.slane %v2742, 2
  %v2744 = vadd.f32 %v2742, %v2743
  %v2745 = vrot.slane %v2744, 1
  %v2746 = vadd.f32 %v2744, %v2745
  %v2747 = vrot.slane %v2738, 4
  %v2748 = vadd.f32 %v2738, %v2747
  %v2749 = vrot.slane %v2748, 2
  %v2750 = vadd.f32 %v2748, %v2749
  %v2751 = vrot.slane %v2750, 1
  %v2752 = vadd.f32 %v2750, %v2751
  %v2753 = vrot.slane %v2739, 4
  %v2754 = vadd.f32 %v2739, %v2753
  %v2755 = vrot.slane %v2754, 2
  %v2756 = vadd.f32 %v2754, %v2755
  %v2757 = vrot.slane %v2756, 1
  %v2758 = vadd.f32 %v2756, %v2757
  %v2759 = vrot.slane %v2740, 4
  %v2760 = vadd.f32 %v2740, %v2759
  %v2761 = vrot.slane %v2760, 2
  %v2762 = vadd.f32 %v2760, %v2761
  %v2763 = vrot.slane %v2762, 1
  %v2764 = vadd.f32 %v2762, %v2763
  %v2765 = vmul.f32 %v2746, %v2590
  %v2766 = vmul.f32 %v2752, %v2590
  %v2767 = vmul.f32 %v2758, %v2590
  %v2768 = vmul.f32 %v2764, %v2590
  %v2769 = vmul.f32 %v2733, %v2733
  %v2770 = vmul.f32 %v2734, %v2734
  %v2771 = vmul.f32 %v2735, %v2735
  %v2772 = vmul.f32 %v2736, %v2736
  %v2773 = vsub.f32 %v2765, %v2769
  %v2774 = vsub.f32 %v2766, %v2770
  %v2775 = vsub.f32 %v2767, %v2771
  %v2776 = vsub.f32 %v2768, %v2772
  %v2777 = vmax.f32 %v2773, 0.0
  %v2778 = vmax.f32 %v2774, 0.0
  %v2779 = vmax.f32 %v2775, 0.0
  %v2780 = vmax.f32 %v2776, 0.0
  %v2781 = vsub.f32 %v2483, %v2733
  %v2782 = vsub.f32 %v2485, %v2734
  %v2783 = vsub.f32 %v2560, %v2735
  %v2784 = vsub.f32 %v2562, %v2736
  %v2785 = vadd.f32 %v2777, 1e-05
  %v2786 = vadd.f32 %v2778, 1e-05
  %v2787 = vadd.f32 %v2779, 1e-05
  %v2788 = vadd.f32 %v2780, 1e-05
  %v2789 = vrsqrt.pop %v2785
  %v2790 = vrsqrt.pop %v2786
  %v2791 = vrsqrt.pop %v2787
  %v2792 = vrsqrt.pop %v2788
  %v2793 = vmul.f32 %v2781, %v2789
  %v2794 = vmul.f32 %v2782, %v2790
  %v2795 = vmul.f32 %v2783, %v2791
  %v2796 = vmul.f32 %v2784, %v2792
  %v2797 = vmul.f32 %v2793, %v2659
  %v2798 = vmul.f32 %v2794, %v2663
  %v2799 = vmul.f32 %v2795, %v2667
  %v2800 = vmul.f32 %v2796, %v2671
  %v2801 = vadd.f32 %v2797, %v2684
  %v2802 = vadd.f32 %v2798, %v2688
  %v2803 = vadd.f32 %v2799, %v2692
  %v2804 = vadd.f32 %v2800, %v2696
  %v2805 = vmax.f32 %v2801, 0.0
  %v2806 = vmax.f32 %v2802, 0.0
  %v2807 = vmax.f32 %v2803, 0.0
  %v2808 = vmax.f32 %v2804, 0.0
  %v2809 = vpack.c.bf16 %v2805, %v2705
  %v2810 = vpack.c.bf16 %v2806, %v2706
  %v2811 = vpack.c.bf16 %v2807, %v2707
  %v2812 = vpack.c.bf16 %v2808, %v2708
  %v2813 = vld [vmem:[%s27] sm:$0xff]
  %v2814 = vld [vmem:[%s27 + $0x8] sm:$0xff]
  %v2815 = vld [vmem:[%s27 + $0x10] sm:$0xff]
  %v2816 = vld [vmem:[%s27 + $0x18] sm:$0xff]
  %v2817 = vld [vmem:[%s27 + $0x20] sm:$0xff]
  %v2818 = vld [vmem:[%s27 + $0x28] sm:$0xff]
  %v2819 = vld [vmem:[%s27 + $0x30] sm:$0xff]
  %v2820 = vld [vmem:[%s27 + $0x38] sm:$0xff]
  %v2821 = vld [vmem:[%s27 + $0x40] sm:$0xff]
  %v2822 = vld [vmem:[%s27 + $0x48] sm:$0xff]
  %v2823 = vld [vmem:[%s27 + $0x50] sm:$0xff]
  %v2824 = vld [vmem:[%s27 + $0x58] sm:$0xff]
  %v2825 = vld [vmem:[%s27 + $0x60] sm:$0xff]
  %v2826 = vld [vmem:[%s27 + $0x68] sm:$0xff]
  %v2827 = vld [vmem:[%s27 + $0x70] sm:$0xff]
  %v2828 = vld [vmem:[%s27 + $0x78] sm:$0xff]
  %v2829 = vld [vmem:[%s27 + $0x80] sm:$0xff]
  %v2830 = vld [vmem:[%s27 + $0x88] sm:$0xff]
  %v2831 = vld [vmem:[%s27 + $0x90] sm:$0xff]
  %v2832 = vld [vmem:[%s27 + $0x98] sm:$0xff]
  %v2833 = vld [vmem:[%s27 + $0xa0] sm:$0xff]
  %v2834 = vld [vmem:[%s27 + $0xa8] sm:$0xff]
  %v2835 = vld [vmem:[%s27 + $0xb0] sm:$0xff]
  %v2836 = vld [vmem:[%s27 + $0xb8] sm:$0xff]
  %v2837 = vld [vmem:[%s27 + $0xc0] sm:$0xff]
  %v2838 = vld [vmem:[%s27 + $0xc8] sm:$0xff]
  %v2839 = vld [vmem:[%s27 + $0xd0] sm:$0xff]
  %v2840 = vld [vmem:[%s27 + $0xd8] sm:$0xff]
  %v2841 = vld [vmem:[%s27 + $0xe0] sm:$0xff]
  %v2842 = vld [vmem:[%s27 + $0xe8] sm:$0xff]
  %v2843 = vld [vmem:[%s27 + $0xf0] sm:$0xff]
  %v2844 = vld [vmem:[%s27 + $0xf8] sm:$0xff]
  %v2845 = vld [vmem:[%s27 + $0x100] sm:$0xff]
  %v2846 = vld [vmem:[%s27 + $0x108] sm:$0xff]
  %v2847 = vld [vmem:[%s27 + $0x110] sm:$0xff]
  %v2848 = vld [vmem:[%s27 + $0x118] sm:$0xff]
  %v2849 = vld [vmem:[%s27 + $0x120] sm:$0xff]
  %v2850 = vld [vmem:[%s27 + $0x128] sm:$0xff]
  %v2851 = vld [vmem:[%s27 + $0x130] sm:$0xff]
  %v2852 = vld [vmem:[%s27 + $0x138] sm:$0xff]
  %v2853 = vld [vmem:[%s27 + $0x140] sm:$0xff]
  %v2854 = vld [vmem:[%s27 + $0x148] sm:$0xff]
  %v2855 = vld [vmem:[%s27 + $0x150] sm:$0xff]
  %v2856 = vld [vmem:[%s27 + $0x158] sm:$0xff]
  %v2857 = vld [vmem:[%s27 + $0x160] sm:$0xff]
  %v2858 = vld [vmem:[%s27 + $0x168] sm:$0xff]
  %v2859 = vld [vmem:[%s27 + $0x170] sm:$0xff]
  %v2860 = vld [vmem:[%s27 + $0x178] sm:$0xff]
  %v2861 = vld [vmem:[%s27 + $0x180] sm:$0xff]
  %v2862 = vld [vmem:[%s27 + $0x188] sm:$0xff]
  %v2863 = vld [vmem:[%s27 + $0x190] sm:$0xff]
  %v2864 = vld [vmem:[%s27 + $0x198] sm:$0xff]
  %v2865 = vld [vmem:[%s27 + $0x1a0] sm:$0xff]
  %v2866 = vld [vmem:[%s27 + $0x1a8] sm:$0xff]
  %v2867 = vld [vmem:[%s27 + $0x1b0] sm:$0xff]
  %v2868 = vld [vmem:[%s27 + $0x1b8] sm:$0xff]
  %v2869 = vld [vmem:[%s27 + $0x1c0] sm:$0xff]
  %v2870 = vld [vmem:[%s27 + $0x1c8] sm:$0xff]
  %v2871 = vld [vmem:[%s27 + $0x1d0] sm:$0xff]
  %v2872 = vld [vmem:[%s27 + $0x1d8] sm:$0xff]
  %v2873 = vld [vmem:[%s27 + $0x1e0] sm:$0xff]
  %v2874 = vld [vmem:[%s27 + $0x1e8] sm:$0xff]
  %v2875 = vld [vmem:[%s27 + $0x1f0] sm:$0xff]
  %v2876 = vld [vmem:[%s27 + $0x1f8] sm:$0xff]
  %v2877 = vld [vmem:[%s27 + $0x200] sm:$0xff]
  %v2878 = vld [vmem:[%s27 + $0x208] sm:$0xff]
  %v2879 = vld [vmem:[%s27 + $0x210] sm:$0xff]
  %v2880 = vld [vmem:[%s27 + $0x218] sm:$0xff]
  %v2881 = vld [vmem:[%s27 + $0x220] sm:$0xff]
  %v2882 = vld [vmem:[%s27 + $0x228] sm:$0xff]
  %v2883 = vld [vmem:[%s27 + $0x230] sm:$0xff]
  %v2884 = vld [vmem:[%s27 + $0x238] sm:$0xff]
  %v2885 = vld [vmem:[%s27 + $0x240] sm:$0xff]
  %v2886 = vld [vmem:[%s27 + $0x248] sm:$0xff]
  %v2887 = vld [vmem:[%s27 + $0x250] sm:$0xff]
  %v2888 = vld [vmem:[%s27 + $0x258] sm:$0xff]
  %v2889 = vld [vmem:[%s27 + $0x260] sm:$0xff]
  %v2890 = vld [vmem:[%s27 + $0x268] sm:$0xff]
  %v2891 = vld [vmem:[%s27 + $0x270] sm:$0xff]
  %v2892 = vld [vmem:[%s27 + $0x278] sm:$0xff]
  %v2893 = vld [vmem:[%s27 + $0x280] sm:$0xff]
  %v2894 = vld [vmem:[%s27 + $0x288] sm:$0xff]
  %v2895 = vld [vmem:[%s27 + $0x290] sm:$0xff]
  %v2896 = vld [vmem:[%s27 + $0x298] sm:$0xff]
  %v2897 = vld [vmem:[%s27 + $0x2a0] sm:$0xff]
  %v2898 = vld [vmem:[%s27 + $0x2a8] sm:$0xff]
  %v2899 = vld [vmem:[%s27 + $0x2b0] sm:$0xff]
  %v2900 = vld [vmem:[%s27 + $0x2b8] sm:$0xff]
  %v2901 = vld [vmem:[%s27 + $0x2c0] sm:$0xff]
  %v2902 = vld [vmem:[%s27 + $0x2c8] sm:$0xff]
  %v2903 = vld [vmem:[%s27 + $0x2d0] sm:$0xff]
  %v2904 = vld [vmem:[%s27 + $0x2d8] sm:$0xff]
  %v2905 = vld [vmem:[%s27 + $0x2e0] sm:$0xff]
  %v2906 = vld [vmem:[%s27 + $0x2e8] sm:$0xff]
  %v2907 = vld [vmem:[%s27 + $0x2f0] sm:$0xff]
  %v2908 = vld [vmem:[%s27 + $0x2f8] sm:$0xff]
  %v2909 = vld [vmem:[%s27 + $0x300] sm:$0xff]
  %v2910 = vld [vmem:[%s27 + $0x308] sm:$0xff]
  %v2911 = vld [vmem:[%s27 + $0x310] sm:$0xff]
  %v2912 = vld [vmem:[%s27 + $0x318] sm:$0xff]
  %v2913 = vld [vmem:[%s27 + $0x320] sm:$0xff]
  %v2914 = vld [vmem:[%s27 + $0x328] sm:$0xff]
  %v2915 = vld [vmem:[%s27 + $0x330] sm:$0xff]
  %v2916 = vld [vmem:[%s27 + $0x338] sm:$0xff]
  %v2917 = vld [vmem:[%s27 + $0x340] sm:$0xff]
  %v2918 = vld [vmem:[%s27 + $0x348] sm:$0xff]
  %v2919 = vld [vmem:[%s27 + $0x350] sm:$0xff]
  %v2920 = vld [vmem:[%s27 + $0x358] sm:$0xff]
  %v2921 = vld [vmem:[%s27 + $0x360] sm:$0xff]
  %v2922 = vld [vmem:[%s27 + $0x368] sm:$0xff]
  %v2923 = vld [vmem:[%s27 + $0x370] sm:$0xff]
  %v2924 = vld [vmem:[%s27 + $0x378] sm:$0xff]
  %v2925 = vld [vmem:[%s27 + $0x380] sm:$0xff]
  %v2926 = vld [vmem:[%s27 + $0x388] sm:$0xff]
  %v2927 = vld [vmem:[%s27 + $0x390] sm:$0xff]
  %v2928 = vld [vmem:[%s27 + $0x398] sm:$0xff]
  %v2929 = vld [vmem:[%s27 + $0x3a0] sm:$0xff]
  %v2930 = vld [vmem:[%s27 + $0x3a8] sm:$0xff]
  %v2931 = vld [vmem:[%s27 + $0x3b0] sm:$0xff]
  %v2932 = vld [vmem:[%s27 + $0x3b8] sm:$0xff]
  %v2933 = vld [vmem:[%s27 + $0x3c0] sm:$0xff]
  %v2934 = vld [vmem:[%s27 + $0x3c8] sm:$0xff]
  %v2935 = vld [vmem:[%s27 + $0x3d0] sm:$0xff]
  %v2936 = vld [vmem:[%s27 + $0x3d8] sm:$0xff]
  %v2937 = vld [vmem:[%s27 + $0x3e0] sm:$0xff]
  %v2938 = vld [vmem:[%s27 + $0x3e8] sm:$0xff]
  %v2939 = vld [vmem:[%s27 + $0x3f0] sm:$0xff]
  %v2940 = vld [vmem:[%s27 + $0x3f8] sm:$0xff]
  %v2941 = vld [vmem:[%s27 + $0x400] sm:$0xff]
  %v2942 = vld [vmem:[%s27 + $0x408] sm:$0xff]
  %v2943 = vld [vmem:[%s27 + $0x410] sm:$0xff]
  %v2944 = vld [vmem:[%s27 + $0x418] sm:$0xff]
  %v2945 = vld [vmem:[%s27 + $0x420] sm:$0xff]
  %v2946 = vld [vmem:[%s27 + $0x428] sm:$0xff]
  %v2947 = vld [vmem:[%s27 + $0x430] sm:$0xff]
  %v2948 = vld [vmem:[%s27 + $0x438] sm:$0xff]
  %v2949 = vld [vmem:[%s27 + $0x440] sm:$0xff]
  %v2950 = vld [vmem:[%s27 + $0x448] sm:$0xff]
  %v2951 = vld [vmem:[%s27 + $0x450] sm:$0xff]
  %v2952 = vld [vmem:[%s27 + $0x458] sm:$0xff]
  %v2953 = vld [vmem:[%s27 + $0x460] sm:$0xff]
  %v2954 = vld [vmem:[%s27 + $0x468] sm:$0xff]
  %v2955 = vld [vmem:[%s27 + $0x470] sm:$0xff]
  %v2956 = vld [vmem:[%s27 + $0x478] sm:$0xff]
  %v2957 = vld [vmem:[%s27 + $0x480] sm:$0xff]
  %v2958 = vld [vmem:[%s27 + $0x488] sm:$0xff]
  %v2959 = vld [vmem:[%s27 + $0x490] sm:$0xff]
  %v2960 = vld [vmem:[%s27 + $0x498] sm:$0xff]
  %v2961 = vld [vmem:[%s27 + $0x4a0] sm:$0xff]
  %v2962 = vld [vmem:[%s27 + $0x4a8] sm:$0xff]
  %v2963 = vld [vmem:[%s27 + $0x4b0] sm:$0xff]
  %v2964 = vld [vmem:[%s27 + $0x4b8] sm:$0xff]
  %v2965 = vld [vmem:[%s27 + $0x4c0] sm:$0xff]
  %v2966 = vld [vmem:[%s27 + $0x4c8] sm:$0xff]
  %v2967 = vld [vmem:[%s27 + $0x4d0] sm:$0xff]
  %v2968 = vld [vmem:[%s27 + $0x4d8] sm:$0xff]
  %v2969 = vld [vmem:[%s27 + $0x4e0] sm:$0xff]
  %v2970 = vld [vmem:[%s27 + $0x4e8] sm:$0xff]
  %v2971 = vld [vmem:[%s27 + $0x4f0] sm:$0xff]
  %v2972 = vld [vmem:[%s27 + $0x4f8] sm:$0xff]
  %v2973 = vld [vmem:[%s27 + $0x500] sm:$0xff]
  %v2974 = vld [vmem:[%s27 + $0x508] sm:$0xff]
  %v2975 = vld [vmem:[%s27 + $0x510] sm:$0xff]
  %v2976 = vld [vmem:[%s27 + $0x518] sm:$0xff]
  %v2977 = vld [vmem:[%s27 + $0x520] sm:$0xff]
  %v2978 = vld [vmem:[%s27 + $0x528] sm:$0xff]
  %v2979 = vld [vmem:[%s27 + $0x530] sm:$0xff]
  %v2980 = vld [vmem:[%s27 + $0x538] sm:$0xff]
  %v2981 = vld [vmem:[%s27 + $0x540] sm:$0xff]
  %v2982 = vld [vmem:[%s27 + $0x548] sm:$0xff]
  %v2983 = vld [vmem:[%s27 + $0x550] sm:$0xff]
  %v2984 = vld [vmem:[%s27 + $0x558] sm:$0xff]
  %v2985 = vld [vmem:[%s27 + $0x560] sm:$0xff]
  %v2986 = vld [vmem:[%s27 + $0x568] sm:$0xff]
  %v2987 = vld [vmem:[%s27 + $0x570] sm:$0xff]
  %v2988 = vld [vmem:[%s27 + $0x578] sm:$0xff]
  %v2989 = vld [vmem:[%s27 + $0x580] sm:$0xff]
  %v2990 = vld [vmem:[%s27 + $0x588] sm:$0xff]
  %v2991 = vld [vmem:[%s27 + $0x590] sm:$0xff]
  %v2992 = vld [vmem:[%s27 + $0x598] sm:$0xff]
  %v2993 = vld [vmem:[%s27 + $0x5a0] sm:$0xff]
  %v2994 = vld [vmem:[%s27 + $0x5a8] sm:$0xff]
  %v2995 = vld [vmem:[%s27 + $0x5b0] sm:$0xff]
  %v2996 = vld [vmem:[%s27 + $0x5b8] sm:$0xff]
  %v2997 = vld [vmem:[%s27 + $0x5c0] sm:$0xff]
  %v2998 = vld [vmem:[%s27 + $0x5c8] sm:$0xff]
  %v2999 = vld [vmem:[%s27 + $0x5d0] sm:$0xff]
  %v3000 = vld [vmem:[%s27 + $0x5d8] sm:$0xff]
  %v3001 = vld [vmem:[%s27 + $0x5e0] sm:$0xff]
  %v3002 = vld [vmem:[%s27 + $0x5e8] sm:$0xff]
  %v3003 = vld [vmem:[%s27 + $0x5f0] sm:$0xff]
  %v3004 = vld [vmem:[%s27 + $0x5f8] sm:$0xff]
  %v3005 = vld [vmem:[%s29] sm:$0x3f]
  %v3007 = vlaneseq
  %v3008 = vshrl.u32 %v3007, 7
  %v3009 = vsub.s32 0, %v3008
  %v3010 = vrot.slane %v3005, %v3009
  %v3011 = vlaneseq
  %v3012 = vshrl.u32 %v3011, 7
  %v3013 = vsub.s32 1, %v3012
  %v3014 = vrot.slane %v3005, %v3013
  %v3015 = vlaneseq
  %v3016 = vshrl.u32 %v3015, 7
  %v3017 = vsub.s32 2, %v3016
  %v3018 = vrot.slane %v3005, %v3017
  %v3019 = vlaneseq
  %v3020 = vshrl.u32 %v3019, 7
  %v3021 = vsub.s32 3, %v3020
  %v3022 = vrot.slane %v3005, %v3021
  %v3023 = vlaneseq
  %v3024 = vshrl.u32 %v3023, 7
  %v3025 = vsub.s32 4, %v3024
  %v3026 = vrot.slane %v3005, %v3025
  %v3027 = vlaneseq
  %v3028 = vshrl.u32 %v3027, 7
  %v3029 = vsub.s32 5, %v3028
  %v3030 = vrot.slane %v3005, %v3029
  %v3229 = vunpack.c.l.b16 %v2813
  %v3230 = vunpack.c.h.b16 %v2813
  %v3231 = vunpack.c.l.b16 %v2814
  %v3232 = vunpack.c.h.b16 %v2814
  %v3233 = vunpack.c.l.b16 %v2815
  %v3234 = vunpack.c.h.b16 %v2815
  %v3235 = vunpack.c.l.b16 %v2816
  %v3236 = vunpack.c.h.b16 %v2816
  %v3237 = vunpack.c.l.b16 %v2817
  %v3238 = vunpack.c.h.b16 %v2817
  %v3239 = vunpack.c.l.b16 %v2818
  %v3240 = vunpack.c.h.b16 %v2818
  %v3241 = vunpack.c.l.b16 %v2819
  %v3242 = vunpack.c.h.b16 %v2819
  %v3243 = vunpack.c.l.b16 %v2820
  %v3244 = vunpack.c.h.b16 %v2820
  %v3245 = vunpack.c.l.b16 %v2821
  %v3246 = vunpack.c.h.b16 %v2821
  %v3247 = vunpack.c.l.b16 %v2822
  %v3248 = vunpack.c.h.b16 %v2822
  %v3249 = vunpack.c.l.b16 %v2823
  %v3250 = vunpack.c.h.b16 %v2823
  %v3251 = vunpack.c.l.b16 %v2824
  %v3252 = vunpack.c.h.b16 %v2824
  %v3253 = vunpack.c.l.b16 %v2825
  %v3254 = vunpack.c.h.b16 %v2825
  %v3255 = vunpack.c.l.b16 %v2826
  %v3256 = vunpack.c.h.b16 %v2826
  %v3257 = vunpack.c.l.b16 %v2827
  %v3258 = vunpack.c.h.b16 %v2827
  %v3259 = vunpack.c.l.b16 %v2828
  %v3260 = vunpack.c.h.b16 %v2828
  %v3261 = vunpack.c.l.b16 %v2829
  %v3262 = vunpack.c.h.b16 %v2829
  %v3263 = vunpack.c.l.b16 %v2830
  %v3264 = vunpack.c.h.b16 %v2830
  %v3265 = vunpack.c.l.b16 %v2831
  %v3266 = vunpack.c.h.b16 %v2831
  %v3267 = vunpack.c.l.b16 %v2832
  %v3268 = vunpack.c.h.b16 %v2832
  %v3269 = vunpack.c.l.b16 %v2833
  %v3270 = vunpack.c.h.b16 %v2833
  %v3271 = vunpack.c.l.b16 %v2834
  %v3272 = vunpack.c.h.b16 %v2834
  %v3273 = vunpack.c.l.b16 %v2835
  %v3274 = vunpack.c.h.b16 %v2835
  %v3275 = vunpack.c.l.b16 %v2836
  %v3276 = vunpack.c.h.b16 %v2836
  %v3277 = vunpack.c.l.b16 %v2837
  %v3278 = vunpack.c.h.b16 %v2837
  %v3279 = vunpack.c.l.b16 %v2838
  %v3280 = vunpack.c.h.b16 %v2838
  %v3281 = vunpack.c.l.b16 %v2839
  %v3282 = vunpack.c.h.b16 %v2839
  %v3283 = vunpack.c.l.b16 %v2840
  %v3284 = vunpack.c.h.b16 %v2840
  %v3285 = vunpack.c.l.b16 %v2841
  %v3286 = vunpack.c.h.b16 %v2841
  %v3287 = vunpack.c.l.b16 %v2842
  %v3288 = vunpack.c.h.b16 %v2842
  %v3289 = vunpack.c.l.b16 %v2843
  %v3290 = vunpack.c.h.b16 %v2843
  %v3291 = vunpack.c.l.b16 %v2844
  %v3292 = vunpack.c.h.b16 %v2844
  %v3293 = vunpack.c.l.b16 %v2845
  %v3294 = vunpack.c.h.b16 %v2845
  %v3295 = vunpack.c.l.b16 %v2846
  %v3296 = vunpack.c.h.b16 %v2846
  %v3297 = vunpack.c.l.b16 %v2847
  %v3298 = vunpack.c.h.b16 %v2847
  %v3299 = vunpack.c.l.b16 %v2848
  %v3300 = vunpack.c.h.b16 %v2848
  %v3301 = vunpack.c.l.b16 %v2849
  %v3302 = vunpack.c.h.b16 %v2849
  %v3303 = vunpack.c.l.b16 %v2850
  %v3304 = vunpack.c.h.b16 %v2850
  %v3305 = vunpack.c.l.b16 %v2851
  %v3306 = vunpack.c.h.b16 %v2851
  %v3307 = vunpack.c.l.b16 %v2852
  %v3308 = vunpack.c.h.b16 %v2852
  %v3309 = vunpack.c.l.b16 %v2853
  %v3310 = vunpack.c.h.b16 %v2853
  %v3311 = vunpack.c.l.b16 %v2854
  %v3312 = vunpack.c.h.b16 %v2854
  %v3313 = vunpack.c.l.b16 %v2855
  %v3314 = vunpack.c.h.b16 %v2855
  %v3315 = vunpack.c.l.b16 %v2856
  %v3316 = vunpack.c.h.b16 %v2856
  %v3317 = vunpack.c.l.b16 %v2857
  %v3318 = vunpack.c.h.b16 %v2857
  %v3319 = vunpack.c.l.b16 %v2858
  %v3320 = vunpack.c.h.b16 %v2858
  %v3321 = vunpack.c.l.b16 %v2859
  %v3322 = vunpack.c.h.b16 %v2859
  %v3323 = vunpack.c.l.b16 %v2860
  %v3324 = vunpack.c.h.b16 %v2860
  %v3325 = vunpack.c.l.b16 %v2861
  %v3326 = vunpack.c.h.b16 %v2861
  %v3327 = vunpack.c.l.b16 %v2862
  %v3328 = vunpack.c.h.b16 %v2862
  %v3329 = vunpack.c.l.b16 %v2863
  %v3330 = vunpack.c.h.b16 %v2863
  %v3331 = vunpack.c.l.b16 %v2864
  %v3332 = vunpack.c.h.b16 %v2864
  %v3333 = vunpack.c.l.b16 %v2865
  %v3334 = vunpack.c.h.b16 %v2865
  %v3335 = vunpack.c.l.b16 %v2866
  %v3336 = vunpack.c.h.b16 %v2866
  %v3337 = vunpack.c.l.b16 %v2867
  %v3338 = vunpack.c.h.b16 %v2867
  %v3339 = vunpack.c.l.b16 %v2868
  %v3340 = vunpack.c.h.b16 %v2868
  %v3341 = vunpack.c.l.b16 %v2869
  %v3342 = vunpack.c.h.b16 %v2869
  %v3343 = vunpack.c.l.b16 %v2870
  %v3344 = vunpack.c.h.b16 %v2870
  %v3345 = vunpack.c.l.b16 %v2871
  %v3346 = vunpack.c.h.b16 %v2871
  %v3347 = vunpack.c.l.b16 %v2872
  %v3348 = vunpack.c.h.b16 %v2872
  %v3349 = vunpack.c.l.b16 %v2873
  %v3350 = vunpack.c.h.b16 %v2873
  %v3351 = vunpack.c.l.b16 %v2874
  %v3352 = vunpack.c.h.b16 %v2874
  %v3353 = vunpack.c.l.b16 %v2875
  %v3354 = vunpack.c.h.b16 %v2875
  %v3355 = vunpack.c.l.b16 %v2876
  %v3356 = vunpack.c.h.b16 %v2876
  %v3357 = vunpack.c.l.b16 %v2877
  %v3358 = vunpack.c.h.b16 %v2877
  %v3359 = vunpack.c.l.b16 %v2878
  %v3360 = vunpack.c.h.b16 %v2878
  %v3361 = vunpack.c.l.b16 %v2879
  %v3362 = vunpack.c.h.b16 %v2879
  %v3363 = vunpack.c.l.b16 %v2880
  %v3364 = vunpack.c.h.b16 %v2880
  %v3365 = vunpack.c.l.b16 %v2881
  %v3366 = vunpack.c.h.b16 %v2881
  %v3367 = vunpack.c.l.b16 %v2882
  %v3368 = vunpack.c.h.b16 %v2882
  %v3369 = vunpack.c.l.b16 %v2883
  %v3370 = vunpack.c.h.b16 %v2883
  %v3371 = vunpack.c.l.b16 %v2884
  %v3372 = vunpack.c.h.b16 %v2884
  %v3373 = vunpack.c.l.b16 %v2885
  %v3374 = vunpack.c.h.b16 %v2885
  %v3375 = vunpack.c.l.b16 %v2886
  %v3376 = vunpack.c.h.b16 %v2886
  %v3377 = vunpack.c.l.b16 %v2887
  %v3378 = vunpack.c.h.b16 %v2887
  %v3379 = vunpack.c.l.b16 %v2888
  %v3380 = vunpack.c.h.b16 %v2888
  %v3381 = vunpack.c.l.b16 %v2889
  %v3382 = vunpack.c.h.b16 %v2889
  %v3383 = vunpack.c.l.b16 %v2890
  %v3384 = vunpack.c.h.b16 %v2890
  %v3385 = vunpack.c.l.b16 %v2891
  %v3386 = vunpack.c.h.b16 %v2891
  %v3387 = vunpack.c.l.b16 %v2892
  %v3388 = vunpack.c.h.b16 %v2892
  %v3389 = vunpack.c.l.b16 %v2893
  %v3390 = vunpack.c.h.b16 %v2893
  %v3391 = vunpack.c.l.b16 %v2894
  %v3392 = vunpack.c.h.b16 %v2894
  %v3393 = vunpack.c.l.b16 %v2895
  %v3394 = vunpack.c.h.b16 %v2895
  %v3395 = vunpack.c.l.b16 %v2896
  %v3396 = vunpack.c.h.b16 %v2896
  %v3397 = vunpack.c.l.b16 %v2897
  %v3398 = vunpack.c.h.b16 %v2897
  %v3399 = vunpack.c.l.b16 %v2898
  %v3400 = vunpack.c.h.b16 %v2898
  %v3401 = vunpack.c.l.b16 %v2899
  %v3402 = vunpack.c.h.b16 %v2899
  %v3403 = vunpack.c.l.b16 %v2900
  %v3404 = vunpack.c.h.b16 %v2900
  %v3405 = vunpack.c.l.b16 %v2901
  %v3406 = vunpack.c.h.b16 %v2901
  %v3407 = vunpack.c.l.b16 %v2902
  %v3408 = vunpack.c.h.b16 %v2902
  %v3409 = vunpack.c.l.b16 %v2903
  %v3410 = vunpack.c.h.b16 %v2903
  %v3411 = vunpack.c.l.b16 %v2904
  %v3412 = vunpack.c.h.b16 %v2904
  %v3413 = vunpack.c.l.b16 %v2905
  %v3414 = vunpack.c.h.b16 %v2905
  %v3415 = vunpack.c.l.b16 %v2906
  %v3416 = vunpack.c.h.b16 %v2906
  %v3417 = vunpack.c.l.b16 %v2907
  %v3418 = vunpack.c.h.b16 %v2907
  %v3419 = vunpack.c.l.b16 %v2908
  %v3420 = vunpack.c.h.b16 %v2908
  %v3421 = vunpack.c.l.b16 %v2909
  %v3422 = vunpack.c.h.b16 %v2909
  %v3423 = vunpack.c.l.b16 %v2910
  %v3424 = vunpack.c.h.b16 %v2910
  %v3425 = vunpack.c.l.b16 %v2911
  %v3426 = vunpack.c.h.b16 %v2911
  %v3427 = vunpack.c.l.b16 %v2912
  %v3428 = vunpack.c.h.b16 %v2912
  %v3429 = vunpack.c.l.b16 %v2913
  %v3430 = vunpack.c.h.b16 %v2913
  %v3431 = vunpack.c.l.b16 %v2914
  %v3432 = vunpack.c.h.b16 %v2914
  %v3433 = vunpack.c.l.b16 %v2915
  %v3434 = vunpack.c.h.b16 %v2915
  %v3435 = vunpack.c.l.b16 %v2916
  %v3436 = vunpack.c.h.b16 %v2916
  %v3437 = vunpack.c.l.b16 %v2917
  %v3438 = vunpack.c.h.b16 %v2917
  %v3439 = vunpack.c.l.b16 %v2918
  %v3440 = vunpack.c.h.b16 %v2918
  %v3441 = vunpack.c.l.b16 %v2919
  %v3442 = vunpack.c.h.b16 %v2919
  %v3443 = vunpack.c.l.b16 %v2920
  %v3444 = vunpack.c.h.b16 %v2920
  %v3445 = vunpack.c.l.b16 %v2921
  %v3446 = vunpack.c.h.b16 %v2921
  %v3447 = vunpack.c.l.b16 %v2922
  %v3448 = vunpack.c.h.b16 %v2922
  %v3449 = vunpack.c.l.b16 %v2923
  %v3450 = vunpack.c.h.b16 %v2923
  %v3451 = vunpack.c.l.b16 %v2924
  %v3452 = vunpack.c.h.b16 %v2924
  %v3453 = vunpack.c.l.b16 %v2925
  %v3454 = vunpack.c.h.b16 %v2925
  %v3455 = vunpack.c.l.b16 %v2926
  %v3456 = vunpack.c.h.b16 %v2926
  %v3457 = vunpack.c.l.b16 %v2927
  %v3458 = vunpack.c.h.b16 %v2927
  %v3459 = vunpack.c.l.b16 %v2928
  %v3460 = vunpack.c.h.b16 %v2928
  %v3461 = vunpack.c.l.b16 %v2929
  %v3462 = vunpack.c.h.b16 %v2929
  %v3463 = vunpack.c.l.b16 %v2930
  %v3464 = vunpack.c.h.b16 %v2930
  %v3465 = vunpack.c.l.b16 %v2931
  %v3466 = vunpack.c.h.b16 %v2931
  %v3467 = vunpack.c.l.b16 %v2932
  %v3468 = vunpack.c.h.b16 %v2932
  %v3469 = vunpack.c.l.b16 %v2933
  %v3470 = vunpack.c.h.b16 %v2933
  %v3471 = vunpack.c.l.b16 %v2934
  %v3472 = vunpack.c.h.b16 %v2934
  %v3473 = vunpack.c.l.b16 %v2935
  %v3474 = vunpack.c.h.b16 %v2935
  %v3475 = vunpack.c.l.b16 %v2936
  %v3476 = vunpack.c.h.b16 %v2936
  %v3477 = vunpack.c.l.b16 %v2937
  %v3478 = vunpack.c.h.b16 %v2937
  %v3479 = vunpack.c.l.b16 %v2938
  %v3480 = vunpack.c.h.b16 %v2938
  %v3481 = vunpack.c.l.b16 %v2939
  %v3482 = vunpack.c.h.b16 %v2939
  %v3483 = vunpack.c.l.b16 %v2940
  %v3484 = vunpack.c.h.b16 %v2940
  %v3485 = vunpack.c.l.b16 %v2941
  %v3486 = vunpack.c.h.b16 %v2941
  %v3487 = vunpack.c.l.b16 %v2942
  %v3488 = vunpack.c.h.b16 %v2942
  %v3489 = vunpack.c.l.b16 %v2943
  %v3490 = vunpack.c.h.b16 %v2943
  %v3491 = vunpack.c.l.b16 %v2944
  %v3492 = vunpack.c.h.b16 %v2944
  %v3493 = vunpack.c.l.b16 %v2945
  %v3494 = vunpack.c.h.b16 %v2945
  %v3495 = vunpack.c.l.b16 %v2946
  %v3496 = vunpack.c.h.b16 %v2946
  %v3497 = vunpack.c.l.b16 %v2947
  %v3498 = vunpack.c.h.b16 %v2947
  %v3499 = vunpack.c.l.b16 %v2948
  %v3500 = vunpack.c.h.b16 %v2948
  %v3501 = vunpack.c.l.b16 %v2949
  %v3502 = vunpack.c.h.b16 %v2949
  %v3503 = vunpack.c.l.b16 %v2950
  %v3504 = vunpack.c.h.b16 %v2950
  %v3505 = vunpack.c.l.b16 %v2951
  %v3506 = vunpack.c.h.b16 %v2951
  %v3507 = vunpack.c.l.b16 %v2952
  %v3508 = vunpack.c.h.b16 %v2952
  %v3509 = vunpack.c.l.b16 %v2953
  %v3510 = vunpack.c.h.b16 %v2953
  %v3511 = vunpack.c.l.b16 %v2954
  %v3512 = vunpack.c.h.b16 %v2954
  %v3513 = vunpack.c.l.b16 %v2955
  %v3514 = vunpack.c.h.b16 %v2955
  %v3515 = vunpack.c.l.b16 %v2956
  %v3516 = vunpack.c.h.b16 %v2956
  %v3517 = vunpack.c.l.b16 %v2957
  %v3518 = vunpack.c.h.b16 %v2957
  %v3519 = vunpack.c.l.b16 %v2958
  %v3520 = vunpack.c.h.b16 %v2958
  %v3521 = vunpack.c.l.b16 %v2959
  %v3522 = vunpack.c.h.b16 %v2959
  %v3523 = vunpack.c.l.b16 %v2960
  %v3524 = vunpack.c.h.b16 %v2960
  %v3525 = vunpack.c.l.b16 %v2961
  %v3526 = vunpack.c.h.b16 %v2961
  %v3527 = vunpack.c.l.b16 %v2962
  %v3528 = vunpack.c.h.b16 %v2962
  %v3529 = vunpack.c.l.b16 %v2963
  %v3530 = vunpack.c.h.b16 %v2963
  %v3531 = vunpack.c.l.b16 %v2964
  %v3532 = vunpack.c.h.b16 %v2964
  %v3533 = vunpack.c.l.b16 %v2965
  %v3534 = vunpack.c.h.b16 %v2965
  %v3535 = vunpack.c.l.b16 %v2966
  %v3536 = vunpack.c.h.b16 %v2966
  %v3537 = vunpack.c.l.b16 %v2967
  %v3538 = vunpack.c.h.b16 %v2967
  %v3539 = vunpack.c.l.b16 %v2968
  %v3540 = vunpack.c.h.b16 %v2968
  %v3541 = vunpack.c.l.b16 %v2969
  %v3542 = vunpack.c.h.b16 %v2969
  %v3543 = vunpack.c.l.b16 %v2970
  %v3544 = vunpack.c.h.b16 %v2970
  %v3545 = vunpack.c.l.b16 %v2971
  %v3546 = vunpack.c.h.b16 %v2971
  %v3547 = vunpack.c.l.b16 %v2972
  %v3548 = vunpack.c.h.b16 %v2972
  %v3549 = vunpack.c.l.b16 %v2973
  %v3550 = vunpack.c.h.b16 %v2973
  %v3551 = vunpack.c.l.b16 %v2974
  %v3552 = vunpack.c.h.b16 %v2974
  %v3553 = vunpack.c.l.b16 %v2975
  %v3554 = vunpack.c.h.b16 %v2975
  %v3555 = vunpack.c.l.b16 %v2976
  %v3556 = vunpack.c.h.b16 %v2976
  %v3557 = vunpack.c.l.b16 %v2977
  %v3558 = vunpack.c.h.b16 %v2977
  %v3559 = vunpack.c.l.b16 %v2978
  %v3560 = vunpack.c.h.b16 %v2978
  %v3561 = vunpack.c.l.b16 %v2979
  %v3562 = vunpack.c.h.b16 %v2979
  %v3563 = vunpack.c.l.b16 %v2980
  %v3564 = vunpack.c.h.b16 %v2980
  %v3565 = vunpack.c.l.b16 %v2981
  %v3566 = vunpack.c.h.b16 %v2981
  %v3567 = vunpack.c.l.b16 %v2982
  %v3568 = vunpack.c.h.b16 %v2982
  %v3569 = vunpack.c.l.b16 %v2983
  %v3570 = vunpack.c.h.b16 %v2983
  %v3571 = vunpack.c.l.b16 %v2984
  %v3572 = vunpack.c.h.b16 %v2984
  %v3573 = vunpack.c.l.b16 %v2985
  %v3574 = vunpack.c.h.b16 %v2985
  %v3575 = vunpack.c.l.b16 %v2986
  %v3576 = vunpack.c.h.b16 %v2986
  %v3577 = vunpack.c.l.b16 %v2987
  %v3578 = vunpack.c.h.b16 %v2987
  %v3579 = vunpack.c.l.b16 %v2988
  %v3580 = vunpack.c.h.b16 %v2988
  %v3581 = vunpack.c.l.b16 %v2989
  %v3582 = vunpack.c.h.b16 %v2989
  %v3583 = vunpack.c.l.b16 %v2990
  %v3584 = vunpack.c.h.b16 %v2990
  %v3585 = vunpack.c.l.b16 %v2991
  %v3586 = vunpack.c.h.b16 %v2991
  %v3587 = vunpack.c.l.b16 %v2992
  %v3588 = vunpack.c.h.b16 %v2992
  %v3589 = vunpack.c.l.b16 %v2993
  %v3590 = vunpack.c.h.b16 %v2993
  %v3591 = vunpack.c.l.b16 %v2994
  %v3592 = vunpack.c.h.b16 %v2994
  %v3593 = vunpack.c.l.b16 %v2995
  %v3594 = vunpack.c.h.b16 %v2995
  %v3595 = vunpack.c.l.b16 %v2996
  %v3596 = vunpack.c.h.b16 %v2996
  %v3597 = vunpack.c.l.b16 %v2997
  %v3598 = vunpack.c.h.b16 %v2997
  %v3599 = vunpack.c.l.b16 %v2998
  %v3600 = vunpack.c.h.b16 %v2998
  %v3601 = vunpack.c.l.b16 %v2999
  %v3602 = vunpack.c.h.b16 %v2999
  %v3603 = vunpack.c.l.b16 %v3000
  %v3604 = vunpack.c.h.b16 %v3000
  %v3605 = vunpack.c.l.b16 %v3001
  %v3606 = vunpack.c.h.b16 %v3001
  %v3607 = vunpack.c.l.b16 %v3002
  %v3608 = vunpack.c.h.b16 %v3002
  %v3609 = vunpack.c.l.b16 %v3003
  %v3610 = vunpack.c.h.b16 %v3003
  %v3611 = vunpack.c.l.b16 %v3004
  %v3612 = vunpack.c.h.b16 %v3004
  %v3613 = vpack.c.b16 %v3235, %v3229
  %v3614 = vpack.c.b16 %v3236, %v3230
  %v3615 = vpack.c.b16 %v3237, %v3231
  %v3616 = vpack.c.b16 %v3238, %v3232
  %v3617 = vpack.c.b16 %v3239, %v3233
  %v3618 = vpack.c.b16 %v3240, %v3234
  %v3619 = vpack.c.b16 %v3247, %v3241
  %v3620 = vpack.c.b16 %v3248, %v3242
  %v3621 = vpack.c.b16 %v3249, %v3243
  %v3622 = vpack.c.b16 %v3250, %v3244
  %v3623 = vpack.c.b16 %v3251, %v3245
  %v3624 = vpack.c.b16 %v3252, %v3246
  %v3625 = vpack.c.b16 %v3259, %v3253
  %v3626 = vpack.c.b16 %v3260, %v3254
  %v3627 = vpack.c.b16 %v3261, %v3255
  %v3628 = vpack.c.b16 %v3262, %v3256
  %v3629 = vpack.c.b16 %v3263, %v3257
  %v3630 = vpack.c.b16 %v3264, %v3258
  %v3631 = vpack.c.b16 %v3271, %v3265
  %v3632 = vpack.c.b16 %v3272, %v3266
  %v3633 = vpack.c.b16 %v3273, %v3267
  %v3634 = vpack.c.b16 %v3274, %v3268
  %v3635 = vpack.c.b16 %v3275, %v3269
  %v3636 = vpack.c.b16 %v3276, %v3270
  %v3637 = vpack.c.b16 %v3283, %v3277
  %v3638 = vpack.c.b16 %v3284, %v3278
  %v3639 = vpack.c.b16 %v3285, %v3279
  %v3640 = vpack.c.b16 %v3286, %v3280
  %v3641 = vpack.c.b16 %v3287, %v3281
  %v3642 = vpack.c.b16 %v3288, %v3282
  %v3643 = vpack.c.b16 %v3295, %v3289
  %v3644 = vpack.c.b16 %v3296, %v3290
  %v3645 = vpack.c.b16 %v3297, %v3291
  %v3646 = vpack.c.b16 %v3298, %v3292
  %v3647 = vpack.c.b16 %v3299, %v3293
  %v3648 = vpack.c.b16 %v3300, %v3294
  %v3649 = vpack.c.b16 %v3307, %v3301
  %v3650 = vpack.c.b16 %v3308, %v3302
  %v3651 = vpack.c.b16 %v3309, %v3303
  %v3652 = vpack.c.b16 %v3310, %v3304
  %v3653 = vpack.c.b16 %v3311, %v3305
  %v3654 = vpack.c.b16 %v3312, %v3306
  %v3655 = vpack.c.b16 %v3319, %v3313
  %v3656 = vpack.c.b16 %v3320, %v3314
  %v3657 = vpack.c.b16 %v3321, %v3315
  %v3658 = vpack.c.b16 %v3322, %v3316
  %v3659 = vpack.c.b16 %v3323, %v3317
  %v3660 = vpack.c.b16 %v3324, %v3318
  %v3661 = vpack.c.b16 %v3331, %v3325
  %v3662 = vpack.c.b16 %v3332, %v3326
  %v3663 = vpack.c.b16 %v3333, %v3327
  %v3664 = vpack.c.b16 %v3334, %v3328
  %v3665 = vpack.c.b16 %v3335, %v3329
  %v3666 = vpack.c.b16 %v3336, %v3330
  %v3667 = vpack.c.b16 %v3343, %v3337
  %v3668 = vpack.c.b16 %v3344, %v3338
  %v3669 = vpack.c.b16 %v3345, %v3339
  %v3670 = vpack.c.b16 %v3346, %v3340
  %v3671 = vpack.c.b16 %v3347, %v3341
  %v3672 = vpack.c.b16 %v3348, %v3342
  %v3673 = vpack.c.b16 %v3355, %v3349
  %v3674 = vpack.c.b16 %v3356, %v3350
  %v3675 = vpack.c.b16 %v3357, %v3351
  %v3676 = vpack.c.b16 %v3358, %v3352
  %v3677 = vpack.c.b16 %v3359, %v3353
  %v3678 = vpack.c.b16 %v3360, %v3354
  %v3679 = vpack.c.b16 %v3367, %v3361
  %v3680 = vpack.c.b16 %v3368, %v3362
  %v3681 = vpack.c.b16 %v3369, %v3363
  %v3682 = vpack.c.b16 %v3370, %v3364
  %v3683 = vpack.c.b16 %v3371, %v3365
  %v3684 = vpack.c.b16 %v3372, %v3366
  %v3685 = vpack.c.b16 %v3379, %v3373
  %v3686 = vpack.c.b16 %v3380, %v3374
  %v3687 = vpack.c.b16 %v3381, %v3375
  %v3688 = vpack.c.b16 %v3382, %v3376
  %v3689 = vpack.c.b16 %v3383, %v3377
  %v3690 = vpack.c.b16 %v3384, %v3378
  %v3691 = vpack.c.b16 %v3391, %v3385
  %v3692 = vpack.c.b16 %v3392, %v3386
  %v3693 = vpack.c.b16 %v3393, %v3387
  %v3694 = vpack.c.b16 %v3394, %v3388
  %v3695 = vpack.c.b16 %v3395, %v3389
  %v3696 = vpack.c.b16 %v3396, %v3390
  %v3697 = vpack.c.b16 %v3403, %v3397
  %v3698 = vpack.c.b16 %v3404, %v3398
  %v3699 = vpack.c.b16 %v3405, %v3399
  %v3700 = vpack.c.b16 %v3406, %v3400
  %v3701 = vpack.c.b16 %v3407, %v3401
  %v3702 = vpack.c.b16 %v3408, %v3402
  %v3703 = vpack.c.b16 %v3415, %v3409
  %v3704 = vpack.c.b16 %v3416, %v3410
  %v3705 = vpack.c.b16 %v3417, %v3411
  %v3706 = vpack.c.b16 %v3418, %v3412
  %v3707 = vpack.c.b16 %v3419, %v3413
  %v3708 = vpack.c.b16 %v3420, %v3414
  %v3709 = vpack.c.b16 %v3427, %v3421
  %v3710 = vpack.c.b16 %v3428, %v3422
  %v3711 = vpack.c.b16 %v3429, %v3423
  %v3712 = vpack.c.b16 %v3430, %v3424
  %v3713 = vpack.c.b16 %v3431, %v3425
  %v3714 = vpack.c.b16 %v3432, %v3426
  %v3715 = vpack.c.b16 %v3439, %v3433
  %v3716 = vpack.c.b16 %v3440, %v3434
  %v3717 = vpack.c.b16 %v3441, %v3435
  %v3718 = vpack.c.b16 %v3442, %v3436
  %v3719 = vpack.c.b16 %v3443, %v3437
  %v3720 = vpack.c.b16 %v3444, %v3438
  %v3721 = vpack.c.b16 %v3451, %v3445
  %v3722 = vpack.c.b16 %v3452, %v3446
  %v3723 = vpack.c.b16 %v3453, %v3447
  %v3724 = vpack.c.b16 %v3454, %v3448
  %v3725 = vpack.c.b16 %v3455, %v3449
  %v3726 = vpack.c.b16 %v3456, %v3450
  %v3727 = vpack.c.b16 %v3463, %v3457
  %v3728 = vpack.c.b16 %v3464, %v3458
  %v3729 = vpack.c.b16 %v3465, %v3459
  %v3730 = vpack.c.b16 %v3466, %v3460
  %v3731 = vpack.c.b16 %v3467, %v3461
  %v3732 = vpack.c.b16 %v3468, %v3462
  %v3733 = vpack.c.b16 %v3475, %v3469
  %v3734 = vpack.c.b16 %v3476, %v3470
  %v3735 = vpack.c.b16 %v3477, %v3471
  %v3736 = vpack.c.b16 %v3478, %v3472
  %v3737 = vpack.c.b16 %v3479, %v3473
  %v3738 = vpack.c.b16 %v3480, %v3474
  %v3739 = vpack.c.b16 %v3487, %v3481
  %v3740 = vpack.c.b16 %v3488, %v3482
  %v3741 = vpack.c.b16 %v3489, %v3483
  %v3742 = vpack.c.b16 %v3490, %v3484
  %v3743 = vpack.c.b16 %v3491, %v3485
  %v3744 = vpack.c.b16 %v3492, %v3486
  %v3745 = vpack.c.b16 %v3499, %v3493
  %v3746 = vpack.c.b16 %v3500, %v3494
  %v3747 = vpack.c.b16 %v3501, %v3495
  %v3748 = vpack.c.b16 %v3502, %v3496
  %v3749 = vpack.c.b16 %v3503, %v3497
  %v3750 = vpack.c.b16 %v3504, %v3498
  %v3751 = vpack.c.b16 %v3511, %v3505
  %v3752 = vpack.c.b16 %v3512, %v3506
  %v3753 = vpack.c.b16 %v3513, %v3507
  %v3754 = vpack.c.b16 %v3514, %v3508
  %v3755 = vpack.c.b16 %v3515, %v3509
  %v3756 = vpack.c.b16 %v3516, %v3510
  %v3757 = vpack.c.b16 %v3523, %v3517
  %v3758 = vpack.c.b16 %v3524, %v3518
  %v3759 = vpack.c.b16 %v3525, %v3519
  %v3760 = vpack.c.b16 %v3526, %v3520
  %v3761 = vpack.c.b16 %v3527, %v3521
  %v3762 = vpack.c.b16 %v3528, %v3522
  %v3763 = vpack.c.b16 %v3535, %v3529
  %v3764 = vpack.c.b16 %v3536, %v3530
  %v3765 = vpack.c.b16 %v3537, %v3531
  %v3766 = vpack.c.b16 %v3538, %v3532
  %v3767 = vpack.c.b16 %v3539, %v3533
  %v3768 = vpack.c.b16 %v3540, %v3534
  %v3769 = vpack.c.b16 %v3547, %v3541
  %v3770 = vpack.c.b16 %v3548, %v3542
  %v3771 = vpack.c.b16 %v3549, %v3543
  %v3772 = vpack.c.b16 %v3550, %v3544
  %v3773 = vpack.c.b16 %v3551, %v3545
  %v3774 = vpack.c.b16 %v3552, %v3546
  %v3775 = vpack.c.b16 %v3559, %v3553
  %v3776 = vpack.c.b16 %v3560, %v3554
  %v3777 = vpack.c.b16 %v3561, %v3555
  %v3778 = vpack.c.b16 %v3562, %v3556
  %v3779 = vpack.c.b16 %v3563, %v3557
  %v3780 = vpack.c.b16 %v3564, %v3558
  %v3781 = vpack.c.b16 %v3571, %v3565
  %v3782 = vpack.c.b16 %v3572, %v3566
  %v3783 = vpack.c.b16 %v3573, %v3567
  %v3784 = vpack.c.b16 %v3574, %v3568
  %v3785 = vpack.c.b16 %v3575, %v3569
  %v3786 = vpack.c.b16 %v3576, %v3570
  %v3787 = vpack.c.b16 %v3583, %v3577
  %v3788 = vpack.c.b16 %v3584, %v3578
  %v3789 = vpack.c.b16 %v3585, %v3579
  %v3790 = vpack.c.b16 %v3586, %v3580
  %v3791 = vpack.c.b16 %v3587, %v3581
  %v3792 = vpack.c.b16 %v3588, %v3582
  %v3793 = vpack.c.b16 %v3595, %v3589
  %v3794 = vpack.c.b16 %v3596, %v3590
  %v3795 = vpack.c.b16 %v3597, %v3591
  %v3796 = vpack.c.b16 %v3598, %v3592
  %v3797 = vpack.c.b16 %v3599, %v3593
  %v3798 = vpack.c.b16 %v3600, %v3594
  %v3799 = vpack.c.b16 %v3607, %v3601
  %v3800 = vpack.c.b16 %v3608, %v3602
  %v3801 = vpack.c.b16 %v3609, %v3603
  %v3802 = vpack.c.b16 %v3610, %v3604
  %v3803 = vpack.c.b16 %v3611, %v3605
  %v3804 = vpack.c.b16 %v3612, %v3606
  %3997 = vmatprep.subr.bf16.mxu0 %v3614
  %3998 = vmatpush1.bf16.msra.mxu0 %v3613
  %3999 = vmatprep.subr.bf16.mxu0 %v3620
  %4000 = vmatpush1.bf16.msra.mxu0 %v3619
  %4001 = vmatprep.subr.bf16.mxu0 %v3626
  %4002 = vmatpush1.bf16.msra.mxu0 %v3625
  %4003 = vmatprep.subr.bf16.mxu0 %v3632
  %4004 = vmatpush1.bf16.msra.mxu0 %v3631
  %4005 = vmatprep.subr.bf16.mxu0 %v3638
  %4006 = vmatpush1.bf16.msra.mxu0 %v3637
  %4007 = vmatprep.subr.bf16.mxu0 %v3644
  %4008 = vmatpush1.bf16.msra.mxu0 %v3643
  %4009 = vmatprep.subr.bf16.mxu0 %v3650
  %4010 = vmatpush1.bf16.msra.mxu0 %v3649
  %4011 = vmatprep.subr.bf16.mxu0 %v3656
  %4012 = vmatpush1.bf16.msra.mxu0 %v3655
  %4013 = vmatprep.subr.bf16.mxu0 %v3662
  %4014 = vmatpush1.bf16.msra.mxu0 %v3661
  %4015 = vmatprep.subr.bf16.mxu0 %v3668
  %4016 = vmatpush1.bf16.msra.mxu0 %v3667
  %4017 = vmatprep.subr.bf16.mxu0 %v3674
  %4018 = vmatpush1.bf16.msra.mxu0 %v3673
  %4019 = vmatprep.subr.bf16.mxu0 %v3680
  %4020 = vmatpush1.bf16.msra.mxu0 %v3679
  %4021 = vmatprep.subr.bf16.mxu0 %v3686
  %4022 = vmatpush1.bf16.msra.mxu0 %v3685
  %4023 = vmatprep.subr.bf16.mxu0 %v3692
  %4024 = vmatpush1.bf16.msra.mxu0 %v3691
  %4025 = vmatprep.subr.bf16.mxu0 %v3698
  %4026 = vmatpush1.bf16.msra.mxu0 %v3697
  %4027 = vmatprep.subr.bf16.mxu0 %v3704
  %4028 = vmatpush1.bf16.msra.mxu0 %v3703
  %4029 = vmatprep.mubr.bf16.mxu0 %v2810
  %4030 = vmatmul.mubr.bf16.gmra.mrb[0].mxu0 %v2809
  %v4031 = vpop.f32.mrb[0].mxu0
  %v4032 = vadd.f32 %v3010, %v4031
  %v4033 = vpop.f32.mrb[0].mxu0
  %v4034 = vadd.f32 %v3014, %v4033
  %v4035 = vpop.f32.mrb[0].mxu0
  %v4036 = vadd.f32 %v3010, %v4035
  %v4037 = vpop.f32.mrb[0].mxu0
  %v4038 = vadd.f32 %v3014, %v4037
  %4039 = vdwg.mxu0
  %4040 = vmatprep.subr.bf16.mxu0 %v3710
  %4041 = vmatpush1.bf16.msra.mxu0 %v3709
  %4042 = vmatprep.subr.bf16.mxu0 %v3716
  %4043 = vmatpush1.bf16.msra.mxu0 %v3715
  %4044 = vmatprep.subr.bf16.mxu0 %v3722
  %4045 = vmatpush1.bf16.msra.mxu0 %v3721
  %4046 = vmatprep.subr.bf16.mxu0 %v3728
  %4047 = vmatpush1.bf16.msra.mxu0 %v3727
  %4048 = vmatprep.subr.bf16.mxu0 %v3734
  %4049 = vmatpush1.bf16.msra.mxu0 %v3733
  %4050 = vmatprep.subr.bf16.mxu0 %v3740
  %4051 = vmatpush1.bf16.msra.mxu0 %v3739
  %4052 = vmatprep.subr.bf16.mxu0 %v3746
  %4053 = vmatpush1.bf16.msra.mxu0 %v3745
  %4054 = vmatprep.subr.bf16.mxu0 %v3752
  %4055 = vmatpush1.bf16.msra.mxu0 %v3751
  %4056 = vmatprep.subr.bf16.mxu0 %v3758
  %4057 = vmatpush1.bf16.msra.mxu0 %v3757
  %4058 = vmatprep.subr.bf16.mxu0 %v3764
  %4059 = vmatpush1.bf16.msra.mxu0 %v3763
  %4060 = vmatprep.subr.bf16.mxu0 %v3770
  %4061 = vmatpush1.bf16.msra.mxu0 %v3769
  %4062 = vmatprep.subr.bf16.mxu0 %v3776
  %4063 = vmatpush1.bf16.msra.mxu0 %v3775
  %4064 = vmatprep.subr.bf16.mxu0 %v3782
  %4065 = vmatpush1.bf16.msra.mxu0 %v3781
  %4066 = vmatprep.subr.bf16.mxu0 %v3788
  %4067 = vmatpush1.bf16.msra.mxu0 %v3787
  %4068 = vmatprep.subr.bf16.mxu0 %v3794
  %4069 = vmatpush1.bf16.msra.mxu0 %v3793
  %4070 = vmatprep.subr.bf16.mxu0 %v3800
  %4071 = vmatpush1.bf16.msra.mxu0 %v3799
  %4072 = vmatprep.mubr.bf16.mxu0 %v2812
  %4073 = vmatmul.mubr.bf16.gmra.mrb[0].mxu0 %v2811
  %v4074 = vpop.f32.mrb[0].mxu0
  %v4075 = vadd.f32 %v4032, %v4074
  %v4076 = vpop.f32.mrb[0].mxu0
  %v4077 = vadd.f32 %v4034, %v4076
  %v4078 = vpop.f32.mrb[0].mxu0
  %v4079 = vadd.f32 %v4036, %v4078
  %v4080 = vpop.f32.mrb[0].mxu0
  %v4081 = vadd.f32 %v4038, %v4080
  %4082 = vdwg.mxu0
  %4083 = vmatprep.subr.bf16.mxu0 %v3616
  %4084 = vmatpush1.bf16.msra.mxu0 %v3615
  %4085 = vmatprep.subr.bf16.mxu0 %v3622
  %4086 = vmatpush1.bf16.msra.mxu0 %v3621
  %4087 = vmatprep.subr.bf16.mxu0 %v3628
  %4088 = vmatpush1.bf16.msra.mxu0 %v3627
  %4089 = vmatprep.subr.bf16.mxu0 %v3634
  %4090 = vmatpush1.bf16.msra.mxu0 %v3633
  %4091 = vmatprep.subr.bf16.mxu0 %v3640
  %4092 = vmatpush1.bf16.msra.mxu0 %v3639
  %4093 = vmatprep.subr.bf16.mxu0 %v3646
  %4094 = vmatpush1.bf16.msra.mxu0 %v3645
  %4095 = vmatprep.subr.bf16.mxu0 %v3652
  %4096 = vmatpush1.bf16.msra.mxu0 %v3651
  %4097 = vmatprep.subr.bf16.mxu0 %v3658
  %4098 = vmatpush1.bf16.msra.mxu0 %v3657
  %4099 = vmatprep.subr.bf16.mxu0 %v3664
  %4100 = vmatpush1.bf16.msra.mxu0 %v3663
  %4101 = vmatprep.subr.bf16.mxu0 %v3670
  %4102 = vmatpush1.bf16.msra.mxu0 %v3669
  %4103 = vmatprep.subr.bf16.mxu0 %v3676
  %4104 = vmatpush1.bf16.msra.mxu0 %v3675
  %4105 = vmatprep.subr.bf16.mxu0 %v3682
  %4106 = vmatpush1.bf16.msra.mxu0 %v3681
  %4107 = vmatprep.subr.bf16.mxu0 %v3688
  %4108 = vmatpush1.bf16.msra.mxu0 %v3687
  %4109 = vmatprep.subr.bf16.mxu0 %v3694
  %4110 = vmatpush1.bf16.msra.mxu0 %v3693
  %4111 = vmatprep.subr.bf16.mxu0 %v3700
  %4112 = vmatpush1.bf16.msra.mxu0 %v3699
  %4113 = vmatprep.subr.bf16.mxu0 %v3706
  %4114 = vmatpush1.bf16.msra.mxu0 %v3705
  %4115 = vmatprep.mubr.bf16.mxu0 %v2810
  %4116 = vmatmul.mubr.bf16.gmra.mrb[0].mxu0 %v2809
  %v4117 = vpop.f32.mrb[0].mxu0
  %v4118 = vadd.f32 %v3018, %v4117
  %v4119 = vpop.f32.mrb[0].mxu0
  %v4120 = vadd.f32 %v3022, %v4119
  %v4121 = vpop.f32.mrb[0].mxu0
  %v4122 = vadd.f32 %v3018, %v4121
  %v4123 = vpop.f32.mrb[0].mxu0
  %v4124 = vadd.f32 %v3022, %v4123
  %4125 = vdwg.mxu0
  %4126 = vmatprep.subr.bf16.mxu0 %v3712
  %4127 = vmatpush1.bf16.msra.mxu0 %v3711
  %4128 = vmatprep.subr.bf16.mxu0 %v3718
  %4129 = vmatpush1.bf16.msra.mxu0 %v3717
  %4130 = vmatprep.subr.bf16.mxu0 %v3724
  %4131 = vmatpush1.bf16.msra.mxu0 %v3723
  %4132 = vmatprep.subr.bf16.mxu0 %v3730
  %4133 = vmatpush1.bf16.msra.mxu0 %v3729
  %4134 = vmatprep.subr.bf16.mxu0 %v3736
  %4135 = vmatpush1.bf16.msra.mxu0 %v3735
  %4136 = vmatprep.subr.bf16.mxu0 %v3742
  %4137 = vmatpush1.bf16.msra.mxu0 %v3741
  %4138 = vmatprep.subr.bf16.mxu0 %v3748
  %4139 = vmatpush1.bf16.msra.mxu0 %v3747
  %4140 = vmatprep.subr.bf16.mxu0 %v3754
  %4141 = vmatpush1.bf16.msra.mxu0 %v3753
  %4142 = vmatprep.subr.bf16.mxu0 %v3760
  %4143 = vmatpush1.bf16.msra.mxu0 %v3759
  %4144 = vmatprep.subr.bf16.mxu0 %v3766
  %4145 = vmatpush1.bf16.msra.mxu0 %v3765
  %4146 = vmatprep.subr.bf16.mxu0 %v3772
  %4147 = vmatpush1.bf16.msra.mxu0 %v3771
  %4148 = vmatprep.subr.bf16.mxu0 %v3778
  %4149 = vmatpush1.bf16.msra.mxu0 %v3777
  %4150 = vmatprep.subr.bf16.mxu0 %v3784
  %4151 = vmatpush1.bf16.msra.mxu0 %v3783
  %4152 = vmatprep.subr.bf16.mxu0 %v3790
  %4153 = vmatpush1.bf16.msra.mxu0 %v3789
  %4154 = vmatprep.subr.bf16.mxu0 %v3796
  %4155 = vmatpush1.bf16.msra.mxu0 %v3795
  %4156 = vmatprep.subr.bf16.mxu0 %v3802
  %4157 = vmatpush1.bf16.msra.mxu0 %v3801
  %4158 = vmatprep.mubr.bf16.mxu0 %v2812
  %4159 = vmatmul.mubr.bf16.gmra.mrb[0].mxu0 %v2811
  %v4160 = vpop.f32.mrb[0].mxu0
  %v4161 = vadd.f32 %v4118, %v4160
  %v4162 = vpop.f32.mrb[0].mxu0
  %v4163 = vadd.f32 %v4120, %v4162
  %v4164 = vpop.f32.mrb[0].mxu0
  %v4165 = vadd.f32 %v4122, %v4164
  %v4166 = vpop.f32.mrb[0].mxu0
  %v4167 = vadd.f32 %v4124, %v4166
  %4168 = vdwg.mxu0
  %4169 = vmatprep.subr.bf16.mxu0 %v3618
  %4170 = vmatpush1.bf16.msra.mxu0 %v3617
  %4171 = vmatprep.subr.bf16.mxu0 %v3624
  %4172 = vmatpush1.bf16.msra.mxu0 %v3623
  %4173 = vmatprep.subr.bf16.mxu0 %v3630
  %4174 = vmatpush1.bf16.msra.mxu0 %v3629
  %4175 = vmatprep.subr.bf16.mxu0 %v3636
  %4176 = vmatpush1.bf16.msra.mxu0 %v3635
  %4177 = vmatprep.subr.bf16.mxu0 %v3642
  %4178 = vmatpush1.bf16.msra.mxu0 %v3641
  %4179 = vmatprep.subr.bf16.mxu0 %v3648
  %4180 = vmatpush1.bf16.msra.mxu0 %v3647
  %4181 = vmatprep.subr.bf16.mxu0 %v3654
  %4182 = vmatpush1.bf16.msra.mxu0 %v3653
  %4183 = vmatprep.subr.bf16.mxu0 %v3660
  %4184 = vmatpush1.bf16.msra.mxu0 %v3659
  %4185 = vmatprep.subr.bf16.mxu0 %v3666
  %4186 = vmatpush1.bf16.msra.mxu0 %v3665
  %4187 = vmatprep.subr.bf16.mxu0 %v3672
  %4188 = vmatpush1.bf16.msra.mxu0 %v3671
  %4189 = vmatprep.subr.bf16.mxu0 %v3678
  %4190 = vmatpush1.bf16.msra.mxu0 %v3677
  %4191 = vmatprep.subr.bf16.mxu0 %v3684
  %4192 = vmatpush1.bf16.msra.mxu0 %v3683
  %4193 = vmatprep.subr.bf16.mxu0 %v3690
  %4194 = vmatpush1.bf16.msra.mxu0 %v3689
  %4195 = vmatprep.subr.bf16.mxu0 %v3696
  %4196 = vmatpush1.bf16.msra.mxu0 %v3695
  %4197 = vmatprep.subr.bf16.mxu0 %v3702
  %4198 = vmatpush1.bf16.msra.mxu0 %v3701
  %4199 = vmatprep.subr.bf16.mxu0 %v3708
  %4200 = vmatpush1.bf16.msra.mxu0 %v3707
  %4201 = vmatprep.mubr.bf16.mxu0 %v2810
  %4202 = vmatmul.mubr.bf16.gmra.mrb[0].mxu0 %v2809
  %v4203 = vpop.f32.mrb[0].mxu0
  %v4204 = vadd.f32 %v3026, %v4203
  %v4205 = vpop.f32.mrb[0].mxu0
  %v4206 = vadd.f32 %v3030, %v4205
  %v4207 = vpop.f32.mrb[0].mxu0
  %v4208 = vadd.f32 %v3026, %v4207
  %v4209 = vpop.f32.mrb[0].mxu0
  %v4210 = vadd.f32 %v3030, %v4209
  %4211 = vdwg.mxu0
  %4212 = vmatprep.subr.bf16.mxu0 %v3714
  %4213 = vmatpush1.bf16.msra.mxu0 %v3713
  %4214 = vmatprep.subr.bf16.mxu0 %v3720
  %4215 = vmatpush1.bf16.msra.mxu0 %v3719
  %4216 = vmatprep.subr.bf16.mxu0 %v3726
  %4217 = vmatpush1.bf16.msra.mxu0 %v3725
  %4218 = vmatprep.subr.bf16.mxu0 %v3732
  %4219 = vmatpush1.bf16.msra.mxu0 %v3731
  %4220 = vmatprep.subr.bf16.mxu0 %v3738
  %4221 = vmatpush1.bf16.msra.mxu0 %v3737
  %4222 = vmatprep.subr.bf16.mxu0 %v3744
  %4223 = vmatpush1.bf16.msra.mxu0 %v3743
  %4224 = vmatprep.subr.bf16.mxu0 %v3750
  %4225 = vmatpush1.bf16.msra.mxu0 %v3749
  %4226 = vmatprep.subr.bf16.mxu0 %v3756
  %4227 = vmatpush1.bf16.msra.mxu0 %v3755
  %4228 = vmatprep.subr.bf16.mxu0 %v3762
  %4229 = vmatpush1.bf16.msra.mxu0 %v3761
  %4230 = vmatprep.subr.bf16.mxu0 %v3768
  %4231 = vmatpush1.bf16.msra.mxu0 %v3767
  %4232 = vmatprep.subr.bf16.mxu0 %v3774
  %4233 = vmatpush1.bf16.msra.mxu0 %v3773
  %4234 = vmatprep.subr.bf16.mxu0 %v3780
  %4235 = vmatpush1.bf16.msra.mxu0 %v3779
  %4236 = vmatprep.subr.bf16.mxu0 %v3786
  %4237 = vmatpush1.bf16.msra.mxu0 %v3785
  %4238 = vmatprep.subr.bf16.mxu0 %v3792
  %4239 = vmatpush1.bf16.msra.mxu0 %v3791
  %4240 = vmatprep.subr.bf16.mxu0 %v3798
  %4241 = vmatpush1.bf16.msra.mxu0 %v3797
  %4242 = vmatprep.subr.bf16.mxu0 %v3804
  %4243 = vmatpush1.bf16.msra.mxu0 %v3803
  %4244 = vmatprep.mubr.bf16.mxu0 %v2812
  %4245 = vmatmul.mubr.bf16.gmra.mrb[0].mxu0 %v2811
  %v4246 = vpop.f32.mrb[0].mxu0
  %v4247 = vadd.f32 %v4204, %v4246
  %v4248 = vpop.f32.mrb[0].mxu0
  %v4249 = vadd.f32 %v4206, %v4248
  %v4250 = vpop.f32.mrb[0].mxu0
  %v4251 = vadd.f32 %v4208, %v4250
  %v4252 = vpop.f32.mrb[0].mxu0
  %v4253 = vadd.f32 %v4210, %v4252
  %4254 = vdwg.mxu0
  %v4255 = vrot.slane %v4075, 4
  %v4256 = vadd.f32 %v4075, %v4255
  %v4257 = vrot.slane %v4256, 2
  %v4258 = vadd.f32 %v4256, %v4257
  %v4259 = vrot.slane %v4258, 1
  %v4260 = vadd.f32 %v4258, %v4259
  %v4261 = vrot.slane %v4077, 4
  %v4262 = vadd.f32 %v4077, %v4261
  %v4263 = vrot.slane %v4262, 2
  %v4264 = vadd.f32 %v4262, %v4263
  %v4265 = vrot.slane %v4264, 1
  %v4266 = vadd.f32 %v4264, %v4265
  %v4267 = vrot.slane %v4161, 4
  %v4268 = vadd.f32 %v4161, %v4267
  %v4269 = vrot.slane %v4268, 2
  %v4270 = vadd.f32 %v4268, %v4269
  %v4271 = vrot.slane %v4270, 1
  %v4272 = vadd.f32 %v4270, %v4271
  %v4273 = vrot.slane %v4163, 4
  %v4274 = vadd.f32 %v4163, %v4273
  %v4275 = vrot.slane %v4274, 2
  %v4276 = vadd.f32 %v4274, %v4275
  %v4277 = vrot.slane %v4276, 1
  %v4278 = vadd.f32 %v4276, %v4277
  %v4279 = vrot.slane %v4247, 4
  %v4280 = vadd.f32 %v4247, %v4279
  %v4281 = vrot.slane %v4280, 2
  %v4282 = vadd.f32 %v4280, %v4281
  %v4283 = vrot.slane %v4282, 1
  %v4284 = vadd.f32 %v4282, %v4283
  %v4285 = vrot.slane %v4249, 4
  %v4286 = vadd.f32 %v4249, %v4285
  %v4287 = vrot.slane %v4286, 2
  %v4288 = vadd.f32 %v4286, %v4287
  %v4289 = vrot.slane %v4288, 1
  %v4290 = vadd.f32 %v4288, %v4289
  %v4291 = vmul.f32 %v4075, %v4075
  %v4292 = vmul.f32 %v4077, %v4077
  %v4293 = vmul.f32 %v4161, %v4161
  %v4294 = vmul.f32 %v4163, %v4163
  %v4295 = vmul.f32 %v4247, %v4247
  %v4296 = vmul.f32 %v4249, %v4249
  %v4297 = vrot.slane %v4291, 4
  %v4298 = vadd.f32 %v4291, %v4297
  %v4299 = vrot.slane %v4298, 2
  %v4300 = vadd.f32 %v4298, %v4299
  %v4301 = vrot.slane %v4300, 1
  %v4302 = vadd.f32 %v4300, %v4301
  %v4303 = vrot.slane %v4292, 4
  %v4304 = vadd.f32 %v4292, %v4303
  %v4305 = vrot.slane %v4304, 2
  %v4306 = vadd.f32 %v4304, %v4305
  %v4307 = vrot.slane %v4306, 1
  %v4308 = vadd.f32 %v4306, %v4307
  %v4309 = vrot.slane %v4293, 4
  %v4310 = vadd.f32 %v4293, %v4309
  %v4311 = vrot.slane %v4310, 2
  %v4312 = vadd.f32 %v4310, %v4311
  %v4313 = vrot.slane %v4312, 1
  %v4314 = vadd.f32 %v4312, %v4313
  %v4315 = vrot.slane %v4294, 4
  %v4316 = vadd.f32 %v4294, %v4315
  %v4317 = vrot.slane %v4316, 2
  %v4318 = vadd.f32 %v4316, %v4317
  %v4319 = vrot.slane %v4318, 1
  %v4320 = vadd.f32 %v4318, %v4319
  %v4321 = vrot.slane %v4295, 4
  %v4322 = vadd.f32 %v4295, %v4321
  %v4323 = vrot.slane %v4322, 2
  %v4324 = vadd.f32 %v4322, %v4323
  %v4325 = vrot.slane %v4324, 1
  %v4326 = vadd.f32 %v4324, %v4325
  %v4327 = vrot.slane %v4296, 4
  %v4328 = vadd.f32 %v4296, %v4327
  %v4329 = vrot.slane %v4328, 2
  %v4330 = vadd.f32 %v4328, %v4329
  %v4331 = vrot.slane %v4330, 1
  %v4332 = vadd.f32 %v4330, %v4331
  %v4333 = vld [vmem:[%s31] sm:$0xf]
  %v4334 = vld [vmem:[%s31 + $0x4] sm:$0xf]
  %v4335 = vld [vmem:[%s31 + $0x8] sm:$0xf]
  %v4336 = vld [vmem:[%s31 + $0xc] sm:$0xf]
  %v4337 = vld [vmem:[%s31 + $0x10] sm:$0xf]
  %v4338 = vld [vmem:[%s31 + $0x14] sm:$0xf]
  %v4339 = vld [vmem:[%s31 + $0x18] sm:$0xf]
  %v4340 = vld [vmem:[%s31 + $0x1c] sm:$0xf]
  %v4341 = vld [vmem:[%s31 + $0x20] sm:$0xf]
  %v4342 = vld [vmem:[%s31 + $0x24] sm:$0xf]
  %v4343 = vld [vmem:[%s31 + $0x28] sm:$0xf]
  %v4344 = vld [vmem:[%s31 + $0x2c] sm:$0xf]
  %v4345 = vld [vmem:[%s31 + $0x30] sm:$0xf]
  %v4346 = vld [vmem:[%s31 + $0x34] sm:$0xf]
  %v4347 = vld [vmem:[%s31 + $0x38] sm:$0xf]
  %v4348 = vld [vmem:[%s31 + $0x3c] sm:$0xf]
  %v4349 = vld [vmem:[%s31 + $0x40] sm:$0xf]
  %v4350 = vld [vmem:[%s31 + $0x44] sm:$0xf]
  %v4351 = vld [vmem:[%s31 + $0x48] sm:$0xf]
  %v4352 = vld [vmem:[%s31 + $0x4c] sm:$0xf]
  %v4353 = vld [vmem:[%s31 + $0x50] sm:$0xf]
  %v4354 = vld [vmem:[%s31 + $0x54] sm:$0xf]
  %v4355 = vld [vmem:[%s31 + $0x58] sm:$0xf]
  %v4356 = vld [vmem:[%s31 + $0x5c] sm:$0xf]
  %v4357 = vld [vmem:[%s31 + $0x60] sm:$0xf]
  %v4358 = vld [vmem:[%s31 + $0x64] sm:$0xf]
  %v4359 = vld [vmem:[%s31 + $0x68] sm:$0xf]
  %v4360 = vld [vmem:[%s31 + $0x6c] sm:$0xf]
  %v4361 = vld [vmem:[%s31 + $0x70] sm:$0xf]
  %v4362 = vld [vmem:[%s31 + $0x74] sm:$0xf]
  %v4363 = vld [vmem:[%s31 + $0x78] sm:$0xf]
  %v4364 = vld [vmem:[%s31 + $0x7c] sm:$0xf]
  %v4365 = vld [vmem:[%s31 + $0x80] sm:$0xf]
  %v4366 = vld [vmem:[%s31 + $0x84] sm:$0xf]
  %v4367 = vld [vmem:[%s31 + $0x88] sm:$0xf]
  %v4368 = vld [vmem:[%s31 + $0x8c] sm:$0xf]
  %v4369 = vld [vmem:[%s31 + $0x90] sm:$0xf]
  %v4370 = vld [vmem:[%s31 + $0x94] sm:$0xf]
  %v4371 = vld [vmem:[%s31 + $0x98] sm:$0xf]
  %v4372 = vld [vmem:[%s31 + $0x9c] sm:$0xf]
  %v4373 = vld [vmem:[%s31 + $0xa0] sm:$0xf]
  %v4374 = vld [vmem:[%s31 + $0xa4] sm:$0xf]
  %v4375 = vld [vmem:[%s31 + $0xa8] sm:$0xf]
  %v4376 = vld [vmem:[%s31 + $0xac] sm:$0xf]
  %v4377 = vld [vmem:[%s31 + $0xb0] sm:$0xf]
  %v4378 = vld [vmem:[%s31 + $0xb4] sm:$0xf]
  %v4379 = vld [vmem:[%s31 + $0xb8] sm:$0xf]
  %v4380 = vld [vmem:[%s31 + $0xbc] sm:$0xf]
  %v4381 = vld [vmem:[%s31 + $0xc0] sm:$0xf]
  %v4382 = vld [vmem:[%s31 + $0xc4] sm:$0xf]
  %v4383 = vld [vmem:[%s31 + $0xc8] sm:$0xf]
  %v4384 = vld [vmem:[%s31 + $0xcc] sm:$0xf]
  %v4385 = vld [vmem:[%s31 + $0xd0] sm:$0xf]
  %v4386 = vld [vmem:[%s31 + $0xd4] sm:$0xf]
  %v4387 = vld [vmem:[%s31 + $0xd8] sm:$0xf]
  %v4388 = vld [vmem:[%s31 + $0xdc] sm:$0xf]
  %v4389 = vld [vmem:[%s31 + $0xe0] sm:$0xf]
  %v4390 = vld [vmem:[%s31 + $0xe4] sm:$0xf]
  %v4391 = vld [vmem:[%s31 + $0xe8] sm:$0xf]
  %v4392 = vld [vmem:[%s31 + $0xec] sm:$0xf]
  %v4393 = vld [vmem:[%s31 + $0xf0] sm:$0xf]
  %v4394 = vld [vmem:[%s31 + $0xf4] sm:$0xf]
  %v4395 = vld [vmem:[%s31 + $0xf8] sm:$0xf]
  %v4396 = vld [vmem:[%s31 + $0xfc] sm:$0xf]
  %v4397 = vld [vmem:[%s31 + $0x100] sm:$0xf]
  %v4398 = vld [vmem:[%s31 + $0x104] sm:$0xf]
  %v4399 = vld [vmem:[%s31 + $0x108] sm:$0xf]
  %v4400 = vld [vmem:[%s31 + $0x10c] sm:$0xf]
  %v4401 = vld [vmem:[%s31 + $0x110] sm:$0xf]
  %v4402 = vld [vmem:[%s31 + $0x114] sm:$0xf]
  %v4403 = vld [vmem:[%s31 + $0x118] sm:$0xf]
  %v4404 = vld [vmem:[%s31 + $0x11c] sm:$0xf]
  %v4405 = vld [vmem:[%s31 + $0x120] sm:$0xf]
  %v4406 = vld [vmem:[%s31 + $0x124] sm:$0xf]
  %v4407 = vld [vmem:[%s31 + $0x128] sm:$0xf]
  %v4408 = vld [vmem:[%s31 + $0x12c] sm:$0xf]
  %v4409 = vld [vmem:[%s31 + $0x130] sm:$0xf]
  %v4410 = vld [vmem:[%s31 + $0x134] sm:$0xf]
  %v4411 = vld [vmem:[%s31 + $0x138] sm:$0xf]
  %v4412 = vld [vmem:[%s31 + $0x13c] sm:$0xf]
  %v4413 = vld [vmem:[%s31 + $0x140] sm:$0xf]
  %v4414 = vld [vmem:[%s31 + $0x144] sm:$0xf]
  %v4415 = vld [vmem:[%s31 + $0x148] sm:$0xf]
  %v4416 = vld [vmem:[%s31 + $0x14c] sm:$0xf]
  %v4417 = vld [vmem:[%s31 + $0x150] sm:$0xf]
  %v4418 = vld [vmem:[%s31 + $0x154] sm:$0xf]
  %v4419 = vld [vmem:[%s31 + $0x158] sm:$0xf]
  %v4420 = vld [vmem:[%s31 + $0x15c] sm:$0xf]
  %v4421 = vld [vmem:[%s31 + $0x160] sm:$0xf]
  %v4422 = vld [vmem:[%s31 + $0x164] sm:$0xf]
  %v4423 = vld [vmem:[%s31 + $0x168] sm:$0xf]
  %v4424 = vld [vmem:[%s31 + $0x16c] sm:$0xf]
  %v4425 = vld [vmem:[%s31 + $0x170] sm:$0xf]
  %v4426 = vld [vmem:[%s31 + $0x174] sm:$0xf]
  %v4427 = vld [vmem:[%s31 + $0x178] sm:$0xf]
  %v4428 = vld [vmem:[%s31 + $0x17c] sm:$0xf]
  %v4525 = vunpack.c.l.b16 %v4333
  %v4526 = vunpack.c.l.b16 %v4334
  %v4527 = vunpack.c.l.b16 %v4335
  %v4528 = vunpack.c.l.b16 %v4336
  %v4529 = vunpack.c.l.b16 %v4337
  %v4530 = vunpack.c.l.b16 %v4338
  %v4531 = vunpack.c.l.b16 %v4339
  %v4532 = vunpack.c.l.b16 %v4340
  %v4533 = vunpack.c.l.b16 %v4341
  %v4534 = vunpack.c.l.b16 %v4342
  %v4535 = vunpack.c.l.b16 %v4343
  %v4536 = vunpack.c.l.b16 %v4344
  %v4537 = vunpack.c.l.b16 %v4345
  %v4538 = vunpack.c.l.b16 %v4346
  %v4539 = vunpack.c.l.b16 %v4347
  %v4540 = vunpack.c.l.b16 %v4348
  %v4541 = vunpack.c.l.b16 %v4349
  %v4542 = vunpack.c.l.b16 %v4350
  %v4543 = vunpack.c.l.b16 %v4351
  %v4544 = vunpack.c.l.b16 %v4352
  %v4545 = vunpack.c.l.b16 %v4353
  %v4546 = vunpack.c.l.b16 %v4354
  %v4547 = vunpack.c.l.b16 %v4355
  %v4548 = vunpack.c.l.b16 %v4356
  %v4549 = vunpack.c.l.b16 %v4357
  %v4550 = vunpack.c.l.b16 %v4358
  %v4551 = vunpack.c.l.b16 %v4359
  %v4552 = vunpack.c.l.b16 %v4360
  %v4553 = vunpack.c.l.b16 %v4361
  %v4554 = vunpack.c.l.b16 %v4362
  %v4555 = vunpack.c.l.b16 %v4363
  %v4556 = vunpack.c.l.b16 %v4364
  %v4557 = vunpack.c.l.b16 %v4365
  %v4558 = vunpack.c.l.b16 %v4366
  %v4559 = vunpack.c.l.b16 %v4367
  %v4560 = vunpack.c.l.b16 %v4368
  %v4561 = vunpack.c.l.b16 %v4369
  %v4562 = vunpack.c.l.b16 %v4370
  %v4563 = vunpack.c.l.b16 %v4371
  %v4564 = vunpack.c.l.b16 %v4372
  %v4565 = vunpack.c.l.b16 %v4373
  %v4566 = vunpack.c.l.b16 %v4374
  %v4567 = vunpack.c.l.b16 %v4375
  %v4568 = vunpack.c.l.b16 %v4376
  %v4569 = vunpack.c.l.b16 %v4377
  %v4570 = vunpack.c.l.b16 %v4378
  %v4571 = vunpack.c.l.b16 %v4379
  %v4572 = vunpack.c.l.b16 %v4380
  %v4573 = vunpack.c.l.b16 %v4381
  %v4574 = vunpack.c.l.b16 %v4382
  %v4575 = vunpack.c.l.b16 %v4383
  %v4576 = vunpack.c.l.b16 %v4384
  %v4577 = vunpack.c.l.b16 %v4385
  %v4578 = vunpack.c.l.b16 %v4386
  %v4579 = vunpack.c.l.b16 %v4387
  %v4580 = vunpack.c.l.b16 %v4388
  %v4581 = vunpack.c.l.b16 %v4389
  %v4582 = vunpack.c.l.b16 %v4390
  %v4583 = vunpack.c.l.b16 %v4391
  %v4584 = vunpack.c.l.b16 %v4392
  %v4585 = vunpack.c.l.b16 %v4393
  %v4586 = vunpack.c.l.b16 %v4394
  %v4587 = vunpack.c.l.b16 %v4395
  %v4588 = vunpack.c.l.b16 %v4396
  %v4589 = vunpack.c.l.b16 %v4397
  %v4590 = vunpack.c.l.b16 %v4398
  %v4591 = vunpack.c.l.b16 %v4399
  %v4592 = vunpack.c.l.b16 %v4400
  %v4593 = vunpack.c.l.b16 %v4401
  %v4594 = vunpack.c.l.b16 %v4402
  %v4595 = vunpack.c.l.b16 %v4403
  %v4596 = vunpack.c.l.b16 %v4404
  %v4597 = vunpack.c.l.b16 %v4405
  %v4598 = vunpack.c.l.b16 %v4406
  %v4599 = vunpack.c.l.b16 %v4407
  %v4600 = vunpack.c.l.b16 %v4408
  %v4601 = vunpack.c.l.b16 %v4409
  %v4602 = vunpack.c.l.b16 %v4410
  %v4603 = vunpack.c.l.b16 %v4411
  %v4604 = vunpack.c.l.b16 %v4412
  %v4605 = vunpack.c.l.b16 %v4413
  %v4606 = vunpack.c.l.b16 %v4414
  %v4607 = vunpack.c.l.b16 %v4415
  %v4608 = vunpack.c.l.b16 %v4416
  %v4609 = vunpack.c.l.b16 %v4417
  %v4610 = vunpack.c.l.b16 %v4418
  %v4611 = vunpack.c.l.b16 %v4419
  %v4612 = vunpack.c.l.b16 %v4420
  %v4613 = vunpack.c.l.b16 %v4421
  %v4614 = vunpack.c.l.b16 %v4422
  %v4615 = vunpack.c.l.b16 %v4423
  %v4616 = vunpack.c.l.b16 %v4424
  %v4617 = vunpack.c.l.b16 %v4425
  %v4618 = vunpack.c.l.b16 %v4426
  %v4619 = vunpack.c.l.b16 %v4427
  %v4620 = vunpack.c.l.b16 %v4428
  %v4621 = vpack.c.b16 %v4526, %v4525
  %v4622 = vpack.c.b16 %v4528, %v4527
  %v4623 = vpack.c.b16 %v4530, %v4529
  %v4624 = vpack.c.b16 %v4532, %v4531
  %v4625 = vpack.c.b16 %v4534, %v4533
  %v4626 = vpack.c.b16 %v4536, %v4535
  %v4627 = vpack.c.b16 %v4538, %v4537
  %v4628 = vpack.c.b16 %v4540, %v4539
  %v4629 = vpack.c.b16 %v4542, %v4541
  %v4630 = vpack.c.b16 %v4544, %v4543
  %v4631 = vpack.c.b16 %v4546, %v4545
  %v4632 = vpack.c.b16 %v4548, %v4547
  %v4633 = vpack.c.b16 %v4550, %v4549
  %v4634 = vpack.c.b16 %v4552, %v4551
  %v4635 = vpack.c.b16 %v4554, %v4553
  %v4636 = vpack.c.b16 %v4556, %v4555
  %v4637 = vpack.c.b16 %v4558, %v4557
  %v4638 = vpack.c.b16 %v4560, %v4559
  %v4639 = vpack.c.b16 %v4562, %v4561
  %v4640 = vpack.c.b16 %v4564, %v4563
  %v4641 = vpack.c.b16 %v4566, %v4565
  %v4642 = vpack.c.b16 %v4568, %v4567
  %v4643 = vpack.c.b16 %v4570, %v4569
  %v4644 = vpack.c.b16 %v4572, %v4571
  %v4645 = vpack.c.b16 %v4574, %v4573
  %v4646 = vpack.c.b16 %v4576, %v4575
  %v4647 = vpack.c.b16 %v4578, %v4577
  %v4648 = vpack.c.b16 %v4580, %v4579
  %v4649 = vpack.c.b16 %v4582, %v4581
  %v4650 = vpack.c.b16 %v4584, %v4583
  %v4651 = vpack.c.b16 %v4586, %v4585
  %v4652 = vpack.c.b16 %v4588, %v4587
  %v4653 = vpack.c.b16 %v4590, %v4589
  %v4654 = vpack.c.b16 %v4592, %v4591
  %v4655 = vpack.c.b16 %v4594, %v4593
  %v4656 = vpack.c.b16 %v4596, %v4595
  %v4657 = vpack.c.b16 %v4598, %v4597
  %v4658 = vpack.c.b16 %v4600, %v4599
  %v4659 = vpack.c.b16 %v4602, %v4601
  %v4660 = vpack.c.b16 %v4604, %v4603
  %v4661 = vpack.c.b16 %v4606, %v4605
  %v4662 = vpack.c.b16 %v4608, %v4607
  %v4663 = vpack.c.b16 %v4610, %v4609
  %v4664 = vpack.c.b16 %v4612, %v4611
  %v4665 = vpack.c.b16 %v4614, %v4613
  %v4666 = vpack.c.b16 %v4616, %v4615
  %v4667 = vpack.c.b16 %v4618, %v4617
  %v4668 = vpack.c.b16 %v4620, %v4619
  %4717 = vmatprep.subr.bf16.mxu0 0
  %4718 = vmatpush1.bf16.msra.mxu0 %v4621
  %4719 = vmatprep.subr.bf16.mxu0 0
  %4720 = vmatpush1.bf16.msra.mxu0 %v4622
  %4721 = vmatprep.subr.bf16.mxu0 0
  %4722 = vmatpush1.bf16.msra.mxu0 %v4623
  %4723 = vmatprep.subr.bf16.mxu0 0
  %4724 = vmatpush1.bf16.msra.mxu0 %v4624
  %4725 = vmatprep.subr.bf16.mxu0 0
  %4726 = vmatpush1.bf16.msra.mxu0 %v4625
  %4727 = vmatprep.subr.bf16.mxu0 0
  %4728 = vmatpush1.bf16.msra.mxu0 %v4626
  %4729 = vmatprep.subr.bf16.mxu0 0
  %4730 = vmatpush1.bf16.msra.mxu0 %v4627
  %4731 = vmatprep.subr.bf16.mxu0 0
  %4732 = vmatpush1.bf16.msra.mxu0 %v4628
  %4733 = vmatprep.subr.bf16.mxu0 0
  %4734 = vmatpush1.bf16.msra.mxu0 %v4629
  %4735 = vmatprep.subr.bf16.mxu0 0
  %4736 = vmatpush1.bf16.msra.mxu0 %v4630
  %4737 = vmatprep.subr.bf16.mxu0 0
  %4738 = vmatpush1.bf16.msra.mxu0 %v4631
  %4739 = vmatprep.subr.bf16.mxu0 0
  %4740 = vmatpush1.bf16.msra.mxu0 %v4632
  %4741 = vmatprep.subr.bf16.mxu0 0
  %4742 = vmatpush1.bf16.msra.mxu0 %v4633
  %4743 = vmatprep.subr.bf16.mxu0 0
  %4744 = vmatpush1.bf16.msra.mxu0 %v4634
  %4745 = vmatprep.subr.bf16.mxu0 0
  %4746 = vmatpush1.bf16.msra.mxu0 %v4635
  %4747 = vmatprep.subr.bf16.mxu0 0
  %4748 = vmatpush1.bf16.msra.mxu0 %v4636
  %4749 = vmatprep.mubr.f32.mxu0 %v4266
  %4750 = vmatmul.mubr.f32.gmra.mrb[0].mxu0 %v4260
  %v4751 = vpop.f32.mrb[0].mxu0
  %v4752 = vadd.f32 0.0, %v4751
  %v4753 = vpop.f32.mrb[0].mxu0
  %4754 = vdwg.mxu0
  %4755 = vmatprep.subr.bf16.mxu0 0
  %4756 = vmatpush1.bf16.msra.mxu0 %v4637
  %4757 = vmatprep.subr.bf16.mxu0 0
  %4758 = vmatpush1.bf16.msra.mxu0 %v4638
  %4759 = vmatprep.subr.bf16.mxu0 0
  %4760 = vmatpush1.bf16.msra.mxu0 %v4639
  %4761 = vmatprep.subr.bf16.mxu0 0
  %4762 = vmatpush1.bf16.msra.mxu0 %v4640
  %4763 = vmatprep.subr.bf16.mxu0 0
  %4764 = vmatpush1.bf16.msra.mxu0 %v4641
  %4765 = vmatprep.subr.bf16.mxu0 0
  %4766 = vmatpush1.bf16.msra.mxu0 %v4642
  %4767 = vmatprep.subr.bf16.mxu0 0
  %4768 = vmatpush1.bf16.msra.mxu0 %v4643
  %4769 = vmatprep.subr.bf16.mxu0 0
  %4770 = vmatpush1.bf16.msra.mxu0 %v4644
  %4771 = vmatprep.subr.bf16.mxu0 0
  %4772 = vmatpush1.bf16.msra.mxu0 %v4645
  %4773 = vmatprep.subr.bf16.mxu0 0
  %4774 = vmatpush1.bf16.msra.mxu0 %v4646
  %4775 = vmatprep.subr.bf16.mxu0 0
  %4776 = vmatpush1.bf16.msra.mxu0 %v4647
  %4777 = vmatprep.subr.bf16.mxu0 0
  %4778 = vmatpush1.bf16.msra.mxu0 %v4648
  %4779 = vmatprep.subr.bf16.mxu0 0
  %4780 = vmatpush1.bf16.msra.mxu0 %v4649
  %4781 = vmatprep.subr.bf16.mxu0 0
  %4782 = vmatpush1.bf16.msra.mxu0 %v4650
  %4783 = vmatprep.subr.bf16.mxu0 0
  %4784 = vmatpush1.bf16.msra.mxu0 %v4651
  %4785 = vmatprep.subr.bf16.mxu0 0
  %4786 = vmatpush1.bf16.msra.mxu0 %v4652
  %4787 = vmatprep.mubr.f32.mxu0 %v4278
  %4788 = vmatmul.mubr.f32.gmra.mrb[0].mxu0 %v4272
  %v4789 = vpop.f32.mrb[0].mxu0
  %v4790 = vadd.f32 %v4752, %v4789
  %v4791 = vpop.f32.mrb[0].mxu0
  %4792 = vdwg.mxu0
  %4793 = vmatprep.subr.bf16.mxu0 0
  %4794 = vmatpush1.bf16.msra.mxu0 %v4653
  %4795 = vmatprep.subr.bf16.mxu0 0
  %4796 = vmatpush1.bf16.msra.mxu0 %v4654
  %4797 = vmatprep.subr.bf16.mxu0 0
  %4798 = vmatpush1.bf16.msra.mxu0 %v4655
  %4799 = vmatprep.subr.bf16.mxu0 0
  %4800 = vmatpush1.bf16.msra.mxu0 %v4656
  %4801 = vmatprep.subr.bf16.mxu0 0
  %4802 = vmatpush1.bf16.msra.mxu0 %v4657
  %4803 = vmatprep.subr.bf16.mxu0 0
  %4804 = vmatpush1.bf16.msra.mxu0 %v4658
  %4805 = vmatprep.subr.bf16.mxu0 0
  %4806 = vmatpush1.bf16.msra.mxu0 %v4659
  %4807 = vmatprep.subr.bf16.mxu0 0
  %4808 = vmatpush1.bf16.msra.mxu0 %v4660
  %4809 = vmatprep.subr.bf16.mxu0 0
  %4810 = vmatpush1.bf16.msra.mxu0 %v4661
  %4811 = vmatprep.subr.bf16.mxu0 0
  %4812 = vmatpush1.bf16.msra.mxu0 %v4662
  %4813 = vmatprep.subr.bf16.mxu0 0
  %4814 = vmatpush1.bf16.msra.mxu0 %v4663
  %4815 = vmatprep.subr.bf16.mxu0 0
  %4816 = vmatpush1.bf16.msra.mxu0 %v4664
  %4817 = vmatprep.subr.bf16.mxu0 0
  %4818 = vmatpush1.bf16.msra.mxu0 %v4665
  %4819 = vmatprep.subr.bf16.mxu0 0
  %4820 = vmatpush1.bf16.msra.mxu0 %v4666
  %4821 = vmatprep.subr.bf16.mxu0 0
  %4822 = vmatpush1.bf16.msra.mxu0 %v4667
  %4823 = vmatprep.subr.bf16.mxu0 0
  %4824 = vmatpush1.bf16.msra.mxu0 %v4668
  %4825 = vmatprep.mubr.f32.mxu0 %v4290
  %4826 = vmatmul.mubr.f32.gmra.mrb[0].mxu0 %v4284
  %v4827 = vpop.f32.mrb[0].mxu0
  %v4828 = vadd.f32 %v4790, %v4827
  %v4829 = vpop.f32.mrb[0].mxu0
  %4830 = vdwg.mxu0
  %4831 = vmatprep.subr.bf16.mxu0 0
  %4832 = vmatpush1.bf16.msra.mxu0 %v4621
  %4833 = vmatprep.subr.bf16.mxu0 0
  %4834 = vmatpush1.bf16.msra.mxu0 %v4622
  %4835 = vmatprep.subr.bf16.mxu0 0
  %4836 = vmatpush1.bf16.msra.mxu0 %v4623
  %4837 = vmatprep.subr.bf16.mxu0 0
  %4838 = vmatpush1.bf16.msra.mxu0 %v4624
  %4839 = vmatprep.subr.bf16.mxu0 0
  %4840 = vmatpush1.bf16.msra.mxu0 %v4625
  %4841 = vmatprep.subr.bf16.mxu0 0
  %4842 = vmatpush1.bf16.msra.mxu0 %v4626
  %4843 = vmatprep.subr.bf16.mxu0 0
  %4844 = vmatpush1.bf16.msra.mxu0 %v4627
  %4845 = vmatprep.subr.bf16.mxu0 0
  %4846 = vmatpush1.bf16.msra.mxu0 %v4628
  %4847 = vmatprep.subr.bf16.mxu0 0
  %4848 = vmatpush1.bf16.msra.mxu0 %v4629
  %4849 = vmatprep.subr.bf16.mxu0 0
  %4850 = vmatpush1.bf16.msra.mxu0 %v4630
  %4851 = vmatprep.subr.bf16.mxu0 0
  %4852 = vmatpush1.bf16.msra.mxu0 %v4631
  %4853 = vmatprep.subr.bf16.mxu0 0
  %4854 = vmatpush1.bf16.msra.mxu0 %v4632
  %4855 = vmatprep.subr.bf16.mxu0 0
  %4856 = vmatpush1.bf16.msra.mxu0 %v4633
  %4857 = vmatprep.subr.bf16.mxu0 0
  %4858 = vmatpush1.bf16.msra.mxu0 %v4634
  %4859 = vmatprep.subr.bf16.mxu0 0
  %4860 = vmatpush1.bf16.msra.mxu0 %v4635
  %4861 = vmatprep.subr.bf16.mxu0 0
  %4862 = vmatpush1.bf16.msra.mxu0 %v4636
  %4863 = vmatprep.mubr.f32.mxu0 %v4308
  %4864 = vmatmul.mubr.f32.gmra.mrb[0].mxu0 %v4302
  %v4865 = vpop.f32.mrb[0].mxu0
  %v4866 = vadd.f32 0.0, %v4865
  %v4867 = vpop.f32.mrb[0].mxu0
  %4868 = vdwg.mxu0
  %4869 = vmatprep.subr.bf16.mxu0 0
  %4870 = vmatpush1.bf16.msra.mxu0 %v4637
  %4871 = vmatprep.subr.bf16.mxu0 0
  %4872 = vmatpush1.bf16.msra.mxu0 %v4638
  %4873 = vmatprep.subr.bf16.mxu0 0
  %4874 = vmatpush1.bf16.msra.mxu0 %v4639
  %4875 = vmatprep.subr.bf16.mxu0 0
  %4876 = vmatpush1.bf16.msra.mxu0 %v4640
  %4877 = vmatprep.subr.bf16.mxu0 0
  %4878 = vmatpush1.bf16.msra.mxu0 %v4641
  %4879 = vmatprep.subr.bf16.mxu0 0
  %4880 = vmatpush1.bf16.msra.mxu0 %v4642
  %4881 = vmatprep.subr.bf16.mxu0 0
  %4882 = vmatpush1.bf16.msra.mxu0 %v4643
  %4883 = vmatprep.subr.bf16.mxu0 0
  %4884 = vmatpush1.bf16.msra.mxu0 %v4644
  %4885 = vmatprep.subr.bf16.mxu0 0
  %4886 = vmatpush1.bf16.msra.mxu0 %v4645
  %4887 = vmatprep.subr.bf16.mxu0 0
  %4888 = vmatpush1.bf16.msra.mxu0 %v4646
  %4889 = vmatprep.subr.bf16.mxu0 0
  %4890 = vmatpush1.bf16.msra.mxu0 %v4647
  %4891 = vmatprep.subr.bf16.mxu0 0
  %4892 = vmatpush1.bf16.msra.mxu0 %v4648
  %4893 = vmatprep.subr.bf16.mxu0 0
  %4894 = vmatpush1.bf16.msra.mxu0 %v4649
  %4895 = vmatprep.subr.bf16.mxu0 0
  %4896 = vmatpush1.bf16.msra.mxu0 %v4650
  %4897 = vmatprep.subr.bf16.mxu0 0
  %4898 = vmatpush1.bf16.msra.mxu0 %v4651
  %4899 = vmatprep.subr.bf16.mxu0 0
  %4900 = vmatpush1.bf16.msra.mxu0 %v4652
  %4901 = vmatprep.mubr.f32.mxu0 %v4320
  %4902 = vmatmul.mubr.f32.gmra.mrb[0].mxu0 %v4314
  %v4903 = vpop.f32.mrb[0].mxu0
  %v4904 = vadd.f32 %v4866, %v4903
  %v4905 = vpop.f32.mrb[0].mxu0
  %4906 = vdwg.mxu0
  %4907 = vmatprep.subr.bf16.mxu0 0
  %4908 = vmatpush1.bf16.msra.mxu0 %v4653
  %4909 = vmatprep.subr.bf16.mxu0 0
  %4910 = vmatpush1.bf16.msra.mxu0 %v4654
  %4911 = vmatprep.subr.bf16.mxu0 0
  %4912 = vmatpush1.bf16.msra.mxu0 %v4655
  %4913 = vmatprep.subr.bf16.mxu0 0
  %4914 = vmatpush1.bf16.msra.mxu0 %v4656
  %4915 = vmatprep.subr.bf16.mxu0 0
  %4916 = vmatpush1.bf16.msra.mxu0 %v4657
  %4917 = vmatprep.subr.bf16.mxu0 0
  %4918 = vmatpush1.bf16.msra.mxu0 %v4658
  %4919 = vmatprep.subr.bf16.mxu0 0
  %4920 = vmatpush1.bf16.msra.mxu0 %v4659
  %4921 = vmatprep.subr.bf16.mxu0 0
  %4922 = vmatpush1.bf16.msra.mxu0 %v4660
  %4923 = vmatprep.subr.bf16.mxu0 0
  %4924 = vmatpush1.bf16.msra.mxu0 %v4661
  %4925 = vmatprep.subr.bf16.mxu0 0
  %4926 = vmatpush1.bf16.msra.mxu0 %v4662
  %4927 = vmatprep.subr.bf16.mxu0 0
  %4928 = vmatpush1.bf16.msra.mxu0 %v4663
  %4929 = vmatprep.subr.bf16.mxu0 0
  %4930 = vmatpush1.bf16.msra.mxu0 %v4664
  %4931 = vmatprep.subr.bf16.mxu0 0
  %4932 = vmatpush1.bf16.msra.mxu0 %v4665
  %4933 = vmatprep.subr.bf16.mxu0 0
  %4934 = vmatpush1.bf16.msra.mxu0 %v4666
  %4935 = vmatprep.subr.bf16.mxu0 0
  %4936 = vmatpush1.bf16.msra.mxu0 %v4667
  %4937 = vmatprep.subr.bf16.mxu0 0
  %4938 = vmatpush1.bf16.msra.mxu0 %v4668
  %4939 = vmatprep.mubr.f32.mxu0 %v4332
  %4940 = vmatmul.mubr.f32.gmra.mrb[0].mxu0 %v4326
  %v4941 = vpop.f32.mrb[0].mxu0
  %v4942 = vadd.f32 %v4904, %v4941
  %v4943 = vpop.f32.mrb[0].mxu0
  %4944 = vdwg.mxu0
  %v4945 = vmul.f32 %v4828, 0.0056818184
  %v4946 = vmul.f32 %v4942, 0.0056818184
  %v4947 = vmul.f32 %v4945, %v4945
  %v4948 = vsub.f32 %v4946, %v4947
  %v4949 = vmax.f32 %v4948, 0.0
  %v4950 = vadd.f32 %v4949, 1e-05
  %v4951 = vrsqrt.pop %v4950
  %v4952 = vld [vmem:[%s35] sm:$0x1]
  %v4953 = vmul.f32 %v4951, %v4952
  %v4954 = vld [vmem:[%s37] sm:$0x1]
  %v4955 = vmul.f32 %v4945, %v4953
  %v4956 = vsub.f32 %v4954, %v4955
  %v4957 = vld [vmem:[%s33] sm:$0xff]
  %v4958 = vld [vmem:[%s33 + $0x8] sm:$0xff]
  %v4959 = vld [vmem:[%s33 + $0x10] sm:$0xff]
  %v4960 = vld [vmem:[%s33 + $0x18] sm:$0xff]
  %v4961 = vld [vmem:[%s33 + $0x20] sm:$0xff]
  %v4962 = vld [vmem:[%s33 + $0x28] sm:$0xff]
  %v4963 = vld [vmem:[%s33 + $0x30] sm:$0xff]
  %v4964 = vld [vmem:[%s33 + $0x38] sm:$0xff]
  %v4965 = vld [vmem:[%s33 + $0x40] sm:$0xff]
  %v4966 = vld [vmem:[%s33 + $0x48] sm:$0xff]
  %v4967 = vld [vmem:[%s33 + $0x50] sm:$0xff]
  %v4968 = vld [vmem:[%s33 + $0x58] sm:$0xff]
  %v4981 = vunpack.c.l.b16 %v4957
  %v4982 = vunpack.c.h.b16 %v4957
  %v4983 = vunpack.c.l.b16 %v4958
  %v4984 = vunpack.c.h.b16 %v4958
  %v4985 = vunpack.c.l.b16 %v4959
  %v4986 = vunpack.c.h.b16 %v4959
  %v4987 = vunpack.c.l.b16 %v4960
  %v4988 = vunpack.c.h.b16 %v4960
  %v4989 = vunpack.c.l.b16 %v4961
  %v4990 = vunpack.c.h.b16 %v4961
  %v4991 = vunpack.c.l.b16 %v4962
  %v4992 = vunpack.c.h.b16 %v4962
  %v4993 = vunpack.c.l.b16 %v4963
  %v4994 = vunpack.c.h.b16 %v4963
  %v4995 = vunpack.c.l.b16 %v4964
  %v4996 = vunpack.c.h.b16 %v4964
  %v4997 = vunpack.c.l.b16 %v4965
  %v4998 = vunpack.c.h.b16 %v4965
  %v4999 = vunpack.c.l.b16 %v4966
  %v5000 = vunpack.c.h.b16 %v4966
  %v5001 = vunpack.c.l.b16 %v4967
  %v5002 = vunpack.c.h.b16 %v4967
  %v5003 = vunpack.c.l.b16 %v4968
  %v5004 = vunpack.c.h.b16 %v4968
  %v5005 = vpack.c.b16 %v4987, %v4981
  %v5006 = vpack.c.b16 %v4988, %v4982
  %v5007 = vpack.c.b16 %v4989, %v4983
  %v5008 = vpack.c.b16 %v4990, %v4984
  %v5009 = vpack.c.b16 %v4991, %v4985
  %v5010 = vpack.c.b16 %v4992, %v4986
  %v5011 = vpack.c.b16 %v4999, %v4993
  %v5012 = vpack.c.b16 %v5000, %v4994
  %v5013 = vpack.c.b16 %v5001, %v4995
  %v5014 = vpack.c.b16 %v5002, %v4996
  %v5015 = vpack.c.b16 %v5003, %v4997
  %v5016 = vpack.c.b16 %v5004, %v4998
  %v5030 = vsel %vm225, %v4953, 0
  %5032 = vmatprep.subr.bf16.mxu0 %v5006
  %5033 = vmatpush1.bf16.msra.mxu0 %v5005
  %5034 = vmatprep.subr.bf16.mxu0 %v5012
  %5035 = vmatpush1.bf16.msra.mxu0 %v5011
  %5036 = vmatprep.subr.bf16.mxu0 0
  %5037 = vmatpush1.bf16.msra.mxu0 0
  %5038 = vmatprep.subr.bf16.mxu0 0
  %5039 = vmatpush1.bf16.msra.mxu0 0
  %5040 = vmatprep.subr.bf16.mxu0 0
  %5041 = vmatpush1.bf16.msra.mxu0 0
  %5042 = vmatprep.subr.bf16.mxu0 0
  %5043 = vmatpush1.bf16.msra.mxu0 0
  %5044 = vmatprep.subr.bf16.mxu0 0
  %5045 = vmatpush1.bf16.msra.mxu0 0
  %5046 = vmatprep.subr.bf16.mxu0 0
  %5047 = vmatpush1.bf16.msra.mxu0 0
  %5048 = vmatprep.subr.bf16.mxu0 0
  %5049 = vmatpush1.bf16.msra.mxu0 0
  %5050 = vmatprep.subr.bf16.mxu0 0
  %5051 = vmatpush1.bf16.msra.mxu0 0
  %5052 = vmatprep.subr.bf16.mxu0 0
  %5053 = vmatpush1.bf16.msra.mxu0 0
  %5054 = vmatprep.subr.bf16.mxu0 0
  %5055 = vmatpush1.bf16.msra.mxu0 0
  %5056 = vmatprep.subr.bf16.mxu0 0
  %5057 = vmatpush1.bf16.msra.mxu0 0
  %5058 = vmatprep.subr.bf16.mxu0 0
  %5059 = vmatpush1.bf16.msra.mxu0 0
  %5060 = vmatprep.subr.bf16.mxu0 0
  %5061 = vmatpush1.bf16.msra.mxu0 0
  %5062 = vmatprep.subr.bf16.mxu0 0
  %5063 = vmatpush1.bf16.msra.mxu0 0
  %5064 = vmatprep.mubr.f32.mxu0 0.0
  %5065 = vmatmul.mubr.f32.gmra.mrb[0].mxu0 %v5030
  %v5066 = vpop.f32.mrb[0].mxu0
  %v5067 = vadd.f32 0.0, %v5066
  %v5068 = vpop.f32.mrb[0].mxu0
  %v5069 = vadd.f32 0.0, %v5068
  %5070 = vdwg.mxu0
  %5071 = vmatprep.subr.bf16.mxu0 %v5008
  %5072 = vmatpush1.bf16.msra.mxu0 %v5007
  %5073 = vmatprep.subr.bf16.mxu0 %v5014
  %5074 = vmatpush1.bf16.msra.mxu0 %v5013
  %5075 = vmatprep.subr.bf16.mxu0 0
  %5076 = vmatpush1.bf16.msra.mxu0 0
  %5077 = vmatprep.subr.bf16.mxu0 0
  %5078 = vmatpush1.bf16.msra.mxu0 0
  %5079 = vmatprep.subr.bf16.mxu0 0
  %5080 = vmatpush1.bf16.msra.mxu0 0
  %5081 = vmatprep.subr.bf16.mxu0 0
  %5082 = vmatpush1.bf16.msra.mxu0 0
  %5083 = vmatprep.subr.bf16.mxu0 0
  %5084 = vmatpush1.bf16.msra.mxu0 0
  %5085 = vmatprep.subr.bf16.mxu0 0
  %5086 = vmatpush1.bf16.msra.mxu0 0
  %5087 = vmatprep.subr.bf16.mxu0 0
  %5088 = vmatpush1.bf16.msra.mxu0 0
  %5089 = vmatprep.subr.bf16.mxu0 0
  %5090 = vmatpush1.bf16.msra.mxu0 0
  %5091 = vmatprep.subr.bf16.mxu0 0
  %5092 = vmatpush1.bf16.msra.mxu0 0
  %5093 = vmatprep.subr.bf16.mxu0 0
  %5094 = vmatpush1.bf16.msra.mxu0 0
  %5095 = vmatprep.subr.bf16.mxu0 0
  %5096 = vmatpush1.bf16.msra.mxu0 0
  %5097 = vmatprep.subr.bf16.mxu0 0
  %5098 = vmatpush1.bf16.msra.mxu0 0
  %5099 = vmatprep.subr.bf16.mxu0 0
  %5100 = vmatpush1.bf16.msra.mxu0 0
  %5101 = vmatprep.subr.bf16.mxu0 0
  %5102 = vmatpush1.bf16.msra.mxu0 0
  %5103 = vmatprep.mubr.f32.mxu0 0.0
  %5104 = vmatmul.mubr.f32.gmra.mrb[0].mxu0 %v5030
  %v5105 = vpop.f32.mrb[0].mxu0
  %v5106 = vadd.f32 0.0, %v5105
  %v5107 = vpop.f32.mrb[0].mxu0
  %v5108 = vadd.f32 0.0, %v5107
  %5109 = vdwg.mxu0
  %5110 = vmatprep.subr.bf16.mxu0 %v5010
  %5111 = vmatpush1.bf16.msra.mxu0 %v5009
  %5112 = vmatprep.subr.bf16.mxu0 %v5016
  %5113 = vmatpush1.bf16.msra.mxu0 %v5015
  %5114 = vmatprep.subr.bf16.mxu0 0
  %5115 = vmatpush1.bf16.msra.mxu0 0
  %5116 = vmatprep.subr.bf16.mxu0 0
  %5117 = vmatpush1.bf16.msra.mxu0 0
  %5118 = vmatprep.subr.bf16.mxu0 0
  %5119 = vmatpush1.bf16.msra.mxu0 0
  %5120 = vmatprep.subr.bf16.mxu0 0
  %5121 = vmatpush1.bf16.msra.mxu0 0
  %5122 = vmatprep.subr.bf16.mxu0 0
  %5123 = vmatpush1.bf16.msra.mxu0 0
  %5124 = vmatprep.subr.bf16.mxu0 0
  %5125 = vmatpush1.bf16.msra.mxu0 0
  %5126 = vmatprep.subr.bf16.mxu0 0
  %5127 = vmatpush1.bf16.msra.mxu0 0
  %5128 = vmatprep.subr.bf16.mxu0 0
  %5129 = vmatpush1.bf16.msra.mxu0 0
  %5130 = vmatprep.subr.bf16.mxu0 0
  %5131 = vmatpush1.bf16.msra.mxu0 0
  %5132 = vmatprep.subr.bf16.mxu0 0
  %5133 = vmatpush1.bf16.msra.mxu0 0
  %5134 = vmatprep.subr.bf16.mxu0 0
  %5135 = vmatpush1.bf16.msra.mxu0 0
  %5136 = vmatprep.subr.bf16.mxu0 0
  %5137 = vmatpush1.bf16.msra.mxu0 0
  %5138 = vmatprep.subr.bf16.mxu0 0
  %5139 = vmatpush1.bf16.msra.mxu0 0
  %5140 = vmatprep.subr.bf16.mxu0 0
  %5141 = vmatpush1.bf16.msra.mxu0 0
  %5142 = vmatprep.mubr.f32.mxu0 0.0
  %5143 = vmatmul.mubr.f32.gmra.mrb[0].mxu0 %v5030
  %v5144 = vpop.f32.mrb[0].mxu0
  %v5145 = vadd.f32 0.0, %v5144
  %v5146 = vpop.f32.mrb[0].mxu0
  %v5147 = vadd.f32 0.0, %v5146
  %5148 = vdwg.mxu0
  %v5150 = vsel %vm225, %v4956, 0
  %5152 = vmatprep.subr.bf16.mxu0 %v5006
  %5153 = vmatpush1.bf16.msra.mxu0 %v5005
  %5154 = vmatprep.subr.bf16.mxu0 %v5012
  %5155 = vmatpush1.bf16.msra.mxu0 %v5011
  %5156 = vmatprep.subr.bf16.mxu0 0
  %5157 = vmatpush1.bf16.msra.mxu0 0
  %5158 = vmatprep.subr.bf16.mxu0 0
  %5159 = vmatpush1.bf16.msra.mxu0 0
  %5160 = vmatprep.subr.bf16.mxu0 0
  %5161 = vmatpush1.bf16.msra.mxu0 0
  %5162 = vmatprep.subr.bf16.mxu0 0
  %5163 = vmatpush1.bf16.msra.mxu0 0
  %5164 = vmatprep.subr.bf16.mxu0 0
  %5165 = vmatpush1.bf16.msra.mxu0 0
  %5166 = vmatprep.subr.bf16.mxu0 0
  %5167 = vmatpush1.bf16.msra.mxu0 0
  %5168 = vmatprep.subr.bf16.mxu0 0
  %5169 = vmatpush1.bf16.msra.mxu0 0
  %5170 = vmatprep.subr.bf16.mxu0 0
  %5171 = vmatpush1.bf16.msra.mxu0 0
  %5172 = vmatprep.subr.bf16.mxu0 0
  %5173 = vmatpush1.bf16.msra.mxu0 0
  %5174 = vmatprep.subr.bf16.mxu0 0
  %5175 = vmatpush1.bf16.msra.mxu0 0
  %5176 = vmatprep.subr.bf16.mxu0 0
  %5177 = vmatpush1.bf16.msra.mxu0 0
  %5178 = vmatprep.subr.bf16.mxu0 0
  %5179 = vmatpush1.bf16.msra.mxu0 0
  %5180 = vmatprep.subr.bf16.mxu0 0
  %5181 = vmatpush1.bf16.msra.mxu0 0
  %5182 = vmatprep.subr.bf16.mxu0 0
  %5183 = vmatpush1.bf16.msra.mxu0 0
  %5184 = vmatprep.mubr.f32.mxu0 0.0
  %5185 = vmatmul.mubr.f32.gmra.mrb[0].mxu0 %v5150
  %v5186 = vpop.f32.mrb[0].mxu0
  %v5187 = vadd.f32 0.0, %v5186
  %v5188 = vpop.f32.mrb[0].mxu0
  %v5189 = vadd.f32 0.0, %v5188
  %5190 = vdwg.mxu0
  %5191 = vmatprep.subr.bf16.mxu0 %v5008
  %5192 = vmatpush1.bf16.msra.mxu0 %v5007
  %5193 = vmatprep.subr.bf16.mxu0 %v5014
  %5194 = vmatpush1.bf16.msra.mxu0 %v5013
  %5195 = vmatprep.subr.bf16.mxu0 0
  %5196 = vmatpush1.bf16.msra.mxu0 0
  %5197 = vmatprep.subr.bf16.mxu0 0
  %5198 = vmatpush1.bf16.msra.mxu0 0
  %5199 = vmatprep.subr.bf16.mxu0 0
  %5200 = vmatpush1.bf16.msra.mxu0 0
  %5201 = vmatprep.subr.bf16.mxu0 0
  %5202 = vmatpush1.bf16.msra.mxu0 0
  %5203 = vmatprep.subr.bf16.mxu0 0
  %5204 = vmatpush1.bf16.msra.mxu0 0
  %5205 = vmatprep.subr.bf16.mxu0 0
  %5206 = vmatpush1.bf16.msra.mxu0 0
  %5207 = vmatprep.subr.bf16.mxu0 0
  %5208 = vmatpush1.bf16.msra.mxu0 0
  %5209 = vmatprep.subr.bf16.mxu0 0
  %5210 = vmatpush1.bf16.msra.mxu0 0
  %5211 = vmatprep.subr.bf16.mxu0 0
  %5212 = vmatpush1.bf16.msra.mxu0 0
  %5213 = vmatprep.subr.bf16.mxu0 0
  %5214 = vmatpush1.bf16.msra.mxu0 0
  %5215 = vmatprep.subr.bf16.mxu0 0
  %5216 = vmatpush1.bf16.msra.mxu0 0
  %5217 = vmatprep.subr.bf16.mxu0 0
  %5218 = vmatpush1.bf16.msra.mxu0 0
  %5219 = vmatprep.subr.bf16.mxu0 0
  %5220 = vmatpush1.bf16.msra.mxu0 0
  %5221 = vmatprep.subr.bf16.mxu0 0
  %5222 = vmatpush1.bf16.msra.mxu0 0
  %5223 = vmatprep.mubr.f32.mxu0 0.0
  %5224 = vmatmul.mubr.f32.gmra.mrb[0].mxu0 %v5150
  %v5225 = vpop.f32.mrb[0].mxu0
  %v5226 = vadd.f32 0.0, %v5225
  %v5227 = vpop.f32.mrb[0].mxu0
  %v5228 = vadd.f32 0.0, %v5227
  %5229 = vdwg.mxu0
  %5230 = vmatprep.subr.bf16.mxu0 %v5010
  %5231 = vmatpush1.bf16.msra.mxu0 %v5009
  %5232 = vmatprep.subr.bf16.mxu0 %v5016
  %5233 = vmatpush1.bf16.msra.mxu0 %v5015
  %5234 = vmatprep.subr.bf16.mxu0 0
  %5235 = vmatpush1.bf16.msra.mxu0 0
  %5236 = vmatprep.subr.bf16.mxu0 0
  %5237 = vmatpush1.bf16.msra.mxu0 0
  %5238 = vmatprep.subr.bf16.mxu0 0
  %5239 = vmatpush1.bf16.msra.mxu0 0
  %5240 = vmatprep.subr.bf16.mxu0 0
  %5241 = vmatpush1.bf16.msra.mxu0 0
  %5242 = vmatprep.subr.bf16.mxu0 0
  %5243 = vmatpush1.bf16.msra.mxu0 0
  %5244 = vmatprep.subr.bf16.mxu0 0
  %5245 = vmatpush1.bf16.msra.mxu0 0
  %5246 = vmatprep.subr.bf16.mxu0 0
  %5247 = vmatpush1.bf16.msra.mxu0 0
  %5248 = vmatprep.subr.bf16.mxu0 0
  %5249 = vmatpush1.bf16.msra.mxu0 0
  %5250 = vmatprep.subr.bf16.mxu0 0
  %5251 = vmatpush1.bf16.msra.mxu0 0
  %5252 = vmatprep.subr.bf16.mxu0 0
  %5253 = vmatpush1.bf16.msra.mxu0 0
  %5254 = vmatprep.subr.bf16.mxu0 0
  %5255 = vmatpush1.bf16.msra.mxu0 0
  %5256 = vmatprep.subr.bf16.mxu0 0
  %5257 = vmatpush1.bf16.msra.mxu0 0
  %5258 = vmatprep.subr.bf16.mxu0 0
  %5259 = vmatpush1.bf16.msra.mxu0 0
  %5260 = vmatprep.subr.bf16.mxu0 0
  %5261 = vmatpush1.bf16.msra.mxu0 0
  %5262 = vmatprep.mubr.f32.mxu0 0.0
  %5263 = vmatmul.mubr.f32.gmra.mrb[0].mxu0 %v5150
  %v5264 = vpop.f32.mrb[0].mxu0
  %v5265 = vadd.f32 0.0, %v5264
  %v5266 = vpop.f32.mrb[0].mxu0
  %v5267 = vadd.f32 0.0, %v5266
  %5268 = vdwg.mxu0
  %v5269 = vlaneseq
  %v5270 = vshrl.u32 %v5269, 7
  %v5271 = vsub.s32 0, %v5270
  %v5272 = vrot.slane %v5067, %v5271
  %v5273 = vlaneseq
  %v5274 = vshrl.u32 %v5273, 7
  %v5275 = vsub.s32 0, %v5274
  %v5276 = vrot.slane %v5069, %v5275
  %v5277 = vlaneseq
  %v5278 = vshrl.u32 %v5277, 7
  %v5279 = vsub.s32 0, %v5278
  %v5280 = vrot.slane %v5106, %v5279
  %v5281 = vlaneseq
  %v5282 = vshrl.u32 %v5281, 7
  %v5283 = vsub.s32 0, %v5282
  %v5284 = vrot.slane %v5108, %v5283
  %v5285 = vlaneseq
  %v5286 = vshrl.u32 %v5285, 7
  %v5287 = vsub.s32 0, %v5286
  %v5288 = vrot.slane %v5145, %v5287
  %v5289 = vlaneseq
  %v5290 = vshrl.u32 %v5289, 7
  %v5291 = vsub.s32 0, %v5290
  %v5292 = vrot.slane %v5147, %v5291
  %v5293 = vmul.f32 %v4075, %v5272
  %v5294 = vmul.f32 %v4077, %v5276
  %v5295 = vmul.f32 %v4161, %v5280
  %v5296 = vmul.f32 %v4163, %v5284
  %v5297 = vmul.f32 %v4247, %v5288
  %v5298 = vmul.f32 %v4249, %v5292
  %v5299 = vlaneseq
  %v5300 = vshrl.u32 %v5299, 7
  %v5301 = vsub.s32 0, %v5300
  %v5302 = vrot.slane %v5187, %v5301
  %v5303 = vlaneseq
  %v5304 = vshrl.u32 %v5303, 7
  %v5305 = vsub.s32 0, %v5304
  %v5306 = vrot.slane %v5189, %v5305
  %v5307 = vlaneseq
  %v5308 = vshrl.u32 %v5307, 7
  %v5309 = vsub.s32 0, %v5308
  %v5310 = vrot.slane %v5226, %v5309
  %v5311 = vlaneseq
  %v5312 = vshrl.u32 %v5311, 7
  %v5313 = vsub.s32 0, %v5312
  %v5314 = vrot.slane %v5228, %v5313
  %v5315 = vlaneseq
  %v5316 = vshrl.u32 %v5315, 7
  %v5317 = vsub.s32 0, %v5316
  %v5318 = vrot.slane %v5265, %v5317
  %v5319 = vlaneseq
  %v5320 = vshrl.u32 %v5319, 7
  %v5321 = vsub.s32 0, %v5320
  %v5322 = vrot.slane %v5267, %v5321
  %v5323 = vadd.f32 %v5293, %v5302
  %v5324 = vadd.f32 %v5294, %v5306
  %v5325 = vadd.f32 %v5295, %v5310
  %v5326 = vadd.f32 %v5296, %v5314
  %v5327 = vadd.f32 %v5297, %v5318
  %v5328 = vadd.f32 %v5298, %v5322
  %v5329 = vmax.f32 %v5323, 0.0
  %v5330 = vmax.f32 %v5324, 0.0
  %v5331 = vmax.f32 %v5325, 0.0
  %v5332 = vmax.f32 %v5326, 0.0
  %v5333 = vmax.f32 %v5327, 0.0
  %v5334 = vmax.f32 %v5328, 0.0
  %v5335 = vrot.slane %v4079, 4
  %v5336 = vadd.f32 %v4079, %v5335
  %v5337 = vrot.slane %v5336, 2
  %v5338 = vadd.f32 %v5336, %v5337
  %v5339 = vrot.slane %v5338, 1
  %v5340 = vadd.f32 %v5338, %v5339
  %v5341 = vrot.slane %v4081, 4
  %v5342 = vadd.f32 %v4081, %v5341
  %v5343 = vrot.slane %v5342, 2
  %v5344 = vadd.f32 %v5342, %v5343
  %v5345 = vrot.slane %v5344, 1
  %v5346 = vadd.f32 %v5344, %v5345
  %v5347 = vrot.slane %v4165, 4
  %v5348 = vadd.f32 %v4165, %v5347
  %v5349 = vrot.slane %v5348, 2
  %v5350 = vadd.f32 %v5348, %v5349
  %v5351 = vrot.slane %v5350, 1
  %v5352 = vadd.f32 %v5350, %v5351
  %v5353 = vrot.slane %v4167, 4
  %v5354 = vadd.f32 %v4167, %v5353
  %v5355 = vrot.slane %v5354, 2
  %v5356 = vadd.f32 %v5354, %v5355
  %v5357 = vrot.slane %v5356, 1
  %v5358 = vadd.f32 %v5356, %v5357
  %v5359 = vrot.slane %v4251, 4
  %v5360 = vadd.f32 %v4251, %v5359
  %v5361 = vrot.slane %v5360, 2
  %v5362 = vadd.f32 %v5360, %v5361
  %v5363 = vrot.slane %v5362, 1
  %v5364 = vadd.f32 %v5362, %v5363
  %v5365 = vrot.slane %v4253, 4
  %v5366 = vadd.f32 %v4253, %v5365
  %v5367 = vrot.slane %v5366, 2
  %v5368 = vadd.f32 %v5366, %v5367
  %v5369 = vrot.slane %v5368, 1
  %v5370 = vadd.f32 %v5368, %v5369
  %v5371 = vmul.f32 %v4079, %v4079
  %v5372 = vmul.f32 %v4081, %v4081
  %v5373 = vmul.f32 %v4165, %v4165
  %v5374 = vmul.f32 %v4167, %v4167
  %v5375 = vmul.f32 %v4251, %v4251
  %v5376 = vmul.f32 %v4253, %v4253
  %v5377 = vrot.slane %v5371, 4
  %v5378 = vadd.f32 %v5371, %v5377
  %v5379 = vrot.slane %v5378, 2
  %v5380 = vadd.f32 %v5378, %v5379
  %v5381 = vrot.slane %v5380, 1
  %v5382 = vadd.f32 %v5380, %v5381
  %v5383 = vrot.slane %v5372, 4
  %v5384 = vadd.f32 %v5372, %v5383
  %v5385 = vrot.slane %v5384, 2
  %v5386 = vadd.f32 %v5384, %v5385
  %v5387 = vrot.slane %v5386, 1
  %v5388 = vadd.f32 %v5386, %v5387
  %v5389 = vrot.slane %v5373, 4
  %v5390 = vadd.f32 %v5373, %v5389
  %v5391 = vrot.slane %v5390, 2
  %v5392 = vadd.f32 %v5390, %v5391
  %v5393 = vrot.slane %v5392, 1
  %v5394 = vadd.f32 %v5392, %v5393
  %v5395 = vrot.slane %v5374, 4
  %v5396 = vadd.f32 %v5374, %v5395
  %v5397 = vrot.slane %v5396, 2
  %v5398 = vadd.f32 %v5396, %v5397
  %v5399 = vrot.slane %v5398, 1
  %v5400 = vadd.f32 %v5398, %v5399
  %v5401 = vrot.slane %v5375, 4
  %v5402 = vadd.f32 %v5375, %v5401
  %v5403 = vrot.slane %v5402, 2
  %v5404 = vadd.f32 %v5402, %v5403
  %v5405 = vrot.slane %v5404, 1
  %v5406 = vadd.f32 %v5404, %v5405
  %v5407 = vrot.slane %v5376, 4
  %v5408 = vadd.f32 %v5376, %v5407
  %v5409 = vrot.slane %v5408, 2
  %v5410 = vadd.f32 %v5408, %v5409
  %v5411 = vrot.slane %v5410, 1
  %v5412 = vadd.f32 %v5410, %v5411
  %5413 = vmatprep.subr.bf16.mxu0 0
  %5414 = vmatpush1.bf16.msra.mxu0 %v4621
  %5415 = vmatprep.subr.bf16.mxu0 0
  %5416 = vmatpush1.bf16.msra.mxu0 %v4622
  %5417 = vmatprep.subr.bf16.mxu0 0
  %5418 = vmatpush1.bf16.msra.mxu0 %v4623
  %5419 = vmatprep.subr.bf16.mxu0 0
  %5420 = vmatpush1.bf16.msra.mxu0 %v4624
  %5421 = vmatprep.subr.bf16.mxu0 0
  %5422 = vmatpush1.bf16.msra.mxu0 %v4625
  %5423 = vmatprep.subr.bf16.mxu0 0
  %5424 = vmatpush1.bf16.msra.mxu0 %v4626
  %5425 = vmatprep.subr.bf16.mxu0 0
  %5426 = vmatpush1.bf16.msra.mxu0 %v4627
  %5427 = vmatprep.subr.bf16.mxu0 0
  %5428 = vmatpush1.bf16.msra.mxu0 %v4628
  %5429 = vmatprep.subr.bf16.mxu0 0
  %5430 = vmatpush1.bf16.msra.mxu0 %v4629
  %5431 = vmatprep.subr.bf16.mxu0 0
  %5432 = vmatpush1.bf16.msra.mxu0 %v4630
  %5433 = vmatprep.subr.bf16.mxu0 0
  %5434 = vmatpush1.bf16.msra.mxu0 %v4631
  %5435 = vmatprep.subr.bf16.mxu0 0
  %5436 = vmatpush1.bf16.msra.mxu0 %v4632
  %5437 = vmatprep.subr.bf16.mxu0 0
  %5438 = vmatpush1.bf16.msra.mxu0 %v4633
  %5439 = vmatprep.subr.bf16.mxu0 0
  %5440 = vmatpush1.bf16.msra.mxu0 %v4634
  %5441 = vmatprep.subr.bf16.mxu0 0
  %5442 = vmatpush1.bf16.msra.mxu0 %v4635
  %5443 = vmatprep.subr.bf16.mxu0 0
  %5444 = vmatpush1.bf16.msra.mxu0 %v4636
  %5445 = vmatprep.mubr.f32.mxu0 %v5346
  %5446 = vmatmul.mubr.f32.gmra.mrb[0].mxu0 %v5340
  %v5447 = vpop.f32.mrb[0].mxu0
  %v5448 = vadd.f32 0.0, %v5447
  %v5449 = vpop.f32.mrb[0].mxu0
  %5450 = vdwg.mxu0
  %5451 = vmatprep.subr.bf16.mxu0 0
  %5452 = vmatpush1.bf16.msra.mxu0 %v4637
  %5453 = vmatprep.subr.bf16.mxu0 0
  %5454 = vmatpush1.bf16.msra.mxu0 %v4638
  %5455 = vmatprep.subr.bf16.mxu0 0
  %5456 = vmatpush1.bf16.msra.mxu0 %v4639
  %5457 = vmatprep.subr.bf16.mxu0 0
  %5458 = vmatpush1.bf16.msra.mxu0 %v4640
  %5459 = vmatprep.subr.bf16.mxu0 0
  %5460 = vmatpush1.bf16.msra.mxu0 %v4641
  %5461 = vmatprep.subr.bf16.mxu0 0
  %5462 = vmatpush1.bf16.msra.mxu0 %v4642
  %5463 = vmatprep.subr.bf16.mxu0 0
  %5464 = vmatpush1.bf16.msra.mxu0 %v4643
  %5465 = vmatprep.subr.bf16.mxu0 0
  %5466 = vmatpush1.bf16.msra.mxu0 %v4644
  %5467 = vmatprep.subr.bf16.mxu0 0
  %5468 = vmatpush1.bf16.msra.mxu0 %v4645
  %5469 = vmatprep.subr.bf16.mxu0 0
  %5470 = vmatpush1.bf16.msra.mxu0 %v4646
  %5471 = vmatprep.subr.bf16.mxu0 0
  %5472 = vmatpush1.bf16.msra.mxu0 %v4647
  %5473 = vmatprep.subr.bf16.mxu0 0
  %5474 = vmatpush1.bf16.msra.mxu0 %v4648
  %5475 = vmatprep.subr.bf16.mxu0 0
  %5476 = vmatpush1.bf16.msra.mxu0 %v4649
  %5477 = vmatprep.subr.bf16.mxu0 0
  %5478 = vmatpush1.bf16.msra.mxu0 %v4650
  %5479 = vmatprep.subr.bf16.mxu0 0
  %5480 = vmatpush1.bf16.msra.mxu0 %v4651
  %5481 = vmatprep.subr.bf16.mxu0 0
  %5482 = vmatpush1.bf16.msra.mxu0 %v4652
  %5483 = vmatprep.mubr.f32.mxu0 %v5358
  %5484 = vmatmul.mubr.f32.gmra.mrb[0].mxu0 %v5352
  %v5485 = vpop.f32.mrb[0].mxu0
  %v5486 = vadd.f32 %v5448, %v5485
  %v5487 = vpop.f32.mrb[0].mxu0
  %5488 = vdwg.mxu0
  %5489 = vmatprep.subr.bf16.mxu0 0
  %5490 = vmatpush1.bf16.msra.mxu0 %v4653
  %5491 = vmatprep.subr.bf16.mxu0 0
  %5492 = vmatpush1.bf16.msra.mxu0 %v4654
  %5493 = vmatprep.subr.bf16.mxu0 0
  %5494 = vmatpush1.bf16.msra.mxu0 %v4655
  %5495 = vmatprep.subr.bf16.mxu0 0
  %5496 = vmatpush1.bf16.msra.mxu0 %v4656
  %5497 = vmatprep.subr.bf16.mxu0 0
  %5498 = vmatpush1.bf16.msra.mxu0 %v4657
  %5499 = vmatprep.subr.bf16.mxu0 0
  %5500 = vmatpush1.bf16.msra.mxu0 %v4658
  %5501 = vmatprep.subr.bf16.mxu0 0
  %5502 = vmatpush1.bf16.msra.mxu0 %v4659
  %5503 = vmatprep.subr.bf16.mxu0 0
  %5504 = vmatpush1.bf16.msra.mxu0 %v4660
  %5505 = vmatprep.subr.bf16.mxu0 0
  %5506 = vmatpush1.bf16.msra.mxu0 %v4661
  %5507 = vmatprep.subr.bf16.mxu0 0
  %5508 = vmatpush1.bf16.msra.mxu0 %v4662
  %5509 = vmatprep.subr.bf16.mxu0 0
  %5510 = vmatpush1.bf16.msra.mxu0 %v4663
  %5511 = vmatprep.subr.bf16.mxu0 0
  %5512 = vmatpush1.bf16.msra.mxu0 %v4664
  %5513 = vmatprep.subr.bf16.mxu0 0
  %5514 = vmatpush1.bf16.msra.mxu0 %v4665
  %5515 = vmatprep.subr.bf16.mxu0 0
  %5516 = vmatpush1.bf16.msra.mxu0 %v4666
  %5517 = vmatprep.subr.bf16.mxu0 0
  %5518 = vmatpush1.bf16.msra.mxu0 %v4667
  %5519 = vmatprep.subr.bf16.mxu0 0
  %5520 = vmatpush1.bf16.msra.mxu0 %v4668
  %5521 = vmatprep.mubr.f32.mxu0 %v5370
  %5522 = vmatmul.mubr.f32.gmra.mrb[0].mxu0 %v5364
  %v5523 = vpop.f32.mrb[0].mxu0
  %v5524 = vadd.f32 %v5486, %v5523
  %v5525 = vpop.f32.mrb[0].mxu0
  %5526 = vdwg.mxu0
  %5527 = vmatprep.subr.bf16.mxu0 0
  %5528 = vmatpush1.bf16.msra.mxu0 %v4621
  %5529 = vmatprep.subr.bf16.mxu0 0
  %5530 = vmatpush1.bf16.msra.mxu0 %v4622
  %5531 = vmatprep.subr.bf16.mxu0 0
  %5532 = vmatpush1.bf16.msra.mxu0 %v4623
  %5533 = vmatprep.subr.bf16.mxu0 0
  %5534 = vmatpush1.bf16.msra.mxu0 %v4624
  %5535 = vmatprep.subr.bf16.mxu0 0
  %5536 = vmatpush1.bf16.msra.mxu0 %v4625
  %5537 = vmatprep.subr.bf16.mxu0 0
  %5538 = vmatpush1.bf16.msra.mxu0 %v4626
  %5539 = vmatprep.subr.bf16.mxu0 0
  %5540 = vmatpush1.bf16.msra.mxu0 %v4627
  %5541 = vmatprep.subr.bf16.mxu0 0
  %5542 = vmatpush1.bf16.msra.mxu0 %v4628
  %5543 = vmatprep.subr.bf16.mxu0 0
  %5544 = vmatpush1.bf16.msra.mxu0 %v4629
  %5545 = vmatprep.subr.bf16.mxu0 0
  %5546 = vmatpush1.bf16.msra.mxu0 %v4630
  %5547 = vmatprep.subr.bf16.mxu0 0
  %5548 = vmatpush1.bf16.msra.mxu0 %v4631
  %5549 = vmatprep.subr.bf16.mxu0 0
  %5550 = vmatpush1.bf16.msra.mxu0 %v4632
  %5551 = vmatprep.subr.bf16.mxu0 0
  %5552 = vmatpush1.bf16.msra.mxu0 %v4633
  %5553 = vmatprep.subr.bf16.mxu0 0
  %5554 = vmatpush1.bf16.msra.mxu0 %v4634
  %5555 = vmatprep.subr.bf16.mxu0 0
  %5556 = vmatpush1.bf16.msra.mxu0 %v4635
  %5557 = vmatprep.subr.bf16.mxu0 0
  %5558 = vmatpush1.bf16.msra.mxu0 %v4636
  %5559 = vmatprep.mubr.f32.mxu0 %v5388
  %5560 = vmatmul.mubr.f32.gmra.mrb[0].mxu0 %v5382
  %v5561 = vpop.f32.mrb[0].mxu0
  %v5562 = vadd.f32 0.0, %v5561
  %v5563 = vpop.f32.mrb[0].mxu0
  %5564 = vdwg.mxu0
  %5565 = vmatprep.subr.bf16.mxu0 0
  %5566 = vmatpush1.bf16.msra.mxu0 %v4637
  %5567 = vmatprep.subr.bf16.mxu0 0
  %5568 = vmatpush1.bf16.msra.mxu0 %v4638
  %5569 = vmatprep.subr.bf16.mxu0 0
  %5570 = vmatpush1.bf16.msra.mxu0 %v4639
  %5571 = vmatprep.subr.bf16.mxu0 0
  %5572 = vmatpush1.bf16.msra.mxu0 %v4640
  %5573 = vmatprep.subr.bf16.mxu0 0
  %5574 = vmatpush1.bf16.msra.mxu0 %v4641
  %5575 = vmatprep.subr.bf16.mxu0 0
  %5576 = vmatpush1.bf16.msra.mxu0 %v4642
  %5577 = vmatprep.subr.bf16.mxu0 0
  %5578 = vmatpush1.bf16.msra.mxu0 %v4643
  %5579 = vmatprep.subr.bf16.mxu0 0
  %5580 = vmatpush1.bf16.msra.mxu0 %v4644
  %5581 = vmatprep.subr.bf16.mxu0 0
  %5582 = vmatpush1.bf16.msra.mxu0 %v4645
  %5583 = vmatprep.subr.bf16.mxu0 0
  %5584 = vmatpush1.bf16.msra.mxu0 %v4646
  %5585 = vmatprep.subr.bf16.mxu0 0
  %5586 = vmatpush1.bf16.msra.mxu0 %v4647
  %5587 = vmatprep.subr.bf16.mxu0 0
  %5588 = vmatpush1.bf16.msra.mxu0 %v4648
  %5589 = vmatprep.subr.bf16.mxu0 0
  %5590 = vmatpush1.bf16.msra.mxu0 %v4649
  %5591 = vmatprep.subr.bf16.mxu0 0
  %5592 = vmatpush1.bf16.msra.mxu0 %v4650
  %5593 = vmatprep.subr.bf16.mxu0 0
  %5594 = vmatpush1.bf16.msra.mxu0 %v4651
  %5595 = vmatprep.subr.bf16.mxu0 0
  %5596 = vmatpush1.bf16.msra.mxu0 %v4652
  %5597 = vmatprep.mubr.f32.mxu0 %v5400
  %5598 = vmatmul.mubr.f32.gmra.mrb[0].mxu0 %v5394
  %v5599 = vpop.f32.mrb[0].mxu0
  %v5600 = vadd.f32 %v5562, %v5599
  %v5601 = vpop.f32.mrb[0].mxu0
  %5602 = vdwg.mxu0
  %5603 = vmatprep.subr.bf16.mxu0 0
  %5604 = vmatpush1.bf16.msra.mxu0 %v4653
  %5605 = vmatprep.subr.bf16.mxu0 0
  %5606 = vmatpush1.bf16.msra.mxu0 %v4654
  %5607 = vmatprep.subr.bf16.mxu0 0
  %5608 = vmatpush1.bf16.msra.mxu0 %v4655
  %5609 = vmatprep.subr.bf16.mxu0 0
  %5610 = vmatpush1.bf16.msra.mxu0 %v4656
  %5611 = vmatprep.subr.bf16.mxu0 0
  %5612 = vmatpush1.bf16.msra.mxu0 %v4657
  %5613 = vmatprep.subr.bf16.mxu0 0
  %5614 = vmatpush1.bf16.msra.mxu0 %v4658
  %5615 = vmatprep.subr.bf16.mxu0 0
  %5616 = vmatpush1.bf16.msra.mxu0 %v4659
  %5617 = vmatprep.subr.bf16.mxu0 0
  %5618 = vmatpush1.bf16.msra.mxu0 %v4660
  %5619 = vmatprep.subr.bf16.mxu0 0
  %5620 = vmatpush1.bf16.msra.mxu0 %v4661
  %5621 = vmatprep.subr.bf16.mxu0 0
  %5622 = vmatpush1.bf16.msra.mxu0 %v4662
  %5623 = vmatprep.subr.bf16.mxu0 0
  %5624 = vmatpush1.bf16.msra.mxu0 %v4663
  %5625 = vmatprep.subr.bf16.mxu0 0
  %5626 = vmatpush1.bf16.msra.mxu0 %v4664
  %5627 = vmatprep.subr.bf16.mxu0 0
  %5628 = vmatpush1.bf16.msra.mxu0 %v4665
  %5629 = vmatprep.subr.bf16.mxu0 0
  %5630 = vmatpush1.bf16.msra.mxu0 %v4666
  %5631 = vmatprep.subr.bf16.mxu0 0
  %5632 = vmatpush1.bf16.msra.mxu0 %v4667
  %5633 = vmatprep.subr.bf16.mxu0 0
  %5634 = vmatpush1.bf16.msra.mxu0 %v4668
  %5635 = vmatprep.mubr.f32.mxu0 %v5412
  %5636 = vmatmul.mubr.f32.gmra.mrb[0].mxu0 %v5406
  %v5637 = vpop.f32.mrb[0].mxu0
  %v5638 = vadd.f32 %v5600, %v5637
  %v5639 = vpop.f32.mrb[0].mxu0
  %5640 = vdwg.mxu0
  %v5641 = vmul.f32 %v5524, 0.0056818184
  %v5642 = vmul.f32 %v5638, 0.0056818184
  %v5643 = vmul.f32 %v5641, %v5641
  %v5644 = vsub.f32 %v5642, %v5643
  %v5645 = vmax.f32 %v5644, 0.0
  %v5646 = vadd.f32 %v5645, 1e-05
  %v5647 = vrsqrt.pop %v5646
  %v5648 = vmul.f32 %v5647, %v4952
  %v5649 = vmul.f32 %v5641, %v5648
  %v5650 = vsub.f32 %v4954, %v5649
  %v5652 = vsel %vm225, %v5648, 0
  %5654 = vmatprep.subr.bf16.mxu0 %v5006
  %5655 = vmatpush1.bf16.msra.mxu0 %v5005
  %5656 = vmatprep.subr.bf16.mxu0 %v5012
  %5657 = vmatpush1.bf16.msra.mxu0 %v5011
  %5658 = vmatprep.subr.bf16.mxu0 0
  %5659 = vmatpush1.bf16.msra.mxu0 0
  %5660 = vmatprep.subr.bf16.mxu0 0
  %5661 = vmatpush1.bf16.msra.mxu0 0
  %5662 = vmatprep.subr.bf16.mxu0 0
  %5663 = vmatpush1.bf16.msra.mxu0 0
  %5664 = vmatprep.subr.bf16.mxu0 0
  %5665 = vmatpush1.bf16.msra.mxu0 0
  %5666 = vmatprep.subr.bf16.mxu0 0
  %5667 = vmatpush1.bf16.msra.mxu0 0
  %5668 = vmatprep.subr.bf16.mxu0 0
  %5669 = vmatpush1.bf16.msra.mxu0 0
  %5670 = vmatprep.subr.bf16.mxu0 0
  %5671 = vmatpush1.bf16.msra.mxu0 0
  %5672 = vmatprep.subr.bf16.mxu0 0
  %5673 = vmatpush1.bf16.msra.mxu0 0
  %5674 = vmatprep.subr.bf16.mxu0 0
  %5675 = vmatpush1.bf16.msra.mxu0 0
  %5676 = vmatprep.subr.bf16.mxu0 0
  %5677 = vmatpush1.bf16.msra.mxu0 0
  %5678 = vmatprep.subr.bf16.mxu0 0
  %5679 = vmatpush1.bf16.msra.mxu0 0
  %5680 = vmatprep.subr.bf16.mxu0 0
  %5681 = vmatpush1.bf16.msra.mxu0 0
  %5682 = vmatprep.subr.bf16.mxu0 0
  %5683 = vmatpush1.bf16.msra.mxu0 0
  %5684 = vmatprep.subr.bf16.mxu0 0
  %5685 = vmatpush1.bf16.msra.mxu0 0
  %5686 = vmatprep.mubr.f32.mxu0 0.0
  %5687 = vmatmul.mubr.f32.gmra.mrb[0].mxu0 %v5652
  %v5688 = vpop.f32.mrb[0].mxu0
  %v5689 = vadd.f32 0.0, %v5688
  %v5690 = vpop.f32.mrb[0].mxu0
  %v5691 = vadd.f32 0.0, %v5690
  %5692 = vdwg.mxu0
  %5693 = vmatprep.subr.bf16.mxu0 %v5008
  %5694 = vmatpush1.bf16.msra.mxu0 %v5007
  %5695 = vmatprep.subr.bf16.mxu0 %v5014
  %5696 = vmatpush1.bf16.msra.mxu0 %v5013
  %5697 = vmatprep.subr.bf16.mxu0 0
  %5698 = vmatpush1.bf16.msra.mxu0 0
  %5699 = vmatprep.subr.bf16.mxu0 0
  %5700 = vmatpush1.bf16.msra.mxu0 0
  %5701 = vmatprep.subr.bf16.mxu0 0
  %5702 = vmatpush1.bf16.msra.mxu0 0
  %5703 = vmatprep.subr.bf16.mxu0 0
  %5704 = vmatpush1.bf16.msra.mxu0 0
  %5705 = vmatprep.subr.bf16.mxu0 0
  %5706 = vmatpush1.bf16.msra.mxu0 0
  %5707 = vmatprep.subr.bf16.mxu0 0
  %5708 = vmatpush1.bf16.msra.mxu0 0
  %5709 = vmatprep.subr.bf16.mxu0 0
  %5710 = vmatpush1.bf16.msra.mxu0 0
  %5711 = vmatprep.subr.bf16.mxu0 0
  %5712 = vmatpush1.bf16.msra.mxu0 0
  %5713 = vmatprep.subr.bf16.mxu0 0
  %5714 = vmatpush1.bf16.msra.mxu0 0
  %5715 = vmatprep.subr.bf16.mxu0 0
  %5716 = vmatpush1.bf16.msra.mxu0 0
  %5717 = vmatprep.subr.bf16.mxu0 0
  %5718 = vmatpush1.bf16.msra.mxu0 0
  %5719 = vmatprep.subr.bf16.mxu0 0
  %5720 = vmatpush1.bf16.msra.mxu0 0
  %5721 = vmatprep.subr.bf16.mxu0 0
  %5722 = vmatpush1.bf16.msra.mxu0 0
  %5723 = vmatprep.subr.bf16.mxu0 0
  %5724 = vmatpush1.bf16.msra.mxu0 0
  %5725 = vmatprep.mubr.f32.mxu0 0.0
  %5726 = vmatmul.mubr.f32.gmra.mrb[0].mxu0 %v5652
  %v5727 = vpop.f32.mrb[0].mxu0
  %v5728 = vadd.f32 0.0, %v5727
  %v5729 = vpop.f32.mrb[0].mxu0
  %v5730 = vadd.f32 0.0, %v5729
  %5731 = vdwg.mxu0
  %5732 = vmatprep.subr.bf16.mxu0 %v5010
  %5733 = vmatpush1.bf16.msra.mxu0 %v5009
  %5734 = vmatprep.subr.bf16.mxu0 %v5016
  %5735 = vmatpush1.bf16.msra.mxu0 %v5015
  %5736 = vmatprep.subr.bf16.mxu0 0
  %5737 = vmatpush1.bf16.msra.mxu0 0
  %5738 = vmatprep.subr.bf16.mxu0 0
  %5739 = vmatpush1.bf16.msra.mxu0 0
  %5740 = vmatprep.subr.bf16.mxu0 0
  %5741 = vmatpush1.bf16.msra.mxu0 0
  %5742 = vmatprep.subr.bf16.mxu0 0
  %5743 = vmatpush1.bf16.msra.mxu0 0
  %5744 = vmatprep.subr.bf16.mxu0 0
  %5745 = vmatpush1.bf16.msra.mxu0 0
  %5746 = vmatprep.subr.bf16.mxu0 0
  %5747 = vmatpush1.bf16.msra.mxu0 0
  %5748 = vmatprep.subr.bf16.mxu0 0
  %5749 = vmatpush1.bf16.msra.mxu0 0
  %5750 = vmatprep.subr.bf16.mxu0 0
  %5751 = vmatpush1.bf16.msra.mxu0 0
  %5752 = vmatprep.subr.bf16.mxu0 0
  %5753 = vmatpush1.bf16.msra.mxu0 0
  %5754 = vmatprep.subr.bf16.mxu0 0
  %5755 = vmatpush1.bf16.msra.mxu0 0
  %5756 = vmatprep.subr.bf16.mxu0 0
  %5757 = vmatpush1.bf16.msra.mxu0 0
  %5758 = vmatprep.subr.bf16.mxu0 0
  %5759 = vmatpush1.bf16.msra.mxu0 0
  %5760 = vmatprep.subr.bf16.mxu0 0
  %5761 = vmatpush1.bf16.msra.mxu0 0
  %5762 = vmatprep.subr.bf16.mxu0 0
  %5763 = vmatpush1.bf16.msra.mxu0 0
  %5764 = vmatprep.mubr.f32.mxu0 0.0
  %5765 = vmatmul.mubr.f32.gmra.mrb[0].mxu0 %v5652
  %v5766 = vpop.f32.mrb[0].mxu0
  %v5767 = vadd.f32 0.0, %v5766
  %v5768 = vpop.f32.mrb[0].mxu0
  %v5769 = vadd.f32 0.0, %v5768
  %5770 = vdwg.mxu0
  %v5772 = vsel %vm225, %v5650, 0
  %5774 = vmatprep.subr.bf16.mxu0 %v5006
  %5775 = vmatpush1.bf16.msra.mxu0 %v5005
  %5776 = vmatprep.subr.bf16.mxu0 %v5012
  %5777 = vmatpush1.bf16.msra.mxu0 %v5011
  %5778 = vmatprep.subr.bf16.mxu0 0
  %5779 = vmatpush1.bf16.msra.mxu0 0
  %5780 = vmatprep.subr.bf16.mxu0 0
  %5781 = vmatpush1.bf16.msra.mxu0 0
  %5782 = vmatprep.subr.bf16.mxu0 0
  %5783 = vmatpush1.bf16.msra.mxu0 0
  %5784 = vmatprep.subr.bf16.mxu0 0
  %5785 = vmatpush1.bf16.msra.mxu0 0
  %5786 = vmatprep.subr.bf16.mxu0 0
  %5787 = vmatpush1.bf16.msra.mxu0 0
  %5788 = vmatprep.subr.bf16.mxu0 0
  %5789 = vmatpush1.bf16.msra.mxu0 0
  %5790 = vmatprep.subr.bf16.mxu0 0
  %5791 = vmatpush1.bf16.msra.mxu0 0
  %5792 = vmatprep.subr.bf16.mxu0 0
  %5793 = vmatpush1.bf16.msra.mxu0 0
  %5794 = vmatprep.subr.bf16.mxu0 0
  %5795 = vmatpush1.bf16.msra.mxu0 0
  %5796 = vmatprep.subr.bf16.mxu0 0
  %5797 = vmatpush1.bf16.msra.mxu0 0
  %5798 = vmatprep.subr.bf16.mxu0 0
  %5799 = vmatpush1.bf16.msra.mxu0 0
  %5800 = vmatprep.subr.bf16.mxu0 0
  %5801 = vmatpush1.bf16.msra.mxu0 0
  %5802 = vmatprep.subr.bf16.mxu0 0
  %5803 = vmatpush1.bf16.msra.mxu0 0
  %5804 = vmatprep.subr.bf16.mxu0 0
  %5805 = vmatpush1.bf16.msra.mxu0 0
  %5806 = vmatprep.mubr.f32.mxu0 0.0
  %5807 = vmatmul.mubr.f32.gmra.mrb[0].mxu0 %v5772
  %v5808 = vpop.f32.mrb[0].mxu0
  %v5809 = vadd.f32 0.0, %v5808
  %v5810 = vpop.f32.mrb[0].mxu0
  %v5811 = vadd.f32 0.0, %v5810
  %5812 = vdwg.mxu0
  %5813 = vmatprep.subr.bf16.mxu0 %v5008
  %5814 = vmatpush1.bf16.msra.mxu0 %v5007
  %5815 = vmatprep.subr.bf16.mxu0 %v5014
  %5816 = vmatpush1.bf16.msra.mxu0 %v5013
  %5817 = vmatprep.subr.bf16.mxu0 0
  %5818 = vmatpush1.bf16.msra.mxu0 0
  %5819 = vmatprep.subr.bf16.mxu0 0
  %5820 = vmatpush1.bf16.msra.mxu0 0
  %5821 = vmatprep.subr.bf16.mxu0 0
  %5822 = vmatpush1.bf16.msra.mxu0 0
  %5823 = vmatprep.subr.bf16.mxu0 0
  %5824 = vmatpush1.bf16.msra.mxu0 0
  %5825 = vmatprep.subr.bf16.mxu0 0
  %5826 = vmatpush1.bf16.msra.mxu0 0
  %5827 = vmatprep.subr.bf16.mxu0 0
  %5828 = vmatpush1.bf16.msra.mxu0 0
  %5829 = vmatprep.subr.bf16.mxu0 0
  %5830 = vmatpush1.bf16.msra.mxu0 0
  %5831 = vmatprep.subr.bf16.mxu0 0
  %5832 = vmatpush1.bf16.msra.mxu0 0
  %5833 = vmatprep.subr.bf16.mxu0 0
  %5834 = vmatpush1.bf16.msra.mxu0 0
  %5835 = vmatprep.subr.bf16.mxu0 0
  %5836 = vmatpush1.bf16.msra.mxu0 0
  %5837 = vmatprep.subr.bf16.mxu0 0
  %5838 = vmatpush1.bf16.msra.mxu0 0
  %5839 = vmatprep.subr.bf16.mxu0 0
  %5840 = vmatpush1.bf16.msra.mxu0 0
  %5841 = vmatprep.subr.bf16.mxu0 0
  %5842 = vmatpush1.bf16.msra.mxu0 0
  %5843 = vmatprep.subr.bf16.mxu0 0
  %5844 = vmatpush1.bf16.msra.mxu0 0
  %5845 = vmatprep.mubr.f32.mxu0 0.0
  %5846 = vmatmul.mubr.f32.gmra.mrb[0].mxu0 %v5772
  %v5847 = vpop.f32.mrb[0].mxu0
  %v5848 = vadd.f32 0.0, %v5847
  %v5849 = vpop.f32.mrb[0].mxu0
  %v5850 = vadd.f32 0.0, %v5849
  %5851 = vdwg.mxu0
  %5852 = vmatprep.subr.bf16.mxu0 %v5010
  %5853 = vmatpush1.bf16.msra.mxu0 %v5009
  %5854 = vmatprep.subr.bf16.mxu0 %v5016
  %5855 = vmatpush1.bf16.msra.mxu0 %v5015
  %5856 = vmatprep.subr.bf16.mxu0 0
  %5857 = vmatpush1.bf16.msra.mxu0 0
  %5858 = vmatprep.subr.bf16.mxu0 0
  %5859 = vmatpush1.bf16.msra.mxu0 0
  %5860 = vmatprep.subr.bf16.mxu0 0
  %5861 = vmatpush1.bf16.msra.mxu0 0
  %5862 = vmatprep.subr.bf16.mxu0 0
  %5863 = vmatpush1.bf16.msra.mxu0 0
  %5864 = vmatprep.subr.bf16.mxu0 0
  %5865 = vmatpush1.bf16.msra.mxu0 0
  %5866 = vmatprep.subr.bf16.mxu0 0
  %5867 = vmatpush1.bf16.msra.mxu0 0
  %5868 = vmatprep.subr.bf16.mxu0 0
  %5869 = vmatpush1.bf16.msra.mxu0 0
  %5870 = vmatprep.subr.bf16.mxu0 0
  %5871 = vmatpush1.bf16.msra.mxu0 0
  %5872 = vmatprep.subr.bf16.mxu0 0
  %5873 = vmatpush1.bf16.msra.mxu0 0
  %5874 = vmatprep.subr.bf16.mxu0 0
  %5875 = vmatpush1.bf16.msra.mxu0 0
  %5876 = vmatprep.subr.bf16.mxu0 0
  %5877 = vmatpush1.bf16.msra.mxu0 0
  %5878 = vmatprep.subr.bf16.mxu0 0
  %5879 = vmatpush1.bf16.msra.mxu0 0
  %5880 = vmatprep.subr.bf16.mxu0 0
  %5881 = vmatpush1.bf16.msra.mxu0 0
  %5882 = vmatprep.subr.bf16.mxu0 0
  %5883 = vmatpush1.bf16.msra.mxu0 0
  %5884 = vmatprep.mubr.f32.mxu0 0.0
  %5885 = vmatmul.mubr.f32.gmra.mrb[0].mxu0 %v5772
  %v5886 = vpop.f32.mrb[0].mxu0
  %v5887 = vadd.f32 0.0, %v5886
  %v5888 = vpop.f32.mrb[0].mxu0
  %v5889 = vadd.f32 0.0, %v5888
  %5890 = vdwg.mxu0
  %v5891 = vlaneseq
  %v5892 = vshrl.u32 %v5891, 7
  %v5893 = vsub.s32 0, %v5892
  %v5894 = vrot.slane %v5689, %v5893
  %v5895 = vlaneseq
  %v5896 = vshrl.u32 %v5895, 7
  %v5897 = vsub.s32 0, %v5896
  %v5898 = vrot.slane %v5691, %v5897
  %v5899 = vlaneseq
  %v5900 = vshrl.u32 %v5899, 7
  %v5901 = vsub.s32 0, %v5900
  %v5902 = vrot.slane %v5728, %v5901
  %v5903 = vlaneseq
  %v5904 = vshrl.u32 %v5903, 7
  %v5905 = vsub.s32 0, %v5904
  %v5906 = vrot.slane %v5730, %v5905
  %v5907 = vlaneseq
  %v5908 = vshrl.u32 %v5907, 7
  %v5909 = vsub.s32 0, %v5908
  %v5910 = vrot.slane %v5767, %v5909
  %v5911 = vlaneseq
  %v5912 = vshrl.u32 %v5911, 7
  %v5913 = vsub.s32 0, %v5912
  %v5914 = vrot.slane %v5769, %v5913
  %v5915 = vmul.f32 %v4079, %v5894
  %v5916 = vmul.f32 %v4081, %v5898
  %v5917 = vmul.f32 %v4165, %v5902
  %v5918 = vmul.f32 %v4167, %v5906
  %v5919 = vmul.f32 %v4251, %v5910
  %v5920 = vmul.f32 %v4253, %v5914
  %v5921 = vlaneseq
  %v5922 = vshrl.u32 %v5921, 7
  %v5923 = vsub.s32 0, %v5922
  %v5924 = vrot.slane %v5809, %v5923
  %v5925 = vlaneseq
  %v5926 = vshrl.u32 %v5925, 7
  %v5927 = vsub.s32 0, %v5926
  %v5928 = vrot.slane %v5811, %v5927
  %v5929 = vlaneseq
  %v5930 = vshrl.u32 %v5929, 7
  %v5931 = vsub.s32 0, %v5930
  %v5932 = vrot.slane %v5848, %v5931
  %v5933 = vlaneseq
  %v5934 = vshrl.u32 %v5933, 7
  %v5935 = vsub.s32 0, %v5934
  %v5936 = vrot.slane %v5850, %v5935
  %v5937 = vlaneseq
  %v5938 = vshrl.u32 %v5937, 7
  %v5939 = vsub.s32 0, %v5938
  %v5940 = vrot.slane %v5887, %v5939
  %v5941 = vlaneseq
  %v5942 = vshrl.u32 %v5941, 7
  %v5943 = vsub.s32 0, %v5942
  %v5944 = vrot.slane %v5889, %v5943
  %v5945 = vadd.f32 %v5915, %v5924
  %v5946 = vadd.f32 %v5916, %v5928
  %v5947 = vadd.f32 %v5917, %v5932
  %v5948 = vadd.f32 %v5918, %v5936
  %v5949 = vadd.f32 %v5919, %v5940
  %v5950 = vadd.f32 %v5920, %v5944
  %v5951 = vmax.f32 %v5945, 0.0
  %v5952 = vmax.f32 %v5946, 0.0
  %v5953 = vmax.f32 %v5947, 0.0
  %v5954 = vmax.f32 %v5948, 0.0
  %v5955 = vmax.f32 %v5949, 0.0
  %v5956 = vmax.f32 %v5950, 0.0
  %v5957 = vpack.c.bf16 %v5951, %v5329
  %v5958 = vpack.c.bf16 %v5952, %v5330
  %v5959 = vpack.c.bf16 %v5953, %v5331
  %v5960 = vpack.c.bf16 %v5954, %v5332
  %v5961 = vpack.c.bf16 %v5955, %v5333
  %v5962 = vpack.c.bf16 %v5956, %v5334
  %v5963 = vld [vmem:[%s39] sm:$0xff]
  %v5964 = vld [vmem:[%s39 + $0x8] sm:$0xff]
  %v5965 = vld [vmem:[%s39 + $0x10] sm:$0xff]
  %v5966 = vld [vmem:[%s39 + $0x18] sm:$0xff]
  %v5967 = vld [vmem:[%s39 + $0x20] sm:$0xff]
  %v5968 = vld [vmem:[%s39 + $0x28] sm:$0xff]
  %v5969 = vld [vmem:[%s39 + $0x30] sm:$0xff]
  %v5970 = vld [vmem:[%s39 + $0x38] sm:$0xff]
  %v5971 = vld [vmem:[%s39 + $0x40] sm:$0xff]
  %v5972 = vld [vmem:[%s39 + $0x48] sm:$0xff]
  %v5973 = vld [vmem:[%s39 + $0x50] sm:$0xff]
  %v5974 = vld [vmem:[%s39 + $0x58] sm:$0xff]
  %v5975 = vld [vmem:[%s39 + $0x60] sm:$0xff]
  %v5976 = vld [vmem:[%s39 + $0x68] sm:$0xff]
  %v5977 = vld [vmem:[%s39 + $0x70] sm:$0xff]
  %v5978 = vld [vmem:[%s39 + $0x78] sm:$0xff]
  %v5979 = vld [vmem:[%s39 + $0x80] sm:$0xff]
  %v5980 = vld [vmem:[%s39 + $0x88] sm:$0xff]
  %v5981 = vld [vmem:[%s39 + $0x90] sm:$0xff]
  %v5982 = vld [vmem:[%s39 + $0x98] sm:$0xff]
  %v5983 = vld [vmem:[%s39 + $0xa0] sm:$0xff]
  %v5984 = vld [vmem:[%s39 + $0xa8] sm:$0xff]
  %v5985 = vld [vmem:[%s39 + $0xb0] sm:$0xff]
  %v5986 = vld [vmem:[%s39 + $0xb8] sm:$0xff]
  %v5987 = vld [vmem:[%s39 + $0xc0] sm:$0xff]
  %v5988 = vld [vmem:[%s39 + $0xc8] sm:$0xff]
  %v5989 = vld [vmem:[%s39 + $0xd0] sm:$0xff]
  %v5990 = vld [vmem:[%s39 + $0xd8] sm:$0xff]
  %v5991 = vld [vmem:[%s39 + $0xe0] sm:$0xff]
  %v5992 = vld [vmem:[%s39 + $0xe8] sm:$0xff]
  %v5993 = vld [vmem:[%s39 + $0xf0] sm:$0xff]
  %v5994 = vld [vmem:[%s39 + $0xf8] sm:$0xff]
  %v5995 = vld [vmem:[%s39 + $0x100] sm:$0xff]
  %v5996 = vld [vmem:[%s39 + $0x108] sm:$0xff]
  %v5997 = vld [vmem:[%s39 + $0x110] sm:$0xff]
  %v5998 = vld [vmem:[%s39 + $0x118] sm:$0xff]
  %v5999 = vld [vmem:[%s39 + $0x120] sm:$0xff]
  %v6000 = vld [vmem:[%s39 + $0x128] sm:$0xff]
  %v6001 = vld [vmem:[%s39 + $0x130] sm:$0xff]
  %v6002 = vld [vmem:[%s39 + $0x138] sm:$0xff]
  %v6003 = vld [vmem:[%s39 + $0x140] sm:$0xff]
  %v6004 = vld [vmem:[%s39 + $0x148] sm:$0xff]
  %v6005 = vld [vmem:[%s39 + $0x150] sm:$0xff]
  %v6006 = vld [vmem:[%s39 + $0x158] sm:$0xff]
  %v6007 = vld [vmem:[%s39 + $0x160] sm:$0xff]
  %v6008 = vld [vmem:[%s39 + $0x168] sm:$0xff]
  %v6009 = vld [vmem:[%s39 + $0x170] sm:$0xff]
  %v6010 = vld [vmem:[%s39 + $0x178] sm:$0xff]
  %v6011 = vld [vmem:[%s39 + $0x180] sm:$0xff]
  %v6012 = vld [vmem:[%s39 + $0x188] sm:$0xff]
  %v6013 = vld [vmem:[%s39 + $0x190] sm:$0xff]
  %v6014 = vld [vmem:[%s39 + $0x198] sm:$0xff]
  %v6015 = vld [vmem:[%s39 + $0x1a0] sm:$0xff]
  %v6016 = vld [vmem:[%s39 + $0x1a8] sm:$0xff]
  %v6017 = vld [vmem:[%s39 + $0x1b0] sm:$0xff]
  %v6018 = vld [vmem:[%s39 + $0x1b8] sm:$0xff]
  %v6019 = vld [vmem:[%s39 + $0x1c0] sm:$0xff]
  %v6020 = vld [vmem:[%s39 + $0x1c8] sm:$0xff]
  %v6021 = vld [vmem:[%s39 + $0x1d0] sm:$0xff]
  %v6022 = vld [vmem:[%s39 + $0x1d8] sm:$0xff]
  %v6023 = vld [vmem:[%s39 + $0x1e0] sm:$0xff]
  %v6024 = vld [vmem:[%s39 + $0x1e8] sm:$0xff]
  %v6025 = vld [vmem:[%s39 + $0x1f0] sm:$0xff]
  %v6026 = vld [vmem:[%s39 + $0x1f8] sm:$0xff]
  %v6027 = vld [vmem:[%s39 + $0x200] sm:$0xff]
  %v6028 = vld [vmem:[%s39 + $0x208] sm:$0xff]
  %v6029 = vld [vmem:[%s39 + $0x210] sm:$0xff]
  %v6030 = vld [vmem:[%s39 + $0x218] sm:$0xff]
  %v6031 = vld [vmem:[%s39 + $0x220] sm:$0xff]
  %v6032 = vld [vmem:[%s39 + $0x228] sm:$0xff]
  %v6033 = vld [vmem:[%s39 + $0x230] sm:$0xff]
  %v6034 = vld [vmem:[%s39 + $0x238] sm:$0xff]
  %v6035 = vld [vmem:[%s39 + $0x240] sm:$0xff]
  %v6036 = vld [vmem:[%s39 + $0x248] sm:$0xff]
  %v6037 = vld [vmem:[%s39 + $0x250] sm:$0xff]
  %v6038 = vld [vmem:[%s39 + $0x258] sm:$0xff]
  %v6039 = vld [vmem:[%s39 + $0x260] sm:$0xff]
  %v6040 = vld [vmem:[%s39 + $0x268] sm:$0xff]
  %v6041 = vld [vmem:[%s39 + $0x270] sm:$0xff]
  %v6042 = vld [vmem:[%s39 + $0x278] sm:$0xff]
  %v6043 = vld [vmem:[%s39 + $0x280] sm:$0xff]
  %v6044 = vld [vmem:[%s39 + $0x288] sm:$0xff]
  %v6045 = vld [vmem:[%s39 + $0x290] sm:$0xff]
  %v6046 = vld [vmem:[%s39 + $0x298] sm:$0xff]
  %v6047 = vld [vmem:[%s39 + $0x2a0] sm:$0xff]
  %v6048 = vld [vmem:[%s39 + $0x2a8] sm:$0xff]
  %v6049 = vld [vmem:[%s39 + $0x2b0] sm:$0xff]
  %v6050 = vld [vmem:[%s39 + $0x2b8] sm:$0xff]
  %v6051 = vld [vmem:[%s39 + $0x2c0] sm:$0xff]
  %v6052 = vld [vmem:[%s39 + $0x2c8] sm:$0xff]
  %v6053 = vld [vmem:[%s39 + $0x2d0] sm:$0xff]
  %v6054 = vld [vmem:[%s39 + $0x2d8] sm:$0xff]
  %v6055 = vld [vmem:[%s39 + $0x2e0] sm:$0xff]
  %v6056 = vld [vmem:[%s39 + $0x2e8] sm:$0xff]
  %v6057 = vld [vmem:[%s39 + $0x2f0] sm:$0xff]
  %v6058 = vld [vmem:[%s39 + $0x2f8] sm:$0xff]
  %v6059 = vld [vmem:[%s39 + $0x300] sm:$0xff]
  %v6060 = vld [vmem:[%s39 + $0x308] sm:$0xff]
  %v6061 = vld [vmem:[%s39 + $0x310] sm:$0xff]
  %v6062 = vld [vmem:[%s39 + $0x318] sm:$0xff]
  %v6063 = vld [vmem:[%s39 + $0x320] sm:$0xff]
  %v6064 = vld [vmem:[%s39 + $0x328] sm:$0xff]
  %v6065 = vld [vmem:[%s39 + $0x330] sm:$0xff]
  %v6066 = vld [vmem:[%s39 + $0x338] sm:$0xff]
  %v6067 = vld [vmem:[%s39 + $0x340] sm:$0xff]
  %v6068 = vld [vmem:[%s39 + $0x348] sm:$0xff]
  %v6069 = vld [vmem:[%s39 + $0x350] sm:$0xff]
  %v6070 = vld [vmem:[%s39 + $0x358] sm:$0xff]
  %v6071 = vld [vmem:[%s39 + $0x360] sm:$0xff]
  %v6072 = vld [vmem:[%s39 + $0x368] sm:$0xff]
  %v6073 = vld [vmem:[%s39 + $0x370] sm:$0xff]
  %v6074 = vld [vmem:[%s39 + $0x378] sm:$0xff]
  %v6075 = vld [vmem:[%s39 + $0x380] sm:$0xff]
  %v6076 = vld [vmem:[%s39 + $0x388] sm:$0xff]
  %v6077 = vld [vmem:[%s39 + $0x390] sm:$0xff]
  %v6078 = vld [vmem:[%s39 + $0x398] sm:$0xff]
  %v6079 = vld [vmem:[%s39 + $0x3a0] sm:$0xff]
  %v6080 = vld [vmem:[%s39 + $0x3a8] sm:$0xff]
  %v6081 = vld [vmem:[%s39 + $0x3b0] sm:$0xff]
  %v6082 = vld [vmem:[%s39 + $0x3b8] sm:$0xff]
  %v6083 = vld [vmem:[%s39 + $0x3c0] sm:$0xff]
  %v6084 = vld [vmem:[%s39 + $0x3c8] sm:$0xff]
  %v6085 = vld [vmem:[%s39 + $0x3d0] sm:$0xff]
  %v6086 = vld [vmem:[%s39 + $0x3d8] sm:$0xff]
  %v6087 = vld [vmem:[%s39 + $0x3e0] sm:$0xff]
  %v6088 = vld [vmem:[%s39 + $0x3e8] sm:$0xff]
  %v6089 = vld [vmem:[%s39 + $0x3f0] sm:$0xff]
  %v6090 = vld [vmem:[%s39 + $0x3f8] sm:$0xff]
  %v6091 = vld [vmem:[%s39 + $0x400] sm:$0xff]
  %v6092 = vld [vmem:[%s39 + $0x408] sm:$0xff]
  %v6093 = vld [vmem:[%s39 + $0x410] sm:$0xff]
  %v6094 = vld [vmem:[%s39 + $0x418] sm:$0xff]
  %v6095 = vld [vmem:[%s39 + $0x420] sm:$0xff]
  %v6096 = vld [vmem:[%s39 + $0x428] sm:$0xff]
  %v6097 = vld [vmem:[%s39 + $0x430] sm:$0xff]
  %v6098 = vld [vmem:[%s39 + $0x438] sm:$0xff]
  %v6099 = vld [vmem:[%s39 + $0x440] sm:$0xff]
  %v6100 = vld [vmem:[%s39 + $0x448] sm:$0xff]
  %v6101 = vld [vmem:[%s39 + $0x450] sm:$0xff]
  %v6102 = vld [vmem:[%s39 + $0x458] sm:$0xff]
  %v6103 = vld [vmem:[%s39 + $0x460] sm:$0xff]
  %v6104 = vld [vmem:[%s39 + $0x468] sm:$0xff]
  %v6105 = vld [vmem:[%s39 + $0x470] sm:$0xff]
  %v6106 = vld [vmem:[%s39 + $0x478] sm:$0xff]
  %v6107 = vld [vmem:[%s39 + $0x480] sm:$0xff]
  %v6108 = vld [vmem:[%s39 + $0x488] sm:$0xff]
  %v6109 = vld [vmem:[%s39 + $0x490] sm:$0xff]
  %v6110 = vld [vmem:[%s39 + $0x498] sm:$0xff]
  %v6111 = vld [vmem:[%s39 + $0x4a0] sm:$0xff]
  %v6112 = vld [vmem:[%s39 + $0x4a8] sm:$0xff]
  %v6113 = vld [vmem:[%s39 + $0x4b0] sm:$0xff]
  %v6114 = vld [vmem:[%s39 + $0x4b8] sm:$0xff]
  %v6115 = vld [vmem:[%s39 + $0x4c0] sm:$0xff]
  %v6116 = vld [vmem:[%s39 + $0x4c8] sm:$0xff]
  %v6117 = vld [vmem:[%s39 + $0x4d0] sm:$0xff]
  %v6118 = vld [vmem:[%s39 + $0x4d8] sm:$0xff]
  %v6119 = vld [vmem:[%s39 + $0x4e0] sm:$0xff]
  %v6120 = vld [vmem:[%s39 + $0x4e8] sm:$0xff]
  %v6121 = vld [vmem:[%s39 + $0x4f0] sm:$0xff]
  %v6122 = vld [vmem:[%s39 + $0x4f8] sm:$0xff]
  %v6123 = vld [vmem:[%s39 + $0x500] sm:$0xff]
  %v6124 = vld [vmem:[%s39 + $0x508] sm:$0xff]
  %v6125 = vld [vmem:[%s39 + $0x510] sm:$0xff]
  %v6126 = vld [vmem:[%s39 + $0x518] sm:$0xff]
  %v6127 = vld [vmem:[%s39 + $0x520] sm:$0xff]
  %v6128 = vld [vmem:[%s39 + $0x528] sm:$0xff]
  %v6129 = vld [vmem:[%s39 + $0x530] sm:$0xff]
  %v6130 = vld [vmem:[%s39 + $0x538] sm:$0xff]
  %v6131 = vld [vmem:[%s39 + $0x540] sm:$0xff]
  %v6132 = vld [vmem:[%s39 + $0x548] sm:$0xff]
  %v6133 = vld [vmem:[%s39 + $0x550] sm:$0xff]
  %v6134 = vld [vmem:[%s39 + $0x558] sm:$0xff]
  %v6135 = vld [vmem:[%s39 + $0x560] sm:$0xff]
  %v6136 = vld [vmem:[%s39 + $0x568] sm:$0xff]
  %v6137 = vld [vmem:[%s39 + $0x570] sm:$0xff]
  %v6138 = vld [vmem:[%s39 + $0x578] sm:$0xff]
  %v6139 = vld [vmem:[%s39 + $0x580] sm:$0xff]
  %v6140 = vld [vmem:[%s39 + $0x588] sm:$0xff]
  %v6141 = vld [vmem:[%s39 + $0x590] sm:$0xff]
  %v6142 = vld [vmem:[%s39 + $0x598] sm:$0xff]
  %v6143 = vld [vmem:[%s39 + $0x5a0] sm:$0xff]
  %v6144 = vld [vmem:[%s39 + $0x5a8] sm:$0xff]
  %v6145 = vld [vmem:[%s39 + $0x5b0] sm:$0xff]
  %v6146 = vld [vmem:[%s39 + $0x5b8] sm:$0xff]
  %v6147 = vld [vmem:[%s39 + $0x5c0] sm:$0xff]
  %v6148 = vld [vmem:[%s39 + $0x5c8] sm:$0xff]
  %v6149 = vld [vmem:[%s39 + $0x5d0] sm:$0xff]
  %v6150 = vld [vmem:[%s39 + $0x5d8] sm:$0xff]
  %v6151 = vld [vmem:[%s39 + $0x5e0] sm:$0xff]
  %v6152 = vld [vmem:[%s39 + $0x5e8] sm:$0xff]
  %v6153 = vld [vmem:[%s39 + $0x5f0] sm:$0xff]
  %v6154 = vld [vmem:[%s39 + $0x5f8] sm:$0xff]
  %v6155 = vld [vmem:[%s39 + $0x600] sm:$0xff]
  %v6156 = vld [vmem:[%s39 + $0x608] sm:$0xff]
  %v6157 = vld [vmem:[%s39 + $0x610] sm:$0xff]
  %v6158 = vld [vmem:[%s39 + $0x618] sm:$0xff]
  %v6159 = vld [vmem:[%s39 + $0x620] sm:$0xff]
  %v6160 = vld [vmem:[%s39 + $0x628] sm:$0xff]
  %v6161 = vld [vmem:[%s39 + $0x630] sm:$0xff]
  %v6162 = vld [vmem:[%s39 + $0x638] sm:$0xff]
  %v6163 = vld [vmem:[%s39 + $0x640] sm:$0xff]
  %v6164 = vld [vmem:[%s39 + $0x648] sm:$0xff]
  %v6165 = vld [vmem:[%s39 + $0x650] sm:$0xff]
  %v6166 = vld [vmem:[%s39 + $0x658] sm:$0xff]
  %v6167 = vld [vmem:[%s39 + $0x660] sm:$0xff]
  %v6168 = vld [vmem:[%s39 + $0x668] sm:$0xff]
  %v6169 = vld [vmem:[%s39 + $0x670] sm:$0xff]
  %v6170 = vld [vmem:[%s39 + $0x678] sm:$0xff]
  %v6171 = vld [vmem:[%s39 + $0x680] sm:$0xff]
  %v6172 = vld [vmem:[%s39 + $0x688] sm:$0xff]
  %v6173 = vld [vmem:[%s39 + $0x690] sm:$0xff]
  %v6174 = vld [vmem:[%s39 + $0x698] sm:$0xff]
  %v6175 = vld [vmem:[%s39 + $0x6a0] sm:$0xff]
  %v6176 = vld [vmem:[%s39 + $0x6a8] sm:$0xff]
  %v6177 = vld [vmem:[%s39 + $0x6b0] sm:$0xff]
  %v6178 = vld [vmem:[%s39 + $0x6b8] sm:$0xff]
  %v6179 = vld [vmem:[%s39 + $0x6c0] sm:$0xff]
  %v6180 = vld [vmem:[%s39 + $0x6c8] sm:$0xff]
  %v6181 = vld [vmem:[%s39 + $0x6d0] sm:$0xff]
  %v6182 = vld [vmem:[%s39 + $0x6d8] sm:$0xff]
  %v6183 = vld [vmem:[%s39 + $0x6e0] sm:$0xff]
  %v6184 = vld [vmem:[%s39 + $0x6e8] sm:$0xff]
  %v6185 = vld [vmem:[%s39 + $0x6f0] sm:$0xff]
  %v6186 = vld [vmem:[%s39 + $0x6f8] sm:$0xff]
  %v6187 = vld [vmem:[%s39 + $0x700] sm:$0xff]
  %v6188 = vld [vmem:[%s39 + $0x708] sm:$0xff]
  %v6189 = vld [vmem:[%s39 + $0x710] sm:$0xff]
  %v6190 = vld [vmem:[%s39 + $0x718] sm:$0xff]
  %v6191 = vld [vmem:[%s39 + $0x720] sm:$0xff]
  %v6192 = vld [vmem:[%s39 + $0x728] sm:$0xff]
  %v6193 = vld [vmem:[%s39 + $0x730] sm:$0xff]
  %v6194 = vld [vmem:[%s39 + $0x738] sm:$0xff]
  %v6195 = vld [vmem:[%s39 + $0x740] sm:$0xff]
  %v6196 = vld [vmem:[%s39 + $0x748] sm:$0xff]
  %v6197 = vld [vmem:[%s39 + $0x750] sm:$0xff]
  %v6198 = vld [vmem:[%s39 + $0x758] sm:$0xff]
  %v6199 = vld [vmem:[%s39 + $0x760] sm:$0xff]
  %v6200 = vld [vmem:[%s39 + $0x768] sm:$0xff]
  %v6201 = vld [vmem:[%s39 + $0x770] sm:$0xff]
  %v6202 = vld [vmem:[%s39 + $0x778] sm:$0xff]
  %v6203 = vld [vmem:[%s39 + $0x780] sm:$0xff]
  %v6204 = vld [vmem:[%s39 + $0x788] sm:$0xff]
  %v6205 = vld [vmem:[%s39 + $0x790] sm:$0xff]
  %v6206 = vld [vmem:[%s39 + $0x798] sm:$0xff]
  %v6207 = vld [vmem:[%s39 + $0x7a0] sm:$0xff]
  %v6208 = vld [vmem:[%s39 + $0x7a8] sm:$0xff]
  %v6209 = vld [vmem:[%s39 + $0x7b0] sm:$0xff]
  %v6210 = vld [vmem:[%s39 + $0x7b8] sm:$0xff]
  %v6211 = vld [vmem:[%s39 + $0x7c0] sm:$0xff]
  %v6212 = vld [vmem:[%s39 + $0x7c8] sm:$0xff]
  %v6213 = vld [vmem:[%s39 + $0x7d0] sm:$0xff]
  %v6214 = vld [vmem:[%s39 + $0x7d8] sm:$0xff]
  %v6215 = vld [vmem:[%s39 + $0x7e0] sm:$0xff]
  %v6216 = vld [vmem:[%s39 + $0x7e8] sm:$0xff]
  %v6217 = vld [vmem:[%s39 + $0x7f0] sm:$0xff]
  %v6218 = vld [vmem:[%s39 + $0x7f8] sm:$0xff]
  %v6219 = vld [vmem:[%s39 + $0x800] sm:$0xff]
  %v6220 = vld [vmem:[%s39 + $0x808] sm:$0xff]
  %v6221 = vld [vmem:[%s39 + $0x810] sm:$0xff]
  %v6222 = vld [vmem:[%s39 + $0x818] sm:$0xff]
  %v6223 = vld [vmem:[%s39 + $0x820] sm:$0xff]
  %v6224 = vld [vmem:[%s39 + $0x828] sm:$0xff]
  %v6225 = vld [vmem:[%s39 + $0x830] sm:$0xff]
  %v6226 = vld [vmem:[%s39 + $0x838] sm:$0xff]
  %v6227 = vld [vmem:[%s39 + $0x840] sm:$0xff]
  %v6228 = vld [vmem:[%s39 + $0x848] sm:$0xff]
  %v6229 = vld [vmem:[%s39 + $0x850] sm:$0xff]
  %v6230 = vld [vmem:[%s39 + $0x858] sm:$0xff]
  %v6231 = vld [vmem:[%s39 + $0x860] sm:$0xff]
  %v6232 = vld [vmem:[%s39 + $0x868] sm:$0xff]
  %v6233 = vld [vmem:[%s39 + $0x870] sm:$0xff]
  %v6234 = vld [vmem:[%s39 + $0x878] sm:$0xff]
  %v6235 = vld [vmem:[%s39 + $0x880] sm:$0xff]
  %v6236 = vld [vmem:[%s39 + $0x888] sm:$0xff]
  %v6237 = vld [vmem:[%s39 + $0x890] sm:$0xff]
  %v6238 = vld [vmem:[%s39 + $0x898] sm:$0xff]
  %v6239 = vld [vmem:[%s39 + $0x8a0] sm:$0xff]
  %v6240 = vld [vmem:[%s39 + $0x8a8] sm:$0xff]
  %v6241 = vld [vmem:[%s39 + $0x8b0] sm:$0xff]
  %v6242 = vld [vmem:[%s39 + $0x8b8] sm:$0xff]
  %v6243 = vld [vmem:[%s39 + $0x8c0] sm:$0xff]
  %v6244 = vld [vmem:[%s39 + $0x8c8] sm:$0xff]
  %v6245 = vld [vmem:[%s39 + $0x8d0] sm:$0xff]
  %v6246 = vld [vmem:[%s39 + $0x8d8] sm:$0xff]
  %v6247 = vld [vmem:[%s39 + $0x8e0] sm:$0xff]
  %v6248 = vld [vmem:[%s39 + $0x8e8] sm:$0xff]
  %v6249 = vld [vmem:[%s39 + $0x8f0] sm:$0xff]
  %v6250 = vld [vmem:[%s39 + $0x8f8] sm:$0xff]
  %v6539 = vunpack.c.l.b16 %v5963
  %v6540 = vunpack.c.h.b16 %v5963
  %v6541 = vunpack.c.l.b16 %v5964
  %v6542 = vunpack.c.h.b16 %v5964
  %v6543 = vunpack.c.l.b16 %v5965
  %v6544 = vunpack.c.h.b16 %v5965
  %v6545 = vunpack.c.l.b16 %v5966
  %v6546 = vunpack.c.h.b16 %v5966
  %v6547 = vunpack.c.l.b16 %v5967
  %v6548 = vunpack.c.h.b16 %v5967
  %v6549 = vunpack.c.l.b16 %v5968
  %v6550 = vunpack.c.h.b16 %v5968
  %v6551 = vunpack.c.l.b16 %v5969
  %v6552 = vunpack.c.h.b16 %v5969
  %v6553 = vunpack.c.l.b16 %v5970
  %v6554 = vunpack.c.h.b16 %v5970
  %v6555 = vunpack.c.l.b16 %v5971
  %v6556 = vunpack.c.h.b16 %v5971
  %v6557 = vunpack.c.l.b16 %v5972
  %v6558 = vunpack.c.h.b16 %v5972
  %v6559 = vunpack.c.l.b16 %v5973
  %v6560 = vunpack.c.h.b16 %v5973
  %v6561 = vunpack.c.l.b16 %v5974
  %v6562 = vunpack.c.h.b16 %v5974
  %v6563 = vunpack.c.l.b16 %v5975
  %v6564 = vunpack.c.h.b16 %v5975
  %v6565 = vunpack.c.l.b16 %v5976
  %v6566 = vunpack.c.h.b16 %v5976
  %v6567 = vunpack.c.l.b16 %v5977
  %v6568 = vunpack.c.h.b16 %v5977
  %v6569 = vunpack.c.l.b16 %v5978
  %v6570 = vunpack.c.h.b16 %v5978
  %v6571 = vunpack.c.l.b16 %v5979
  %v6572 = vunpack.c.h.b16 %v5979
  %v6573 = vunpack.c.l.b16 %v5980
  %v6574 = vunpack.c.h.b16 %v5980
  %v6575 = vunpack.c.l.b16 %v5981
  %v6576 = vunpack.c.h.b16 %v5981
  %v6577 = vunpack.c.l.b16 %v5982
  %v6578 = vunpack.c.h.b16 %v5982
  %v6579 = vunpack.c.l.b16 %v5983
  %v6580 = vunpack.c.h.b16 %v5983
  %v6581 = vunpack.c.l.b16 %v5984
  %v6582 = vunpack.c.h.b16 %v5984
  %v6583 = vunpack.c.l.b16 %v5985
  %v6584 = vunpack.c.h.b16 %v5985
  %v6585 = vunpack.c.l.b16 %v5986
  %v6586 = vunpack.c.h.b16 %v5986
  %v6587 = vunpack.c.l.b16 %v5987
  %v6588 = vunpack.c.h.b16 %v5987
  %v6589 = vunpack.c.l.b16 %v5988
  %v6590 = vunpack.c.h.b16 %v5988
  %v6591 = vunpack.c.l.b16 %v5989
  %v6592 = vunpack.c.h.b16 %v5989
  %v6593 = vunpack.c.l.b16 %v5990
  %v6594 = vunpack.c.h.b16 %v5990
  %v6595 = vunpack.c.l.b16 %v5991
  %v6596 = vunpack.c.h.b16 %v5991
  %v6597 = vunpack.c.l.b16 %v5992
  %v6598 = vunpack.c.h.b16 %v5992
  %v6599 = vunpack.c.l.b16 %v5993
  %v6600 = vunpack.c.h.b16 %v5993
  %v6601 = vunpack.c.l.b16 %v5994
  %v6602 = vunpack.c.h.b16 %v5994
  %v6603 = vunpack.c.l.b16 %v5995
  %v6604 = vunpack.c.h.b16 %v5995
  %v6605 = vunpack.c.l.b16 %v5996
  %v6606 = vunpack.c.h.b16 %v5996
  %v6607 = vunpack.c.l.b16 %v5997
  %v6608 = vunpack.c.h.b16 %v5997
  %v6609 = vunpack.c.l.b16 %v5998
  %v6610 = vunpack.c.h.b16 %v5998
  %v6611 = vunpack.c.l.b16 %v5999
  %v6612 = vunpack.c.h.b16 %v5999
  %v6613 = vunpack.c.l.b16 %v6000
  %v6614 = vunpack.c.h.b16 %v6000
  %v6615 = vunpack.c.l.b16 %v6001
  %v6616 = vunpack.c.h.b16 %v6001
  %v6617 = vunpack.c.l.b16 %v6002
  %v6618 = vunpack.c.h.b16 %v6002
  %v6619 = vunpack.c.l.b16 %v6003
  %v6620 = vunpack.c.h.b16 %v6003
  %v6621 = vunpack.c.l.b16 %v6004
  %v6622 = vunpack.c.h.b16 %v6004
  %v6623 = vunpack.c.l.b16 %v6005
  %v6624 = vunpack.c.h.b16 %v6005
  %v6625 = vunpack.c.l.b16 %v6006
  %v6626 = vunpack.c.h.b16 %v6006
  %v6627 = vunpack.c.l.b16 %v6007
  %v6628 = vunpack.c.h.b16 %v6007
  %v6629 = vunpack.c.l.b16 %v6008
  %v6630 = vunpack.c.h.b16 %v6008
  %v6631 = vunpack.c.l.b16 %v6009
  %v6632 = vunpack.c.h.b16 %v6009
  %v6633 = vunpack.c.l.b16 %v6010
  %v6634 = vunpack.c.h.b16 %v6010
  %v6635 = vunpack.c.l.b16 %v6011
  %v6636 = vunpack.c.h.b16 %v6011
  %v6637 = vunpack.c.l.b16 %v6012
  %v6638 = vunpack.c.h.b16 %v6012
  %v6639 = vunpack.c.l.b16 %v6013
  %v6640 = vunpack.c.h.b16 %v6013
  %v6641 = vunpack.c.l.b16 %v6014
  %v6642 = vunpack.c.h.b16 %v6014
  %v6643 = vunpack.c.l.b16 %v6015
  %v6644 = vunpack.c.h.b16 %v6015
  %v6645 = vunpack.c.l.b16 %v6016
  %v6646 = vunpack.c.h.b16 %v6016
  %v6647 = vunpack.c.l.b16 %v6017
  %v6648 = vunpack.c.h.b16 %v6017
  %v6649 = vunpack.c.l.b16 %v6018
  %v6650 = vunpack.c.h.b16 %v6018
  %v6651 = vunpack.c.l.b16 %v6019
  %v6652 = vunpack.c.h.b16 %v6019
  %v6653 = vunpack.c.l.b16 %v6020
  %v6654 = vunpack.c.h.b16 %v6020
  %v6655 = vunpack.c.l.b16 %v6021
  %v6656 = vunpack.c.h.b16 %v6021
  %v6657 = vunpack.c.l.b16 %v6022
  %v6658 = vunpack.c.h.b16 %v6022
  %v6659 = vunpack.c.l.b16 %v6023
  %v6660 = vunpack.c.h.b16 %v6023
  %v6661 = vunpack.c.l.b16 %v6024
  %v6662 = vunpack.c.h.b16 %v6024
  %v6663 = vunpack.c.l.b16 %v6025
  %v6664 = vunpack.c.h.b16 %v6025
  %v6665 = vunpack.c.l.b16 %v6026
  %v6666 = vunpack.c.h.b16 %v6026
  %v6667 = vunpack.c.l.b16 %v6027
  %v6668 = vunpack.c.h.b16 %v6027
  %v6669 = vunpack.c.l.b16 %v6028
  %v6670 = vunpack.c.h.b16 %v6028
  %v6671 = vunpack.c.l.b16 %v6029
  %v6672 = vunpack.c.h.b16 %v6029
  %v6673 = vunpack.c.l.b16 %v6030
  %v6674 = vunpack.c.h.b16 %v6030
  %v6675 = vunpack.c.l.b16 %v6031
  %v6676 = vunpack.c.h.b16 %v6031
  %v6677 = vunpack.c.l.b16 %v6032
  %v6678 = vunpack.c.h.b16 %v6032
  %v6679 = vunpack.c.l.b16 %v6033
  %v6680 = vunpack.c.h.b16 %v6033
  %v6681 = vunpack.c.l.b16 %v6034
  %v6682 = vunpack.c.h.b16 %v6034
  %v6683 = vunpack.c.l.b16 %v6035
  %v6684 = vunpack.c.h.b16 %v6035
  %v6685 = vunpack.c.l.b16 %v6036
  %v6686 = vunpack.c.h.b16 %v6036
  %v6687 = vunpack.c.l.b16 %v6037
  %v6688 = vunpack.c.h.b16 %v6037
  %v6689 = vunpack.c.l.b16 %v6038
  %v6690 = vunpack.c.h.b16 %v6038
  %v6691 = vunpack.c.l.b16 %v6039
  %v6692 = vunpack.c.h.b16 %v6039
  %v6693 = vunpack.c.l.b16 %v6040
  %v6694 = vunpack.c.h.b16 %v6040
  %v6695 = vunpack.c.l.b16 %v6041
  %v6696 = vunpack.c.h.b16 %v6041
  %v6697 = vunpack.c.l.b16 %v6042
  %v6698 = vunpack.c.h.b16 %v6042
  %v6699 = vunpack.c.l.b16 %v6043
  %v6700 = vunpack.c.h.b16 %v6043
  %v6701 = vunpack.c.l.b16 %v6044
  %v6702 = vunpack.c.h.b16 %v6044
  %v6703 = vunpack.c.l.b16 %v6045
  %v6704 = vunpack.c.h.b16 %v6045
  %v6705 = vunpack.c.l.b16 %v6046
  %v6706 = vunpack.c.h.b16 %v6046
  %v6707 = vunpack.c.l.b16 %v6047
  %v6708 = vunpack.c.h.b16 %v6047
  %v6709 = vunpack.c.l.b16 %v6048
  %v6710 = vunpack.c.h.b16 %v6048
  %v6711 = vunpack.c.l.b16 %v6049
  %v6712 = vunpack.c.h.b16 %v6049
  %v6713 = vunpack.c.l.b16 %v6050
  %v6714 = vunpack.c.h.b16 %v6050
  %v6715 = vunpack.c.l.b16 %v6051
  %v6716 = vunpack.c.h.b16 %v6051
  %v6717 = vunpack.c.l.b16 %v6052
  %v6718 = vunpack.c.h.b16 %v6052
  %v6719 = vunpack.c.l.b16 %v6053
  %v6720 = vunpack.c.h.b16 %v6053
  %v6721 = vunpack.c.l.b16 %v6054
  %v6722 = vunpack.c.h.b16 %v6054
  %v6723 = vunpack.c.l.b16 %v6055
  %v6724 = vunpack.c.h.b16 %v6055
  %v6725 = vunpack.c.l.b16 %v6056
  %v6726 = vunpack.c.h.b16 %v6056
  %v6727 = vunpack.c.l.b16 %v6057
  %v6728 = vunpack.c.h.b16 %v6057
  %v6729 = vunpack.c.l.b16 %v6058
  %v6730 = vunpack.c.h.b16 %v6058
  %v6731 = vunpack.c.l.b16 %v6059
  %v6732 = vunpack.c.h.b16 %v6059
  %v6733 = vunpack.c.l.b16 %v6060
  %v6734 = vunpack.c.h.b16 %v6060
  %v6735 = vunpack.c.l.b16 %v6061
  %v6736 = vunpack.c.h.b16 %v6061
  %v6737 = vunpack.c.l.b16 %v6062
  %v6738 = vunpack.c.h.b16 %v6062
  %v6739 = vunpack.c.l.b16 %v6063
  %v6740 = vunpack.c.h.b16 %v6063
  %v6741 = vunpack.c.l.b16 %v6064
  %v6742 = vunpack.c.h.b16 %v6064
  %v6743 = vunpack.c.l.b16 %v6065
  %v6744 = vunpack.c.h.b16 %v6065
  %v6745 = vunpack.c.l.b16 %v6066
  %v6746 = vunpack.c.h.b16 %v6066
  %v6747 = vunpack.c.l.b16 %v6067
  %v6748 = vunpack.c.h.b16 %v6067
  %v6749 = vunpack.c.l.b16 %v6068
  %v6750 = vunpack.c.h.b16 %v6068
  %v6751 = vunpack.c.l.b16 %v6069
  %v6752 = vunpack.c.h.b16 %v6069
  %v6753 = vunpack.c.l.b16 %v6070
  %v6754 = vunpack.c.h.b16 %v6070
  %v6755 = vunpack.c.l.b16 %v6071
  %v6756 = vunpack.c.h.b16 %v6071
  %v6757 = vunpack.c.l.b16 %v6072
  %v6758 = vunpack.c.h.b16 %v6072
  %v6759 = vunpack.c.l.b16 %v6073
  %v6760 = vunpack.c.h.b16 %v6073
  %v6761 = vunpack.c.l.b16 %v6074
  %v6762 = vunpack.c.h.b16 %v6074
  %v6763 = vunpack.c.l.b16 %v6075
  %v6764 = vunpack.c.h.b16 %v6075
  %v6765 = vunpack.c.l.b16 %v6076
  %v6766 = vunpack.c.h.b16 %v6076
  %v6767 = vunpack.c.l.b16 %v6077
  %v6768 = vunpack.c.h.b16 %v6077
  %v6769 = vunpack.c.l.b16 %v6078
  %v6770 = vunpack.c.h.b16 %v6078
  %v6771 = vunpack.c.l.b16 %v6079
  %v6772 = vunpack.c.h.b16 %v6079
  %v6773 = vunpack.c.l.b16 %v6080
  %v6774 = vunpack.c.h.b16 %v6080
  %v6775 = vunpack.c.l.b16 %v6081
  %v6776 = vunpack.c.h.b16 %v6081
  %v6777 = vunpack.c.l.b16 %v6082
  %v6778 = vunpack.c.h.b16 %v6082
  %v6779 = vunpack.c.l.b16 %v6083
  %v6780 = vunpack.c.h.b16 %v6083
  %v6781 = vunpack.c.l.b16 %v6084
  %v6782 = vunpack.c.h.b16 %v6084
  %v6783 = vunpack.c.l.b16 %v6085
  %v6784 = vunpack.c.h.b16 %v6085
  %v6785 = vunpack.c.l.b16 %v6086
  %v6786 = vunpack.c.h.b16 %v6086
  %v6787 = vunpack.c.l.b16 %v6087
  %v6788 = vunpack.c.h.b16 %v6087
  %v6789 = vunpack.c.l.b16 %v6088
  %v6790 = vunpack.c.h.b16 %v6088
  %v6791 = vunpack.c.l.b16 %v6089
  %v6792 = vunpack.c.h.b16 %v6089
  %v6793 = vunpack.c.l.b16 %v6090
  %v6794 = vunpack.c.h.b16 %v6090
  %v6795 = vunpack.c.l.b16 %v6091
  %v6796 = vunpack.c.h.b16 %v6091
  %v6797 = vunpack.c.l.b16 %v6092
  %v6798 = vunpack.c.h.b16 %v6092
  %v6799 = vunpack.c.l.b16 %v6093
  %v6800 = vunpack.c.h.b16 %v6093
  %v6801 = vunpack.c.l.b16 %v6094
  %v6802 = vunpack.c.h.b16 %v6094
  %v6803 = vunpack.c.l.b16 %v6095
  %v6804 = vunpack.c.h.b16 %v6095
  %v6805 = vunpack.c.l.b16 %v6096
  %v6806 = vunpack.c.h.b16 %v6096
  %v6807 = vunpack.c.l.b16 %v6097
  %v6808 = vunpack.c.h.b16 %v6097
  %v6809 = vunpack.c.l.b16 %v6098
  %v6810 = vunpack.c.h.b16 %v6098
  %v6811 = vunpack.c.l.b16 %v6099
  %v6812 = vunpack.c.h.b16 %v6099
  %v6813 = vunpack.c.l.b16 %v6100
  %v6814 = vunpack.c.h.b16 %v6100
  %v6815 = vunpack.c.l.b16 %v6101
  %v6816 = vunpack.c.h.b16 %v6101
  %v6817 = vunpack.c.l.b16 %v6102
  %v6818 = vunpack.c.h.b16 %v6102
  %v6819 = vunpack.c.l.b16 %v6103
  %v6820 = vunpack.c.h.b16 %v6103
  %v6821 = vunpack.c.l.b16 %v6104
  %v6822 = vunpack.c.h.b16 %v6104
  %v6823 = vunpack.c.l.b16 %v6105
  %v6824 = vunpack.c.h.b16 %v6105
  %v6825 = vunpack.c.l.b16 %v6106
  %v6826 = vunpack.c.h.b16 %v6106
  %v6827 = vunpack.c.l.b16 %v6107
  %v6828 = vunpack.c.h.b16 %v6107
  %v6829 = vunpack.c.l.b16 %v6108
  %v6830 = vunpack.c.h.b16 %v6108
  %v6831 = vunpack.c.l.b16 %v6109
  %v6832 = vunpack.c.h.b16 %v6109
  %v6833 = vunpack.c.l.b16 %v6110
  %v6834 = vunpack.c.h.b16 %v6110
  %v6835 = vunpack.c.l.b16 %v6111
  %v6836 = vunpack.c.h.b16 %v6111
  %v6837 = vunpack.c.l.b16 %v6112
  %v6838 = vunpack.c.h.b16 %v6112
  %v6839 = vunpack.c.l.b16 %v6113
  %v6840 = vunpack.c.h.b16 %v6113
  %v6841 = vunpack.c.l.b16 %v6114
  %v6842 = vunpack.c.h.b16 %v6114
  %v6843 = vunpack.c.l.b16 %v6115
  %v6844 = vunpack.c.h.b16 %v6115
  %v6845 = vunpack.c.l.b16 %v6116
  %v6846 = vunpack.c.h.b16 %v6116
  %v6847 = vunpack.c.l.b16 %v6117
  %v6848 = vunpack.c.h.b16 %v6117
  %v6849 = vunpack.c.l.b16 %v6118
  %v6850 = vunpack.c.h.b16 %v6118
  %v6851 = vunpack.c.l.b16 %v6119
  %v6852 = vunpack.c.h.b16 %v6119
  %v6853 = vunpack.c.l.b16 %v6120
  %v6854 = vunpack.c.h.b16 %v6120
  %v6855 = vunpack.c.l.b16 %v6121
  %v6856 = vunpack.c.h.b16 %v6121
  %v6857 = vunpack.c.l.b16 %v6122
  %v6858 = vunpack.c.h.b16 %v6122
  %v6859 = vunpack.c.l.b16 %v6123
  %v6860 = vunpack.c.h.b16 %v6123
  %v6861 = vunpack.c.l.b16 %v6124
  %v6862 = vunpack.c.h.b16 %v6124
  %v6863 = vunpack.c.l.b16 %v6125
  %v6864 = vunpack.c.h.b16 %v6125
  %v6865 = vunpack.c.l.b16 %v6126
  %v6866 = vunpack.c.h.b16 %v6126
  %v6867 = vunpack.c.l.b16 %v6127
  %v6868 = vunpack.c.h.b16 %v6127
  %v6869 = vunpack.c.l.b16 %v6128
  %v6870 = vunpack.c.h.b16 %v6128
  %v6871 = vunpack.c.l.b16 %v6129
  %v6872 = vunpack.c.h.b16 %v6129
  %v6873 = vunpack.c.l.b16 %v6130
  %v6874 = vunpack.c.h.b16 %v6130
  %v6875 = vunpack.c.l.b16 %v6131
  %v6876 = vunpack.c.h.b16 %v6131
  %v6877 = vunpack.c.l.b16 %v6132
  %v6878 = vunpack.c.h.b16 %v6132
  %v6879 = vunpack.c.l.b16 %v6133
  %v6880 = vunpack.c.h.b16 %v6133
  %v6881 = vunpack.c.l.b16 %v6134
  %v6882 = vunpack.c.h.b16 %v6134
  %v6883 = vunpack.c.l.b16 %v6135
  %v6884 = vunpack.c.h.b16 %v6135
  %v6885 = vunpack.c.l.b16 %v6136
  %v6886 = vunpack.c.h.b16 %v6136
  %v6887 = vunpack.c.l.b16 %v6137
  %v6888 = vunpack.c.h.b16 %v6137
  %v6889 = vunpack.c.l.b16 %v6138
  %v6890 = vunpack.c.h.b16 %v6138
  %v6891 = vunpack.c.l.b16 %v6139
  %v6892 = vunpack.c.h.b16 %v6139
  %v6893 = vunpack.c.l.b16 %v6140
  %v6894 = vunpack.c.h.b16 %v6140
  %v6895 = vunpack.c.l.b16 %v6141
  %v6896 = vunpack.c.h.b16 %v6141
  %v6897 = vunpack.c.l.b16 %v6142
  %v6898 = vunpack.c.h.b16 %v6142
  %v6899 = vunpack.c.l.b16 %v6143
  %v6900 = vunpack.c.h.b16 %v6143
  %v6901 = vunpack.c.l.b16 %v6144
  %v6902 = vunpack.c.h.b16 %v6144
  %v6903 = vunpack.c.l.b16 %v6145
  %v6904 = vunpack.c.h.b16 %v6145
  %v6905 = vunpack.c.l.b16 %v6146
  %v6906 = vunpack.c.h.b16 %v6146
  %v6907 = vunpack.c.l.b16 %v6147
  %v6908 = vunpack.c.h.b16 %v6147
  %v6909 = vunpack.c.l.b16 %v6148
  %v6910 = vunpack.c.h.b16 %v6148
  %v6911 = vunpack.c.l.b16 %v6149
  %v6912 = vunpack.c.h.b16 %v6149
  %v6913 = vunpack.c.l.b16 %v6150
  %v6914 = vunpack.c.h.b16 %v6150
  %v6915 = vunpack.c.l.b16 %v6151
  %v6916 = vunpack.c.h.b16 %v6151
  %v6917 = vunpack.c.l.b16 %v6152
  %v6918 = vunpack.c.h.b16 %v6152
  %v6919 = vunpack.c.l.b16 %v6153
  %v6920 = vunpack.c.h.b16 %v6153
  %v6921 = vunpack.c.l.b16 %v6154
  %v6922 = vunpack.c.h.b16 %v6154
  %v6923 = vunpack.c.l.b16 %v6155
  %v6924 = vunpack.c.h.b16 %v6155
  %v6925 = vunpack.c.l.b16 %v6156
  %v6926 = vunpack.c.h.b16 %v6156
  %v6927 = vunpack.c.l.b16 %v6157
  %v6928 = vunpack.c.h.b16 %v6157
  %v6929 = vunpack.c.l.b16 %v6158
  %v6930 = vunpack.c.h.b16 %v6158
  %v6931 = vunpack.c.l.b16 %v6159
  %v6932 = vunpack.c.h.b16 %v6159
  %v6933 = vunpack.c.l.b16 %v6160
  %v6934 = vunpack.c.h.b16 %v6160
  %v6935 = vunpack.c.l.b16 %v6161
  %v6936 = vunpack.c.h.b16 %v6161
  %v6937 = vunpack.c.l.b16 %v6162
  %v6938 = vunpack.c.h.b16 %v6162
  %v6939 = vunpack.c.l.b16 %v6163
  %v6940 = vunpack.c.h.b16 %v6163
  %v6941 = vunpack.c.l.b16 %v6164
  %v6942 = vunpack.c.h.b16 %v6164
  %v6943 = vunpack.c.l.b16 %v6165
  %v6944 = vunpack.c.h.b16 %v6165
  %v6945 = vunpack.c.l.b16 %v6166
  %v6946 = vunpack.c.h.b16 %v6166
  %v6947 = vunpack.c.l.b16 %v6167
  %v6948 = vunpack.c.h.b16 %v6167
  %v6949 = vunpack.c.l.b16 %v6168
  %v6950 = vunpack.c.h.b16 %v6168
  %v6951 = vunpack.c.l.b16 %v6169
  %v6952 = vunpack.c.h.b16 %v6169
  %v6953 = vunpack.c.l.b16 %v6170
  %v6954 = vunpack.c.h.b16 %v6170
  %v6955 = vunpack.c.l.b16 %v6171
  %v6956 = vunpack.c.h.b16 %v6171
  %v6957 = vunpack.c.l.b16 %v6172
  %v6958 = vunpack.c.h.b16 %v6172
  %v6959 = vunpack.c.l.b16 %v6173
  %v6960 = vunpack.c.h.b16 %v6173
  %v6961 = vunpack.c.l.b16 %v6174
  %v6962 = vunpack.c.h.b16 %v6174
  %v6963 = vunpack.c.l.b16 %v6175
  %v6964 = vunpack.c.h.b16 %v6175
  %v6965 = vunpack.c.l.b16 %v6176
  %v6966 = vunpack.c.h.b16 %v6176
  %v6967 = vunpack.c.l.b16 %v6177
  %v6968 = vunpack.c.h.b16 %v6177
  %v6969 = vunpack.c.l.b16 %v6178
  %v6970 = vunpack.c.h.b16 %v6178
  %v6971 = vunpack.c.l.b16 %v6179
  %v6972 = vunpack.c.h.b16 %v6179
  %v6973 = vunpack.c.l.b16 %v6180
  %v6974 = vunpack.c.h.b16 %v6180
  %v6975 = vunpack.c.l.b16 %v6181
  %v6976 = vunpack.c.h.b16 %v6181
  %v6977 = vunpack.c.l.b16 %v6182
  %v6978 = vunpack.c.h.b16 %v6182
  %v6979 = vunpack.c.l.b16 %v6183
  %v6980 = vunpack.c.h.b16 %v6183
  %v6981 = vunpack.c.l.b16 %v6184
  %v6982 = vunpack.c.h.b16 %v6184
  %v6983 = vunpack.c.l.b16 %v6185
  %v6984 = vunpack.c.h.b16 %v6185
  %v6985 = vunpack.c.l.b16 %v6186
  %v6986 = vunpack.c.h.b16 %v6186
  %v6987 = vunpack.c.l.b16 %v6187
  %v6988 = vunpack.c.h.b16 %v6187
  %v6989 = vunpack.c.l.b16 %v6188
  %v6990 = vunpack.c.h.b16 %v6188
  %v6991 = vunpack.c.l.b16 %v6189
  %v6992 = vunpack.c.h.b16 %v6189
  %v6993 = vunpack.c.l.b16 %v6190
  %v6994 = vunpack.c.h.b16 %v6190
  %v6995 = vunpack.c.l.b16 %v6191
  %v6996 = vunpack.c.h.b16 %v6191
  %v6997 = vunpack.c.l.b16 %v6192
  %v6998 = vunpack.c.h.b16 %v6192
  %v6999 = vunpack.c.l.b16 %v6193
  %v7000 = vunpack.c.h.b16 %v6193
  %v7001 = vunpack.c.l.b16 %v6194
  %v7002 = vunpack.c.h.b16 %v6194
  %v7003 = vunpack.c.l.b16 %v6195
  %v7004 = vunpack.c.h.b16 %v6195
  %v7005 = vunpack.c.l.b16 %v6196
  %v7006 = vunpack.c.h.b16 %v6196
  %v7007 = vunpack.c.l.b16 %v6197
  %v7008 = vunpack.c.h.b16 %v6197
  %v7009 = vunpack.c.l.b16 %v6198
  %v7010 = vunpack.c.h.b16 %v6198
  %v7011 = vunpack.c.l.b16 %v6199
  %v7012 = vunpack.c.h.b16 %v6199
  %v7013 = vunpack.c.l.b16 %v6200
  %v7014 = vunpack.c.h.b16 %v6200
  %v7015 = vunpack.c.l.b16 %v6201
  %v7016 = vunpack.c.h.b16 %v6201
  %v7017 = vunpack.c.l.b16 %v6202
  %v7018 = vunpack.c.h.b16 %v6202
  %v7019 = vunpack.c.l.b16 %v6203
  %v7020 = vunpack.c.h.b16 %v6203
  %v7021 = vunpack.c.l.b16 %v6204
  %v7022 = vunpack.c.h.b16 %v6204
  %v7023 = vunpack.c.l.b16 %v6205
  %v7024 = vunpack.c.h.b16 %v6205
  %v7025 = vunpack.c.l.b16 %v6206
  %v7026 = vunpack.c.h.b16 %v6206
  %v7027 = vunpack.c.l.b16 %v6207
  %v7028 = vunpack.c.h.b16 %v6207
  %v7029 = vunpack.c.l.b16 %v6208
  %v7030 = vunpack.c.h.b16 %v6208
  %v7031 = vunpack.c.l.b16 %v6209
  %v7032 = vunpack.c.h.b16 %v6209
  %v7033 = vunpack.c.l.b16 %v6210
  %v7034 = vunpack.c.h.b16 %v6210
  %v7035 = vunpack.c.l.b16 %v6211
  %v7036 = vunpack.c.h.b16 %v6211
  %v7037 = vunpack.c.l.b16 %v6212
  %v7038 = vunpack.c.h.b16 %v6212
  %v7039 = vunpack.c.l.b16 %v6213
  %v7040 = vunpack.c.h.b16 %v6213
  %v7041 = vunpack.c.l.b16 %v6214
  %v7042 = vunpack.c.h.b16 %v6214
  %v7043 = vunpack.c.l.b16 %v6215
  %v7044 = vunpack.c.h.b16 %v6215
  %v7045 = vunpack.c.l.b16 %v6216
  %v7046 = vunpack.c.h.b16 %v6216
  %v7047 = vunpack.c.l.b16 %v6217
  %v7048 = vunpack.c.h.b16 %v6217
  %v7049 = vunpack.c.l.b16 %v6218
  %v7050 = vunpack.c.h.b16 %v6218
  %v7051 = vunpack.c.l.b16 %v6219
  %v7052 = vunpack.c.h.b16 %v6219
  %v7053 = vunpack.c.l.b16 %v6220
  %v7054 = vunpack.c.h.b16 %v6220
  %v7055 = vunpack.c.l.b16 %v6221
  %v7056 = vunpack.c.h.b16 %v6221
  %v7057 = vunpack.c.l.b16 %v6222
  %v7058 = vunpack.c.h.b16 %v6222
  %v7059 = vunpack.c.l.b16 %v6223
  %v7060 = vunpack.c.h.b16 %v6223
  %v7061 = vunpack.c.l.b16 %v6224
  %v7062 = vunpack.c.h.b16 %v6224
  %v7063 = vunpack.c.l.b16 %v6225
  %v7064 = vunpack.c.h.b16 %v6225
  %v7065 = vunpack.c.l.b16 %v6226
  %v7066 = vunpack.c.h.b16 %v6226
  %v7067 = vunpack.c.l.b16 %v6227
  %v7068 = vunpack.c.h.b16 %v6227
  %v7069 = vunpack.c.l.b16 %v6228
  %v7070 = vunpack.c.h.b16 %v6228
  %v7071 = vunpack.c.l.b16 %v6229
  %v7072 = vunpack.c.h.b16 %v6229
  %v7073 = vunpack.c.l.b16 %v6230
  %v7074 = vunpack.c.h.b16 %v6230
  %v7075 = vunpack.c.l.b16 %v6231
  %v7076 = vunpack.c.h.b16 %v6231
  %v7077 = vunpack.c.l.b16 %v6232
  %v7078 = vunpack.c.h.b16 %v6232
  %v7079 = vunpack.c.l.b16 %v6233
  %v7080 = vunpack.c.h.b16 %v6233
  %v7081 = vunpack.c.l.b16 %v6234
  %v7082 = vunpack.c.h.b16 %v6234
  %v7083 = vunpack.c.l.b16 %v6235
  %v7084 = vunpack.c.h.b16 %v6235
  %v7085 = vunpack.c.l.b16 %v6236
  %v7086 = vunpack.c.h.b16 %v6236
  %v7087 = vunpack.c.l.b16 %v6237
  %v7088 = vunpack.c.h.b16 %v6237
  %v7089 = vunpack.c.l.b16 %v6238
  %v7090 = vunpack.c.h.b16 %v6238
  %v7091 = vunpack.c.l.b16 %v6239
  %v7092 = vunpack.c.h.b16 %v6239
  %v7093 = vunpack.c.l.b16 %v6240
  %v7094 = vunpack.c.h.b16 %v6240
  %v7095 = vunpack.c.l.b16 %v6241
  %v7096 = vunpack.c.h.b16 %v6241
  %v7097 = vunpack.c.l.b16 %v6242
  %v7098 = vunpack.c.h.b16 %v6242
  %v7099 = vunpack.c.l.b16 %v6243
  %v7100 = vunpack.c.h.b16 %v6243
  %v7101 = vunpack.c.l.b16 %v6244
  %v7102 = vunpack.c.h.b16 %v6244
  %v7103 = vunpack.c.l.b16 %v6245
  %v7104 = vunpack.c.h.b16 %v6245
  %v7105 = vunpack.c.l.b16 %v6246
  %v7106 = vunpack.c.h.b16 %v6246
  %v7107 = vunpack.c.l.b16 %v6247
  %v7108 = vunpack.c.h.b16 %v6247
  %v7109 = vunpack.c.l.b16 %v6248
  %v7110 = vunpack.c.h.b16 %v6248
  %v7111 = vunpack.c.l.b16 %v6249
  %v7112 = vunpack.c.h.b16 %v6249
  %v7113 = vunpack.c.l.b16 %v6250
  %v7114 = vunpack.c.h.b16 %v6250
  %v7115 = vpack.c.b16 %v6545, %v6539
  %v7116 = vpack.c.b16 %v6546, %v6540
  %v7117 = vpack.c.b16 %v6547, %v6541
  %v7118 = vpack.c.b16 %v6548, %v6542
  %v7119 = vpack.c.b16 %v6549, %v6543
  %v7120 = vpack.c.b16 %v6550, %v6544
  %v7121 = vpack.c.b16 %v6557, %v6551
  %v7122 = vpack.c.b16 %v6558, %v6552
  %v7123 = vpack.c.b16 %v6559, %v6553
  %v7124 = vpack.c.b16 %v6560, %v6554
  %v7125 = vpack.c.b16 %v6561, %v6555
  %v7126 = vpack.c.b16 %v6562, %v6556
  %v7127 = vpack.c.b16 %v6569, %v6563
  %v7128 = vpack.c.b16 %v6570, %v6564
  %v7129 = vpack.c.b16 %v6571, %v6565
  %v7130 = vpack.c.b16 %v6572, %v6566
  %v7131 = vpack.c.b16 %v6573, %v6567
  %v7132 = vpack.c.b16 %v6574, %v6568
  %v7133 = vpack.c.b16 %v6581, %v6575
  %v7134 = vpack.c.b16 %v6582, %v6576
  %v7135 = vpack.c.b16 %v6583, %v6577
  %v7136 = vpack.c.b16 %v6584, %v6578
  %v7137 = vpack.c.b16 %v6585, %v6579
  %v7138 = vpack.c.b16 %v6586, %v6580
  %v7139 = vpack.c.b16 %v6593, %v6587
  %v7140 = vpack.c.b16 %v6594, %v6588
  %v7141 = vpack.c.b16 %v6595, %v6589
  %v7142 = vpack.c.b16 %v6596, %v6590
  %v7143 = vpack.c.b16 %v6597, %v6591
  %v7144 = vpack.c.b16 %v6598, %v6592
  %v7145 = vpack.c.b16 %v6605, %v6599
  %v7146 = vpack.c.b16 %v6606, %v6600
  %v7147 = vpack.c.b16 %v6607, %v6601
  %v7148 = vpack.c.b16 %v6608, %v6602
  %v7149 = vpack.c.b16 %v6609, %v6603
  %v7150 = vpack.c.b16 %v6610, %v6604
  %v7151 = vpack.c.b16 %v6617, %v6611
  %v7152 = vpack.c.b16 %v6618, %v6612
  %v7153 = vpack.c.b16 %v6619, %v6613
  %v7154 = vpack.c.b16 %v6620, %v6614
  %v7155 = vpack.c.b16 %v6621, %v6615
  %v7156 = vpack.c.b16 %v6622, %v6616
  %v7157 = vpack.c.b16 %v6629, %v6623
  %v7158 = vpack.c.b16 %v6630, %v6624
  %v7159 = vpack.c.b16 %v6631, %v6625
  %v7160 = vpack.c.b16 %v6632, %v6626
  %v7161 = vpack.c.b16 %v6633, %v6627
  %v7162 = vpack.c.b16 %v6634, %v6628
  %v7163 = vpack.c.b16 %v6641, %v6635
  %v7164 = vpack.c.b16 %v6642, %v6636
  %v7165 = vpack.c.b16 %v6643, %v6637
  %v7166 = vpack.c.b16 %v6644, %v6638
  %v7167 = vpack.c.b16 %v6645, %v6639
  %v7168 = vpack.c.b16 %v6646, %v6640
  %v7169 = vpack.c.b16 %v6653, %v6647
  %v7170 = vpack.c.b16 %v6654, %v6648
  %v7171 = vpack.c.b16 %v6655, %v6649
  %v7172 = vpack.c.b16 %v6656, %v6650
  %v7173 = vpack.c.b16 %v6657, %v6651
  %v7174 = vpack.c.b16 %v6658, %v6652
  %v7175 = vpack.c.b16 %v6665, %v6659
  %v7176 = vpack.c.b16 %v6666, %v6660
  %v7177 = vpack.c.b16 %v6667, %v6661
  %v7178 = vpack.c.b16 %v6668, %v6662
  %v7179 = vpack.c.b16 %v6669, %v6663
  %v7180 = vpack.c.b16 %v6670, %v6664
  %v7181 = vpack.c.b16 %v6677, %v6671
  %v7182 = vpack.c.b16 %v6678, %v6672
  %v7183 = vpack.c.b16 %v6679, %v6673
  %v7184 = vpack.c.b16 %v6680, %v6674
  %v7185 = vpack.c.b16 %v6681, %v6675
  %v7186 = vpack.c.b16 %v6682, %v6676
  %v7187 = vpack.c.b16 %v6689, %v6683
  %v7188 = vpack.c.b16 %v6690, %v6684
  %v7189 = vpack.c.b16 %v6691, %v6685
  %v7190 = vpack.c.b16 %v6692, %v6686
  %v7191 = vpack.c.b16 %v6693, %v6687
  %v7192 = vpack.c.b16 %v6694, %v6688
  %v7193 = vpack.c.b16 %v6701, %v6695
  %v7194 = vpack.c.b16 %v6702, %v6696
  %v7195 = vpack.c.b16 %v6703, %v6697
  %v7196 = vpack.c.b16 %v6704, %v6698
  %v7197 = vpack.c.b16 %v6705, %v6699
  %v7198 = vpack.c.b16 %v6706, %v6700
  %v7199 = vpack.c.b16 %v6713, %v6707
  %v7200 = vpack.c.b16 %v6714, %v6708
  %v7201 = vpack.c.b16 %v6715, %v6709
  %v7202 = vpack.c.b16 %v6716, %v6710
  %v7203 = vpack.c.b16 %v6717, %v6711
  %v7204 = vpack.c.b16 %v6718, %v6712
  %v7205 = vpack.c.b16 %v6725, %v6719
  %v7206 = vpack.c.b16 %v6726, %v6720
  %v7207 = vpack.c.b16 %v6727, %v6721
  %v7208 = vpack.c.b16 %v6728, %v6722
  %v7209 = vpack.c.b16 %v6729, %v6723
  %v7210 = vpack.c.b16 %v6730, %v6724
  %v7211 = vpack.c.b16 %v6737, %v6731
  %v7212 = vpack.c.b16 %v6738, %v6732
  %v7213 = vpack.c.b16 %v6739, %v6733
  %v7214 = vpack.c.b16 %v6740, %v6734
  %v7215 = vpack.c.b16 %v6741, %v6735
  %v7216 = vpack.c.b16 %v6742, %v6736
  %v7217 = vpack.c.b16 %v6749, %v6743
  %v7218 = vpack.c.b16 %v6750, %v6744
  %v7219 = vpack.c.b16 %v6751, %v6745
  %v7220 = vpack.c.b16 %v6752, %v6746
  %v7221 = vpack.c.b16 %v6753, %v6747
  %v7222 = vpack.c.b16 %v6754, %v6748
  %v7223 = vpack.c.b16 %v6761, %v6755
  %v7224 = vpack.c.b16 %v6762, %v6756
  %v7225 = vpack.c.b16 %v6763, %v6757
  %v7226 = vpack.c.b16 %v6764, %v6758
  %v7227 = vpack.c.b16 %v6765, %v6759
  %v7228 = vpack.c.b16 %v6766, %v6760
  %v7229 = vpack.c.b16 %v6773, %v6767
  %v7230 = vpack.c.b16 %v6774, %v6768
  %v7231 = vpack.c.b16 %v6775, %v6769
  %v7232 = vpack.c.b16 %v6776, %v6770
  %v7233 = vpack.c.b16 %v6777, %v6771
  %v7234 = vpack.c.b16 %v6778, %v6772
  %v7235 = vpack.c.b16 %v6785, %v6779
  %v7236 = vpack.c.b16 %v6786, %v6780
  %v7237 = vpack.c.b16 %v6787, %v6781
  %v7238 = vpack.c.b16 %v6788, %v6782
  %v7239 = vpack.c.b16 %v6789, %v6783
  %v7240 = vpack.c.b16 %v6790, %v6784
  %v7241 = vpack.c.b16 %v6797, %v6791
  %v7242 = vpack.c.b16 %v6798, %v6792
  %v7243 = vpack.c.b16 %v6799, %v6793
  %v7244 = vpack.c.b16 %v6800, %v6794
  %v7245 = vpack.c.b16 %v6801, %v6795
  %v7246 = vpack.c.b16 %v6802, %v6796
  %v7247 = vpack.c.b16 %v6809, %v6803
  %v7248 = vpack.c.b16 %v6810, %v6804
  %v7249 = vpack.c.b16 %v6811, %v6805
  %v7250 = vpack.c.b16 %v6812, %v6806
  %v7251 = vpack.c.b16 %v6813, %v6807
  %v7252 = vpack.c.b16 %v6814, %v6808
  %v7253 = vpack.c.b16 %v6821, %v6815
  %v7254 = vpack.c.b16 %v6822, %v6816
  %v7255 = vpack.c.b16 %v6823, %v6817
  %v7256 = vpack.c.b16 %v6824, %v6818
  %v7257 = vpack.c.b16 %v6825, %v6819
  %v7258 = vpack.c.b16 %v6826, %v6820
  %v7259 = vpack.c.b16 %v6833, %v6827
  %v7260 = vpack.c.b16 %v6834, %v6828
  %v7261 = vpack.c.b16 %v6835, %v6829
  %v7262 = vpack.c.b16 %v6836, %v6830
  %v7263 = vpack.c.b16 %v6837, %v6831
  %v7264 = vpack.c.b16 %v6838, %v6832
  %v7265 = vpack.c.b16 %v6845, %v6839
  %v7266 = vpack.c.b16 %v6846, %v6840
  %v7267 = vpack.c.b16 %v6847, %v6841
  %v7268 = vpack.c.b16 %v6848, %v6842
  %v7269 = vpack.c.b16 %v6849, %v6843
  %v7270 = vpack.c.b16 %v6850, %v6844
  %v7271 = vpack.c.b16 %v6857, %v6851
  %v7272 = vpack.c.b16 %v6858, %v6852
  %v7273 = vpack.c.b16 %v6859, %v6853
  %v7274 = vpack.c.b16 %v6860, %v6854
  %v7275 = vpack.c.b16 %v6861, %v6855
  %v7276 = vpack.c.b16 %v6862, %v6856
  %v7277 = vpack.c.b16 %v6869, %v6863
  %v7278 = vpack.c.b16 %v6870, %v6864
  %v7279 = vpack.c.b16 %v6871, %v6865
  %v7280 = vpack.c.b16 %v6872, %v6866
  %v7281 = vpack.c.b16 %v6873, %v6867
  %v7282 = vpack.c.b16 %v6874, %v6868
  %v7283 = vpack.c.b16 %v6881, %v6875
  %v7284 = vpack.c.b16 %v6882, %v6876
  %v7285 = vpack.c.b16 %v6883, %v6877
  %v7286 = vpack.c.b16 %v6884, %v6878
  %v7287 = vpack.c.b16 %v6885, %v6879
  %v7288 = vpack.c.b16 %v6886, %v6880
  %v7289 = vpack.c.b16 %v6893, %v6887
  %v7290 = vpack.c.b16 %v6894, %v6888
  %v7291 = vpack.c.b16 %v6895, %v6889
  %v7292 = vpack.c.b16 %v6896, %v6890
  %v7293 = vpack.c.b16 %v6897, %v6891
  %v7294 = vpack.c.b16 %v6898, %v6892
  %v7295 = vpack.c.b16 %v6905, %v6899
  %v7296 = vpack.c.b16 %v6906, %v6900
  %v7297 = vpack.c.b16 %v6907, %v6901
  %v7298 = vpack.c.b16 %v6908, %v6902
  %v7299 = vpack.c.b16 %v6909, %v6903
  %v7300 = vpack.c.b16 %v6910, %v6904
  %v7301 = vpack.c.b16 %v6917, %v6911
  %v7302 = vpack.c.b16 %v6918, %v6912
  %v7303 = vpack.c.b16 %v6919, %v6913
  %v7304 = vpack.c.b16 %v6920, %v6914
  %v7305 = vpack.c.b16 %v6921, %v6915
  %v7306 = vpack.c.b16 %v6922, %v6916
  %v7307 = vpack.c.b16 %v6929, %v6923
  %v7308 = vpack.c.b16 %v6930, %v6924
  %v7309 = vpack.c.b16 %v6931, %v6925
  %v7310 = vpack.c.b16 %v6932, %v6926
  %v7311 = vpack.c.b16 %v6933, %v6927
  %v7312 = vpack.c.b16 %v6934, %v6928
  %v7313 = vpack.c.b16 %v6941, %v6935
  %v7314 = vpack.c.b16 %v6942, %v6936
  %v7315 = vpack.c.b16 %v6943, %v6937
  %v7316 = vpack.c.b16 %v6944, %v6938
  %v7317 = vpack.c.b16 %v6945, %v6939
  %v7318 = vpack.c.b16 %v6946, %v6940
  %v7319 = vpack.c.b16 %v6953, %v6947
  %v7320 = vpack.c.b16 %v6954, %v6948
  %v7321 = vpack.c.b16 %v6955, %v6949
  %v7322 = vpack.c.b16 %v6956, %v6950
  %v7323 = vpack.c.b16 %v6957, %v6951
  %v7324 = vpack.c.b16 %v6958, %v6952
  %v7325 = vpack.c.b16 %v6965, %v6959
  %v7326 = vpack.c.b16 %v6966, %v6960
  %v7327 = vpack.c.b16 %v6967, %v6961
  %v7328 = vpack.c.b16 %v6968, %v6962
  %v7329 = vpack.c.b16 %v6969, %v6963
  %v7330 = vpack.c.b16 %v6970, %v6964
  %v7331 = vpack.c.b16 %v6977, %v6971
  %v7332 = vpack.c.b16 %v6978, %v6972
  %v7333 = vpack.c.b16 %v6979, %v6973
  %v7334 = vpack.c.b16 %v6980, %v6974
  %v7335 = vpack.c.b16 %v6981, %v6975
  %v7336 = vpack.c.b16 %v6982, %v6976
  %v7337 = vpack.c.b16 %v6989, %v6983
  %v7338 = vpack.c.b16 %v6990, %v6984
  %v7339 = vpack.c.b16 %v6991, %v6985
  %v7340 = vpack.c.b16 %v6992, %v6986
  %v7341 = vpack.c.b16 %v6993, %v6987
  %v7342 = vpack.c.b16 %v6994, %v6988
  %v7343 = vpack.c.b16 %v7001, %v6995
  %v7344 = vpack.c.b16 %v7002, %v6996
  %v7345 = vpack.c.b16 %v7003, %v6997
  %v7346 = vpack.c.b16 %v7004, %v6998
  %v7347 = vpack.c.b16 %v7005, %v6999
  %v7348 = vpack.c.b16 %v7006, %v7000
  %v7349 = vpack.c.b16 %v7013, %v7007
  %v7350 = vpack.c.b16 %v7014, %v7008
  %v7351 = vpack.c.b16 %v7015, %v7009
  %v7352 = vpack.c.b16 %v7016, %v7010
  %v7353 = vpack.c.b16 %v7017, %v7011
  %v7354 = vpack.c.b16 %v7018, %v7012
  %v7355 = vpack.c.b16 %v7025, %v7019
  %v7356 = vpack.c.b16 %v7026, %v7020
  %v7357 = vpack.c.b16 %v7027, %v7021
  %v7358 = vpack.c.b16 %v7028, %v7022
  %v7359 = vpack.c.b16 %v7029, %v7023
  %v7360 = vpack.c.b16 %v7030, %v7024
  %v7361 = vpack.c.b16 %v7037, %v7031
  %v7362 = vpack.c.b16 %v7038, %v7032
  %v7363 = vpack.c.b16 %v7039, %v7033
  %v7364 = vpack.c.b16 %v7040, %v7034
  %v7365 = vpack.c.b16 %v7041, %v7035
  %v7366 = vpack.c.b16 %v7042, %v7036
  %v7367 = vpack.c.b16 %v7049, %v7043
  %v7368 = vpack.c.b16 %v7050, %v7044
  %v7369 = vpack.c.b16 %v7051, %v7045
  %v7370 = vpack.c.b16 %v7052, %v7046
  %v7371 = vpack.c.b16 %v7053, %v7047
  %v7372 = vpack.c.b16 %v7054, %v7048
  %v7373 = vpack.c.b16 %v7061, %v7055
  %v7374 = vpack.c.b16 %v7062, %v7056
  %v7375 = vpack.c.b16 %v7063, %v7057
  %v7376 = vpack.c.b16 %v7064, %v7058
  %v7377 = vpack.c.b16 %v7065, %v7059
  %v7378 = vpack.c.b16 %v7066, %v7060
  %v7379 = vpack.c.b16 %v7073, %v7067
  %v7380 = vpack.c.b16 %v7074, %v7068
  %v7381 = vpack.c.b16 %v7075, %v7069
  %v7382 = vpack.c.b16 %v7076, %v7070
  %v7383 = vpack.c.b16 %v7077, %v7071
  %v7384 = vpack.c.b16 %v7078, %v7072
  %v7385 = vpack.c.b16 %v7085, %v7079
  %v7386 = vpack.c.b16 %v7086, %v7080
  %v7387 = vpack.c.b16 %v7087, %v7081
  %v7388 = vpack.c.b16 %v7088, %v7082
  %v7389 = vpack.c.b16 %v7089, %v7083
  %v7390 = vpack.c.b16 %v7090, %v7084
  %v7391 = vpack.c.b16 %v7097, %v7091
  %v7392 = vpack.c.b16 %v7098, %v7092
  %v7393 = vpack.c.b16 %v7099, %v7093
  %v7394 = vpack.c.b16 %v7100, %v7094
  %v7395 = vpack.c.b16 %v7101, %v7095
  %v7396 = vpack.c.b16 %v7102, %v7096
  %v7397 = vpack.c.b16 %v7109, %v7103
  %v7398 = vpack.c.b16 %v7110, %v7104
  %v7399 = vpack.c.b16 %v7111, %v7105
  %v7400 = vpack.c.b16 %v7112, %v7106
  %v7401 = vpack.c.b16 %v7113, %v7107
  %v7402 = vpack.c.b16 %v7114, %v7108
  %7691 = vmatprep.subr.bf16.mxu0 %v7116
  %7692 = vmatpush1.bf16.msra.mxu0 %v7115
  %7693 = vmatprep.subr.bf16.mxu0 %v7122
  %7694 = vmatpush1.bf16.msra.mxu0 %v7121
  %7695 = vmatprep.subr.bf16.mxu0 %v7128
  %7696 = vmatpush1.bf16.msra.mxu0 %v7127
  %7697 = vmatprep.subr.bf16.mxu0 %v7134
  %7698 = vmatpush1.bf16.msra.mxu0 %v7133
  %7699 = vmatprep.subr.bf16.mxu0 %v7140
  %7700 = vmatpush1.bf16.msra.mxu0 %v7139
  %7701 = vmatprep.subr.bf16.mxu0 %v7146
  %7702 = vmatpush1.bf16.msra.mxu0 %v7145
  %7703 = vmatprep.subr.bf16.mxu0 %v7152
  %7704 = vmatpush1.bf16.msra.mxu0 %v7151
  %7705 = vmatprep.subr.bf16.mxu0 %v7158
  %7706 = vmatpush1.bf16.msra.mxu0 %v7157
  %7707 = vmatprep.subr.bf16.mxu0 %v7164
  %7708 = vmatpush1.bf16.msra.mxu0 %v7163
  %7709 = vmatprep.subr.bf16.mxu0 %v7170
  %7710 = vmatpush1.bf16.msra.mxu0 %v7169
  %7711 = vmatprep.subr.bf16.mxu0 %v7176
  %7712 = vmatpush1.bf16.msra.mxu0 %v7175
  %7713 = vmatprep.subr.bf16.mxu0 %v7182
  %7714 = vmatpush1.bf16.msra.mxu0 %v7181
  %7715 = vmatprep.subr.bf16.mxu0 %v7188
  %7716 = vmatpush1.bf16.msra.mxu0 %v7187
  %7717 = vmatprep.subr.bf16.mxu0 %v7194
  %7718 = vmatpush1.bf16.msra.mxu0 %v7193
  %7719 = vmatprep.subr.bf16.mxu0 %v7200
  %7720 = vmatpush1.bf16.msra.mxu0 %v7199
  %7721 = vmatprep.subr.bf16.mxu0 %v7206
  %7722 = vmatpush1.bf16.msra.mxu0 %v7205
  %7723 = vmatprep.mubr.bf16.mxu0 %v5958
  %7724 = vmatmul.mubr.bf16.gmra.mrb[0].mxu0 %v5957
  %v7725 = vpop.f32.mrb[0].mxu0
  %v7726 = vadd.f32 0.0, %v7725
  %v7727 = vpop.f32.mrb[0].mxu0
  %v7728 = vadd.f32 0.0, %v7727
  %v7729 = vpop.f32.mrb[0].mxu0
  %v7730 = vadd.f32 0.0, %v7729
  %v7731 = vpop.f32.mrb[0].mxu0
  %v7732 = vadd.f32 0.0, %v7731
  %7733 = vdwg.mxu0
  %7734 = vmatprep.subr.bf16.mxu0 %v7212
  %7735 = vmatpush1.bf16.msra.mxu0 %v7211
  %7736 = vmatprep.subr.bf16.mxu0 %v7218
  %7737 = vmatpush1.bf16.msra.mxu0 %v7217
  %7738 = vmatprep.subr.bf16.mxu0 %v7224
  %7739 = vmatpush1.bf16.msra.mxu0 %v7223
  %7740 = vmatprep.subr.bf16.mxu0 %v7230
  %7741 = vmatpush1.bf16.msra.mxu0 %v7229
  %7742 = vmatprep.subr.bf16.mxu0 %v7236
  %7743 = vmatpush1.bf16.msra.mxu0 %v7235
  %7744 = vmatprep.subr.bf16.mxu0 %v7242
  %7745 = vmatpush1.bf16.msra.mxu0 %v7241
  %7746 = vmatprep.subr.bf16.mxu0 %v7248
  %7747 = vmatpush1.bf16.msra.mxu0 %v7247
  %7748 = vmatprep.subr.bf16.mxu0 %v7254
  %7749 = vmatpush1.bf16.msra.mxu0 %v7253
  %7750 = vmatprep.subr.bf16.mxu0 %v7260
  %7751 = vmatpush1.bf16.msra.mxu0 %v7259
  %7752 = vmatprep.subr.bf16.mxu0 %v7266
  %7753 = vmatpush1.bf16.msra.mxu0 %v7265
  %7754 = vmatprep.subr.bf16.mxu0 %v7272
  %7755 = vmatpush1.bf16.msra.mxu0 %v7271
  %7756 = vmatprep.subr.bf16.mxu0 %v7278
  %7757 = vmatpush1.bf16.msra.mxu0 %v7277
  %7758 = vmatprep.subr.bf16.mxu0 %v7284
  %7759 = vmatpush1.bf16.msra.mxu0 %v7283
  %7760 = vmatprep.subr.bf16.mxu0 %v7290
  %7761 = vmatpush1.bf16.msra.mxu0 %v7289
  %7762 = vmatprep.subr.bf16.mxu0 %v7296
  %7763 = vmatpush1.bf16.msra.mxu0 %v7295
  %7764 = vmatprep.subr.bf16.mxu0 %v7302
  %7765 = vmatpush1.bf16.msra.mxu0 %v7301
  %7766 = vmatprep.mubr.bf16.mxu0 %v5960
  %7767 = vmatmul.mubr.bf16.gmra.mrb[0].mxu0 %v5959
  %v7768 = vpop.f32.mrb[0].mxu0
  %v7769 = vadd.f32 %v7726, %v7768
  %v7770 = vpop.f32.mrb[0].mxu0
  %v7771 = vadd.f32 %v7728, %v7770
  %v7772 = vpop.f32.mrb[0].mxu0
  %v7773 = vadd.f32 %v7730, %v7772
  %v7774 = vpop.f32.mrb[0].mxu0
  %v7775 = vadd.f32 %v7732, %v7774
  %7776 = vdwg.mxu0
  %7777 = vmatprep.subr.bf16.mxu0 %v7308
  %7778 = vmatpush1.bf16.msra.mxu0 %v7307
  %7779 = vmatprep.subr.bf16.mxu0 %v7314
  %7780 = vmatpush1.bf16.msra.mxu0 %v7313
  %7781 = vmatprep.subr.bf16.mxu0 %v7320
  %7782 = vmatpush1.bf16.msra.mxu0 %v7319
  %7783 = vmatprep.subr.bf16.mxu0 %v7326
  %7784 = vmatpush1.bf16.msra.mxu0 %v7325
  %7785 = vmatprep.subr.bf16.mxu0 %v7332
  %7786 = vmatpush1.bf16.msra.mxu0 %v7331
  %7787 = vmatprep.subr.bf16.mxu0 %v7338
  %7788 = vmatpush1.bf16.msra.mxu0 %v7337
  %7789 = vmatprep.subr.bf16.mxu0 %v7344
  %7790 = vmatpush1.bf16.msra.mxu0 %v7343
  %7791 = vmatprep.subr.bf16.mxu0 %v7350
  %7792 = vmatpush1.bf16.msra.mxu0 %v7349
  %7793 = vmatprep.subr.bf16.mxu0 %v7356
  %7794 = vmatpush1.bf16.msra.mxu0 %v7355
  %7795 = vmatprep.subr.bf16.mxu0 %v7362
  %7796 = vmatpush1.bf16.msra.mxu0 %v7361
  %7797 = vmatprep.subr.bf16.mxu0 %v7368
  %7798 = vmatpush1.bf16.msra.mxu0 %v7367
  %7799 = vmatprep.subr.bf16.mxu0 %v7374
  %7800 = vmatpush1.bf16.msra.mxu0 %v7373
  %7801 = vmatprep.subr.bf16.mxu0 %v7380
  %7802 = vmatpush1.bf16.msra.mxu0 %v7379
  %7803 = vmatprep.subr.bf16.mxu0 %v7386
  %7804 = vmatpush1.bf16.msra.mxu0 %v7385
  %7805 = vmatprep.subr.bf16.mxu0 %v7392
  %7806 = vmatpush1.bf16.msra.mxu0 %v7391
  %7807 = vmatprep.subr.bf16.mxu0 %v7398
  %7808 = vmatpush1.bf16.msra.mxu0 %v7397
  %7809 = vmatprep.mubr.bf16.mxu0 %v5962
  %7810 = vmatmul.mubr.bf16.gmra.mrb[0].mxu0 %v5961
  %v7811 = vpop.f32.mrb[0].mxu0
  %v7812 = vadd.f32 %v7769, %v7811
  %v7813 = vpop.f32.mrb[0].mxu0
  %v7814 = vadd.f32 %v7771, %v7813
  %v7815 = vpop.f32.mrb[0].mxu0
  %v7816 = vadd.f32 %v7773, %v7815
  %v7817 = vpop.f32.mrb[0].mxu0
  %v7818 = vadd.f32 %v7775, %v7817
  %7819 = vdwg.mxu0
  %7820 = vmatprep.subr.bf16.mxu0 %v7118
  %7821 = vmatpush1.bf16.msra.mxu0 %v7117
  %7822 = vmatprep.subr.bf16.mxu0 %v7124
  %7823 = vmatpush1.bf16.msra.mxu0 %v7123
  %7824 = vmatprep.subr.bf16.mxu0 %v7130
  %7825 = vmatpush1.bf16.msra.mxu0 %v7129
  %7826 = vmatprep.subr.bf16.mxu0 %v7136
  %7827 = vmatpush1.bf16.msra.mxu0 %v7135
  %7828 = vmatprep.subr.bf16.mxu0 %v7142
  %7829 = vmatpush1.bf16.msra.mxu0 %v7141
  %7830 = vmatprep.subr.bf16.mxu0 %v7148
  %7831 = vmatpush1.bf16.msra.mxu0 %v7147
  %7832 = vmatprep.subr.bf16.mxu0 %v7154
  %7833 = vmatpush1.bf16.msra.mxu0 %v7153
  %7834 = vmatprep.subr.bf16.mxu0 %v7160
  %7835 = vmatpush1.bf16.msra.mxu0 %v7159
  %7836 = vmatprep.subr.bf16.mxu0 %v7166
  %7837 = vmatpush1.bf16.msra.mxu0 %v7165
  %7838 = vmatprep.subr.bf16.mxu0 %v7172
  %7839 = vmatpush1.bf16.msra.mxu0 %v7171
  %7840 = vmatprep.subr.bf16.mxu0 %v7178
  %7841 = vmatpush1.bf16.msra.mxu0 %v7177
  %7842 = vmatprep.subr.bf16.mxu0 %v7184
  %7843 = vmatpush1.bf16.msra.mxu0 %v7183
  %7844 = vmatprep.subr.bf16.mxu0 %v7190
  %7845 = vmatpush1.bf16.msra.mxu0 %v7189
  %7846 = vmatprep.subr.bf16.mxu0 %v7196
  %7847 = vmatpush1.bf16.msra.mxu0 %v7195
  %7848 = vmatprep.subr.bf16.mxu0 %v7202
  %7849 = vmatpush1.bf16.msra.mxu0 %v7201
  %7850 = vmatprep.subr.bf16.mxu0 %v7208
  %7851 = vmatpush1.bf16.msra.mxu0 %v7207
  %7852 = vmatprep.mubr.bf16.mxu0 %v5958
  %7853 = vmatmul.mubr.bf16.gmra.mrb[0].mxu0 %v5957
  %v7854 = vpop.f32.mrb[0].mxu0
  %v7855 = vadd.f32 0.0, %v7854
  %v7856 = vpop.f32.mrb[0].mxu0
  %v7857 = vadd.f32 0.0, %v7856
  %v7858 = vpop.f32.mrb[0].mxu0
  %v7859 = vadd.f32 0.0, %v7858
  %v7860 = vpop.f32.mrb[0].mxu0
  %v7861 = vadd.f32 0.0, %v7860
  %7862 = vdwg.mxu0
  %7863 = vmatprep.subr.bf16.mxu0 %v7214
  %7864 = vmatpush1.bf16.msra.mxu0 %v7213
  %7865 = vmatprep.subr.bf16.mxu0 %v7220
  %7866 = vmatpush1.bf16.msra.mxu0 %v7219
  %7867 = vmatprep.subr.bf16.mxu0 %v7226
  %7868 = vmatpush1.bf16.msra.mxu0 %v7225
  %7869 = vmatprep.subr.bf16.mxu0 %v7232
  %7870 = vmatpush1.bf16.msra.mxu0 %v7231
  %7871 = vmatprep.subr.bf16.mxu0 %v7238
  %7872 = vmatpush1.bf16.msra.mxu0 %v7237
  %7873 = vmatprep.subr.bf16.mxu0 %v7244
  %7874 = vmatpush1.bf16.msra.mxu0 %v7243
  %7875 = vmatprep.subr.bf16.mxu0 %v7250
  %7876 = vmatpush1.bf16.msra.mxu0 %v7249
  %7877 = vmatprep.subr.bf16.mxu0 %v7256
  %7878 = vmatpush1.bf16.msra.mxu0 %v7255
  %7879 = vmatprep.subr.bf16.mxu0 %v7262
  %7880 = vmatpush1.bf16.msra.mxu0 %v7261
  %7881 = vmatprep.subr.bf16.mxu0 %v7268
  %7882 = vmatpush1.bf16.msra.mxu0 %v7267
  %7883 = vmatprep.subr.bf16.mxu0 %v7274
  %7884 = vmatpush1.bf16.msra.mxu0 %v7273
  %7885 = vmatprep.subr.bf16.mxu0 %v7280
  %7886 = vmatpush1.bf16.msra.mxu0 %v7279
  %7887 = vmatprep.subr.bf16.mxu0 %v7286
  %7888 = vmatpush1.bf16.msra.mxu0 %v7285
  %7889 = vmatprep.subr.bf16.mxu0 %v7292
  %7890 = vmatpush1.bf16.msra.mxu0 %v7291
  %7891 = vmatprep.subr.bf16.mxu0 %v7298
  %7892 = vmatpush1.bf16.msra.mxu0 %v7297
  %7893 = vmatprep.subr.bf16.mxu0 %v7304
  %7894 = vmatpush1.bf16.msra.mxu0 %v7303
  %7895 = vmatprep.mubr.bf16.mxu0 %v5960
  %7896 = vmatmul.mubr.bf16.gmra.mrb[0].mxu0 %v5959
  %v7897 = vpop.f32.mrb[0].mxu0
  %v7898 = vadd.f32 %v7855, %v7897
  %v7899 = vpop.f32.mrb[0].mxu0
  %v7900 = vadd.f32 %v7857, %v7899
  %v7901 = vpop.f32.mrb[0].mxu0
  %v7902 = vadd.f32 %v7859, %v7901
  %v7903 = vpop.f32.mrb[0].mxu0
  %v7904 = vadd.f32 %v7861, %v7903
  %7905 = vdwg.mxu0
  %7906 = vmatprep.subr.bf16.mxu0 %v7310
  %7907 = vmatpush1.bf16.msra.mxu0 %v7309
  %7908 = vmatprep.subr.bf16.mxu0 %v7316
  %7909 = vmatpush1.bf16.msra.mxu0 %v7315
  %7910 = vmatprep.subr.bf16.mxu0 %v7322
  %7911 = vmatpush1.bf16.msra.mxu0 %v7321
  %7912 = vmatprep.subr.bf16.mxu0 %v7328
  %7913 = vmatpush1.bf16.msra.mxu0 %v7327
  %7914 = vmatprep.subr.bf16.mxu0 %v7334
  %7915 = vmatpush1.bf16.msra.mxu0 %v7333
  %7916 = vmatprep.subr.bf16.mxu0 %v7340
  %7917 = vmatpush1.bf16.msra.mxu0 %v7339
  %7918 = vmatprep.subr.bf16.mxu0 %v7346
  %7919 = vmatpush1.bf16.msra.mxu0 %v7345
  %7920 = vmatprep.subr.bf16.mxu0 %v7352
  %7921 = vmatpush1.bf16.msra.mxu0 %v7351
  %7922 = vmatprep.subr.bf16.mxu0 %v7358
  %7923 = vmatpush1.bf16.msra.mxu0 %v7357
  %7924 = vmatprep.subr.bf16.mxu0 %v7364
  %7925 = vmatpush1.bf16.msra.mxu0 %v7363
  %7926 = vmatprep.subr.bf16.mxu0 %v7370
  %7927 = vmatpush1.bf16.msra.mxu0 %v7369
  %7928 = vmatprep.subr.bf16.mxu0 %v7376
  %7929 = vmatpush1.bf16.msra.mxu0 %v7375
  %7930 = vmatprep.subr.bf16.mxu0 %v7382
  %7931 = vmatpush1.bf16.msra.mxu0 %v7381
  %7932 = vmatprep.subr.bf16.mxu0 %v7388
  %7933 = vmatpush1.bf16.msra.mxu0 %v7387
  %7934 = vmatprep.subr.bf16.mxu0 %v7394
  %7935 = vmatpush1.bf16.msra.mxu0 %v7393
  %7936 = vmatprep.subr.bf16.mxu0 %v7400
  %7937 = vmatpush1.bf16.msra.mxu0 %v7399
  %7938 = vmatprep.mubr.bf16.mxu0 %v5962
  %7939 = vmatmul.mubr.bf16.gmra.mrb[0].mxu0 %v5961
  %v7940 = vpop.f32.mrb[0].mxu0
  %v7941 = vadd.f32 %v7898, %v7940
  %v7942 = vpop.f32.mrb[0].mxu0
  %v7943 = vadd.f32 %v7900, %v7942
  %v7944 = vpop.f32.mrb[0].mxu0
  %v7945 = vadd.f32 %v7902, %v7944
  %v7946 = vpop.f32.mrb[0].mxu0
  %v7947 = vadd.f32 %v7904, %v7946
  %7948 = vdwg.mxu0
  %7949 = vmatprep.subr.bf16.mxu0 %v7120
  %7950 = vmatpush1.bf16.msra.mxu0 %v7119
  %7951 = vmatprep.subr.bf16.mxu0 %v7126
  %7952 = vmatpush1.bf16.msra.mxu0 %v7125
  %7953 = vmatprep.subr.bf16.mxu0 %v7132
  %7954 = vmatpush1.bf16.msra.mxu0 %v7131
  %7955 = vmatprep.subr.bf16.mxu0 %v7138
  %7956 = vmatpush1.bf16.msra.mxu0 %v7137
  %7957 = vmatprep.subr.bf16.mxu0 %v7144
  %7958 = vmatpush1.bf16.msra.mxu0 %v7143
  %7959 = vmatprep.subr.bf16.mxu0 %v7150
  %7960 = vmatpush1.bf16.msra.mxu0 %v7149
  %7961 = vmatprep.subr.bf16.mxu0 %v7156
  %7962 = vmatpush1.bf16.msra.mxu0 %v7155
  %7963 = vmatprep.subr.bf16.mxu0 %v7162
  %7964 = vmatpush1.bf16.msra.mxu0 %v7161
  %7965 = vmatprep.subr.bf16.mxu0 %v7168
  %7966 = vmatpush1.bf16.msra.mxu0 %v7167
  %7967 = vmatprep.subr.bf16.mxu0 %v7174
  %7968 = vmatpush1.bf16.msra.mxu0 %v7173
  %7969 = vmatprep.subr.bf16.mxu0 %v7180
  %7970 = vmatpush1.bf16.msra.mxu0 %v7179
  %7971 = vmatprep.subr.bf16.mxu0 %v7186
  %7972 = vmatpush1.bf16.msra.mxu0 %v7185
  %7973 = vmatprep.subr.bf16.mxu0 %v7192
  %7974 = vmatpush1.bf16.msra.mxu0 %v7191
  %7975 = vmatprep.subr.bf16.mxu0 %v7198
  %7976 = vmatpush1.bf16.msra.mxu0 %v7197
  %7977 = vmatprep.subr.bf16.mxu0 %v7204
  %7978 = vmatpush1.bf16.msra.mxu0 %v7203
  %7979 = vmatprep.subr.bf16.mxu0 %v7210
  %7980 = vmatpush1.bf16.msra.mxu0 %v7209
  %7981 = vmatprep.mubr.bf16.mxu0 %v5958
  %7982 = vmatmul.mubr.bf16.gmra.mrb[0].mxu0 %v5957
  %v7983 = vpop.f32.mrb[0].mxu0
  %v7984 = vadd.f32 0.0, %v7983
  %v7985 = vpop.f32.mrb[0].mxu0
  %v7986 = vadd.f32 0.0, %v7985
  %v7987 = vpop.f32.mrb[0].mxu0
  %v7988 = vadd.f32 0.0, %v7987
  %v7989 = vpop.f32.mrb[0].mxu0
  %v7990 = vadd.f32 0.0, %v7989
  %7991 = vdwg.mxu0
  %7992 = vmatprep.subr.bf16.mxu0 %v7216
  %7993 = vmatpush1.bf16.msra.mxu0 %v7215
  %7994 = vmatprep.subr.bf16.mxu0 %v7222
  %7995 = vmatpush1.bf16.msra.mxu0 %v7221
  %7996 = vmatprep.subr.bf16.mxu0 %v7228
  %7997 = vmatpush1.bf16.msra.mxu0 %v7227
  %7998 = vmatprep.subr.bf16.mxu0 %v7234
  %7999 = vmatpush1.bf16.msra.mxu0 %v7233
  %8000 = vmatprep.subr.bf16.mxu0 %v7240
  %8001 = vmatpush1.bf16.msra.mxu0 %v7239
  %8002 = vmatprep.subr.bf16.mxu0 %v7246
  %8003 = vmatpush1.bf16.msra.mxu0 %v7245
  %8004 = vmatprep.subr.bf16.mxu0 %v7252
  %8005 = vmatpush1.bf16.msra.mxu0 %v7251
  %8006 = vmatprep.subr.bf16.mxu0 %v7258
  %8007 = vmatpush1.bf16.msra.mxu0 %v7257
  %8008 = vmatprep.subr.bf16.mxu0 %v7264
  %8009 = vmatpush1.bf16.msra.mxu0 %v7263
  %8010 = vmatprep.subr.bf16.mxu0 %v7270
  %8011 = vmatpush1.bf16.msra.mxu0 %v7269
  %8012 = vmatprep.subr.bf16.mxu0 %v7276
  %8013 = vmatpush1.bf16.msra.mxu0 %v7275
  %8014 = vmatprep.subr.bf16.mxu0 %v7282
  %8015 = vmatpush1.bf16.msra.mxu0 %v7281
  %8016 = vmatprep.subr.bf16.mxu0 %v7288
  %8017 = vmatpush1.bf16.msra.mxu0 %v7287
  %8018 = vmatprep.subr.bf16.mxu0 %v7294
  %8019 = vmatpush1.bf16.msra.mxu0 %v7293
  %8020 = vmatprep.subr.bf16.mxu0 %v7300
  %8021 = vmatpush1.bf16.msra.mxu0 %v7299
  %8022 = vmatprep.subr.bf16.mxu0 %v7306
  %8023 = vmatpush1.bf16.msra.mxu0 %v7305
  %8024 = vmatprep.mubr.bf16.mxu0 %v5960
  %8025 = vmatmul.mubr.bf16.gmra.mrb[0].mxu0 %v5959
  %v8026 = vpop.f32.mrb[0].mxu0
  %v8027 = vadd.f32 %v7984, %v8026
  %v8028 = vpop.f32.mrb[0].mxu0
  %v8029 = vadd.f32 %v7986, %v8028
  %v8030 = vpop.f32.mrb[0].mxu0
  %v8031 = vadd.f32 %v7988, %v8030
  %v8032 = vpop.f32.mrb[0].mxu0
  %v8033 = vadd.f32 %v7990, %v8032
  %8034 = vdwg.mxu0
  %8035 = vmatprep.subr.bf16.mxu0 %v7312
  %8036 = vmatpush1.bf16.msra.mxu0 %v7311
  %8037 = vmatprep.subr.bf16.mxu0 %v7318
  %8038 = vmatpush1.bf16.msra.mxu0 %v7317
  %8039 = vmatprep.subr.bf16.mxu0 %v7324
  %8040 = vmatpush1.bf16.msra.mxu0 %v7323
  %8041 = vmatprep.subr.bf16.mxu0 %v7330
  %8042 = vmatpush1.bf16.msra.mxu0 %v7329
  %8043 = vmatprep.subr.bf16.mxu0 %v7336
  %8044 = vmatpush1.bf16.msra.mxu0 %v7335
  %8045 = vmatprep.subr.bf16.mxu0 %v7342
  %8046 = vmatpush1.bf16.msra.mxu0 %v7341
  %8047 = vmatprep.subr.bf16.mxu0 %v7348
  %8048 = vmatpush1.bf16.msra.mxu0 %v7347
  %8049 = vmatprep.subr.bf16.mxu0 %v7354
  %8050 = vmatpush1.bf16.msra.mxu0 %v7353
  %8051 = vmatprep.subr.bf16.mxu0 %v7360
  %8052 = vmatpush1.bf16.msra.mxu0 %v7359
  %8053 = vmatprep.subr.bf16.mxu0 %v7366
  %8054 = vmatpush1.bf16.msra.mxu0 %v7365
  %8055 = vmatprep.subr.bf16.mxu0 %v7372
  %8056 = vmatpush1.bf16.msra.mxu0 %v7371
  %8057 = vmatprep.subr.bf16.mxu0 %v7378
  %8058 = vmatpush1.bf16.msra.mxu0 %v7377
  %8059 = vmatprep.subr.bf16.mxu0 %v7384
  %8060 = vmatpush1.bf16.msra.mxu0 %v7383
  %8061 = vmatprep.subr.bf16.mxu0 %v7390
  %8062 = vmatpush1.bf16.msra.mxu0 %v7389
  %8063 = vmatprep.subr.bf16.mxu0 %v7396
  %8064 = vmatpush1.bf16.msra.mxu0 %v7395
  %8065 = vmatprep.subr.bf16.mxu0 %v7402
  %8066 = vmatpush1.bf16.msra.mxu0 %v7401
  %8067 = vmatprep.mubr.bf16.mxu0 %v5962
  %8068 = vmatmul.mubr.bf16.gmra.mrb[0].mxu0 %v5961
  %v8069 = vpop.f32.mrb[0].mxu0
  %v8070 = vadd.f32 %v8027, %v8069
  %v8071 = vpop.f32.mrb[0].mxu0
  %v8072 = vadd.f32 %v8029, %v8071
  %v8073 = vpop.f32.mrb[0].mxu0
  %v8074 = vadd.f32 %v8031, %v8073
  %v8075 = vpop.f32.mrb[0].mxu0
  %v8076 = vadd.f32 %v8033, %v8075
  %8077 = vdwg.mxu0
  %v8078 = vld [vmem:[%s41] sm:$0x3f]
  %v8080 = vlaneseq
  %v8081 = vshrl.u32 %v8080, 7
  %v8082 = vsub.s32 0, %v8081
  %v8083 = vrot.slane %v8078, %v8082
  %v8084 = vlaneseq
  %v8085 = vshrl.u32 %v8084, 7
  %v8086 = vsub.s32 1, %v8085
  %v8087 = vrot.slane %v8078, %v8086
  %v8088 = vlaneseq
  %v8089 = vshrl.u32 %v8088, 7
  %v8090 = vsub.s32 2, %v8089
  %v8091 = vrot.slane %v8078, %v8090
  %v8092 = vlaneseq
  %v8093 = vshrl.u32 %v8092, 7
  %v8094 = vsub.s32 3, %v8093
  %v8095 = vrot.slane %v8078, %v8094
  %v8096 = vlaneseq
  %v8097 = vshrl.u32 %v8096, 7
  %v8098 = vsub.s32 4, %v8097
  %v8099 = vrot.slane %v8078, %v8098
  %v8100 = vlaneseq
  %v8101 = vshrl.u32 %v8100, 7
  %v8102 = vsub.s32 5, %v8101
  %v8103 = vrot.slane %v8078, %v8102
  %8110 = vmatprep.subr.mxu0 %v7814
  %8111 = vmatpush1.msra.mxu0 %v7812
  %8112 = vmatprep.subr.mxu0 %v7818
  %8113 = vmatpush1.msra.mxu0 %v7816
  %8114 = vmatprep.subr.mxu0 0.0
  %8115 = vmatpush1.msra.mxu0 0.0
  %8116 = vmatprep.subr.mxu0 0.0
  %8117 = vmatpush1.msra.mxu0 0.0
  %8118 = vmatprep.subr.mxu0 0.0
  %8119 = vmatpush1.msra.mxu0 0.0
  %8120 = vmatprep.subr.mxu0 0.0
  %8121 = vmatpush1.msra.mxu0 0.0
  %8122 = vmatprep.subr.mxu0 0.0
  %8123 = vmatpush1.msra.mxu0 0.0
  %8124 = vmatprep.subr.mxu0 0.0
  %8125 = vmatpush1.msra.mxu0 0.0
  %8126 = vmatprep.subr.mxu0 0.0
  %8127 = vmatpush1.msra.mxu0 0.0
  %8128 = vmatprep.subr.mxu0 0.0
  %8129 = vmatpush1.msra.mxu0 0.0
  %8130 = vmatprep.subr.mxu0 0.0
  %8131 = vmatpush1.msra.mxu0 0.0
  %8132 = vmatprep.subr.mxu0 0.0
  %8133 = vmatpush1.msra.mxu0 0.0
  %8134 = vmatprep.subr.mxu0 0.0
  %8135 = vmatpush1.msra.mxu0 0.0
  %8136 = vmatprep.subr.mxu0 0.0
  %8137 = vmatpush1.msra.mxu0 0.0
  %8138 = vmatprep.subr.mxu0 0.0
  %8139 = vmatpush1.msra.mxu0 0.0
  %8140 = vmatprep.subr.mxu0 0.0
  %8141 = vmatpush1.msra.mxu0 0.0
  %8142 = vmatprep.subr.mxu0 0.0
  %8143 = vmatpush1.msra.mxu0 0.0
  %8144 = vmatprep.subr.mxu0 0.0
  %8145 = vmatpush1.msra.mxu0 0.0
  %8146 = vmatprep.subr.mxu0 0.0
  %8147 = vmatpush1.msra.mxu0 0.0
  %8148 = vmatprep.subr.mxu0 0.0
  %8149 = vmatpush1.msra.mxu0 0.0
  %8150 = vmatprep.subr.mxu0 0.0
  %8151 = vmatpush1.msra.mxu0 0.0
  %8152 = vmatprep.subr.mxu0 0.0
  %8153 = vmatpush1.msra.mxu0 0.0
  %8154 = vmatprep.subr.mxu0 0.0
  %8155 = vmatpush1.msra.mxu0 0.0
  %8156 = vmatprep.subr.mxu0 0.0
  %8157 = vmatpush1.msra.mxu0 0.0
  %8158 = vmatprep.subr.mxu0 0.0
  %8159 = vmatpush1.msra.mxu0 0.0
  %8160 = vmatprep.subr.mxu0 0.0
  %8161 = vmatpush1.msra.mxu0 0.0
  %8162 = vmatprep.subr.mxu0 0.0
  %8163 = vmatpush1.msra.mxu0 0.0
  %8164 = vmatprep.subr.mxu0 0.0
  %8165 = vmatpush1.msra.mxu0 0.0
  %8166 = vmatprep.subr.mxu0 0.0
  %8167 = vmatpush1.msra.mxu0 0.0
  %8168 = vmatprep.subr.mxu0 0.0
  %8169 = vmatpush1.msra.mxu0 0.0
  %8170 = vmatprep.subr.mxu0 0.0
  %8171 = vmatpush1.msra.mxu0 0.0
  %8172 = vmatprep.subr.mxu0 0.0
  %8173 = vmatpush1.msra.mxu0 0.0
  %8174 = vmatprep.mubr.f32.mxu0 0.0
  %8175 = vmatmul.mubr.f32.gmra.mrb[0].mxu0 %v2405
  %v8176 = vpop.f32.mrb[0].mxu0
  %v8177 = vadd.f32 %v8083, %v8176
  %v8178 = vpop.f32.mrb[0].mxu0
  %v8179 = vadd.f32 %v8087, %v8178
  %8180 = vmatprep.mubr.f32.mxu0 0.0
  %8181 = vmatmul.mubr.f32.gmra.mrb[0].mxu0 %v2408
  %v8182 = vpop.f32.mrb[0].mxu0
  %v8183 = vadd.f32 %v8083, %v8182
  %v8184 = vpop.f32.mrb[0].mxu0
  %v8185 = vadd.f32 %v8087, %v8184
  %8186 = vdwg.mxu0
  %8187 = vmatprep.subr.mxu0 %v7943
  %8188 = vmatpush1.msra.mxu0 %v7941
  %8189 = vmatprep.subr.mxu0 %v7947
  %8190 = vmatpush1.msra.mxu0 %v7945
  %8191 = vmatprep.subr.mxu0 0.0
  %8192 = vmatpush1.msra.mxu0 0.0
  %8193 = vmatprep.subr.mxu0 0.0
  %8194 = vmatpush1.msra.mxu0 0.0
  %8195 = vmatprep.subr.mxu0 0.0
  %8196 = vmatpush1.msra.mxu0 0.0
  %8197 = vmatprep.subr.mxu0 0.0
  %8198 = vmatpush1.msra.mxu0 0.0
  %8199 = vmatprep.subr.mxu0 0.0
  %8200 = vmatpush1.msra.mxu0 0.0
  %8201 = vmatprep.subr.mxu0 0.0
  %8202 = vmatpush1.msra.mxu0 0.0
  %8203 = vmatprep.subr.mxu0 0.0
  %8204 = vmatpush1.msra.mxu0 0.0
  %8205 = vmatprep.subr.mxu0 0.0
  %8206 = vmatpush1.msra.mxu0 0.0
  %8207 = vmatprep.subr.mxu0 0.0
  %8208 = vmatpush1.msra.mxu0 0.0
  %8209 = vmatprep.subr.mxu0 0.0
  %8210 = vmatpush1.msra.mxu0 0.0
  %8211 = vmatprep.subr.mxu0 0.0
  %8212 = vmatpush1.msra.mxu0 0.0
  %8213 = vmatprep.subr.mxu0 0.0
  %8214 = vmatpush1.msra.mxu0 0.0
  %8215 = vmatprep.subr.mxu0 0.0
  %8216 = vmatpush1.msra.mxu0 0.0
  %8217 = vmatprep.subr.mxu0 0.0
  %8218 = vmatpush1.msra.mxu0 0.0
  %8219 = vmatprep.subr.mxu0 0.0
  %8220 = vmatpush1.msra.mxu0 0.0
  %8221 = vmatprep.subr.mxu0 0.0
  %8222 = vmatpush1.msra.mxu0 0.0
  %8223 = vmatprep.subr.mxu0 0.0
  %8224 = vmatpush1.msra.mxu0 0.0
  %8225 = vmatprep.subr.mxu0 0.0
  %8226 = vmatpush1.msra.mxu0 0.0
  %8227 = vmatprep.subr.mxu0 0.0
  %8228 = vmatpush1.msra.mxu0 0.0
  %8229 = vmatprep.subr.mxu0 0.0
  %8230 = vmatpush1.msra.mxu0 0.0
  %8231 = vmatprep.subr.mxu0 0.0
  %8232 = vmatpush1.msra.mxu0 0.0
  %8233 = vmatprep.subr.mxu0 0.0
  %8234 = vmatpush1.msra.mxu0 0.0
  %8235 = vmatprep.subr.mxu0 0.0
  %8236 = vmatpush1.msra.mxu0 0.0
  %8237 = vmatprep.subr.mxu0 0.0
  %8238 = vmatpush1.msra.mxu0 0.0
  %8239 = vmatprep.subr.mxu0 0.0
  %8240 = vmatpush1.msra.mxu0 0.0
  %8241 = vmatprep.subr.mxu0 0.0
  %8242 = vmatpush1.msra.mxu0 0.0
  %8243 = vmatprep.subr.mxu0 0.0
  %8244 = vmatpush1.msra.mxu0 0.0
  %8245 = vmatprep.subr.mxu0 0.0
  %8246 = vmatpush1.msra.mxu0 0.0
  %8247 = vmatprep.subr.mxu0 0.0
  %8248 = vmatpush1.msra.mxu0 0.0
  %8249 = vmatprep.subr.mxu0 0.0
  %8250 = vmatpush1.msra.mxu0 0.0
  %8251 = vmatprep.mubr.f32.mxu0 0.0
  %8252 = vmatmul.mubr.f32.gmra.mrb[0].mxu0 %v2405
  %v8253 = vpop.f32.mrb[0].mxu0
  %v8254 = vadd.f32 %v8091, %v8253
  %v8255 = vpop.f32.mrb[0].mxu0
  %v8256 = vadd.f32 %v8095, %v8255
  %8257 = vmatprep.mubr.f32.mxu0 0.0
  %8258 = vmatmul.mubr.f32.gmra.mrb[0].mxu0 %v2408
  %v8259 = vpop.f32.mrb[0].mxu0
  %v8260 = vadd.f32 %v8091, %v8259
  %v8261 = vpop.f32.mrb[0].mxu0
  %v8262 = vadd.f32 %v8095, %v8261
  %8263 = vdwg.mxu0
  %8264 = vmatprep.subr.mxu0 %v8072
  %8265 = vmatpush1.msra.mxu0 %v8070
  %8266 = vmatprep.subr.mxu0 %v8076
  %8267 = vmatpush1.msra.mxu0 %v8074
  %8268 = vmatprep.subr.mxu0 0.0
  %8269 = vmatpush1.msra.mxu0 0.0
  %8270 = vmatprep.subr.mxu0 0.0
  %8271 = vmatpush1.msra.mxu0 0.0
  %8272 = vmatprep.subr.mxu0 0.0
  %8273 = vmatpush1.msra.mxu0 0.0
  %8274 = vmatprep.subr.mxu0 0.0
  %8275 = vmatpush1.msra.mxu0 0.0
  %8276 = vmatprep.subr.mxu0 0.0
  %8277 = vmatpush1.msra.mxu0 0.0
  %8278 = vmatprep.subr.mxu0 0.0
  %8279 = vmatpush1.msra.mxu0 0.0
  %8280 = vmatprep.subr.mxu0 0.0
  %8281 = vmatpush1.msra.mxu0 0.0
  %8282 = vmatprep.subr.mxu0 0.0
  %8283 = vmatpush1.msra.mxu0 0.0
  %8284 = vmatprep.subr.mxu0 0.0
  %8285 = vmatpush1.msra.mxu0 0.0
  %8286 = vmatprep.subr.mxu0 0.0
  %8287 = vmatpush1.msra.mxu0 0.0
  %8288 = vmatprep.subr.mxu0 0.0
  %8289 = vmatpush1.msra.mxu0 0.0
  %8290 = vmatprep.subr.mxu0 0.0
  %8291 = vmatpush1.msra.mxu0 0.0
  %8292 = vmatprep.subr.mxu0 0.0
  %8293 = vmatpush1.msra.mxu0 0.0
  %8294 = vmatprep.subr.mxu0 0.0
  %8295 = vmatpush1.msra.mxu0 0.0
  %8296 = vmatprep.subr.mxu0 0.0
  %8297 = vmatpush1.msra.mxu0 0.0
  %8298 = vmatprep.subr.mxu0 0.0
  %8299 = vmatpush1.msra.mxu0 0.0
  %8300 = vmatprep.subr.mxu0 0.0
  %8301 = vmatpush1.msra.mxu0 0.0
  %8302 = vmatprep.subr.mxu0 0.0
  %8303 = vmatpush1.msra.mxu0 0.0
  %8304 = vmatprep.subr.mxu0 0.0
  %8305 = vmatpush1.msra.mxu0 0.0
  %8306 = vmatprep.subr.mxu0 0.0
  %8307 = vmatpush1.msra.mxu0 0.0
  %8308 = vmatprep.subr.mxu0 0.0
  %8309 = vmatpush1.msra.mxu0 0.0
  %8310 = vmatprep.subr.mxu0 0.0
  %8311 = vmatpush1.msra.mxu0 0.0
  %8312 = vmatprep.subr.mxu0 0.0
  %8313 = vmatpush1.msra.mxu0 0.0
  %8314 = vmatprep.subr.mxu0 0.0
  %8315 = vmatpush1.msra.mxu0 0.0
  %8316 = vmatprep.subr.mxu0 0.0
  %8317 = vmatpush1.msra.mxu0 0.0
  %8318 = vmatprep.subr.mxu0 0.0
  %8319 = vmatpush1.msra.mxu0 0.0
  %8320 = vmatprep.subr.mxu0 0.0
  %8321 = vmatpush1.msra.mxu0 0.0
  %8322 = vmatprep.subr.mxu0 0.0
  %8323 = vmatpush1.msra.mxu0 0.0
  %8324 = vmatprep.subr.mxu0 0.0
  %8325 = vmatpush1.msra.mxu0 0.0
  %8326 = vmatprep.subr.mxu0 0.0
  %8327 = vmatpush1.msra.mxu0 0.0
  %8328 = vmatprep.mubr.f32.mxu0 0.0
  %8329 = vmatmul.mubr.f32.gmra.mrb[0].mxu0 %v2405
  %v8330 = vpop.f32.mrb[0].mxu0
  %v8331 = vadd.f32 %v8099, %v8330
  %v8332 = vpop.f32.mrb[0].mxu0
  %v8333 = vadd.f32 %v8103, %v8332
  %8334 = vmatprep.mubr.f32.mxu0 0.0
  %8335 = vmatmul.mubr.f32.gmra.mrb[0].mxu0 %v2408
  %v8336 = vpop.f32.mrb[0].mxu0
  %v8337 = vadd.f32 %v8099, %v8336
  %v8338 = vpop.f32.mrb[0].mxu0
  %v8339 = vadd.f32 %v8103, %v8338
  %8340 = vdwg.mxu0
  %v8341 = vld [vmem:[%s43] sm:$0x3f]
  %v8342 = vld [vmem:[%s45] sm:$0x3f]
  %v8343 = vrot.slane %v8177, 4
  %v8344 = vadd.f32 %v8177, %v8343
  %v8345 = vrot.slane %v8344, 2
  %v8346 = vadd.f32 %v8344, %v8345
  %v8347 = vrot.slane %v8346, 1
  %v8348 = vadd.f32 %v8346, %v8347
  %v8349 = vrot.slane %v8179, 4
  %v8350 = vadd.f32 %v8179, %v8349
  %v8351 = vrot.slane %v8350, 2
  %v8352 = vadd.f32 %v8350, %v8351
  %v8353 = vrot.slane %v8352, 1
  %v8354 = vadd.f32 %v8352, %v8353
  %v8355 = vrot.slane %v8254, 4
  %v8356 = vadd.f32 %v8254, %v8355
  %v8357 = vrot.slane %v8356, 2
  %v8358 = vadd.f32 %v8356, %v8357
  %v8359 = vrot.slane %v8358, 1
  %v8360 = vadd.f32 %v8358, %v8359
  %v8361 = vrot.slane %v8256, 4
  %v8362 = vadd.f32 %v8256, %v8361
  %v8363 = vrot.slane %v8362, 2
  %v8364 = vadd.f32 %v8362, %v8363
  %v8365 = vrot.slane %v8364, 1
  %v8366 = vadd.f32 %v8364, %v8365
  %v8367 = vrot.slane %v8331, 4
  %v8368 = vadd.f32 %v8331, %v8367
  %v8369 = vrot.slane %v8368, 2
  %v8370 = vadd.f32 %v8368, %v8369
  %v8371 = vrot.slane %v8370, 1
  %v8372 = vadd.f32 %v8370, %v8371
  %v8373 = vrot.slane %v8333, 4
  %v8374 = vadd.f32 %v8333, %v8373
  %v8375 = vrot.slane %v8374, 2
  %v8376 = vadd.f32 %v8374, %v8375
  %v8377 = vrot.slane %v8376, 1
  %v8378 = vadd.f32 %v8376, %v8377
  %v8379 = vmul.f32 %v8348, %v2590
  %v8380 = vmul.f32 %v8354, %v2590
  %v8381 = vmul.f32 %v8360, %v2590
  %v8382 = vmul.f32 %v8366, %v2590
  %v8383 = vmul.f32 %v8372, %v2590
  %v8384 = vmul.f32 %v8378, %v2590
  %v8385 = vmul.f32 %v8177, %v8177
  %v8386 = vmul.f32 %v8179, %v8179
  %v8387 = vmul.f32 %v8254, %v8254
  %v8388 = vmul.f32 %v8256, %v8256
  %v8389 = vmul.f32 %v8331, %v8331
  %v8390 = vmul.f32 %v8333, %v8333
  %v8391 = vrot.slane %v8385, 4
  %v8392 = vadd.f32 %v8385, %v8391
  %v8393 = vrot.slane %v8392, 2
  %v8394 = vadd.f32 %v8392, %v8393
  %v8395 = vrot.slane %v8394, 1
  %v8396 = vadd.f32 %v8394, %v8395
  %v8397 = vrot.slane %v8386, 4
  %v8398 = vadd.f32 %v8386, %v8397
  %v8399 = vrot.slane %v8398, 2
  %v8400 = vadd.f32 %v8398, %v8399
  %v8401 = vrot.slane %v8400, 1
  %v8402 = vadd.f32 %v8400, %v8401
  %v8403 = vrot.slane %v8387, 4
  %v8404 = vadd.f32 %v8387, %v8403
  %v8405 = vrot.slane %v8404, 2
  %v8406 = vadd.f32 %v8404, %v8405
  %v8407 = vrot.slane %v8406, 1
  %v8408 = vadd.f32 %v8406, %v8407
  %v8409 = vrot.slane %v8388, 4
  %v8410 = vadd.f32 %v8388, %v8409
  %v8411 = vrot.slane %v8410, 2
  %v8412 = vadd.f32 %v8410, %v8411
  %v8413 = vrot.slane %v8412, 1
  %v8414 = vadd.f32 %v8412, %v8413
  %v8415 = vrot.slane %v8389, 4
  %v8416 = vadd.f32 %v8389, %v8415
  %v8417 = vrot.slane %v8416, 2
  %v8418 = vadd.f32 %v8416, %v8417
  %v8419 = vrot.slane %v8418, 1
  %v8420 = vadd.f32 %v8418, %v8419
  %v8421 = vrot.slane %v8390, 4
  %v8422 = vadd.f32 %v8390, %v8421
  %v8423 = vrot.slane %v8422, 2
  %v8424 = vadd.f32 %v8422, %v8423
  %v8425 = vrot.slane %v8424, 1
  %v8426 = vadd.f32 %v8424, %v8425
  %v8427 = vmul.f32 %v8396, %v2590
  %v8428 = vmul.f32 %v8402, %v2590
  %v8429 = vmul.f32 %v8408, %v2590
  %v8430 = vmul.f32 %v8414, %v2590
  %v8431 = vmul.f32 %v8420, %v2590
  %v8432 = vmul.f32 %v8426, %v2590
  %v8433 = vmul.f32 %v8379, %v8379
  %v8434 = vmul.f32 %v8380, %v8380
  %v8435 = vmul.f32 %v8381, %v8381
  %v8436 = vmul.f32 %v8382, %v8382
  %v8437 = vmul.f32 %v8383, %v8383
  %v8438 = vmul.f32 %v8384, %v8384
  %v8439 = vsub.f32 %v8427, %v8433
  %v8440 = vsub.f32 %v8428, %v8434
  %v8441 = vsub.f32 %v8429, %v8435
  %v8442 = vsub.f32 %v8430, %v8436
  %v8443 = vsub.f32 %v8431, %v8437
  %v8444 = vsub.f32 %v8432, %v8438
  %v8445 = vmax.f32 %v8439, 0.0
  %v8446 = vmax.f32 %v8440, 0.0
  %v8447 = vmax.f32 %v8441, 0.0
  %v8448 = vmax.f32 %v8442, 0.0
  %v8449 = vmax.f32 %v8443, 0.0
  %v8450 = vmax.f32 %v8444, 0.0
  %v8451 = vsub.f32 %v8177, %v8379
  %v8452 = vsub.f32 %v8179, %v8380
  %v8453 = vsub.f32 %v8254, %v8381
  %v8454 = vsub.f32 %v8256, %v8382
  %v8455 = vsub.f32 %v8331, %v8383
  %v8456 = vsub.f32 %v8333, %v8384
  %v8457 = vadd.f32 %v8445, 1e-05
  %v8458 = vadd.f32 %v8446, 1e-05
  %v8459 = vadd.f32 %v8447, 1e-05
  %v8460 = vadd.f32 %v8448, 1e-05
  %v8461 = vadd.f32 %v8449, 1e-05
  %v8462 = vadd.f32 %v8450, 1e-05
  %v8463 = vrsqrt.pop %v8457
  %v8464 = vrsqrt.pop %v8458
  %v8465 = vrsqrt.pop %v8459
  %v8466 = vrsqrt.pop %v8460
  %v8467 = vrsqrt.pop %v8461
  %v8468 = vrsqrt.pop %v8462
  %v8469 = vmul.f32 %v8451, %v8463
  %v8470 = vmul.f32 %v8452, %v8464
  %v8471 = vmul.f32 %v8453, %v8465
  %v8472 = vmul.f32 %v8454, %v8466
  %v8473 = vmul.f32 %v8455, %v8467
  %v8474 = vmul.f32 %v8456, %v8468
  %v8476 = vlaneseq
  %v8477 = vshrl.u32 %v8476, 7
  %v8478 = vsub.s32 0, %v8477
  %v8479 = vrot.slane %v8341, %v8478
  %v8480 = vlaneseq
  %v8481 = vshrl.u32 %v8480, 7
  %v8482 = vsub.s32 1, %v8481
  %v8483 = vrot.slane %v8341, %v8482
  %v8484 = vlaneseq
  %v8485 = vshrl.u32 %v8484, 7
  %v8486 = vsub.s32 2, %v8485
  %v8487 = vrot.slane %v8341, %v8486
  %v8488 = vlaneseq
  %v8489 = vshrl.u32 %v8488, 7
  %v8490 = vsub.s32 3, %v8489
  %v8491 = vrot.slane %v8341, %v8490
  %v8492 = vlaneseq
  %v8493 = vshrl.u32 %v8492, 7
  %v8494 = vsub.s32 4, %v8493
  %v8495 = vrot.slane %v8341, %v8494
  %v8496 = vlaneseq
  %v8497 = vshrl.u32 %v8496, 7
  %v8498 = vsub.s32 5, %v8497
  %v8499 = vrot.slane %v8341, %v8498
  %v8506 = vmul.f32 %v8469, %v8479
  %v8507 = vmul.f32 %v8470, %v8483
  %v8508 = vmul.f32 %v8471, %v8487
  %v8509 = vmul.f32 %v8472, %v8491
  %v8510 = vmul.f32 %v8473, %v8495
  %v8511 = vmul.f32 %v8474, %v8499
  %v8513 = vlaneseq
  %v8514 = vshrl.u32 %v8513, 7
  %v8515 = vsub.s32 0, %v8514
  %v8516 = vrot.slane %v8342, %v8515
  %v8517 = vlaneseq
  %v8518 = vshrl.u32 %v8517, 7
  %v8519 = vsub.s32 1, %v8518
  %v8520 = vrot.slane %v8342, %v8519
  %v8521 = vlaneseq
  %v8522 = vshrl.u32 %v8521, 7
  %v8523 = vsub.s32 2, %v8522
  %v8524 = vrot.slane %v8342, %v8523
  %v8525 = vlaneseq
  %v8526 = vshrl.u32 %v8525, 7
  %v8527 = vsub.s32 3, %v8526
  %v8528 = vrot.slane %v8342, %v8527
  %v8529 = vlaneseq
  %v8530 = vshrl.u32 %v8529, 7
  %v8531 = vsub.s32 4, %v8530
  %v8532 = vrot.slane %v8342, %v8531
  %v8533 = vlaneseq
  %v8534 = vshrl.u32 %v8533, 7
  %v8535 = vsub.s32 5, %v8534
  %v8536 = vrot.slane %v8342, %v8535
  %v8543 = vadd.f32 %v8506, %v8516
  %v8544 = vadd.f32 %v8507, %v8520
  %v8545 = vadd.f32 %v8508, %v8524
  %v8546 = vadd.f32 %v8509, %v8528
  %v8547 = vadd.f32 %v8510, %v8532
  %v8548 = vadd.f32 %v8511, %v8536
  %v8549 = vmax.f32 %v8543, 0.0
  %v8550 = vmax.f32 %v8544, 0.0
  %v8551 = vmax.f32 %v8545, 0.0
  %v8552 = vmax.f32 %v8546, 0.0
  %v8553 = vmax.f32 %v8547, 0.0
  %v8554 = vmax.f32 %v8548, 0.0
  %v8555 = vrot.slane %v8183, 4
  %v8556 = vadd.f32 %v8183, %v8555
  %v8557 = vrot.slane %v8556, 2
  %v8558 = vadd.f32 %v8556, %v8557
  %v8559 = vrot.slane %v8558, 1
  %v8560 = vadd.f32 %v8558, %v8559
  %v8561 = vrot.slane %v8185, 4
  %v8562 = vadd.f32 %v8185, %v8561
  %v8563 = vrot.slane %v8562, 2
  %v8564 = vadd.f32 %v8562, %v8563
  %v8565 = vrot.slane %v8564, 1
  %v8566 = vadd.f32 %v8564, %v8565
  %v8567 = vrot.slane %v8260, 4
  %v8568 = vadd.f32 %v8260, %v8567
  %v8569 = vrot.slane %v8568, 2
  %v8570 = vadd.f32 %v8568, %v8569
  %v8571 = vrot.slane %v8570, 1
  %v8572 = vadd.f32 %v8570, %v8571
  %v8573 = vrot.slane %v8262, 4
  %v8574 = vadd.f32 %v8262, %v8573
  %v8575 = vrot.slane %v8574, 2
  %v8576 = vadd.f32 %v8574, %v8575
  %v8577 = vrot.slane %v8576, 1
  %v8578 = vadd.f32 %v8576, %v8577
  %v8579 = vrot.slane %v8337, 4
  %v8580 = vadd.f32 %v8337, %v8579
  %v8581 = vrot.slane %v8580, 2
  %v8582 = vadd.f32 %v8580, %v8581
  %v8583 = vrot.slane %v8582, 1
  %v8584 = vadd.f32 %v8582, %v8583
  %v8585 = vrot.slane %v8339, 4
  %v8586 = vadd.f32 %v8339, %v8585
  %v8587 = vrot.slane %v8586, 2
  %v8588 = vadd.f32 %v8586, %v8587
  %v8589 = vrot.slane %v8588, 1
  %v8590 = vadd.f32 %v8588, %v8589
  %v8591 = vmul.f32 %v8560, %v2590
  %v8592 = vmul.f32 %v8566, %v2590
  %v8593 = vmul.f32 %v8572, %v2590
  %v8594 = vmul.f32 %v8578, %v2590
  %v8595 = vmul.f32 %v8584, %v2590
  %v8596 = vmul.f32 %v8590, %v2590
  %v8597 = vmul.f32 %v8183, %v8183
  %v8598 = vmul.f32 %v8185, %v8185
  %v8599 = vmul.f32 %v8260, %v8260
  %v8600 = vmul.f32 %v8262, %v8262
  %v8601 = vmul.f32 %v8337, %v8337
  %v8602 = vmul.f32 %v8339, %v8339
  %v8603 = vrot.slane %v8597, 4
  %v8604 = vadd.f32 %v8597, %v8603
  %v8605 = vrot.slane %v8604, 2
  %v8606 = vadd.f32 %v8604, %v8605
  %v8607 = vrot.slane %v8606, 1
  %v8608 = vadd.f32 %v8606, %v8607
  %v8609 = vrot.slane %v8598, 4
  %v8610 = vadd.f32 %v8598, %v8609
  %v8611 = vrot.slane %v8610, 2
  %v8612 = vadd.f32 %v8610, %v8611
  %v8613 = vrot.slane %v8612, 1
  %v8614 = vadd.f32 %v8612, %v8613
  %v8615 = vrot.slane %v8599, 4
  %v8616 = vadd.f32 %v8599, %v8615
  %v8617 = vrot.slane %v8616, 2
  %v8618 = vadd.f32 %v8616, %v8617
  %v8619 = vrot.slane %v8618, 1
  %v8620 = vadd.f32 %v8618, %v8619
  %v8621 = vrot.slane %v8600, 4
  %v8622 = vadd.f32 %v8600, %v8621
  %v8623 = vrot.slane %v8622, 2
  %v8624 = vadd.f32 %v8622, %v8623
  %v8625 = vrot.slane %v8624, 1
  %v8626 = vadd.f32 %v8624, %v8625
  %v8627 = vrot.slane %v8601, 4
  %v8628 = vadd.f32 %v8601, %v8627
  %v8629 = vrot.slane %v8628, 2
  %v8630 = vadd.f32 %v8628, %v8629
  %v8631 = vrot.slane %v8630, 1
  %v8632 = vadd.f32 %v8630, %v8631
  %v8633 = vrot.slane %v8602, 4
  %v8634 = vadd.f32 %v8602, %v8633
  %v8635 = vrot.slane %v8634, 2
  %v8636 = vadd.f32 %v8634, %v8635
  %v8637 = vrot.slane %v8636, 1
  %v8638 = vadd.f32 %v8636, %v8637
  %v8639 = vmul.f32 %v8608, %v2590
  %v8640 = vmul.f32 %v8614, %v2590
  %v8641 = vmul.f32 %v8620, %v2590
  %v8642 = vmul.f32 %v8626, %v2590
  %v8643 = vmul.f32 %v8632, %v2590
  %v8644 = vmul.f32 %v8638, %v2590
  %v8645 = vmul.f32 %v8591, %v8591
  %v8646 = vmul.f32 %v8592, %v8592
  %v8647 = vmul.f32 %v8593, %v8593
  %v8648 = vmul.f32 %v8594, %v8594
  %v8649 = vmul.f32 %v8595, %v8595
  %v8650 = vmul.f32 %v8596, %v8596
  %v8651 = vsub.f32 %v8639, %v8645
  %v8652 = vsub.f32 %v8640, %v8646
  %v8653 = vsub.f32 %v8641, %v8647
  %v8654 = vsub.f32 %v8642, %v8648
  %v8655 = vsub.f32 %v8643, %v8649
  %v8656 = vsub.f32 %v8644, %v8650
  %v8657 = vmax.f32 %v8651, 0.0
  %v8658 = vmax.f32 %v8652, 0.0
  %v8659 = vmax.f32 %v8653, 0.0
  %v8660 = vmax.f32 %v8654, 0.0
  %v8661 = vmax.f32 %v8655, 0.0
  %v8662 = vmax.f32 %v8656, 0.0
  %v8663 = vsub.f32 %v8183, %v8591
  %v8664 = vsub.f32 %v8185, %v8592
  %v8665 = vsub.f32 %v8260, %v8593
  %v8666 = vsub.f32 %v8262, %v8594
  %v8667 = vsub.f32 %v8337, %v8595
  %v8668 = vsub.f32 %v8339, %v8596
  %v8669 = vadd.f32 %v8657, 1e-05
  %v8670 = vadd.f32 %v8658, 1e-05
  %v8671 = vadd.f32 %v8659, 1e-05
  %v8672 = vadd.f32 %v8660, 1e-05
  %v8673 = vadd.f32 %v8661, 1e-05
  %v8674 = vadd.f32 %v8662, 1e-05
  %v8675 = vrsqrt.pop %v8669
  %v8676 = vrsqrt.pop %v8670
  %v8677 = vrsqrt.pop %v8671
  %v8678 = vrsqrt.pop %v8672
  %v8679 = vrsqrt.pop %v8673
  %v8680 = vrsqrt.pop %v8674
  %v8681 = vmul.f32 %v8663, %v8675
  %v8682 = vmul.f32 %v8664, %v8676
  %v8683 = vmul.f32 %v8665, %v8677
  %v8684 = vmul.f32 %v8666, %v8678
  %v8685 = vmul.f32 %v8667, %v8679
  %v8686 = vmul.f32 %v8668, %v8680
  %v8687 = vmul.f32 %v8681, %v8479
  %v8688 = vmul.f32 %v8682, %v8483
  %v8689 = vmul.f32 %v8683, %v8487
  %v8690 = vmul.f32 %v8684, %v8491
  %v8691 = vmul.f32 %v8685, %v8495
  %v8692 = vmul.f32 %v8686, %v8499
  %v8693 = vadd.f32 %v8687, %v8516
  %v8694 = vadd.f32 %v8688, %v8520
  %v8695 = vadd.f32 %v8689, %v8524
  %v8696 = vadd.f32 %v8690, %v8528
  %v8697 = vadd.f32 %v8691, %v8532
  %v8698 = vadd.f32 %v8692, %v8536
  %v8699 = vmax.f32 %v8693, 0.0
  %v8700 = vmax.f32 %v8694, 0.0
  %v8701 = vmax.f32 %v8695, 0.0
  %v8702 = vmax.f32 %v8696, 0.0
  %v8703 = vmax.f32 %v8697, 0.0
  %v8704 = vmax.f32 %v8698, 0.0
  %v8705 = vpack.c.bf16 %v8699, %v8549
  %v8706 = vpack.c.bf16 %v8700, %v8550
  %v8707 = vpack.c.bf16 %v8701, %v8551
  %v8708 = vpack.c.bf16 %v8702, %v8552
  %v8709 = vpack.c.bf16 %v8703, %v8553
  %v8710 = vpack.c.bf16 %v8704, %v8554
  %v8711 = vld [vmem:[%s47] sm:$0xf]
  %v8712 = vld [vmem:[%s47 + $0x4] sm:$0xf]
  %v8713 = vld [vmem:[%s47 + $0x8] sm:$0xf]
  %v8714 = vld [vmem:[%s47 + $0xc] sm:$0xf]
  %v8715 = vld [vmem:[%s47 + $0x10] sm:$0xf]
  %v8716 = vld [vmem:[%s47 + $0x14] sm:$0xf]
  %v8717 = vld [vmem:[%s47 + $0x18] sm:$0xf]
  %v8718 = vld [vmem:[%s47 + $0x1c] sm:$0xf]
  %v8719 = vld [vmem:[%s47 + $0x20] sm:$0xf]
  %v8720 = vld [vmem:[%s47 + $0x24] sm:$0xf]
  %v8721 = vld [vmem:[%s47 + $0x28] sm:$0xf]
  %v8722 = vld [vmem:[%s47 + $0x2c] sm:$0xf]
  %v8723 = vld [vmem:[%s47 + $0x30] sm:$0xf]
  %v8724 = vld [vmem:[%s47 + $0x34] sm:$0xf]
  %v8725 = vld [vmem:[%s47 + $0x38] sm:$0xf]
  %v8726 = vld [vmem:[%s47 + $0x3c] sm:$0xf]
  %v8727 = vld [vmem:[%s47 + $0x40] sm:$0xf]
  %v8728 = vld [vmem:[%s47 + $0x44] sm:$0xf]
  %v8729 = vld [vmem:[%s47 + $0x48] sm:$0xf]
  %v8730 = vld [vmem:[%s47 + $0x4c] sm:$0xf]
  %v8731 = vld [vmem:[%s47 + $0x50] sm:$0xf]
  %v8732 = vld [vmem:[%s47 + $0x54] sm:$0xf]
  %v8733 = vld [vmem:[%s47 + $0x58] sm:$0xf]
  %v8734 = vld [vmem:[%s47 + $0x5c] sm:$0xf]
  %v8735 = vld [vmem:[%s47 + $0x60] sm:$0xf]
  %v8736 = vld [vmem:[%s47 + $0x64] sm:$0xf]
  %v8737 = vld [vmem:[%s47 + $0x68] sm:$0xf]
  %v8738 = vld [vmem:[%s47 + $0x6c] sm:$0xf]
  %v8739 = vld [vmem:[%s47 + $0x70] sm:$0xf]
  %v8740 = vld [vmem:[%s47 + $0x74] sm:$0xf]
  %v8741 = vld [vmem:[%s47 + $0x78] sm:$0xf]
  %v8742 = vld [vmem:[%s47 + $0x7c] sm:$0xf]
  %v8743 = vld [vmem:[%s47 + $0x80] sm:$0xf]
  %v8744 = vld [vmem:[%s47 + $0x84] sm:$0xf]
  %v8745 = vld [vmem:[%s47 + $0x88] sm:$0xf]
  %v8746 = vld [vmem:[%s47 + $0x8c] sm:$0xf]
  %v8747 = vld [vmem:[%s47 + $0x90] sm:$0xf]
  %v8748 = vld [vmem:[%s47 + $0x94] sm:$0xf]
  %v8749 = vld [vmem:[%s47 + $0x98] sm:$0xf]
  %v8750 = vld [vmem:[%s47 + $0x9c] sm:$0xf]
  %v8751 = vld [vmem:[%s47 + $0xa0] sm:$0xf]
  %v8752 = vld [vmem:[%s47 + $0xa4] sm:$0xf]
  %v8753 = vld [vmem:[%s47 + $0xa8] sm:$0xf]
  %v8754 = vld [vmem:[%s47 + $0xac] sm:$0xf]
  %v8755 = vld [vmem:[%s47 + $0xb0] sm:$0xf]
  %v8756 = vld [vmem:[%s47 + $0xb4] sm:$0xf]
  %v8757 = vld [vmem:[%s47 + $0xb8] sm:$0xf]
  %v8758 = vld [vmem:[%s47 + $0xbc] sm:$0xf]
  %v8759 = vld [vmem:[%s47 + $0xc0] sm:$0xf]
  %v8760 = vld [vmem:[%s47 + $0xc4] sm:$0xf]
  %v8761 = vld [vmem:[%s47 + $0xc8] sm:$0xf]
  %v8762 = vld [vmem:[%s47 + $0xcc] sm:$0xf]
  %v8763 = vld [vmem:[%s47 + $0xd0] sm:$0xf]
  %v8764 = vld [vmem:[%s47 + $0xd4] sm:$0xf]
  %v8765 = vld [vmem:[%s47 + $0xd8] sm:$0xf]
  %v8766 = vld [vmem:[%s47 + $0xdc] sm:$0xf]
  %v8767 = vld [vmem:[%s47 + $0xe0] sm:$0xf]
  %v8768 = vld [vmem:[%s47 + $0xe4] sm:$0xf]
  %v8769 = vld [vmem:[%s47 + $0xe8] sm:$0xf]
  %v8770 = vld [vmem:[%s47 + $0xec] sm:$0xf]
  %v8771 = vld [vmem:[%s47 + $0xf0] sm:$0xf]
  %v8772 = vld [vmem:[%s47 + $0xf4] sm:$0xf]
  %v8773 = vld [vmem:[%s47 + $0xf8] sm:$0xf]
  %v8774 = vld [vmem:[%s47 + $0xfc] sm:$0xf]
  %v8775 = vld [vmem:[%s47 + $0x100] sm:$0xf]
  %v8776 = vld [vmem:[%s47 + $0x104] sm:$0xf]
  %v8777 = vld [vmem:[%s47 + $0x108] sm:$0xf]
  %v8778 = vld [vmem:[%s47 + $0x10c] sm:$0xf]
  %v8779 = vld [vmem:[%s47 + $0x110] sm:$0xf]
  %v8780 = vld [vmem:[%s47 + $0x114] sm:$0xf]
  %v8781 = vld [vmem:[%s47 + $0x118] sm:$0xf]
  %v8782 = vld [vmem:[%s47 + $0x11c] sm:$0xf]
  %v8783 = vld [vmem:[%s47 + $0x120] sm:$0xf]
  %v8784 = vld [vmem:[%s47 + $0x124] sm:$0xf]
  %v8785 = vld [vmem:[%s47 + $0x128] sm:$0xf]
  %v8786 = vld [vmem:[%s47 + $0x12c] sm:$0xf]
  %v8787 = vld [vmem:[%s47 + $0x130] sm:$0xf]
  %v8788 = vld [vmem:[%s47 + $0x134] sm:$0xf]
  %v8789 = vld [vmem:[%s47 + $0x138] sm:$0xf]
  %v8790 = vld [vmem:[%s47 + $0x13c] sm:$0xf]
  %v8791 = vld [vmem:[%s47 + $0x140] sm:$0xf]
  %v8792 = vld [vmem:[%s47 + $0x144] sm:$0xf]
  %v8793 = vld [vmem:[%s47 + $0x148] sm:$0xf]
  %v8794 = vld [vmem:[%s47 + $0x14c] sm:$0xf]
  %v8795 = vld [vmem:[%s47 + $0x150] sm:$0xf]
  %v8796 = vld [vmem:[%s47 + $0x154] sm:$0xf]
  %v8797 = vld [vmem:[%s47 + $0x158] sm:$0xf]
  %v8798 = vld [vmem:[%s47 + $0x15c] sm:$0xf]
  %v8799 = vld [vmem:[%s47 + $0x160] sm:$0xf]
  %v8800 = vld [vmem:[%s47 + $0x164] sm:$0xf]
  %v8801 = vld [vmem:[%s47 + $0x168] sm:$0xf]
  %v8802 = vld [vmem:[%s47 + $0x16c] sm:$0xf]
  %v8803 = vld [vmem:[%s47 + $0x170] sm:$0xf]
  %v8804 = vld [vmem:[%s47 + $0x174] sm:$0xf]
  %v8805 = vld [vmem:[%s47 + $0x178] sm:$0xf]
  %v8806 = vld [vmem:[%s47 + $0x17c] sm:$0xf]
  %v8807 = vld [vmem:[%s49] sm:$0x1]
  %v8809 = vlaneseq
  %v8810 = vshrl.u32 %v8809, 7
  %v8811 = vsub.s32 0, %v8810
  %v8812 = vrot.slane %v8807, %v8811
  %v8910 = vunpack.c.l.b16 %v8711
  %v8911 = vunpack.c.l.b16 %v8712
  %v8912 = vunpack.c.l.b16 %v8713
  %v8913 = vunpack.c.l.b16 %v8714
  %v8914 = vunpack.c.l.b16 %v8715
  %v8915 = vunpack.c.l.b16 %v8716
  %v8916 = vunpack.c.l.b16 %v8717
  %v8917 = vunpack.c.l.b16 %v8718
  %v8918 = vunpack.c.l.b16 %v8719
  %v8919 = vunpack.c.l.b16 %v8720
  %v8920 = vunpack.c.l.b16 %v8721
  %v8921 = vunpack.c.l.b16 %v8722
  %v8922 = vunpack.c.l.b16 %v8723
  %v8923 = vunpack.c.l.b16 %v8724
  %v8924 = vunpack.c.l.b16 %v8725
  %v8925 = vunpack.c.l.b16 %v8726
  %v8926 = vunpack.c.l.b16 %v8727
  %v8927 = vunpack.c.l.b16 %v8728
  %v8928 = vunpack.c.l.b16 %v8729
  %v8929 = vunpack.c.l.b16 %v8730
  %v8930 = vunpack.c.l.b16 %v8731
  %v8931 = vunpack.c.l.b16 %v8732
  %v8932 = vunpack.c.l.b16 %v8733
  %v8933 = vunpack.c.l.b16 %v8734
  %v8934 = vunpack.c.l.b16 %v8735
  %v8935 = vunpack.c.l.b16 %v8736
  %v8936 = vunpack.c.l.b16 %v8737
  %v8937 = vunpack.c.l.b16 %v8738
  %v8938 = vunpack.c.l.b16 %v8739
  %v8939 = vunpack.c.l.b16 %v8740
  %v8940 = vunpack.c.l.b16 %v8741
  %v8941 = vunpack.c.l.b16 %v8742
  %v8942 = vunpack.c.l.b16 %v8743
  %v8943 = vunpack.c.l.b16 %v8744
  %v8944 = vunpack.c.l.b16 %v8745
  %v8945 = vunpack.c.l.b16 %v8746
  %v8946 = vunpack.c.l.b16 %v8747
  %v8947 = vunpack.c.l.b16 %v8748
  %v8948 = vunpack.c.l.b16 %v8749
  %v8949 = vunpack.c.l.b16 %v8750
  %v8950 = vunpack.c.l.b16 %v8751
  %v8951 = vunpack.c.l.b16 %v8752
  %v8952 = vunpack.c.l.b16 %v8753
  %v8953 = vunpack.c.l.b16 %v8754
  %v8954 = vunpack.c.l.b16 %v8755
  %v8955 = vunpack.c.l.b16 %v8756
  %v8956 = vunpack.c.l.b16 %v8757
  %v8957 = vunpack.c.l.b16 %v8758
  %v8958 = vunpack.c.l.b16 %v8759
  %v8959 = vunpack.c.l.b16 %v8760
  %v8960 = vunpack.c.l.b16 %v8761
  %v8961 = vunpack.c.l.b16 %v8762
  %v8962 = vunpack.c.l.b16 %v8763
  %v8963 = vunpack.c.l.b16 %v8764
  %v8964 = vunpack.c.l.b16 %v8765
  %v8965 = vunpack.c.l.b16 %v8766
  %v8966 = vunpack.c.l.b16 %v8767
  %v8967 = vunpack.c.l.b16 %v8768
  %v8968 = vunpack.c.l.b16 %v8769
  %v8969 = vunpack.c.l.b16 %v8770
  %v8970 = vunpack.c.l.b16 %v8771
  %v8971 = vunpack.c.l.b16 %v8772
  %v8972 = vunpack.c.l.b16 %v8773
  %v8973 = vunpack.c.l.b16 %v8774
  %v8974 = vunpack.c.l.b16 %v8775
  %v8975 = vunpack.c.l.b16 %v8776
  %v8976 = vunpack.c.l.b16 %v8777
  %v8977 = vunpack.c.l.b16 %v8778
  %v8978 = vunpack.c.l.b16 %v8779
  %v8979 = vunpack.c.l.b16 %v8780
  %v8980 = vunpack.c.l.b16 %v8781
  %v8981 = vunpack.c.l.b16 %v8782
  %v8982 = vunpack.c.l.b16 %v8783
  %v8983 = vunpack.c.l.b16 %v8784
  %v8984 = vunpack.c.l.b16 %v8785
  %v8985 = vunpack.c.l.b16 %v8786
  %v8986 = vunpack.c.l.b16 %v8787
  %v8987 = vunpack.c.l.b16 %v8788
  %v8988 = vunpack.c.l.b16 %v8789
  %v8989 = vunpack.c.l.b16 %v8790
  %v8990 = vunpack.c.l.b16 %v8791
  %v8991 = vunpack.c.l.b16 %v8792
  %v8992 = vunpack.c.l.b16 %v8793
  %v8993 = vunpack.c.l.b16 %v8794
  %v8994 = vunpack.c.l.b16 %v8795
  %v8995 = vunpack.c.l.b16 %v8796
  %v8996 = vunpack.c.l.b16 %v8797
  %v8997 = vunpack.c.l.b16 %v8798
  %v8998 = vunpack.c.l.b16 %v8799
  %v8999 = vunpack.c.l.b16 %v8800
  %v9000 = vunpack.c.l.b16 %v8801
  %v9001 = vunpack.c.l.b16 %v8802
  %v9002 = vunpack.c.l.b16 %v8803
  %v9003 = vunpack.c.l.b16 %v8804
  %v9004 = vunpack.c.l.b16 %v8805
  %v9005 = vunpack.c.l.b16 %v8806
  %v9006 = vpack.c.b16 %v8911, %v8910
  %v9007 = vpack.c.b16 %v8913, %v8912
  %v9008 = vpack.c.b16 %v8915, %v8914
  %v9009 = vpack.c.b16 %v8917, %v8916
  %v9010 = vpack.c.b16 %v8919, %v8918
  %v9011 = vpack.c.b16 %v8921, %v8920
  %v9012 = vpack.c.b16 %v8923, %v8922
  %v9013 = vpack.c.b16 %v8925, %v8924
  %v9014 = vpack.c.b16 %v8927, %v8926
  %v9015 = vpack.c.b16 %v8929, %v8928
  %v9016 = vpack.c.b16 %v8931, %v8930
  %v9017 = vpack.c.b16 %v8933, %v8932
  %v9018 = vpack.c.b16 %v8935, %v8934
  %v9019 = vpack.c.b16 %v8937, %v8936
  %v9020 = vpack.c.b16 %v8939, %v8938
  %v9021 = vpack.c.b16 %v8941, %v8940
  %v9022 = vpack.c.b16 %v8943, %v8942
  %v9023 = vpack.c.b16 %v8945, %v8944
  %v9024 = vpack.c.b16 %v8947, %v8946
  %v9025 = vpack.c.b16 %v8949, %v8948
  %v9026 = vpack.c.b16 %v8951, %v8950
  %v9027 = vpack.c.b16 %v8953, %v8952
  %v9028 = vpack.c.b16 %v8955, %v8954
  %v9029 = vpack.c.b16 %v8957, %v8956
  %v9030 = vpack.c.b16 %v8959, %v8958
  %v9031 = vpack.c.b16 %v8961, %v8960
  %v9032 = vpack.c.b16 %v8963, %v8962
  %v9033 = vpack.c.b16 %v8965, %v8964
  %v9034 = vpack.c.b16 %v8967, %v8966
  %v9035 = vpack.c.b16 %v8969, %v8968
  %v9036 = vpack.c.b16 %v8971, %v8970
  %v9037 = vpack.c.b16 %v8973, %v8972
  %v9038 = vpack.c.b16 %v8975, %v8974
  %v9039 = vpack.c.b16 %v8977, %v8976
  %v9040 = vpack.c.b16 %v8979, %v8978
  %v9041 = vpack.c.b16 %v8981, %v8980
  %v9042 = vpack.c.b16 %v8983, %v8982
  %v9043 = vpack.c.b16 %v8985, %v8984
  %v9044 = vpack.c.b16 %v8987, %v8986
  %v9045 = vpack.c.b16 %v8989, %v8988
  %v9046 = vpack.c.b16 %v8991, %v8990
  %v9047 = vpack.c.b16 %v8993, %v8992
  %v9048 = vpack.c.b16 %v8995, %v8994
  %v9049 = vpack.c.b16 %v8997, %v8996
  %v9050 = vpack.c.b16 %v8999, %v8998
  %v9051 = vpack.c.b16 %v9001, %v9000
  %v9052 = vpack.c.b16 %v9003, %v9002
  %v9053 = vpack.c.b16 %v9005, %v9004
  %9102 = vmatprep.subr.bf16.mxu0 0
  %9103 = vmatpush1.bf16.msra.mxu0 %v9006
  %9104 = vmatprep.subr.bf16.mxu0 0
  %9105 = vmatpush1.bf16.msra.mxu0 %v9007
  %9106 = vmatprep.subr.bf16.mxu0 0
  %9107 = vmatpush1.bf16.msra.mxu0 %v9008
  %9108 = vmatprep.subr.bf16.mxu0 0
  %9109 = vmatpush1.bf16.msra.mxu0 %v9009
  %9110 = vmatprep.subr.bf16.mxu0 0
  %9111 = vmatpush1.bf16.msra.mxu0 %v9010
  %9112 = vmatprep.subr.bf16.mxu0 0
  %9113 = vmatpush1.bf16.msra.mxu0 %v9011
  %9114 = vmatprep.subr.bf16.mxu0 0
  %9115 = vmatpush1.bf16.msra.mxu0 %v9012
  %9116 = vmatprep.subr.bf16.mxu0 0
  %9117 = vmatpush1.bf16.msra.mxu0 %v9013
  %9118 = vmatprep.subr.bf16.mxu0 0
  %9119 = vmatpush1.bf16.msra.mxu0 %v9014
  %9120 = vmatprep.subr.bf16.mxu0 0
  %9121 = vmatpush1.bf16.msra.mxu0 %v9015
  %9122 = vmatprep.subr.bf16.mxu0 0
  %9123 = vmatpush1.bf16.msra.mxu0 %v9016
  %9124 = vmatprep.subr.bf16.mxu0 0
  %9125 = vmatpush1.bf16.msra.mxu0 %v9017
  %9126 = vmatprep.subr.bf16.mxu0 0
  %9127 = vmatpush1.bf16.msra.mxu0 %v9018
  %9128 = vmatprep.subr.bf16.mxu0 0
  %9129 = vmatpush1.bf16.msra.mxu0 %v9019
  %9130 = vmatprep.subr.bf16.mxu0 0
  %9131 = vmatpush1.bf16.msra.mxu0 %v9020
  %9132 = vmatprep.subr.bf16.mxu0 0
  %9133 = vmatpush1.bf16.msra.mxu0 %v9021
  %9134 = vmatprep.mubr.bf16.mxu0 %v8706
  %9135 = vmatmul.mubr.bf16.gmra.mrb[0].mxu0 %v8705
  %v9136 = vpop.f32.mrb[0].mxu0
  %v9137 = vadd.f32 %v8812, %v9136
  %v9138 = vpop.f32.mrb[0].mxu0
  %v9139 = vpop.f32.mrb[0].mxu0
  %v9140 = vadd.f32 %v8812, %v9139
  %v9141 = vpop.f32.mrb[0].mxu0
  %9142 = vdwg.mxu0
  %9143 = vmatprep.subr.bf16.mxu0 0
  %9144 = vmatpush1.bf16.msra.mxu0 %v9022
  %9145 = vmatprep.subr.bf16.mxu0 0
  %9146 = vmatpush1.bf16.msra.mxu0 %v9023
  %9147 = vmatprep.subr.bf16.mxu0 0
  %9148 = vmatpush1.bf16.msra.mxu0 %v9024
  %9149 = vmatprep.subr.bf16.mxu0 0
  %9150 = vmatpush1.bf16.msra.mxu0 %v9025
  %9151 = vmatprep.subr.bf16.mxu0 0
  %9152 = vmatpush1.bf16.msra.mxu0 %v9026
  %9153 = vmatprep.subr.bf16.mxu0 0
  %9154 = vmatpush1.bf16.msra.mxu0 %v9027
  %9155 = vmatprep.subr.bf16.mxu0 0
  %9156 = vmatpush1.bf16.msra.mxu0 %v9028
  %9157 = vmatprep.subr.bf16.mxu0 0
  %9158 = vmatpush1.bf16.msra.mxu0 %v9029
  %9159 = vmatprep.subr.bf16.mxu0 0
  %9160 = vmatpush1.bf16.msra.mxu0 %v9030
  %9161 = vmatprep.subr.bf16.mxu0 0
  %9162 = vmatpush1.bf16.msra.mxu0 %v9031
  %9163 = vmatprep.subr.bf16.mxu0 0
  %9164 = vmatpush1.bf16.msra.mxu0 %v9032
  %9165 = vmatprep.subr.bf16.mxu0 0
  %9166 = vmatpush1.bf16.msra.mxu0 %v9033
  %9167 = vmatprep.subr.bf16.mxu0 0
  %9168 = vmatpush1.bf16.msra.mxu0 %v9034
  %9169 = vmatprep.subr.bf16.mxu0 0
  %9170 = vmatpush1.bf16.msra.mxu0 %v9035
  %9171 = vmatprep.subr.bf16.mxu0 0
  %9172 = vmatpush1.bf16.msra.mxu0 %v9036
  %9173 = vmatprep.subr.bf16.mxu0 0
  %9174 = vmatpush1.bf16.msra.mxu0 %v9037
  %9175 = vmatprep.mubr.bf16.mxu0 %v8708
  %9176 = vmatmul.mubr.bf16.gmra.mrb[0].mxu0 %v8707
  %v9177 = vpop.f32.mrb[0].mxu0
  %v9178 = vadd.f32 %v9137, %v9177
  %v9179 = vpop.f32.mrb[0].mxu0
  %v9180 = vpop.f32.mrb[0].mxu0
  %v9181 = vadd.f32 %v9140, %v9180
  %v9182 = vpop.f32.mrb[0].mxu0
  %9183 = vdwg.mxu0
  %9184 = vmatprep.subr.bf16.mxu0 0
  %9185 = vmatpush1.bf16.msra.mxu0 %v9038
  %9186 = vmatprep.subr.bf16.mxu0 0
  %9187 = vmatpush1.bf16.msra.mxu0 %v9039
  %9188 = vmatprep.subr.bf16.mxu0 0
  %9189 = vmatpush1.bf16.msra.mxu0 %v9040
  %9190 = vmatprep.subr.bf16.mxu0 0
  %9191 = vmatpush1.bf16.msra.mxu0 %v9041
  %9192 = vmatprep.subr.bf16.mxu0 0
  %9193 = vmatpush1.bf16.msra.mxu0 %v9042
  %9194 = vmatprep.subr.bf16.mxu0 0
  %9195 = vmatpush1.bf16.msra.mxu0 %v9043
  %9196 = vmatprep.subr.bf16.mxu0 0
  %9197 = vmatpush1.bf16.msra.mxu0 %v9044
  %9198 = vmatprep.subr.bf16.mxu0 0
  %9199 = vmatpush1.bf16.msra.mxu0 %v9045
  %9200 = vmatprep.subr.bf16.mxu0 0
  %9201 = vmatpush1.bf16.msra.mxu0 %v9046
  %9202 = vmatprep.subr.bf16.mxu0 0
  %9203 = vmatpush1.bf16.msra.mxu0 %v9047
  %9204 = vmatprep.subr.bf16.mxu0 0
  %9205 = vmatpush1.bf16.msra.mxu0 %v9048
  %9206 = vmatprep.subr.bf16.mxu0 0
  %9207 = vmatpush1.bf16.msra.mxu0 %v9049
  %9208 = vmatprep.subr.bf16.mxu0 0
  %9209 = vmatpush1.bf16.msra.mxu0 %v9050
  %9210 = vmatprep.subr.bf16.mxu0 0
  %9211 = vmatpush1.bf16.msra.mxu0 %v9051
  %9212 = vmatprep.subr.bf16.mxu0 0
  %9213 = vmatpush1.bf16.msra.mxu0 %v9052
  %9214 = vmatprep.subr.bf16.mxu0 0
  %9215 = vmatpush1.bf16.msra.mxu0 %v9053
  %9216 = vmatprep.mubr.bf16.mxu0 %v8710
  %9217 = vmatmul.mubr.bf16.gmra.mrb[0].mxu0 %v8709
  %v9218 = vpop.f32.mrb[0].mxu0
  %v9219 = vadd.f32 %v9178, %v9218
  %v9220 = vpop.f32.mrb[0].mxu0
  %v9221 = vpop.f32.mrb[0].mxu0
  %v9222 = vadd.f32 %v9181, %v9221
  %v9223 = vpop.f32.mrb[0].mxu0
  %9224 = vdwg.mxu0
  %v9225 = vld [vmem:[%s51] sm:$0x1]
  %v9226 = vld [vmem:[%s53] sm:$0x1]
  %v9227 = vrot.slane %v9219, 4
  %v9228 = vadd.f32 %v9219, %v9227
  %v9229 = vrot.slane %v9228, 2
  %v9230 = vadd.f32 %v9228, %v9229
  %v9231 = vrot.slane %v9230, 1
  %v9232 = vadd.f32 %v9230, %v9231
  %v9233 = vmul.f32 %v9232, %v2590
  %v9234 = vmul.f32 %v9219, %v9219
  %v9235 = vrot.slane %v9234, 4
  %v9236 = vadd.f32 %v9234, %v9235
  %v9237 = vrot.slane %v9236, 2
  %v9238 = vadd.f32 %v9236, %v9237
  %v9239 = vrot.slane %v9238, 1
  %v9240 = vadd.f32 %v9238, %v9239
  %v9241 = vmul.f32 %v9240, %v2590
  %v9242 = vmul.f32 %v9233, %v9233
  %v9243 = vsub.f32 %v9241, %v9242
  %v9244 = vmax.f32 %v9243, 0.0
  %v9245 = vsub.f32 %v9219, %v9233
  %v9246 = vadd.f32 %v9244, 1e-05
  %v9247 = vrsqrt.pop %v9246
  %v9248 = vmul.f32 %v9245, %v9247
  %v9250 = vlaneseq
  %v9251 = vshrl.u32 %v9250, 7
  %v9252 = vsub.s32 0, %v9251
  %v9253 = vrot.slane %v9225, %v9252
  %v9255 = vmul.f32 %v9248, %v9253
  %v9257 = vlaneseq
  %v9258 = vshrl.u32 %v9257, 7
  %v9259 = vsub.s32 0, %v9258
  %v9260 = vrot.slane %v9226, %v9259
  %v9262 = vadd.f32 %v9255, %v9260
  %v9263 = vmax.f32 %v9262, 0.0
  %v9264 = vrot.slane %v9222, 4
  %v9265 = vadd.f32 %v9222, %v9264
  %v9266 = vrot.slane %v9265, 2
  %v9267 = vadd.f32 %v9265, %v9266
  %v9268 = vrot.slane %v9267, 1
  %v9269 = vadd.f32 %v9267, %v9268
  %v9270 = vmul.f32 %v9269, %v2590
  %v9271 = vmul.f32 %v9222, %v9222
  %v9272 = vrot.slane %v9271, 4
  %v9273 = vadd.f32 %v9271, %v9272
  %v9274 = vrot.slane %v9273, 2
  %v9275 = vadd.f32 %v9273, %v9274
  %v9276 = vrot.slane %v9275, 1
  %v9277 = vadd.f32 %v9275, %v9276
  %v9278 = vmul.f32 %v9277, %v2590
  %v9279 = vmul.f32 %v9270, %v9270
  %v9280 = vsub.f32 %v9278, %v9279
  %v9281 = vmax.f32 %v9280, 0.0
  %v9282 = vsub.f32 %v9222, %v9270
  %v9283 = vadd.f32 %v9281, 1e-05
  %v9284 = vrsqrt.pop %v9283
  %v9285 = vmul.f32 %v9282, %v9284
  %v9286 = vmul.f32 %v9285, %v9253
  %v9287 = vadd.f32 %v9286, %v9260
  %v9288 = vmax.f32 %v9287, 0.0
  %v9289 = vpack.c.bf16 %v9288, %v9263
  %v9290 = vld [vmem:[%s55] sm:$0xff]
  %v9291 = vld [vmem:[%s55 + $0x8] sm:$0xff]
  %v9292 = vld [vmem:[%s55 + $0x10] sm:$0xff]
  %v9293 = vld [vmem:[%s55 + $0x18] sm:$0xff]
  %v9294 = vld [vmem:[%s55 + $0x20] sm:$0xff]
  %v9295 = vld [vmem:[%s55 + $0x28] sm:$0xff]
  %v9296 = vld [vmem:[%s55 + $0x30] sm:$0xff]
  %v9297 = vld [vmem:[%s55 + $0x38] sm:$0xff]
  %v9298 = vld [vmem:[%s55 + $0x40] sm:$0xff]
  %v9299 = vld [vmem:[%s55 + $0x48] sm:$0xff]
  %v9300 = vld [vmem:[%s55 + $0x50] sm:$0xff]
  %v9301 = vld [vmem:[%s55 + $0x58] sm:$0xff]
  %v9302 = vld [vmem:[%s55 + $0x60] sm:$0xff]
  %v9303 = vld [vmem:[%s55 + $0x68] sm:$0xff]
  %v9304 = vld [vmem:[%s55 + $0x70] sm:$0xff]
  %v9305 = vld [vmem:[%s55 + $0x78] sm:$0xff]
  %v9306 = vld [vmem:[%s55 + $0x80] sm:$0xff]
  %v9307 = vld [vmem:[%s55 + $0x88] sm:$0xff]
  %v9308 = vld [vmem:[%s55 + $0x90] sm:$0xff]
  %v9309 = vld [vmem:[%s55 + $0x98] sm:$0xff]
  %v9310 = vld [vmem:[%s55 + $0xa0] sm:$0xff]
  %v9311 = vld [vmem:[%s55 + $0xa8] sm:$0xff]
  %v9312 = vld [vmem:[%s55 + $0xb0] sm:$0xff]
  %v9313 = vld [vmem:[%s55 + $0xb8] sm:$0xff]
  %v9314 = vld [vmem:[%s55 + $0xc0] sm:$0xff]
  %v9315 = vld [vmem:[%s55 + $0xc8] sm:$0xff]
  %v9316 = vld [vmem:[%s55 + $0xd0] sm:$0xff]
  %v9317 = vld [vmem:[%s55 + $0xd8] sm:$0xff]
  %v9318 = vld [vmem:[%s55 + $0xe0] sm:$0xff]
  %v9319 = vld [vmem:[%s55 + $0xe8] sm:$0xff]
  %v9320 = vld [vmem:[%s55 + $0xf0] sm:$0xff]
  %v9321 = vld [vmem:[%s55 + $0xf8] sm:$0xff]
  %v9322 = vld [vmem:[%s55 + $0x100] sm:$0xff]
  %v9323 = vld [vmem:[%s55 + $0x108] sm:$0xff]
  %v9324 = vld [vmem:[%s55 + $0x110] sm:$0xff]
  %v9325 = vld [vmem:[%s55 + $0x118] sm:$0xff]
  %v9326 = vld [vmem:[%s55 + $0x120] sm:$0xff]
  %v9327 = vld [vmem:[%s55 + $0x128] sm:$0xff]
  %v9328 = vld [vmem:[%s55 + $0x130] sm:$0xff]
  %v9329 = vld [vmem:[%s55 + $0x138] sm:$0xff]
  %v9330 = vld [vmem:[%s55 + $0x140] sm:$0xff]
  %v9331 = vld [vmem:[%s55 + $0x148] sm:$0xff]
  %v9332 = vld [vmem:[%s55 + $0x150] sm:$0xff]
  %v9333 = vld [vmem:[%s55 + $0x158] sm:$0xff]
  %v9334 = vld [vmem:[%s55 + $0x160] sm:$0xff]
  %v9335 = vld [vmem:[%s55 + $0x168] sm:$0xff]
  %v9336 = vld [vmem:[%s55 + $0x170] sm:$0xff]
  %v9337 = vld [vmem:[%s55 + $0x178] sm:$0xff]
  %v9338 = vld [vmem:[%s57] sm:$0x3f]
  %v9340 = vlaneseq
  %v9341 = vshrl.u32 %v9340, 7
  %v9342 = vsub.s32 0, %v9341
  %v9343 = vrot.slane %v9338, %v9342
  %v9344 = vlaneseq
  %v9345 = vshrl.u32 %v9344, 7
  %v9346 = vsub.s32 1, %v9345
  %v9347 = vrot.slane %v9338, %v9346
  %v9348 = vlaneseq
  %v9349 = vshrl.u32 %v9348, 7
  %v9350 = vsub.s32 2, %v9349
  %v9351 = vrot.slane %v9338, %v9350
  %v9352 = vlaneseq
  %v9353 = vshrl.u32 %v9352, 7
  %v9354 = vsub.s32 3, %v9353
  %v9355 = vrot.slane %v9338, %v9354
  %v9356 = vlaneseq
  %v9357 = vshrl.u32 %v9356, 7
  %v9358 = vsub.s32 4, %v9357
  %v9359 = vrot.slane %v9338, %v9358
  %v9360 = vlaneseq
  %v9361 = vshrl.u32 %v9360, 7
  %v9362 = vsub.s32 5, %v9361
  %v9363 = vrot.slane %v9338, %v9362
  %v9418 = vunpack.c.l.b16 %v9290
  %v9419 = vunpack.c.h.b16 %v9290
  %v9420 = vunpack.c.l.b16 %v9291
  %v9421 = vunpack.c.h.b16 %v9291
  %v9422 = vunpack.c.l.b16 %v9292
  %v9423 = vunpack.c.h.b16 %v9292
  %v9424 = vunpack.c.l.b16 %v9293
  %v9425 = vunpack.c.h.b16 %v9293
  %v9426 = vunpack.c.l.b16 %v9294
  %v9427 = vunpack.c.h.b16 %v9294
  %v9428 = vunpack.c.l.b16 %v9295
  %v9429 = vunpack.c.h.b16 %v9295
  %v9430 = vunpack.c.l.b16 %v9296
  %v9431 = vunpack.c.h.b16 %v9296
  %v9432 = vunpack.c.l.b16 %v9297
  %v9433 = vunpack.c.h.b16 %v9297
  %v9434 = vunpack.c.l.b16 %v9298
  %v9435 = vunpack.c.h.b16 %v9298
  %v9436 = vunpack.c.l.b16 %v9299
  %v9437 = vunpack.c.h.b16 %v9299
  %v9438 = vunpack.c.l.b16 %v9300
  %v9439 = vunpack.c.h.b16 %v9300
  %v9440 = vunpack.c.l.b16 %v9301
  %v9441 = vunpack.c.h.b16 %v9301
  %v9442 = vunpack.c.l.b16 %v9302
  %v9443 = vunpack.c.h.b16 %v9302
  %v9444 = vunpack.c.l.b16 %v9303
  %v9445 = vunpack.c.h.b16 %v9303
  %v9446 = vunpack.c.l.b16 %v9304
  %v9447 = vunpack.c.h.b16 %v9304
  %v9448 = vunpack.c.l.b16 %v9305
  %v9449 = vunpack.c.h.b16 %v9305
  %v9450 = vunpack.c.l.b16 %v9306
  %v9451 = vunpack.c.h.b16 %v9306
  %v9452 = vunpack.c.l.b16 %v9307
  %v9453 = vunpack.c.h.b16 %v9307
  %v9454 = vunpack.c.l.b16 %v9308
  %v9455 = vunpack.c.h.b16 %v9308
  %v9456 = vunpack.c.l.b16 %v9309
  %v9457 = vunpack.c.h.b16 %v9309
  %v9458 = vunpack.c.l.b16 %v9310
  %v9459 = vunpack.c.h.b16 %v9310
  %v9460 = vunpack.c.l.b16 %v9311
  %v9461 = vunpack.c.h.b16 %v9311
  %v9462 = vunpack.c.l.b16 %v9312
  %v9463 = vunpack.c.h.b16 %v9312
  %v9464 = vunpack.c.l.b16 %v9313
  %v9465 = vunpack.c.h.b16 %v9313
  %v9466 = vunpack.c.l.b16 %v9314
  %v9467 = vunpack.c.h.b16 %v9314
  %v9468 = vunpack.c.l.b16 %v9315
  %v9469 = vunpack.c.h.b16 %v9315
  %v9470 = vunpack.c.l.b16 %v9316
  %v9471 = vunpack.c.h.b16 %v9316
  %v9472 = vunpack.c.l.b16 %v9317
  %v9473 = vunpack.c.h.b16 %v9317
  %v9474 = vunpack.c.l.b16 %v9318
  %v9475 = vunpack.c.h.b16 %v9318
  %v9476 = vunpack.c.l.b16 %v9319
  %v9477 = vunpack.c.h.b16 %v9319
  %v9478 = vunpack.c.l.b16 %v9320
  %v9479 = vunpack.c.h.b16 %v9320
  %v9480 = vunpack.c.l.b16 %v9321
  %v9481 = vunpack.c.h.b16 %v9321
  %v9482 = vunpack.c.l.b16 %v9322
  %v9483 = vunpack.c.h.b16 %v9322
  %v9484 = vunpack.c.l.b16 %v9323
  %v9485 = vunpack.c.h.b16 %v9323
  %v9486 = vunpack.c.l.b16 %v9324
  %v9487 = vunpack.c.h.b16 %v9324
  %v9488 = vunpack.c.l.b16 %v9325
  %v9489 = vunpack.c.h.b16 %v9325
  %v9490 = vunpack.c.l.b16 %v9326
  %v9491 = vunpack.c.h.b16 %v9326
  %v9492 = vunpack.c.l.b16 %v9327
  %v9493 = vunpack.c.h.b16 %v9327
  %v9494 = vunpack.c.l.b16 %v9328
  %v9495 = vunpack.c.h.b16 %v9328
  %v9496 = vunpack.c.l.b16 %v9329
  %v9497 = vunpack.c.h.b16 %v9329
  %v9498 = vunpack.c.l.b16 %v9330
  %v9499 = vunpack.c.h.b16 %v9330
  %v9500 = vunpack.c.l.b16 %v9331
  %v9501 = vunpack.c.h.b16 %v9331
  %v9502 = vunpack.c.l.b16 %v9332
  %v9503 = vunpack.c.h.b16 %v9332
  %v9504 = vunpack.c.l.b16 %v9333
  %v9505 = vunpack.c.h.b16 %v9333
  %v9506 = vunpack.c.l.b16 %v9334
  %v9507 = vunpack.c.h.b16 %v9334
  %v9508 = vunpack.c.l.b16 %v9335
  %v9509 = vunpack.c.h.b16 %v9335
  %v9510 = vunpack.c.l.b16 %v9336
  %v9511 = vunpack.c.h.b16 %v9336
  %v9512 = vunpack.c.l.b16 %v9337
  %v9513 = vunpack.c.h.b16 %v9337
  %v9514 = vpack.c.b16 %v9424, %v9418
  %v9515 = vpack.c.b16 %v9425, %v9419
  %v9516 = vpack.c.b16 %v9426, %v9420
  %v9517 = vpack.c.b16 %v9427, %v9421
  %v9518 = vpack.c.b16 %v9428, %v9422
  %v9519 = vpack.c.b16 %v9429, %v9423
  %v9520 = vpack.c.b16 %v9436, %v9430
  %v9521 = vpack.c.b16 %v9437, %v9431
  %v9522 = vpack.c.b16 %v9438, %v9432
  %v9523 = vpack.c.b16 %v9439, %v9433
  %v9524 = vpack.c.b16 %v9440, %v9434
  %v9525 = vpack.c.b16 %v9441, %v9435
  %v9526 = vpack.c.b16 %v9448, %v9442
  %v9527 = vpack.c.b16 %v9449, %v9443
  %v9528 = vpack.c.b16 %v9450, %v9444
  %v9529 = vpack.c.b16 %v9451, %v9445
  %v9530 = vpack.c.b16 %v9452, %v9446
  %v9531 = vpack.c.b16 %v9453, %v9447
  %v9532 = vpack.c.b16 %v9460, %v9454
  %v9533 = vpack.c.b16 %v9461, %v9455
  %v9534 = vpack.c.b16 %v9462, %v9456
  %v9535 = vpack.c.b16 %v9463, %v9457
  %v9536 = vpack.c.b16 %v9464, %v9458
  %v9537 = vpack.c.b16 %v9465, %v9459
  %v9538 = vpack.c.b16 %v9472, %v9466
  %v9539 = vpack.c.b16 %v9473, %v9467
  %v9540 = vpack.c.b16 %v9474, %v9468
  %v9541 = vpack.c.b16 %v9475, %v9469
  %v9542 = vpack.c.b16 %v9476, %v9470
  %v9543 = vpack.c.b16 %v9477, %v9471
  %v9544 = vpack.c.b16 %v9484, %v9478
  %v9545 = vpack.c.b16 %v9485, %v9479
  %v9546 = vpack.c.b16 %v9486, %v9480
  %v9547 = vpack.c.b16 %v9487, %v9481
  %v9548 = vpack.c.b16 %v9488, %v9482
  %v9549 = vpack.c.b16 %v9489, %v9483
  %v9550 = vpack.c.b16 %v9496, %v9490
  %v9551 = vpack.c.b16 %v9497, %v9491
  %v9552 = vpack.c.b16 %v9498, %v9492
  %v9553 = vpack.c.b16 %v9499, %v9493
  %v9554 = vpack.c.b16 %v9500, %v9494
  %v9555 = vpack.c.b16 %v9501, %v9495
  %v9556 = vpack.c.b16 %v9508, %v9502
  %v9557 = vpack.c.b16 %v9509, %v9503
  %v9558 = vpack.c.b16 %v9510, %v9504
  %v9559 = vpack.c.b16 %v9511, %v9505
  %v9560 = vpack.c.b16 %v9512, %v9506
  %v9561 = vpack.c.b16 %v9513, %v9507
  %9610 = vmatprep.subr.bf16.mxu0 %v9515
  %9611 = vmatpush1.bf16.msra.mxu0 %v9514
  %9612 = vmatprep.subr.bf16.mxu0 %v9521
  %9613 = vmatpush1.bf16.msra.mxu0 %v9520
  %9614 = vmatprep.subr.bf16.mxu0 %v9527
  %9615 = vmatpush1.bf16.msra.mxu0 %v9526
  %9616 = vmatprep.subr.bf16.mxu0 %v9533
  %9617 = vmatpush1.bf16.msra.mxu0 %v9532
  %9618 = vmatprep.subr.bf16.mxu0 %v9539
  %9619 = vmatpush1.bf16.msra.mxu0 %v9538
  %9620 = vmatprep.subr.bf16.mxu0 %v9545
  %9621 = vmatpush1.bf16.msra.mxu0 %v9544
  %9622 = vmatprep.subr.bf16.mxu0 %v9551
  %9623 = vmatpush1.bf16.msra.mxu0 %v9550
  %9624 = vmatprep.subr.bf16.mxu0 %v9557
  %9625 = vmatpush1.bf16.msra.mxu0 %v9556
  %9626 = vmatprep.subr.bf16.mxu0 0
  %9627 = vmatpush1.bf16.msra.mxu0 0
  %9628 = vmatprep.subr.bf16.mxu0 0
  %9629 = vmatpush1.bf16.msra.mxu0 0
  %9630 = vmatprep.subr.bf16.mxu0 0
  %9631 = vmatpush1.bf16.msra.mxu0 0
  %9632 = vmatprep.subr.bf16.mxu0 0
  %9633 = vmatpush1.bf16.msra.mxu0 0
  %9634 = vmatprep.subr.bf16.mxu0 0
  %9635 = vmatpush1.bf16.msra.mxu0 0
  %9636 = vmatprep.subr.bf16.mxu0 0
  %9637 = vmatpush1.bf16.msra.mxu0 0
  %9638 = vmatprep.subr.bf16.mxu0 0
  %9639 = vmatpush1.bf16.msra.mxu0 0
  %9640 = vmatprep.subr.bf16.mxu0 0
  %9641 = vmatpush1.bf16.msra.mxu0 0
  %9642 = vmatprep.mubr.bf16.mxu0 0
  %9643 = vmatmul.mubr.bf16.gmra.mrb[0].mxu0 %v9289
  %v9644 = vpop.f32.mrb[0].mxu0
  %v9645 = vadd.f32 %v9343, %v9644
  %v9646 = vpop.f32.mrb[0].mxu0
  %v9647 = vadd.f32 %v9347, %v9646
  %v9648 = vpop.f32.mrb[0].mxu0
  %v9649 = vadd.f32 %v9343, %v9648
  %v9650 = vpop.f32.mrb[0].mxu0
  %v9651 = vadd.f32 %v9347, %v9650
  %9652 = vdwg.mxu0
  %9653 = vmatprep.subr.bf16.mxu0 %v9517
  %9654 = vmatpush1.bf16.msra.mxu0 %v9516
  %9655 = vmatprep.subr.bf16.mxu0 %v9523
  %9656 = vmatpush1.bf16.msra.mxu0 %v9522
  %9657 = vmatprep.subr.bf16.mxu0 %v9529
  %9658 = vmatpush1.bf16.msra.mxu0 %v9528
  %9659 = vmatprep.subr.bf16.mxu0 %v9535
  %9660 = vmatpush1.bf16.msra.mxu0 %v9534
  %9661 = vmatprep.subr.bf16.mxu0 %v9541
  %9662 = vmatpush1.bf16.msra.mxu0 %v9540
  %9663 = vmatprep.subr.bf16.mxu0 %v9547
  %9664 = vmatpush1.bf16.msra.mxu0 %v9546
  %9665 = vmatprep.subr.bf16.mxu0 %v9553
  %9666 = vmatpush1.bf16.msra.mxu0 %v9552
  %9667 = vmatprep.subr.bf16.mxu0 %v9559
  %9668 = vmatpush1.bf16.msra.mxu0 %v9558
  %9669 = vmatprep.subr.bf16.mxu0 0
  %9670 = vmatpush1.bf16.msra.mxu0 0
  %9671 = vmatprep.subr.bf16.mxu0 0
  %9672 = vmatpush1.bf16.msra.mxu0 0
  %9673 = vmatprep.subr.bf16.mxu0 0
  %9674 = vmatpush1.bf16.msra.mxu0 0
  %9675 = vmatprep.subr.bf16.mxu0 0
  %9676 = vmatpush1.bf16.msra.mxu0 0
  %9677 = vmatprep.subr.bf16.mxu0 0
  %9678 = vmatpush1.bf16.msra.mxu0 0
  %9679 = vmatprep.subr.bf16.mxu0 0
  %9680 = vmatpush1.bf16.msra.mxu0 0
  %9681 = vmatprep.subr.bf16.mxu0 0
  %9682 = vmatpush1.bf16.msra.mxu0 0
  %9683 = vmatprep.subr.bf16.mxu0 0
  %9684 = vmatpush1.bf16.msra.mxu0 0
  %9685 = vmatprep.mubr.bf16.mxu0 0
  %9686 = vmatmul.mubr.bf16.gmra.mrb[0].mxu0 %v9289
  %v9687 = vpop.f32.mrb[0].mxu0
  %v9688 = vadd.f32 %v9351, %v9687
  %v9689 = vpop.f32.mrb[0].mxu0
  %v9690 = vadd.f32 %v9355, %v9689
  %v9691 = vpop.f32.mrb[0].mxu0
  %v9692 = vadd.f32 %v9351, %v9691
  %v9693 = vpop.f32.mrb[0].mxu0
  %v9694 = vadd.f32 %v9355, %v9693
  %9695 = vdwg.mxu0
  %9696 = vmatprep.subr.bf16.mxu0 %v9519
  %9697 = vmatpush1.bf16.msra.mxu0 %v9518
  %9698 = vmatprep.subr.bf16.mxu0 %v9525
  %9699 = vmatpush1.bf16.msra.mxu0 %v9524
  %9700 = vmatprep.subr.bf16.mxu0 %v9531
  %9701 = vmatpush1.bf16.msra.mxu0 %v9530
  %9702 = vmatprep.subr.bf16.mxu0 %v9537
  %9703 = vmatpush1.bf16.msra.mxu0 %v9536
  %9704 = vmatprep.subr.bf16.mxu0 %v9543
  %9705 = vmatpush1.bf16.msra.mxu0 %v9542
  %9706 = vmatprep.subr.bf16.mxu0 %v9549
  %9707 = vmatpush1.bf16.msra.mxu0 %v9548
  %9708 = vmatprep.subr.bf16.mxu0 %v9555
  %9709 = vmatpush1.bf16.msra.mxu0 %v9554
  %9710 = vmatprep.subr.bf16.mxu0 %v9561
  %9711 = vmatpush1.bf16.msra.mxu0 %v9560
  %9712 = vmatprep.subr.bf16.mxu0 0
  %9713 = vmatpush1.bf16.msra.mxu0 0
  %9714 = vmatprep.subr.bf16.mxu0 0
  %9715 = vmatpush1.bf16.msra.mxu0 0
  %9716 = vmatprep.subr.bf16.mxu0 0
  %9717 = vmatpush1.bf16.msra.mxu0 0
  %9718 = vmatprep.subr.bf16.mxu0 0
  %9719 = vmatpush1.bf16.msra.mxu0 0
  %9720 = vmatprep.subr.bf16.mxu0 0
  %9721 = vmatpush1.bf16.msra.mxu0 0
  %9722 = vmatprep.subr.bf16.mxu0 0
  %9723 = vmatpush1.bf16.msra.mxu0 0
  %9724 = vmatprep.subr.bf16.mxu0 0
  %9725 = vmatpush1.bf16.msra.mxu0 0
  %9726 = vmatprep.subr.bf16.mxu0 0
  %9727 = vmatpush1.bf16.msra.mxu0 0
  %9728 = vmatprep.mubr.bf16.mxu0 0
  %9729 = vmatmul.mubr.bf16.gmra.mrb[0].mxu0 %v9289
  %v9730 = vpop.f32.mrb[0].mxu0
  %v9731 = vadd.f32 %v9359, %v9730
  %v9732 = vpop.f32.mrb[0].mxu0
  %v9733 = vadd.f32 %v9363, %v9732
  %v9734 = vpop.f32.mrb[0].mxu0
  %v9735 = vadd.f32 %v9359, %v9734
  %v9736 = vpop.f32.mrb[0].mxu0
  %v9737 = vadd.f32 %v9363, %v9736
  %9738 = vdwg.mxu0
  %9739 = vst [vmem:[%s71] sm:$0xff] %v9645
  %9740 = vst [vmem:[%s71 + $0x8] sm:$0xff] %v9647
  %9741 = vst [vmem:[%s71 + $0x10] sm:$0xff] %v9688
  %9742 = vst [vmem:[%s71 + $0x18] sm:$0xff] %v9690
  %9743 = vst [vmem:[%s71 + $0x20] sm:$0xff] %v9731
  %9744 = vst [vmem:[%s71 + $0x28] sm:$0xff] %v9733
  %9745 = vst [vmem:[%s71 + $0x30] sm:$0xff] %v9649
  %9746 = vst [vmem:[%s71 + $0x38] sm:$0xff] %v9651
  %9747 = vst [vmem:[%s71 + $0x40] sm:$0xff] %v9692
  %9748 = vst [vmem:[%s71 + $0x48] sm:$0xff] %v9694
  %9749 = vst [vmem:[%s71 + $0x50] sm:$0xff] %v9735
  %9750 = vst [vmem:[%s71 + $0x58] sm:$0xff] %v9737
  %v9751 = vld [vmem:[%s5] sm:$0xff]
  %v9752 = vld [vmem:[%s5 + $0x8] sm:$0xff]
  %v9753 = vld [vmem:[%s5 + $0x10] sm:$0xff]
  %v9754 = vld [vmem:[%s5 + $0x18] sm:$0xff]
  %v9755 = vld [vmem:[%s5 + $0x20] sm:$0xff]
  %v9756 = vld [vmem:[%s5 + $0x28] sm:$0xff]
  %v9757 = vld [vmem:[%s5 + $0x30] sm:$0xff]
  %v9758 = vld [vmem:[%s5 + $0x38] sm:$0xff]
  %v9759 = vld [vmem:[%s5 + $0x40] sm:$0xff]
  %v9760 = vld [vmem:[%s5 + $0x48] sm:$0xff]
  %v9761 = vld [vmem:[%s5 + $0x50] sm:$0xff]
  %v9762 = vld [vmem:[%s5 + $0x58] sm:$0xff]
  %v9763 = vmul.f32 %v9751, 0.001
  %v9764 = vmul.f32 %v9752, 0.001
  %v9765 = vmul.f32 %v9753, 0.001
  %v9766 = vmul.f32 %v9754, 0.001
  %v9767 = vmul.f32 %v9755, 0.001
  %v9768 = vmul.f32 %v9756, 0.001
  %v9769 = vmul.f32 %v9757, 0.001
  %v9770 = vmul.f32 %v9758, 0.001
  %v9771 = vmul.f32 %v9759, 0.001
  %v9772 = vmul.f32 %v9760, 0.001
  %v9773 = vmul.f32 %v9761, 0.001
  %v9774 = vmul.f32 %v9762, 0.001
  %v9775 = vadd.f32 %v9645, %v9763
  %v9776 = vadd.f32 %v9647, %v9764
  %v9777 = vadd.f32 %v9688, %v9765
  %v9778 = vadd.f32 %v9690, %v9766
  %v9779 = vadd.f32 %v9731, %v9767
  %v9780 = vadd.f32 %v9733, %v9768
  %v9781 = vadd.f32 %v9649, %v9769
  %v9782 = vadd.f32 %v9651, %v9770
  %v9783 = vadd.f32 %v9692, %v9771
  %v9784 = vadd.f32 %v9694, %v9772
  %v9785 = vadd.f32 %v9735, %v9773
  %v9786 = vadd.f32 %v9737, %v9774
  %v9787 = vpack.c.bf16 %v9781, %v9775
  %v9788 = vpack.c.bf16 %v9782, %v9776
  %v9789 = vpack.c.bf16 %v9783, %v9777
  %v9790 = vpack.c.bf16 %v9784, %v9778
  %v9791 = vpack.c.bf16 %v9785, %v9779
  %v9792 = vpack.c.bf16 %v9786, %v9780
  %v9793 = vld [vmem:[%s59] sm:$0xf]
  %v9794 = vld [vmem:[%s59 + $0x4] sm:$0xf]
  %v9795 = vld [vmem:[%s59 + $0x8] sm:$0xf]
  %v9796 = vld [vmem:[%s59 + $0xc] sm:$0xf]
  %v9797 = vld [vmem:[%s59 + $0x10] sm:$0xf]
  %v9798 = vld [vmem:[%s59 + $0x14] sm:$0xf]
  %v9799 = vld [vmem:[%s59 + $0x18] sm:$0xf]
  %v9800 = vld [vmem:[%s59 + $0x1c] sm:$0xf]
  %v9801 = vld [vmem:[%s59 + $0x20] sm:$0xf]
  %v9802 = vld [vmem:[%s59 + $0x24] sm:$0xf]
  %v9803 = vld [vmem:[%s59 + $0x28] sm:$0xf]
  %v9804 = vld [vmem:[%s59 + $0x2c] sm:$0xf]
  %v9805 = vld [vmem:[%s59 + $0x30] sm:$0xf]
  %v9806 = vld [vmem:[%s59 + $0x34] sm:$0xf]
  %v9807 = vld [vmem:[%s59 + $0x38] sm:$0xf]
  %v9808 = vld [vmem:[%s59 + $0x3c] sm:$0xf]
  %v9809 = vld [vmem:[%s59 + $0x40] sm:$0xf]
  %v9810 = vld [vmem:[%s59 + $0x44] sm:$0xf]
  %v9811 = vld [vmem:[%s59 + $0x48] sm:$0xf]
  %v9812 = vld [vmem:[%s59 + $0x4c] sm:$0xf]
  %v9813 = vld [vmem:[%s59 + $0x50] sm:$0xf]
  %v9814 = vld [vmem:[%s59 + $0x54] sm:$0xf]
  %v9815 = vld [vmem:[%s59 + $0x58] sm:$0xf]
  %v9816 = vld [vmem:[%s59 + $0x5c] sm:$0xf]
  %v9817 = vld [vmem:[%s59 + $0x60] sm:$0xf]
  %v9818 = vld [vmem:[%s59 + $0x64] sm:$0xf]
  %v9819 = vld [vmem:[%s59 + $0x68] sm:$0xf]
  %v9820 = vld [vmem:[%s59 + $0x6c] sm:$0xf]
  %v9821 = vld [vmem:[%s59 + $0x70] sm:$0xf]
  %v9822 = vld [vmem:[%s59 + $0x74] sm:$0xf]
  %v9823 = vld [vmem:[%s59 + $0x78] sm:$0xf]
  %v9824 = vld [vmem:[%s59 + $0x7c] sm:$0xf]
  %v9825 = vld [vmem:[%s59 + $0x80] sm:$0xf]
  %v9826 = vld [vmem:[%s59 + $0x84] sm:$0xf]
  %v9827 = vld [vmem:[%s59 + $0x88] sm:$0xf]
  %v9828 = vld [vmem:[%s59 + $0x8c] sm:$0xf]
  %v9829 = vld [vmem:[%s59 + $0x90] sm:$0xf]
  %v9830 = vld [vmem:[%s59 + $0x94] sm:$0xf]
  %v9831 = vld [vmem:[%s59 + $0x98] sm:$0xf]
  %v9832 = vld [vmem:[%s59 + $0x9c] sm:$0xf]
  %v9833 = vld [vmem:[%s59 + $0xa0] sm:$0xf]
  %v9834 = vld [vmem:[%s59 + $0xa4] sm:$0xf]
  %v9835 = vld [vmem:[%s59 + $0xa8] sm:$0xf]
  %v9836 = vld [vmem:[%s59 + $0xac] sm:$0xf]
  %v9837 = vld [vmem:[%s59 + $0xb0] sm:$0xf]
  %v9838 = vld [vmem:[%s59 + $0xb4] sm:$0xf]
  %v9839 = vld [vmem:[%s59 + $0xb8] sm:$0xf]
  %v9840 = vld [vmem:[%s59 + $0xbc] sm:$0xf]
  %v9841 = vld [vmem:[%s59 + $0xc0] sm:$0xf]
  %v9842 = vld [vmem:[%s59 + $0xc4] sm:$0xf]
  %v9843 = vld [vmem:[%s59 + $0xc8] sm:$0xf]
  %v9844 = vld [vmem:[%s59 + $0xcc] sm:$0xf]
  %v9845 = vld [vmem:[%s59 + $0xd0] sm:$0xf]
  %v9846 = vld [vmem:[%s59 + $0xd4] sm:$0xf]
  %v9847 = vld [vmem:[%s59 + $0xd8] sm:$0xf]
  %v9848 = vld [vmem:[%s59 + $0xdc] sm:$0xf]
  %v9849 = vld [vmem:[%s59 + $0xe0] sm:$0xf]
  %v9850 = vld [vmem:[%s59 + $0xe4] sm:$0xf]
  %v9851 = vld [vmem:[%s59 + $0xe8] sm:$0xf]
  %v9852 = vld [vmem:[%s59 + $0xec] sm:$0xf]
  %v9853 = vld [vmem:[%s59 + $0xf0] sm:$0xf]
  %v9854 = vld [vmem:[%s59 + $0xf4] sm:$0xf]
  %v9855 = vld [vmem:[%s59 + $0xf8] sm:$0xf]
  %v9856 = vld [vmem:[%s59 + $0xfc] sm:$0xf]
  %v9857 = vld [vmem:[%s59 + $0x100] sm:$0xf]
  %v9858 = vld [vmem:[%s59 + $0x104] sm:$0xf]
  %v9859 = vld [vmem:[%s59 + $0x108] sm:$0xf]
  %v9860 = vld [vmem:[%s59 + $0x10c] sm:$0xf]
  %v9861 = vld [vmem:[%s59 + $0x110] sm:$0xf]
  %v9862 = vld [vmem:[%s59 + $0x114] sm:$0xf]
  %v9863 = vld [vmem:[%s59 + $0x118] sm:$0xf]
  %v9864 = vld [vmem:[%s59 + $0x11c] sm:$0xf]
  %v9865 = vld [vmem:[%s59 + $0x120] sm:$0xf]
  %v9866 = vld [vmem:[%s59 + $0x124] sm:$0xf]
  %v9867 = vld [vmem:[%s59 + $0x128] sm:$0xf]
  %v9868 = vld [vmem:[%s59 + $0x12c] sm:$0xf]
  %v9869 = vld [vmem:[%s59 + $0x130] sm:$0xf]
  %v9870 = vld [vmem:[%s59 + $0x134] sm:$0xf]
  %v9871 = vld [vmem:[%s59 + $0x138] sm:$0xf]
  %v9872 = vld [vmem:[%s59 + $0x13c] sm:$0xf]
  %v9873 = vld [vmem:[%s59 + $0x140] sm:$0xf]
  %v9874 = vld [vmem:[%s59 + $0x144] sm:$0xf]
  %v9875 = vld [vmem:[%s59 + $0x148] sm:$0xf]
  %v9876 = vld [vmem:[%s59 + $0x14c] sm:$0xf]
  %v9877 = vld [vmem:[%s59 + $0x150] sm:$0xf]
  %v9878 = vld [vmem:[%s59 + $0x154] sm:$0xf]
  %v9879 = vld [vmem:[%s59 + $0x158] sm:$0xf]
  %v9880 = vld [vmem:[%s59 + $0x15c] sm:$0xf]
  %v9881 = vld [vmem:[%s59 + $0x160] sm:$0xf]
  %v9882 = vld [vmem:[%s59 + $0x164] sm:$0xf]
  %v9883 = vld [vmem:[%s59 + $0x168] sm:$0xf]
  %v9884 = vld [vmem:[%s59 + $0x16c] sm:$0xf]
  %v9885 = vld [vmem:[%s59 + $0x170] sm:$0xf]
  %v9886 = vld [vmem:[%s59 + $0x174] sm:$0xf]
  %v9887 = vld [vmem:[%s59 + $0x178] sm:$0xf]
  %v9888 = vld [vmem:[%s59 + $0x17c] sm:$0xf]
  %v9889 = vld [vmem:[%s61] sm:$0x1]
  %v9891 = vlaneseq
  %v9892 = vshrl.u32 %v9891, 7
  %v9893 = vsub.s32 0, %v9892
  %v9894 = vrot.slane %v9889, %v9893
  %v9992 = vunpack.c.l.b16 %v9793
  %v9993 = vunpack.c.l.b16 %v9794
  %v9994 = vunpack.c.l.b16 %v9795
  %v9995 = vunpack.c.l.b16 %v9796
  %v9996 = vunpack.c.l.b16 %v9797
  %v9997 = vunpack.c.l.b16 %v9798
  %v9998 = vunpack.c.l.b16 %v9799
  %v9999 = vunpack.c.l.b16 %v9800
  %v10000 = vunpack.c.l.b16 %v9801
  %v10001 = vunpack.c.l.b16 %v9802
  %v10002 = vunpack.c.l.b16 %v9803
  %v10003 = vunpack.c.l.b16 %v9804
  %v10004 = vunpack.c.l.b16 %v9805
  %v10005 = vunpack.c.l.b16 %v9806
  %v10006 = vunpack.c.l.b16 %v9807
  %v10007 = vunpack.c.l.b16 %v9808
  %v10008 = vunpack.c.l.b16 %v9809
  %v10009 = vunpack.c.l.b16 %v9810
  %v10010 = vunpack.c.l.b16 %v9811
  %v10011 = vunpack.c.l.b16 %v9812
  %v10012 = vunpack.c.l.b16 %v9813
  %v10013 = vunpack.c.l.b16 %v9814
  %v10014 = vunpack.c.l.b16 %v9815
  %v10015 = vunpack.c.l.b16 %v9816
  %v10016 = vunpack.c.l.b16 %v9817
  %v10017 = vunpack.c.l.b16 %v9818
  %v10018 = vunpack.c.l.b16 %v9819
  %v10019 = vunpack.c.l.b16 %v9820
  %v10020 = vunpack.c.l.b16 %v9821
  %v10021 = vunpack.c.l.b16 %v9822
  %v10022 = vunpack.c.l.b16 %v9823
  %v10023 = vunpack.c.l.b16 %v9824
  %v10024 = vunpack.c.l.b16 %v9825
  %v10025 = vunpack.c.l.b16 %v9826
  %v10026 = vunpack.c.l.b16 %v9827
  %v10027 = vunpack.c.l.b16 %v9828
  %v10028 = vunpack.c.l.b16 %v9829
  %v10029 = vunpack.c.l.b16 %v9830
  %v10030 = vunpack.c.l.b16 %v9831
  %v10031 = vunpack.c.l.b16 %v9832
  %v10032 = vunpack.c.l.b16 %v9833
  %v10033 = vunpack.c.l.b16 %v9834
  %v10034 = vunpack.c.l.b16 %v9835
  %v10035 = vunpack.c.l.b16 %v9836
  %v10036 = vunpack.c.l.b16 %v9837
  %v10037 = vunpack.c.l.b16 %v9838
  %v10038 = vunpack.c.l.b16 %v9839
  %v10039 = vunpack.c.l.b16 %v9840
  %v10040 = vunpack.c.l.b16 %v9841
  %v10041 = vunpack.c.l.b16 %v9842
  %v10042 = vunpack.c.l.b16 %v9843
  %v10043 = vunpack.c.l.b16 %v9844
  %v10044 = vunpack.c.l.b16 %v9845
  %v10045 = vunpack.c.l.b16 %v9846
  %v10046 = vunpack.c.l.b16 %v9847
  %v10047 = vunpack.c.l.b16 %v9848
  %v10048 = vunpack.c.l.b16 %v9849
  %v10049 = vunpack.c.l.b16 %v9850
  %v10050 = vunpack.c.l.b16 %v9851
  %v10051 = vunpack.c.l.b16 %v9852
  %v10052 = vunpack.c.l.b16 %v9853
  %v10053 = vunpack.c.l.b16 %v9854
  %v10054 = vunpack.c.l.b16 %v9855
  %v10055 = vunpack.c.l.b16 %v9856
  %v10056 = vunpack.c.l.b16 %v9857
  %v10057 = vunpack.c.l.b16 %v9858
  %v10058 = vunpack.c.l.b16 %v9859
  %v10059 = vunpack.c.l.b16 %v9860
  %v10060 = vunpack.c.l.b16 %v9861
  %v10061 = vunpack.c.l.b16 %v9862
  %v10062 = vunpack.c.l.b16 %v9863
  %v10063 = vunpack.c.l.b16 %v9864
  %v10064 = vunpack.c.l.b16 %v9865
  %v10065 = vunpack.c.l.b16 %v9866
  %v10066 = vunpack.c.l.b16 %v9867
  %v10067 = vunpack.c.l.b16 %v9868
  %v10068 = vunpack.c.l.b16 %v9869
  %v10069 = vunpack.c.l.b16 %v9870
  %v10070 = vunpack.c.l.b16 %v9871
  %v10071 = vunpack.c.l.b16 %v9872
  %v10072 = vunpack.c.l.b16 %v9873
  %v10073 = vunpack.c.l.b16 %v9874
  %v10074 = vunpack.c.l.b16 %v9875
  %v10075 = vunpack.c.l.b16 %v9876
  %v10076 = vunpack.c.l.b16 %v9877
  %v10077 = vunpack.c.l.b16 %v9878
  %v10078 = vunpack.c.l.b16 %v9879
  %v10079 = vunpack.c.l.b16 %v9880
  %v10080 = vunpack.c.l.b16 %v9881
  %v10081 = vunpack.c.l.b16 %v9882
  %v10082 = vunpack.c.l.b16 %v9883
  %v10083 = vunpack.c.l.b16 %v9884
  %v10084 = vunpack.c.l.b16 %v9885
  %v10085 = vunpack.c.l.b16 %v9886
  %v10086 = vunpack.c.l.b16 %v9887
  %v10087 = vunpack.c.l.b16 %v9888
  %v10088 = vpack.c.b16 %v9993, %v9992
  %v10089 = vpack.c.b16 %v9995, %v9994
  %v10090 = vpack.c.b16 %v9997, %v9996
  %v10091 = vpack.c.b16 %v9999, %v9998
  %v10092 = vpack.c.b16 %v10001, %v10000
  %v10093 = vpack.c.b16 %v10003, %v10002
  %v10094 = vpack.c.b16 %v10005, %v10004
  %v10095 = vpack.c.b16 %v10007, %v10006
  %v10096 = vpack.c.b16 %v10009, %v10008
  %v10097 = vpack.c.b16 %v10011, %v10010
  %v10098 = vpack.c.b16 %v10013, %v10012
  %v10099 = vpack.c.b16 %v10015, %v10014
  %v10100 = vpack.c.b16 %v10017, %v10016
  %v10101 = vpack.c.b16 %v10019, %v10018
  %v10102 = vpack.c.b16 %v10021, %v10020
  %v10103 = vpack.c.b16 %v10023, %v10022
  %v10104 = vpack.c.b16 %v10025, %v10024
  %v10105 = vpack.c.b16 %v10027, %v10026
  %v10106 = vpack.c.b16 %v10029, %v10028
  %v10107 = vpack.c.b16 %v10031, %v10030
  %v10108 = vpack.c.b16 %v10033, %v10032
  %v10109 = vpack.c.b16 %v10035, %v10034
  %v10110 = vpack.c.b16 %v10037, %v10036
  %v10111 = vpack.c.b16 %v10039, %v10038
  %v10112 = vpack.c.b16 %v10041, %v10040
  %v10113 = vpack.c.b16 %v10043, %v10042
  %v10114 = vpack.c.b16 %v10045, %v10044
  %v10115 = vpack.c.b16 %v10047, %v10046
  %v10116 = vpack.c.b16 %v10049, %v10048
  %v10117 = vpack.c.b16 %v10051, %v10050
  %v10118 = vpack.c.b16 %v10053, %v10052
  %v10119 = vpack.c.b16 %v10055, %v10054
  %v10120 = vpack.c.b16 %v10057, %v10056
  %v10121 = vpack.c.b16 %v10059, %v10058
  %v10122 = vpack.c.b16 %v10061, %v10060
  %v10123 = vpack.c.b16 %v10063, %v10062
  %v10124 = vpack.c.b16 %v10065, %v10064
  %v10125 = vpack.c.b16 %v10067, %v10066
  %v10126 = vpack.c.b16 %v10069, %v10068
  %v10127 = vpack.c.b16 %v10071, %v10070
  %v10128 = vpack.c.b16 %v10073, %v10072
  %v10129 = vpack.c.b16 %v10075, %v10074
  %v10130 = vpack.c.b16 %v10077, %v10076
  %v10131 = vpack.c.b16 %v10079, %v10078
  %v10132 = vpack.c.b16 %v10081, %v10080
  %v10133 = vpack.c.b16 %v10083, %v10082
  %v10134 = vpack.c.b16 %v10085, %v10084
  %v10135 = vpack.c.b16 %v10087, %v10086
  %10184 = vmatprep.subr.bf16.mxu0 0
  %10185 = vmatpush1.bf16.msra.mxu0 %v10088
  %10186 = vmatprep.subr.bf16.mxu0 0
  %10187 = vmatpush1.bf16.msra.mxu0 %v10089
  %10188 = vmatprep.subr.bf16.mxu0 0
  %10189 = vmatpush1.bf16.msra.mxu0 %v10090
  %10190 = vmatprep.subr.bf16.mxu0 0
  %10191 = vmatpush1.bf16.msra.mxu0 %v10091
  %10192 = vmatprep.subr.bf16.mxu0 0
  %10193 = vmatpush1.bf16.msra.mxu0 %v10092
  %10194 = vmatprep.subr.bf16.mxu0 0
  %10195 = vmatpush1.bf16.msra.mxu0 %v10093
  %10196 = vmatprep.subr.bf16.mxu0 0
  %10197 = vmatpush1.bf16.msra.mxu0 %v10094
  %10198 = vmatprep.subr.bf16.mxu0 0
  %10199 = vmatpush1.bf16.msra.mxu0 %v10095
  %10200 = vmatprep.subr.bf16.mxu0 0
  %10201 = vmatpush1.bf16.msra.mxu0 %v10096
  %10202 = vmatprep.subr.bf16.mxu0 0
  %10203 = vmatpush1.bf16.msra.mxu0 %v10097
  %10204 = vmatprep.subr.bf16.mxu0 0
  %10205 = vmatpush1.bf16.msra.mxu0 %v10098
  %10206 = vmatprep.subr.bf16.mxu0 0
  %10207 = vmatpush1.bf16.msra.mxu0 %v10099
  %10208 = vmatprep.subr.bf16.mxu0 0
  %10209 = vmatpush1.bf16.msra.mxu0 %v10100
  %10210 = vmatprep.subr.bf16.mxu0 0
  %10211 = vmatpush1.bf16.msra.mxu0 %v10101
  %10212 = vmatprep.subr.bf16.mxu0 0
  %10213 = vmatpush1.bf16.msra.mxu0 %v10102
  %10214 = vmatprep.subr.bf16.mxu0 0
  %10215 = vmatpush1.bf16.msra.mxu0 %v10103
  %10216 = vmatprep.mubr.bf16.mxu0 %v9788
  %10217 = vmatmul.mubr.bf16.gmra.mrb[0].mxu0 %v9787
  %v10218 = vpop.f32.mrb[0].mxu0
  %v10219 = vadd.f32 %v9894, %v10218
  %v10220 = vpop.f32.mrb[0].mxu0
  %v10221 = vpop.f32.mrb[0].mxu0
  %v10222 = vadd.f32 %v9894, %v10221
  %v10223 = vpop.f32.mrb[0].mxu0
  %10224 = vdwg.mxu0
  %10225 = vmatprep.subr.bf16.mxu0 0
  %10226 = vmatpush1.bf16.msra.mxu0 %v10104
  %10227 = vmatprep.subr.bf16.mxu0 0
  %10228 = vmatpush1.bf16.msra.mxu0 %v10105
  %10229 = vmatprep.subr.bf16.mxu0 0
  %10230 = vmatpush1.bf16.msra.mxu0 %v10106
  %10231 = vmatprep.subr.bf16.mxu0 0
  %10232 = vmatpush1.bf16.msra.mxu0 %v10107
  %10233 = vmatprep.subr.bf16.mxu0 0
  %10234 = vmatpush1.bf16.msra.mxu0 %v10108
  %10235 = vmatprep.subr.bf16.mxu0 0
  %10236 = vmatpush1.bf16.msra.mxu0 %v10109
  %10237 = vmatprep.subr.bf16.mxu0 0
  %10238 = vmatpush1.bf16.msra.mxu0 %v10110
  %10239 = vmatprep.subr.bf16.mxu0 0
  %10240 = vmatpush1.bf16.msra.mxu0 %v10111
  %10241 = vmatprep.subr.bf16.mxu0 0
  %10242 = vmatpush1.bf16.msra.mxu0 %v10112
  %10243 = vmatprep.subr.bf16.mxu0 0
  %10244 = vmatpush1.bf16.msra.mxu0 %v10113
  %10245 = vmatprep.subr.bf16.mxu0 0
  %10246 = vmatpush1.bf16.msra.mxu0 %v10114
  %10247 = vmatprep.subr.bf16.mxu0 0
  %10248 = vmatpush1.bf16.msra.mxu0 %v10115
  %10249 = vmatprep.subr.bf16.mxu0 0
  %10250 = vmatpush1.bf16.msra.mxu0 %v10116
  %10251 = vmatprep.subr.bf16.mxu0 0
  %10252 = vmatpush1.bf16.msra.mxu0 %v10117
  %10253 = vmatprep.subr.bf16.mxu0 0
  %10254 = vmatpush1.bf16.msra.mxu0 %v10118
  %10255 = vmatprep.subr.bf16.mxu0 0
  %10256 = vmatpush1.bf16.msra.mxu0 %v10119
  %10257 = vmatprep.mubr.bf16.mxu0 %v9790
  %10258 = vmatmul.mubr.bf16.gmra.mrb[0].mxu0 %v9789
  %v10259 = vpop.f32.mrb[0].mxu0
  %v10260 = vadd.f32 %v10219, %v10259
  %v10261 = vpop.f32.mrb[0].mxu0
  %v10262 = vpop.f32.mrb[0].mxu0
  %v10263 = vadd.f32 %v10222, %v10262
  %v10264 = vpop.f32.mrb[0].mxu0
  %10265 = vdwg.mxu0
  %10266 = vmatprep.subr.bf16.mxu0 0
  %10267 = vmatpush1.bf16.msra.mxu0 %v10120
  %10268 = vmatprep.subr.bf16.mxu0 0
  %10269 = vmatpush1.bf16.msra.mxu0 %v10121
  %10270 = vmatprep.subr.bf16.mxu0 0
  %10271 = vmatpush1.bf16.msra.mxu0 %v10122
  %10272 = vmatprep.subr.bf16.mxu0 0
  %10273 = vmatpush1.bf16.msra.mxu0 %v10123
  %10274 = vmatprep.subr.bf16.mxu0 0
  %10275 = vmatpush1.bf16.msra.mxu0 %v10124
  %10276 = vmatprep.subr.bf16.mxu0 0
  %10277 = vmatpush1.bf16.msra.mxu0 %v10125
  %10278 = vmatprep.subr.bf16.mxu0 0
  %10279 = vmatpush1.bf16.msra.mxu0 %v10126
  %10280 = vmatprep.subr.bf16.mxu0 0
  %10281 = vmatpush1.bf16.msra.mxu0 %v10127
  %10282 = vmatprep.subr.bf16.mxu0 0
  %10283 = vmatpush1.bf16.msra.mxu0 %v10128
  %10284 = vmatprep.subr.bf16.mxu0 0
  %10285 = vmatpush1.bf16.msra.mxu0 %v10129
  %10286 = vmatprep.subr.bf16.mxu0 0
  %10287 = vmatpush1.bf16.msra.mxu0 %v10130
  %10288 = vmatprep.subr.bf16.mxu0 0
  %10289 = vmatpush1.bf16.msra.mxu0 %v10131
  %10290 = vmatprep.subr.bf16.mxu0 0
  %10291 = vmatpush1.bf16.msra.mxu0 %v10132
  %10292 = vmatprep.subr.bf16.mxu0 0
  %10293 = vmatpush1.bf16.msra.mxu0 %v10133
  %10294 = vmatprep.subr.bf16.mxu0 0
  %10295 = vmatpush1.bf16.msra.mxu0 %v10134
  %10296 = vmatprep.subr.bf16.mxu0 0
  %10297 = vmatpush1.bf16.msra.mxu0 %v10135
  %10298 = vmatprep.mubr.bf16.mxu0 %v9792
  %10299 = vmatmul.mubr.bf16.gmra.mrb[0].mxu0 %v9791
  %v10300 = vpop.f32.mrb[0].mxu0
  %v10301 = vadd.f32 %v10260, %v10300
  %v10302 = vpop.f32.mrb[0].mxu0
  %v10303 = vpop.f32.mrb[0].mxu0
  %v10304 = vadd.f32 %v10263, %v10303
  %v10305 = vpop.f32.mrb[0].mxu0
  %10306 = vdwg.mxu0
  %v10307 = vld [vmem:[%s63] sm:$0x1]
  %v10308 = vld [vmem:[%s65] sm:$0x1]
  %v10309 = vrot.slane %v10301, 4
  %v10310 = vadd.f32 %v10301, %v10309
  %v10311 = vrot.slane %v10310, 2
  %v10312 = vadd.f32 %v10310, %v10311
  %v10313 = vrot.slane %v10312, 1
  %v10314 = vadd.f32 %v10312, %v10313
  %v10315 = vmul.f32 %v10314, %v2590
  %v10316 = vmul.f32 %v10301, %v10301
  %v10317 = vrot.slane %v10316, 4
  %v10318 = vadd.f32 %v10316, %v10317
  %v10319 = vrot.slane %v10318, 2
  %v10320 = vadd.f32 %v10318, %v10319
  %v10321 = vrot.slane %v10320, 1
  %v10322 = vadd.f32 %v10320, %v10321
  %v10323 = vmul.f32 %v10322, %v2590
  %v10324 = vmul.f32 %v10315, %v10315
  %v10325 = vsub.f32 %v10323, %v10324
  %v10326 = vmax.f32 %v10325, 0.0
  %v10327 = vsub.f32 %v10301, %v10315
  %v10328 = vadd.f32 %v10326, 1e-05
  %v10329 = vrsqrt.pop %v10328
  %v10330 = vmul.f32 %v10327, %v10329
  %v10332 = vlaneseq
  %v10333 = vshrl.u32 %v10332, 7
  %v10334 = vsub.s32 0, %v10333
  %v10335 = vrot.slane %v10307, %v10334
  %v10337 = vmul.f32 %v10330, %v10335
  %v10339 = vlaneseq
  %v10340 = vshrl.u32 %v10339, 7
  %v10341 = vsub.s32 0, %v10340
  %v10342 = vrot.slane %v10308, %v10341
  %v10344 = vadd.f32 %v10337, %v10342
  %v10345 = vmax.f32 %v10344, 0.0
  %v10346 = vrot.slane %v10304, 4
  %v10347 = vadd.f32 %v10304, %v10346
  %v10348 = vrot.slane %v10347, 2
  %v10349 = vadd.f32 %v10347, %v10348
  %v10350 = vrot.slane %v10349, 1
  %v10351 = vadd.f32 %v10349, %v10350
  %v10352 = vmul.f32 %v10351, %v2590
  %v10353 = vmul.f32 %v10304, %v10304
  %v10354 = vrot.slane %v10353, 4
  %v10355 = vadd.f32 %v10353, %v10354
  %v10356 = vrot.slane %v10355, 2
  %v10357 = vadd.f32 %v10355, %v10356
  %v10358 = vrot.slane %v10357, 1
  %v10359 = vadd.f32 %v10357, %v10358
  %v10360 = vmul.f32 %v10359, %v2590
  %v10361 = vmul.f32 %v10352, %v10352
  %v10362 = vsub.f32 %v10360, %v10361
  %v10363 = vmax.f32 %v10362, 0.0
  %v10364 = vsub.f32 %v10304, %v10352
  %v10365 = vadd.f32 %v10363, 1e-05
  %v10366 = vrsqrt.pop %v10365
  %v10367 = vmul.f32 %v10364, %v10366
  %v10368 = vmul.f32 %v10367, %v10335
  %v10369 = vadd.f32 %v10368, %v10342
  %v10370 = vmax.f32 %v10369, 0.0
  %v10371 = vpack.c.bf16 %v10370, %v10345
  %v10372 = vld [vmem:[%s67] sm:$0xff]
  %v10373 = vld [vmem:[%s67 + $0x8] sm:$0xff]
  %v10374 = vld [vmem:[%s67 + $0x10] sm:$0xff]
  %v10375 = vld [vmem:[%s67 + $0x18] sm:$0xff]
  %v10376 = vld [vmem:[%s67 + $0x20] sm:$0xff]
  %v10377 = vld [vmem:[%s67 + $0x28] sm:$0xff]
  %v10378 = vld [vmem:[%s67 + $0x30] sm:$0xff]
  %v10379 = vld [vmem:[%s67 + $0x38] sm:$0xff]
  %v10380 = vld [vmem:[%s67 + $0x40] sm:$0xff]
  %v10381 = vld [vmem:[%s67 + $0x48] sm:$0xff]
  %v10382 = vld [vmem:[%s67 + $0x50] sm:$0xff]
  %v10383 = vld [vmem:[%s67 + $0x58] sm:$0xff]
  %v10384 = vld [vmem:[%s67 + $0x60] sm:$0xff]
  %v10385 = vld [vmem:[%s67 + $0x68] sm:$0xff]
  %v10386 = vld [vmem:[%s67 + $0x70] sm:$0xff]
  %v10387 = vld [vmem:[%s67 + $0x78] sm:$0xff]
  %v10388 = vld [vmem:[%s67 + $0x80] sm:$0xff]
  %v10389 = vld [vmem:[%s67 + $0x88] sm:$0xff]
  %v10390 = vld [vmem:[%s67 + $0x90] sm:$0xff]
  %v10391 = vld [vmem:[%s67 + $0x98] sm:$0xff]
  %v10392 = vld [vmem:[%s67 + $0xa0] sm:$0xff]
  %v10393 = vld [vmem:[%s67 + $0xa8] sm:$0xff]
  %v10394 = vld [vmem:[%s67 + $0xb0] sm:$0xff]
  %v10395 = vld [vmem:[%s67 + $0xb8] sm:$0xff]
  %v10396 = vld [vmem:[%s67 + $0xc0] sm:$0xff]
  %v10397 = vld [vmem:[%s67 + $0xc8] sm:$0xff]
  %v10398 = vld [vmem:[%s67 + $0xd0] sm:$0xff]
  %v10399 = vld [vmem:[%s67 + $0xd8] sm:$0xff]
  %v10400 = vld [vmem:[%s67 + $0xe0] sm:$0xff]
  %v10401 = vld [vmem:[%s67 + $0xe8] sm:$0xff]
  %v10402 = vld [vmem:[%s67 + $0xf0] sm:$0xff]
  %v10403 = vld [vmem:[%s67 + $0xf8] sm:$0xff]
  %v10404 = vld [vmem:[%s67 + $0x100] sm:$0xff]
  %v10405 = vld [vmem:[%s67 + $0x108] sm:$0xff]
  %v10406 = vld [vmem:[%s67 + $0x110] sm:$0xff]
  %v10407 = vld [vmem:[%s67 + $0x118] sm:$0xff]
  %v10408 = vld [vmem:[%s67 + $0x120] sm:$0xff]
  %v10409 = vld [vmem:[%s67 + $0x128] sm:$0xff]
  %v10410 = vld [vmem:[%s67 + $0x130] sm:$0xff]
  %v10411 = vld [vmem:[%s67 + $0x138] sm:$0xff]
  %v10412 = vld [vmem:[%s67 + $0x140] sm:$0xff]
  %v10413 = vld [vmem:[%s67 + $0x148] sm:$0xff]
  %v10414 = vld [vmem:[%s67 + $0x150] sm:$0xff]
  %v10415 = vld [vmem:[%s67 + $0x158] sm:$0xff]
  %v10416 = vld [vmem:[%s67 + $0x160] sm:$0xff]
  %v10417 = vld [vmem:[%s67 + $0x168] sm:$0xff]
  %v10418 = vld [vmem:[%s67 + $0x170] sm:$0xff]
  %v10419 = vld [vmem:[%s67 + $0x178] sm:$0xff]
  %v10420 = vld [vmem:[%s69] sm:$0x3f]
  %v10422 = vlaneseq
  %v10423 = vshrl.u32 %v10422, 7
  %v10424 = vsub.s32 0, %v10423
  %v10425 = vrot.slane %v10420, %v10424
  %v10426 = vlaneseq
  %v10427 = vshrl.u32 %v10426, 7
  %v10428 = vsub.s32 1, %v10427
  %v10429 = vrot.slane %v10420, %v10428
  %v10430 = vlaneseq
  %v10431 = vshrl.u32 %v10430, 7
  %v10432 = vsub.s32 2, %v10431
  %v10433 = vrot.slane %v10420, %v10432
  %v10434 = vlaneseq
  %v10435 = vshrl.u32 %v10434, 7
  %v10436 = vsub.s32 3, %v10435
  %v10437 = vrot.slane %v10420, %v10436
  %v10438 = vlaneseq
  %v10439 = vshrl.u32 %v10438, 7
  %v10440 = vsub.s32 4, %v10439
  %v10441 = vrot.slane %v10420, %v10440
  %v10442 = vlaneseq
  %v10443 = vshrl.u32 %v10442, 7
  %v10444 = vsub.s32 5, %v10443
  %v10445 = vrot.slane %v10420, %v10444
  %v10500 = vunpack.c.l.b16 %v10372
  %v10501 = vunpack.c.h.b16 %v10372
  %v10502 = vunpack.c.l.b16 %v10373
  %v10503 = vunpack.c.h.b16 %v10373
  %v10504 = vunpack.c.l.b16 %v10374
  %v10505 = vunpack.c.h.b16 %v10374
  %v10506 = vunpack.c.l.b16 %v10375
  %v10507 = vunpack.c.h.b16 %v10375
  %v10508 = vunpack.c.l.b16 %v10376
  %v10509 = vunpack.c.h.b16 %v10376
  %v10510 = vunpack.c.l.b16 %v10377
  %v10511 = vunpack.c.h.b16 %v10377
  %v10512 = vunpack.c.l.b16 %v10378
  %v10513 = vunpack.c.h.b16 %v10378
  %v10514 = vunpack.c.l.b16 %v10379
  %v10515 = vunpack.c.h.b16 %v10379
  %v10516 = vunpack.c.l.b16 %v10380
  %v10517 = vunpack.c.h.b16 %v10380
  %v10518 = vunpack.c.l.b16 %v10381
  %v10519 = vunpack.c.h.b16 %v10381
  %v10520 = vunpack.c.l.b16 %v10382
  %v10521 = vunpack.c.h.b16 %v10382
  %v10522 = vunpack.c.l.b16 %v10383
  %v10523 = vunpack.c.h.b16 %v10383
  %v10524 = vunpack.c.l.b16 %v10384
  %v10525 = vunpack.c.h.b16 %v10384
  %v10526 = vunpack.c.l.b16 %v10385
  %v10527 = vunpack.c.h.b16 %v10385
  %v10528 = vunpack.c.l.b16 %v10386
  %v10529 = vunpack.c.h.b16 %v10386
  %v10530 = vunpack.c.l.b16 %v10387
  %v10531 = vunpack.c.h.b16 %v10387
  %v10532 = vunpack.c.l.b16 %v10388
  %v10533 = vunpack.c.h.b16 %v10388
  %v10534 = vunpack.c.l.b16 %v10389
  %v10535 = vunpack.c.h.b16 %v10389
  %v10536 = vunpack.c.l.b16 %v10390
  %v10537 = vunpack.c.h.b16 %v10390
  %v10538 = vunpack.c.l.b16 %v10391
  %v10539 = vunpack.c.h.b16 %v10391
  %v10540 = vunpack.c.l.b16 %v10392
  %v10541 = vunpack.c.h.b16 %v10392
  %v10542 = vunpack.c.l.b16 %v10393
  %v10543 = vunpack.c.h.b16 %v10393
  %v10544 = vunpack.c.l.b16 %v10394
  %v10545 = vunpack.c.h.b16 %v10394
  %v10546 = vunpack.c.l.b16 %v10395
  %v10547 = vunpack.c.h.b16 %v10395
  %v10548 = vunpack.c.l.b16 %v10396
  %v10549 = vunpack.c.h.b16 %v10396
  %v10550 = vunpack.c.l.b16 %v10397
  %v10551 = vunpack.c.h.b16 %v10397
  %v10552 = vunpack.c.l.b16 %v10398
  %v10553 = vunpack.c.h.b16 %v10398
  %v10554 = vunpack.c.l.b16 %v10399
  %v10555 = vunpack.c.h.b16 %v10399
  %v10556 = vunpack.c.l.b16 %v10400
  %v10557 = vunpack.c.h.b16 %v10400
  %v10558 = vunpack.c.l.b16 %v10401
  %v10559 = vunpack.c.h.b16 %v10401
  %v10560 = vunpack.c.l.b16 %v10402
  %v10561 = vunpack.c.h.b16 %v10402
  %v10562 = vunpack.c.l.b16 %v10403
  %v10563 = vunpack.c.h.b16 %v10403
  %v10564 = vunpack.c.l.b16 %v10404
  %v10565 = vunpack.c.h.b16 %v10404
  %v10566 = vunpack.c.l.b16 %v10405
  %v10567 = vunpack.c.h.b16 %v10405
  %v10568 = vunpack.c.l.b16 %v10406
  %v10569 = vunpack.c.h.b16 %v10406
  %v10570 = vunpack.c.l.b16 %v10407
  %v10571 = vunpack.c.h.b16 %v10407
  %v10572 = vunpack.c.l.b16 %v10408
  %v10573 = vunpack.c.h.b16 %v10408
  %v10574 = vunpack.c.l.b16 %v10409
  %v10575 = vunpack.c.h.b16 %v10409
  %v10576 = vunpack.c.l.b16 %v10410
  %v10577 = vunpack.c.h.b16 %v10410
  %v10578 = vunpack.c.l.b16 %v10411
  %v10579 = vunpack.c.h.b16 %v10411
  %v10580 = vunpack.c.l.b16 %v10412
  %v10581 = vunpack.c.h.b16 %v10412
  %v10582 = vunpack.c.l.b16 %v10413
  %v10583 = vunpack.c.h.b16 %v10413
  %v10584 = vunpack.c.l.b16 %v10414
  %v10585 = vunpack.c.h.b16 %v10414
  %v10586 = vunpack.c.l.b16 %v10415
  %v10587 = vunpack.c.h.b16 %v10415
  %v10588 = vunpack.c.l.b16 %v10416
  %v10589 = vunpack.c.h.b16 %v10416
  %v10590 = vunpack.c.l.b16 %v10417
  %v10591 = vunpack.c.h.b16 %v10417
  %v10592 = vunpack.c.l.b16 %v10418
  %v10593 = vunpack.c.h.b16 %v10418
  %v10594 = vunpack.c.l.b16 %v10419
  %v10595 = vunpack.c.h.b16 %v10419
  %v10596 = vpack.c.b16 %v10506, %v10500
  %v10597 = vpack.c.b16 %v10507, %v10501
  %v10598 = vpack.c.b16 %v10508, %v10502
  %v10599 = vpack.c.b16 %v10509, %v10503
  %v10600 = vpack.c.b16 %v10510, %v10504
  %v10601 = vpack.c.b16 %v10511, %v10505
  %v10602 = vpack.c.b16 %v10518, %v10512
  %v10603 = vpack.c.b16 %v10519, %v10513
  %v10604 = vpack.c.b16 %v10520, %v10514
  %v10605 = vpack.c.b16 %v10521, %v10515
  %v10606 = vpack.c.b16 %v10522, %v10516
  %v10607 = vpack.c.b16 %v10523, %v10517
  %v10608 = vpack.c.b16 %v10530, %v10524
  %v10609 = vpack.c.b16 %v10531, %v10525
  %v10610 = vpack.c.b16 %v10532, %v10526
  %v10611 = vpack.c.b16 %v10533, %v10527
  %v10612 = vpack.c.b16 %v10534, %v10528
  %v10613 = vpack.c.b16 %v10535, %v10529
  %v10614 = vpack.c.b16 %v10542, %v10536
  %v10615 = vpack.c.b16 %v10543, %v10537
  %v10616 = vpack.c.b16 %v10544, %v10538
  %v10617 = vpack.c.b16 %v10545, %v10539
  %v10618 = vpack.c.b16 %v10546, %v10540
  %v10619 = vpack.c.b16 %v10547, %v10541
  %v10620 = vpack.c.b16 %v10554, %v10548
  %v10621 = vpack.c.b16 %v10555, %v10549
  %v10622 = vpack.c.b16 %v10556, %v10550
  %v10623 = vpack.c.b16 %v10557, %v10551
  %v10624 = vpack.c.b16 %v10558, %v10552
  %v10625 = vpack.c.b16 %v10559, %v10553
  %v10626 = vpack.c.b16 %v10566, %v10560
  %v10627 = vpack.c.b16 %v10567, %v10561
  %v10628 = vpack.c.b16 %v10568, %v10562
  %v10629 = vpack.c.b16 %v10569, %v10563
  %v10630 = vpack.c.b16 %v10570, %v10564
  %v10631 = vpack.c.b16 %v10571, %v10565
  %v10632 = vpack.c.b16 %v10578, %v10572
  %v10633 = vpack.c.b16 %v10579, %v10573
  %v10634 = vpack.c.b16 %v10580, %v10574
  %v10635 = vpack.c.b16 %v10581, %v10575
  %v10636 = vpack.c.b16 %v10582, %v10576
  %v10637 = vpack.c.b16 %v10583, %v10577
  %v10638 = vpack.c.b16 %v10590, %v10584
  %v10639 = vpack.c.b16 %v10591, %v10585
  %v10640 = vpack.c.b16 %v10592, %v10586
  %v10641 = vpack.c.b16 %v10593, %v10587
  %v10642 = vpack.c.b16 %v10594, %v10588
  %v10643 = vpack.c.b16 %v10595, %v10589
  %10692 = vmatprep.subr.bf16.mxu0 %v10597
  %10693 = vmatpush1.bf16.msra.mxu0 %v10596
  %10694 = vmatprep.subr.bf16.mxu0 %v10603
  %10695 = vmatpush1.bf16.msra.mxu0 %v10602
  %10696 = vmatprep.subr.bf16.mxu0 %v10609
  %10697 = vmatpush1.bf16.msra.mxu0 %v10608
  %10698 = vmatprep.subr.bf16.mxu0 %v10615
  %10699 = vmatpush1.bf16.msra.mxu0 %v10614
  %10700 = vmatprep.subr.bf16.mxu0 %v10621
  %10701 = vmatpush1.bf16.msra.mxu0 %v10620
  %10702 = vmatprep.subr.bf16.mxu0 %v10627
  %10703 = vmatpush1.bf16.msra.mxu0 %v10626
  %10704 = vmatprep.subr.bf16.mxu0 %v10633
  %10705 = vmatpush1.bf16.msra.mxu0 %v10632
  %10706 = vmatprep.subr.bf16.mxu0 %v10639
  %10707 = vmatpush1.bf16.msra.mxu0 %v10638
  %10708 = vmatprep.subr.bf16.mxu0 0
  %10709 = vmatpush1.bf16.msra.mxu0 0
  %10710 = vmatprep.subr.bf16.mxu0 0
  %10711 = vmatpush1.bf16.msra.mxu0 0
  %10712 = vmatprep.subr.bf16.mxu0 0
  %10713 = vmatpush1.bf16.msra.mxu0 0
  %10714 = vmatprep.subr.bf16.mxu0 0
  %10715 = vmatpush1.bf16.msra.mxu0 0
  %10716 = vmatprep.subr.bf16.mxu0 0
  %10717 = vmatpush1.bf16.msra.mxu0 0
  %10718 = vmatprep.subr.bf16.mxu0 0
  %10719 = vmatpush1.bf16.msra.mxu0 0
  %10720 = vmatprep.subr.bf16.mxu0 0
  %10721 = vmatpush1.bf16.msra.mxu0 0
  %10722 = vmatprep.subr.bf16.mxu0 0
  %10723 = vmatpush1.bf16.msra.mxu0 0
  %10724 = vmatprep.mubr.bf16.mxu0 0
  %10725 = vmatmul.mubr.bf16.gmra.mrb[0].mxu0 %v10371
  %v10726 = vpop.f32.mrb[0].mxu0
  %v10727 = vadd.f32 %v10425, %v10726
  %v10728 = vpop.f32.mrb[0].mxu0
  %v10729 = vadd.f32 %v10429, %v10728
  %v10730 = vpop.f32.mrb[0].mxu0
  %v10731 = vadd.f32 %v10425, %v10730
  %v10732 = vpop.f32.mrb[0].mxu0
  %v10733 = vadd.f32 %v10429, %v10732
  %10734 = vdwg.mxu0
  %10735 = vmatprep.subr.bf16.mxu0 %v10599
  %10736 = vmatpush1.bf16.msra.mxu0 %v10598
  %10737 = vmatprep.subr.bf16.mxu0 %v10605
  %10738 = vmatpush1.bf16.msra.mxu0 %v10604
  %10739 = vmatprep.subr.bf16.mxu0 %v10611
  %10740 = vmatpush1.bf16.msra.mxu0 %v10610
  %10741 = vmatprep.subr.bf16.mxu0 %v10617
  %10742 = vmatpush1.bf16.msra.mxu0 %v10616
  %10743 = vmatprep.subr.bf16.mxu0 %v10623
  %10744 = vmatpush1.bf16.msra.mxu0 %v10622
  %10745 = vmatprep.subr.bf16.mxu0 %v10629
  %10746 = vmatpush1.bf16.msra.mxu0 %v10628
  %10747 = vmatprep.subr.bf16.mxu0 %v10635
  %10748 = vmatpush1.bf16.msra.mxu0 %v10634
  %10749 = vmatprep.subr.bf16.mxu0 %v10641
  %10750 = vmatpush1.bf16.msra.mxu0 %v10640
  %10751 = vmatprep.subr.bf16.mxu0 0
  %10752 = vmatpush1.bf16.msra.mxu0 0
  %10753 = vmatprep.subr.bf16.mxu0 0
  %10754 = vmatpush1.bf16.msra.mxu0 0
  %10755 = vmatprep.subr.bf16.mxu0 0
  %10756 = vmatpush1.bf16.msra.mxu0 0
  %10757 = vmatprep.subr.bf16.mxu0 0
  %10758 = vmatpush1.bf16.msra.mxu0 0
  %10759 = vmatprep.subr.bf16.mxu0 0
  %10760 = vmatpush1.bf16.msra.mxu0 0
  %10761 = vmatprep.subr.bf16.mxu0 0
  %10762 = vmatpush1.bf16.msra.mxu0 0
  %10763 = vmatprep.subr.bf16.mxu0 0
  %10764 = vmatpush1.bf16.msra.mxu0 0
  %10765 = vmatprep.subr.bf16.mxu0 0
  %10766 = vmatpush1.bf16.msra.mxu0 0
  %10767 = vmatprep.mubr.bf16.mxu0 0
  %10768 = vmatmul.mubr.bf16.gmra.mrb[0].mxu0 %v10371
  %v10769 = vpop.f32.mrb[0].mxu0
  %v10770 = vadd.f32 %v10433, %v10769
  %v10771 = vpop.f32.mrb[0].mxu0
  %v10772 = vadd.f32 %v10437, %v10771
  %v10773 = vpop.f32.mrb[0].mxu0
  %v10774 = vadd.f32 %v10433, %v10773
  %v10775 = vpop.f32.mrb[0].mxu0
  %v10776 = vadd.f32 %v10437, %v10775
  %10777 = vdwg.mxu0
  %10778 = vmatprep.subr.bf16.mxu0 %v10601
  %10779 = vmatpush1.bf16.msra.mxu0 %v10600
  %10780 = vmatprep.subr.bf16.mxu0 %v10607
  %10781 = vmatpush1.bf16.msra.mxu0 %v10606
  %10782 = vmatprep.subr.bf16.mxu0 %v10613
  %10783 = vmatpush1.bf16.msra.mxu0 %v10612
  %10784 = vmatprep.subr.bf16.mxu0 %v10619
  %10785 = vmatpush1.bf16.msra.mxu0 %v10618
  %10786 = vmatprep.subr.bf16.mxu0 %v10625
  %10787 = vmatpush1.bf16.msra.mxu0 %v10624
  %10788 = vmatprep.subr.bf16.mxu0 %v10631
  %10789 = vmatpush1.bf16.msra.mxu0 %v10630
  %10790 = vmatprep.subr.bf16.mxu0 %v10637
  %10791 = vmatpush1.bf16.msra.mxu0 %v10636
  %10792 = vmatprep.subr.bf16.mxu0 %v10643
  %10793 = vmatpush1.bf16.msra.mxu0 %v10642
  %10794 = vmatprep.subr.bf16.mxu0 0
  %10795 = vmatpush1.bf16.msra.mxu0 0
  %10796 = vmatprep.subr.bf16.mxu0 0
  %10797 = vmatpush1.bf16.msra.mxu0 0
  %10798 = vmatprep.subr.bf16.mxu0 0
  %10799 = vmatpush1.bf16.msra.mxu0 0
  %10800 = vmatprep.subr.bf16.mxu0 0
  %10801 = vmatpush1.bf16.msra.mxu0 0
  %10802 = vmatprep.subr.bf16.mxu0 0
  %10803 = vmatpush1.bf16.msra.mxu0 0
  %10804 = vmatprep.subr.bf16.mxu0 0
  %10805 = vmatpush1.bf16.msra.mxu0 0
  %10806 = vmatprep.subr.bf16.mxu0 0
  %10807 = vmatpush1.bf16.msra.mxu0 0
  %10808 = vmatprep.subr.bf16.mxu0 0
  %10809 = vmatpush1.bf16.msra.mxu0 0
  %10810 = vmatprep.mubr.bf16.mxu0 0
  %10811 = vmatmul.mubr.bf16.gmra.mrb[0].mxu0 %v10371
  %v10812 = vpop.f32.mrb[0].mxu0
  %v10813 = vadd.f32 %v10441, %v10812
  %v10814 = vpop.f32.mrb[0].mxu0
  %v10815 = vadd.f32 %v10445, %v10814
  %v10816 = vpop.f32.mrb[0].mxu0
  %v10817 = vadd.f32 %v10441, %v10816
  %v10818 = vpop.f32.mrb[0].mxu0
  %v10819 = vadd.f32 %v10445, %v10818
  %10820 = vdwg.mxu0
  %10821 = vst [vmem:[%s73] sm:$0xff] %v10727
  %10822 = vst [vmem:[%s73 + $0x8] sm:$0xff] %v10729
  %10823 = vst [vmem:[%s73 + $0x10] sm:$0xff] %v10770
  %10824 = vst [vmem:[%s73 + $0x18] sm:$0xff] %v10772
  %10825 = vst [vmem:[%s73 + $0x20] sm:$0xff] %v10813
  %10826 = vst [vmem:[%s73 + $0x28] sm:$0xff] %v10815
  %10827 = vst [vmem:[%s73 + $0x30] sm:$0xff] %v10731
  %10828 = vst [vmem:[%s73 + $0x38] sm:$0xff] %v10733
  %10829 = vst [vmem:[%s73 + $0x40] sm:$0xff] %v10774
  %10830 = vst [vmem:[%s73 + $0x48] sm:$0xff] %v10776
  %10831 = vst [vmem:[%s73 + $0x50] sm:$0xff] %v10817
  %10832 = vst [vmem:[%s73 + $0x58] sm:$0xff] %v10819
  // Predicated region
  $region142: #{net_forward.1} parent=0 // pred_check
    _
  $region143: #{net_forward.1} parent=0 // pred_check_branch
    %10834 = sbr.rel (0) target = $region145
  $region144: #{net_forward.1} parent=0 // pred_region
    _
  $region145: #{net_forward.1} parent=0 // pred_fallthru
    _
  // Predicated region
  $region146: #{net_forward.1} parent=0 // pred_check
    _
  $region147: #{net_forward.1} parent=0 // pred_check_branch
    %10836 = sbr.rel (0) target = $region149
  $region148: #{net_forward.1} parent=0 // pred_region
    _
  $region149: #{net_forward.1} parent=0 // pred_fallthru
    _
  // Predicated region
  $region150: #{net_forward.1} parent=0 // pred_check
    _
  $region151: #{net_forward.1} parent=0 // pred_check_branch
    %10838 = sbr.rel (0) target = $region153
  $region152: #{net_forward.1} parent=0 // pred_region
    _
  $region153: #{net_forward.1} parent=0 // pred_fallthru
    _
  // Predicated region
  $region154: #{net_forward.1} parent=0 // pred_check
    _
  $region155: #{net_forward.1} parent=0 // pred_check_branch
    %10840 = sbr.rel (0) target = $region157
  $region156: #{net_forward.1} parent=0 // pred_region
    _
  $region157: #{net_forward.1} parent=0 // pred_fallthru
    _

</llo_original>
